<compile_context>
chip_gen: v7x
topology: tpu7x:2x2x1
jax: 0.10.0
libtpu: 0.0.40
codegen_flags: <defaults>
</compile_context>

<pallas_src>
import functools

import jax
import jax.numpy as jnp
from jax import lax
from jax.experimental import pallas as pl
from jax.experimental.pallas import tpu as pltpu


def _round_up(x, m):
    return (x + m - 1) // m * m


# ----------------------------------------------------------------------------
# Fused conv-as-matmul kernel:  out = LeakyReLU(scale * (W @ patches) + shift)
#   patches : (1, K*K*Cin, TILE) bf16   pixel tile, lane-dense
#   W       : (Cout_pad, K*K*Cin) bf16  resident across the whole grid
#   scale, shift : (Cout_pad, 1) f32    folded conv-bias + BatchNorm(eval)
#   out     : (1, Cout_pad, TILE) bf16  pixel tile, lane-dense
# ----------------------------------------------------------------------------
def _conv_mm_kernel(p_ref, w_ref, scale_ref, shift_ref, o_ref, *, leaky_slope):
    acc = jnp.dot(w_ref[...], p_ref[0], preferred_element_type=jnp.float32)
    y = acc * scale_ref[...] + shift_ref[...]
    if leaky_slope is not None:
        y = jnp.where(y > 0, y, leaky_slope * y)
    o_ref[0] = y.astype(o_ref.dtype)


# Final layer: conv (Cout=1, padded to 8) + bias, fused with AvgPool2d via a
# pooling-matrix matmul.  Invalid / padded pixels are zeroed by the pool matrix.
def _conv_pool_kernel(p_ref, w_ref, shift_ref, pool_ref, o_ref):
    conv = jnp.dot(w_ref[...], p_ref[0], preferred_element_type=jnp.float32)
    conv = conv + shift_ref[...]
    o_ref[0] = jnp.dot(conv, pool_ref[...], preferred_element_type=jnp.float32)


# ----------------------------------------------------------------------------
# Glue: im2col patch extraction (single fused pad + strided slices + concat)
# ----------------------------------------------------------------------------
def _im2col(x_nchw, K, stride, padding):
    """NCHW -> (N, K*K*C, Ho*Wo) patches (contraction index = (kh, kw, ci))."""
    N, C, H, W = x_nchw.shape
    Hp, Wp = H + 2 * padding, W + 2 * padding
    Ho = (Hp - K) // stride + 1
    Wo = (Wp - K) // stride + 1
    xp = jnp.pad(x_nchw, ((0, 0), (0, 0), (padding, padding), (padding, padding)))
    slabs = []
    for kh in range(K):
        for kw in range(K):
            slabs.append(xp[:, :,
                            kh:kh + (Ho - 1) * stride + 1:stride,
                            kw:kw + (Wo - 1) * stride + 1:stride])
    p = jnp.stack(slabs, axis=1)                       # (N, K*K, C, Ho, Wo)
    return p.reshape(N, K * K * C, Ho * Wo), Ho, Wo


def _flat_weight(w_hwio, co_pad):
    K, _, Cin, Cout = w_hwio.shape
    wmat = jnp.transpose(w_hwio, (3, 0, 1, 2)).reshape(Cout, K * K * Cin)
    return jnp.pad(wmat, ((0, co_pad - Cout), (0, 0))).astype(jnp.bfloat16)


# ----------------------------------------------------------------------------
# Conv2d + bias + BatchNorm(eval) + LeakyReLU, one Pallas kernel per layer
# ----------------------------------------------------------------------------
def conv2d_fused(x_nchw, w_hwio, scale, shift, *, stride, padding,
                 leaky_slope=0.2, max_tile=2048):
    x = x_nchw.astype(jnp.bfloat16)
    N = x.shape[0]
    K, _, Cin, Cout = w_hwio.shape
    KK = K * K * Cin

    patches, Ho, Wo = _im2col(x, K, stride, padding)
    npix = Ho * Wo
    ntiles = pl.cdiv(npix, max_tile)
    tile = _round_up(pl.cdiv(npix, ntiles), 128)
    npix_pad = ntiles * tile
    patches = jnp.pad(patches, ((0, 0), (0, 0), (0, npix_pad - npix)))

    co_pad = _round_up(Cout, 8)
    wmat = _flat_weight(w_hwio, co_pad)
    sc = jnp.pad(scale.astype(jnp.float32), (0, co_pad - Cout)).reshape(co_pad, 1)
    sh = jnp.pad(shift.astype(jnp.float32), (0, co_pad - Cout)).reshape(co_pad, 1)

    out = pl.pallas_call(
        functools.partial(_conv_mm_kernel, leaky_slope=leaky_slope),
        out_shape=jax.ShapeDtypeStruct((N, co_pad, npix_pad), jnp.bfloat16),
        grid=(N, ntiles),
        in_specs=[
            pl.BlockSpec((1, KK, tile), lambda n, t: (n, 0, t)),
            pl.BlockSpec((co_pad, KK), lambda n, t: (0, 0)),     # resident
            pl.BlockSpec((co_pad, 1), lambda n, t: (0, 0)),
            pl.BlockSpec((co_pad, 1), lambda n, t: (0, 0)),
        ],
        out_specs=pl.BlockSpec((1, co_pad, tile), lambda n, t: (n, 0, t)),
        compiler_params=pltpu.CompilerParams(
            dimension_semantics=("parallel", "parallel")),
    )(patches, wmat, sc, sh)

    return out[:, :Cout, :npix].reshape(N, Cout, Ho, Wo)


# ----------------------------------------------------------------------------
# Final Conv2d (Cout=1) + bias fused with AvgPool2d((pool_k, pool_k))
# ----------------------------------------------------------------------------
def conv2d_avgpool(x_nchw, w_hwio, bias, *, padding, pool_k):
    x = x_nchw.astype(jnp.bfloat16)
    N = x.shape[0]
    K, _, Cin, _ = w_hwio.shape
    KK = K * K * Cin

    patches, Ho, Wo = _im2col(x, K, 1, padding)
    npix = Ho * Wo
    npix_pad = _round_up(npix, 128)
    patches = jnp.pad(patches, ((0, 0), (0, 0), (0, npix_pad - npix)))

    co_pad = 8
    wmat = _flat_weight(w_hwio, co_pad)
    sh = jnp.pad(bias.astype(jnp.float32).reshape(1), (0, co_pad - 1)
                 ).reshape(co_pad, 1)

    # Pooling matrix: (npix_pad, pq_pad); zero for padded / cropped pixels.
    Po, Qo = Ho // pool_k, Wo // pool_k
    pq = Po * Qo
    pq_pad = _round_up(pq, 128)
    p_idx = jnp.arange(npix_pad)
    r, c = p_idx // Wo, p_idx % Wo
    R, C = r // pool_k, c // pool_k
    q = R * Qo + C
    valid = (p_idx < npix) & (R < Po) & (C < Qo)
    pool = jnp.where(valid[:, None] & (q[:, None] == jnp.arange(pq_pad)[None, :]),
                     1.0 / float(pool_k * pool_k), 0.0).astype(jnp.float32)

    out = pl.pallas_call(
        _conv_pool_kernel,
        out_shape=jax.ShapeDtypeStruct((N, co_pad, pq_pad), jnp.float32),
        grid=(N,),
        in_specs=[
            pl.BlockSpec((1, KK, npix_pad), lambda n: (n, 0, 0)),
            pl.BlockSpec((co_pad, KK), lambda n: (0, 0)),
            pl.BlockSpec((co_pad, 1), lambda n: (0, 0)),
            pl.BlockSpec((npix_pad, pq_pad), lambda n: (0, 0)),
        ],
        out_specs=pl.BlockSpec((1, co_pad, pq_pad), lambda n: (n, 0, 0)),
        compiler_params=pltpu.CompilerParams(dimension_semantics=("parallel",)),
    )(patches, wmat, sh, pool)

    return out[:, 0, :pq]                               # (N, Po*Qo)


# ----------------------------------------------------------------------------
# Parameters (deterministic, synthetic) and forward pass
# ----------------------------------------------------------------------------
def init_params(key, input_nc, ndf):
    keys = iter(jax.random.split(key, 32))

    def conv(cin, cout, k=4):
        w = jax.random.normal(next(keys), (k, k, cin, cout), jnp.float32) * 0.05
        b = jax.random.normal(next(keys), (cout,), jnp.float32) * 0.05
        return {"w": w, "b": b}

    def bn(c):
        gamma = 1.0 + 0.1 * jax.random.normal(next(keys), (c,), jnp.float32)
        beta = 0.1 * jax.random.normal(next(keys), (c,), jnp.float32)
        mean = 0.1 * jax.random.normal(next(keys), (c,), jnp.float32)
        var = jnp.abs(jax.random.normal(next(keys), (c,), jnp.float32)) + 0.5
        return {"gamma": gamma, "beta": beta, "mean": mean, "var": var}

    return {
        "c1": conv(input_nc, ndf),
        "c2": conv(ndf, 2 * ndf), "bn2": bn(2 * ndf),
        "c3": conv(2 * ndf, 4 * ndf), "bn3": bn(4 * ndf),
        "c4": conv(4 * ndf, 4 * ndf), "bn4": bn(4 * ndf),
        "c5": conv(4 * ndf, 1),
    }


def _fold_bn(b, bn, eps=1e-5):
    """Fold conv bias + eval-mode BatchNorm into per-channel scale/shift."""
    scale = bn["gamma"] * lax.rsqrt(bn["var"] + eps)
    shift = (b - bn["mean"]) * scale + bn["beta"]
    return scale, shift


def discriminator_forward(params, x_nchw, *, pool_k=23):
    """x_nchw: (N, input_nc, H, W) -> (N*Po*Qo, 1), matching model(input).view(-1,1)."""
    p = params
    h = conv2d_fused(x_nchw, p["c1"]["w"], jnp.ones_like(p["c1"]["b"]),
                     p["c1"]["b"], stride=2, padding=1, leaky_slope=0.2)
    s2, t2 = _fold_bn(p["c2"]["b"], p["bn2"])
    h = conv2d_fused(h, p["c2"]["w"], s2, t2, stride=2, padding=1, leaky_slope=0.2)
    s3, t3 = _fold_bn(p["c3"]["b"], p["bn3"])
    h = conv2d_fused(h, p["c3"]["w"], s3, t3, stride=2, padding=1, leaky_slope=0.2)
    s4, t4 = _fold_bn(p["c4"]["b"], p["bn4"])
    h = conv2d_fused(h, p["c4"]["w"], s4, t4, stride=1, padding=1, leaky_slope=0.2)
    pooled = conv2d_avgpool(h, p["c5"]["w"], p["c5"]["b"], padding=1, pool_k=pool_k)
    return pooled.reshape(-1, 1)                        # use_sigmoid=False


# ----------------------------------------------------------------------------
# Pure-JAX reference (same bf16-in / f32-accumulate numerics) for validation
# ----------------------------------------------------------------------------
def discriminator_reference(params, x_nchw, *, pool_k=23):
    p = params
    x = jnp.transpose(x_nchw, (0, 2, 3, 1))

    def conv(h, w, scale, shift, stride, padding, leaky):
        y = lax.conv_general_dilated(
            h.astype(jnp.bfloat16), w.astype(jnp.bfloat16),
            window_strides=(stride, stride),
            padding=[(padding, padding)] * 2,
            dimension_numbers=("NHWC", "HWIO", "NHWC"),
            preferred_element_type=jnp.float32)
        y = y * scale.reshape(1, 1, 1, -1) + shift.reshape(1, 1, 1, -1)
        return jnp.where(y > 0, y, 0.2 * y) if leaky else y

    ones = lambda c: jnp.ones((c,), jnp.float32)
    h = conv(x, p["c1"]["w"], ones(p["c1"]["b"].shape[0]), p["c1"]["b"], 2, 1, True)
    s2, t2 = _fold_bn(p["c2"]["b"], p["bn2"])
    h = conv(h, p["c2"]["w"], s2, t2, 2, 1, True)
    s3, t3 = _fold_bn(p["c3"]["b"], p["bn3"])
    h = conv(h, p["c3"]["w"], s3, t3, 2, 1, True)
    s4, t4 = _fold_bn(p["c4"]["b"], p["bn4"])
    h = conv(h, p["c4"]["w"], s4, t4, 1, 1, True)
    h = conv(h, p["c5"]["w"], ones(1), p["c5"]["b"], 1, 1, False)
    N, H5, W5, _ = h.shape
    Po, Qo = H5 // pool_k, W5 // pool_k
    pooled = h[:, :Po * pool_k, :Qo * pool_k, 0].reshape(
        N, Po, pool_k, Qo, pool_k).mean(axis=(2, 4))
    return pooled.reshape(-1, 1)


if __name__ == "__main__":
    # Smallest shapes the module supports: AvgPool2d((23,23)) after three s=2 and
    # two k=4,s=1,p=1 convs requires input spatial >= 200.  Channels kept small.
    input_nc, ndf = 6, 8          # input_nc=6: two concatenated RGB images
    N, H, W = 2, 200, 200

    key = jax.random.PRNGKey(0)
    kx, kp = jax.random.split(key)
    x = jax.random.normal(kx, (N, input_nc, H, W), jnp.float32)
    params = init_params(kp, input_nc, ndf)

    fwd = jax.jit(functools.partial(discriminator_forward, params))
    out = fwd(x)
    jax.block_until_ready(out)

    ref = jax.jit(functools.partial(discriminator_reference, params))(x)
    jax.block_until_ready(ref)

    assert out.shape == (N, 1), out.shape
    assert bool(jnp.all(jnp.isfinite(out)))
    assert bool(jnp.allclose(out, ref, atol=1e-2, rtol=1e-2)), (out, ref)
    print("KERNEL_OK")
</pallas_src>

<mosaic_0001>
module attributes {stable_mosaic.version = 11 : i64} {
  func.func @_conv_mm_kernel(%arg0: i32, %arg1: i32, %arg2: memref<1x96x2048xbf16, #tpu.memory_space<vmem>>, %arg3: memref<8x96xbf16, #tpu.memory_space<vmem>>, %arg4: memref<8x1xf32, #tpu.memory_space<vmem>>, %arg5: memref<8x1xf32, #tpu.memory_space<vmem>>, %arg6: memref<1x8x2048xbf16, #tpu.memory_space<vmem>>) attributes {dimension_semantics = [#tpu.dimension_semantics<parallel>, #tpu.dimension_semantics<parallel>], iteration_bounds = array<i64: 2, 5>, scalar_prefetch = 0 : i64, scratch_operands = 0 : i64, tpu.core_type = #tpu.core_type<tc>, window_params = [{transform_indices = @transform_0, window_bounds = array<i64: 1, 96, 2048>}, {pipeline_mode = #tpu.pipeline_mode<synchronous>, transform_indices = @transform_1, window_bounds = array<i64: 8, 96>}, {pipeline_mode = #tpu.pipeline_mode<synchronous>, transform_indices = @transform_2, window_bounds = array<i64: 8, 1>}, {pipeline_mode = #tpu.pipeline_mode<synchronous>, transform_indices = @transform_3, window_bounds = array<i64: 8, 1>}, {transform_indices = @transform_4, window_bounds = array<i64: 1, 8, 2048>}]} {
    %c0 = arith.constant 0 : index
    %c0_0 = arith.constant 0 : index
    %0 = vector.load %arg3[%c0, %c0_0] : memref<8x96xbf16, #tpu.memory_space<vmem>>, vector<8x96xbf16>
    %c0_1 = arith.constant 0 : index
    %c0_2 = arith.constant 0 : index
    %c0_3 = arith.constant 0 : index
    %1 = vector.load %arg2[%c0_1, %c0_2, %c0_3] : memref<1x96x2048xbf16, #tpu.memory_space<vmem>>, vector<1x96x2048xbf16>
    %2 = vector.shape_cast %1 : vector<1x96x2048xbf16> to vector<96x2048xbf16>
    %cst = arith.constant dense<0.000000e+00> : vector<8x2048xf32>
    %3 = tpu.matmul %0, %2, %cst {dimension_numbers = #tpu.dot_dimension_numbers<[1], [0], [0], [1], [0, 0, 1, 1], [], []>} : vector<8x96xbf16>, vector<96x2048xbf16>, vector<8x2048xf32> -> vector<8x2048xf32>
    %c0_4 = arith.constant 0 : index
    %c0_5 = arith.constant 0 : index
    %4 = vector.load %arg4[%c0_4, %c0_5] : memref<8x1xf32, #tpu.memory_space<vmem>>, vector<8x1xf32>
    %5 = vector.broadcast %4 : vector<8x1xf32> to vector<8x2048xf32>
    %6 = arith.mulf %3, %5 : vector<8x2048xf32>
    %c0_6 = arith.constant 0 : index
    %c0_7 = arith.constant 0 : index
    %7 = vector.load %arg5[%c0_6, %c0_7] : memref<8x1xf32, #tpu.memory_space<vmem>>, vector<8x1xf32>
    %8 = vector.broadcast %7 : vector<8x1xf32> to vector<8x2048xf32>
    %9 = arith.addf %6, %8 : vector<8x2048xf32>
    %cst_8 = arith.constant 0.000000e+00 : f32
    %10 = vector.broadcast %cst_8 : f32 to vector<8x2048xf32>
    %11 = arith.cmpf ogt, %9, %10 : vector<8x2048xf32>
    %cst_9 = arith.constant 2.000000e-01 : f32
    %12 = vector.broadcast %cst_9 : f32 to vector<8x2048xf32>
    %13 = arith.mulf %12, %9 : vector<8x2048xf32>
    %14 = arith.select %11, %9, %13 : vector<8x2048xi1>, vector<8x2048xf32>
    %15 = arith.truncf %14 : vector<8x2048xf32> to vector<8x2048xbf16>
    %c0_10 = arith.constant 0 : index
    %c0_11 = arith.constant 0 : index
    %c0_12 = arith.constant 0 : index
    %16 = vector.load %arg6[%c0_10, %c0_11, %c0_12] : memref<1x8x2048xbf16, #tpu.memory_space<vmem>>, vector<1x8x2048xbf16>
    %17 = vector.shape_cast %16 : vector<1x8x2048xbf16> to vector<8x2048xbf16>
    %18 = vector.shape_cast %15 : vector<8x2048xbf16> to vector<1x8x2048xbf16>
    tpu.vector_store %arg6[%c0_10, %c0_11, %c0_12], %18 {strides = array<i32>} : memref<1x8x2048xbf16, #tpu.memory_space<vmem>>, vector<1x8x2048xbf16>,
    return
  }
  func.func @transform_0(%arg0: i32, %arg1: i32) -> (i32, i32, i32) {
    %c0_i32 = arith.constant 0 : i32
    %c0_i32_0 = arith.constant 0 : i32
    return %arg0, %c0_i32, %arg1 : i32, i32, i32
  }
  func.func @transform_1(%arg0: i32, %arg1: i32) -> (i32, i32) {
    %c0_i32 = arith.constant 0 : i32
    %c0_i32_0 = arith.constant 0 : i32
    %c0_i32_1 = arith.constant 0 : i32
    return %c0_i32, %c0_i32_0 : i32, i32
  }
  func.func @transform_2(%arg0: i32, %arg1: i32) -> (i32, i32) {
    %c0_i32 = arith.constant 0 : i32
    %c0_i32_0 = arith.constant 0 : i32
    %c0_i32_1 = arith.constant 0 : i32
    return %c0_i32, %c0_i32_0 : i32, i32
  }
  func.func @transform_3(%arg0: i32, %arg1: i32) -> (i32, i32) {
    %c0_i32 = arith.constant 0 : i32
    %c0_i32_0 = arith.constant 0 : i32
    %c0_i32_1 = arith.constant 0 : i32
    return %c0_i32, %c0_i32_0 : i32, i32
  }
  func.func @transform_4(%arg0: i32, %arg1: i32) -> (i32, i32, i32) {
    %c0_i32 = arith.constant 0 : i32
    %c0_i32_0 = arith.constant 0 : i32
    return %arg0, %c0_i32, %arg1 : i32, i32, i32
  }
}

module attributes {stable_mosaic.version = 11 : i64} {
  func.func @_conv_mm_kernel(%arg0: i32, %arg1: i32, %arg2: memref<1x128x1280xbf16, #tpu.memory_space<vmem>>, %arg3: memref<16x128xbf16, #tpu.memory_space<vmem>>, %arg4: memref<16x1xf32, #tpu.memory_space<vmem>>, %arg5: memref<16x1xf32, #tpu.memory_space<vmem>>, %arg6: memref<1x16x1280xbf16, #tpu.memory_space<vmem>>) attributes {dimension_semantics = [#tpu.dimension_semantics<parallel>, #tpu.dimension_semantics<parallel>], iteration_bounds = array<i64: 2, 2>, scalar_prefetch = 0 : i64, scratch_operands = 0 : i64, tpu.core_type = #tpu.core_type<tc>, window_params = [{transform_indices = @transform_0, window_bounds = array<i64: 1, 128, 1280>}, {pipeline_mode = #tpu.pipeline_mode<synchronous>, transform_indices = @transform_1, window_bounds = array<i64: 16, 128>}, {pipeline_mode = #tpu.pipeline_mode<synchronous>, transform_indices = @transform_2, window_bounds = array<i64: 16, 1>}, {pipeline_mode = #tpu.pipeline_mode<synchronous>, transform_indices = @transform_3, window_bounds = array<i64: 16, 1>}, {transform_indices = @transform_4, window_bounds = array<i64: 1, 16, 1280>}]} {
    %c0 = arith.constant 0 : index
    %c0_0 = arith.constant 0 : index
    %0 = vector.load %arg3[%c0, %c0_0] : memref<16x128xbf16, #tpu.memory_space<vmem>>, vector<16x128xbf16>
    %c0_1 = arith.constant 0 : index
    %c0_2 = arith.constant 0 : index
    %c0_3 = arith.constant 0 : index
    %1 = vector.load %arg2[%c0_1, %c0_2, %c0_3] : memref<1x128x1280xbf16, #tpu.memory_space<vmem>>, vector<1x128x1280xbf16>
    %2 = vector.shape_cast %1 : vector<1x128x1280xbf16> to vector<128x1280xbf16>
    %cst = arith.constant dense<0.000000e+00> : vector<16x1280xf32>
    %3 = tpu.matmul %0, %2, %cst {dimension_numbers = #tpu.dot_dimension_numbers<[1], [0], [0], [1], [0, 0, 1, 1], [], []>} : vector<16x128xbf16>, vector<128x1280xbf16>, vector<16x1280xf32> -> vector<16x1280xf32>
    %c0_4 = arith.constant 0 : index
    %c0_5 = arith.constant 0 : index
    %4 = vector.load %arg4[%c0_4, %c0_5] : memref<16x1xf32, #tpu.memory_space<vmem>>, vector<16x1xf32>
    %5 = vector.broadcast %4 : vector<16x1xf32> to vector<16x1280xf32>
    %6 = arith.mulf %3, %5 : vector<16x1280xf32>
    %c0_6 = arith.constant 0 : index
    %c0_7 = arith.constant 0 : index
    %7 = vector.load %arg5[%c0_6, %c0_7] : memref<16x1xf32, #tpu.memory_space<vmem>>, vector<16x1xf32>
    %8 = vector.broadcast %7 : vector<16x1xf32> to vector<16x1280xf32>
    %9 = arith.addf %6, %8 : vector<16x1280xf32>
    %cst_8 = arith.constant 0.000000e+00 : f32
    %10 = vector.broadcast %cst_8 : f32 to vector<16x1280xf32>
    %11 = arith.cmpf ogt, %9, %10 : vector<16x1280xf32>
    %cst_9 = arith.constant 2.000000e-01 : f32
    %12 = vector.broadcast %cst_9 : f32 to vector<16x1280xf32>
    %13 = arith.mulf %12, %9 : vector<16x1280xf32>
    %14 = arith.select %11, %9, %13 : vector<16x1280xi1>, vector<16x1280xf32>
    %15 = arith.truncf %14 : vector<16x1280xf32> to vector<16x1280xbf16>
    %c0_10 = arith.constant 0 : index
    %c0_11 = arith.constant 0 : index
    %c0_12 = arith.constant 0 : index
    %16 = vector.load %arg6[%c0_10, %c0_11, %c0_12] : memref<1x16x1280xbf16, #tpu.memory_space<vmem>>, vector<1x16x1280xbf16>
    %17 = vector.shape_cast %16 : vector<1x16x1280xbf16> to vector<16x1280xbf16>
    %18 = vector.shape_cast %15 : vector<16x1280xbf16> to vector<1x16x1280xbf16>
    tpu.vector_store %arg6[%c0_10, %c0_11, %c0_12], %18 {strides = array<i32>} : memref<1x16x1280xbf16, #tpu.memory_space<vmem>>, vector<1x16x1280xbf16>,
    return
  }
  func.func @transform_0(%arg0: i32, %arg1: i32) -> (i32, i32, i32) {
    %c0_i32 = arith.constant 0 : i32
    %c0_i32_0 = arith.constant 0 : i32
    return %arg0, %c0_i32, %arg1 : i32, i32, i32
  }
  func.func @transform_1(%arg0: i32, %arg1: i32) -> (i32, i32) {
    %c0_i32 = arith.constant 0 : i32
    %c0_i32_0 = arith.constant 0 : i32
    %c0_i32_1 = arith.constant 0 : i32
    return %c0_i32, %c0_i32_0 : i32, i32
  }
  func.func @transform_2(%arg0: i32, %arg1: i32) -> (i32, i32) {
    %c0_i32 = arith.constant 0 : i32
    %c0_i32_0 = arith.constant 0 : i32
    %c0_i32_1 = arith.constant 0 : i32
    return %c0_i32, %c0_i32_0 : i32, i32
  }
  func.func @transform_3(%arg0: i32, %arg1: i32) -> (i32, i32) {
    %c0_i32 = arith.constant 0 : i32
    %c0_i32_0 = arith.constant 0 : i32
    %c0_i32_1 = arith.constant 0 : i32
    return %c0_i32, %c0_i32_0 : i32, i32
  }
  func.func @transform_4(%arg0: i32, %arg1: i32) -> (i32, i32, i32) {
    %c0_i32 = arith.constant 0 : i32
    %c0_i32_0 = arith.constant 0 : i32
    return %arg0, %c0_i32, %arg1 : i32, i32, i32
  }
}

module attributes {stable_mosaic.version = 11 : i64} {
  func.func @_conv_mm_kernel(%arg0: i32, %arg1: i32, %arg2: memref<1x256x640xbf16, #tpu.memory_space<vmem>>, %arg3: memref<32x256xbf16, #tpu.memory_space<vmem>>, %arg4: memref<32x1xf32, #tpu.memory_space<vmem>>, %arg5: memref<32x1xf32, #tpu.memory_space<vmem>>, %arg6: memref<1x32x640xbf16, #tpu.memory_space<vmem>>) attributes {dimension_semantics = [#tpu.dimension_semantics<parallel>, #tpu.dimension_semantics<parallel>], iteration_bounds = array<i64: 2, 1>, scalar_prefetch = 0 : i64, scratch_operands = 0 : i64, tpu.core_type = #tpu.core_type<tc>, window_params = [{transform_indices = @transform_0, window_bounds = array<i64: 1, 256, 640>}, {pipeline_mode = #tpu.pipeline_mode<synchronous>, transform_indices = @transform_1, window_bounds = array<i64: 32, 256>}, {pipeline_mode = #tpu.pipeline_mode<synchronous>, transform_indices = @transform_2, window_bounds = array<i64: 32, 1>}, {pipeline_mode = #tpu.pipeline_mode<synchronous>, transform_indices = @transform_3, window_bounds = array<i64: 32, 1>}, {transform_indices = @transform_4, window_bounds = array<i64: 1, 32, 640>}]} {
    %c0 = arith.constant 0 : index
    %c0_0 = arith.constant 0 : index
    %0 = vector.load %arg3[%c0, %c0_0] : memref<32x256xbf16, #tpu.memory_space<vmem>>, vector<32x256xbf16>
    %c0_1 = arith.constant 0 : index
    %c0_2 = arith.constant 0 : index
    %c0_3 = arith.constant 0 : index
    %1 = vector.load %arg2[%c0_1, %c0_2, %c0_3] : memref<1x256x640xbf16, #tpu.memory_space<vmem>>, vector<1x256x640xbf16>
    %2 = vector.shape_cast %1 : vector<1x256x640xbf16> to vector<256x640xbf16>
    %cst = arith.constant dense<0.000000e+00> : vector<32x640xf32>
    %3 = tpu.matmul %0, %2, %cst {dimension_numbers = #tpu.dot_dimension_numbers<[1], [0], [0], [1], [0, 0, 1, 1], [], []>} : vector<32x256xbf16>, vector<256x640xbf16>, vector<32x640xf32> -> vector<32x640xf32>
    %c0_4 = arith.constant 0 : index
    %c0_5 = arith.constant 0 : index
    %4 = vector.load %arg4[%c0_4, %c0_5] : memref<32x1xf32, #tpu.memory_space<vmem>>, vector<32x1xf32>
    %5 = vector.broadcast %4 : vector<32x1xf32> to vector<32x640xf32>
    %6 = arith.mulf %3, %5 : vector<32x640xf32>
    %c0_6 = arith.constant 0 : index
    %c0_7 = arith.constant 0 : index
    %7 = vector.load %arg5[%c0_6, %c0_7] : memref<32x1xf32, #tpu.memory_space<vmem>>, vector<32x1xf32>
    %8 = vector.broadcast %7 : vector<32x1xf32> to vector<32x640xf32>
    %9 = arith.addf %6, %8 : vector<32x640xf32>
    %cst_8 = arith.constant 0.000000e+00 : f32
    %10 = vector.broadcast %cst_8 : f32 to vector<32x640xf32>
    %11 = arith.cmpf ogt, %9, %10 : vector<32x640xf32>
    %cst_9 = arith.constant 2.000000e-01 : f32
    %12 = vector.broadcast %cst_9 : f32 to vector<32x640xf32>
    %13 = arith.mulf %12, %9 : vector<32x640xf32>
    %14 = arith.select %11, %9, %13 : vector<32x640xi1>, vector<32x640xf32>
    %15 = arith.truncf %14 : vector<32x640xf32> to vector<32x640xbf16>
    %c0_10 = arith.constant 0 : index
    %c0_11 = arith.constant 0 : index
    %c0_12 = arith.constant 0 : index
    %16 = vector.load %arg6[%c0_10, %c0_11, %c0_12] : memref<1x32x640xbf16, #tpu.memory_space<vmem>>, vector<1x32x640xbf16>
    %17 = vector.shape_cast %16 : vector<1x32x640xbf16> to vector<32x640xbf16>
    %18 = vector.shape_cast %15 : vector<32x640xbf16> to vector<1x32x640xbf16>
    tpu.vector_store %arg6[%c0_10, %c0_11, %c0_12], %18 {strides = array<i32>} : memref<1x32x640xbf16, #tpu.memory_space<vmem>>, vector<1x32x640xbf16>,
    return
  }
  func.func @transform_0(%arg0: i32, %arg1: i32) -> (i32, i32, i32) {
    %c0_i32 = arith.constant 0 : i32
    %c0_i32_0 = arith.constant 0 : i32
    return %arg0, %c0_i32, %arg1 : i32, i32, i32
  }
  func.func @transform_1(%arg0: i32, %arg1: i32) -> (i32, i32) {
    %c0_i32 = arith.constant 0 : i32
    %c0_i32_0 = arith.constant 0 : i32
    %c0_i32_1 = arith.constant 0 : i32
    return %c0_i32, %c0_i32_0 : i32, i32
  }
  func.func @transform_2(%arg0: i32, %arg1: i32) -> (i32, i32) {
    %c0_i32 = arith.constant 0 : i32
    %c0_i32_0 = arith.constant 0 : i32
    %c0_i32_1 = arith.constant 0 : i32
    return %c0_i32, %c0_i32_0 : i32, i32
  }
  func.func @transform_3(%arg0: i32, %arg1: i32) -> (i32, i32) {
    %c0_i32 = arith.constant 0 : i32
    %c0_i32_0 = arith.constant 0 : i32
    %c0_i32_1 = arith.constant 0 : i32
    return %c0_i32, %c0_i32_0 : i32, i32
  }
  func.func @transform_4(%arg0: i32, %arg1: i32) -> (i32, i32, i32) {
    %c0_i32 = arith.constant 0 : i32
    %c0_i32_0 = arith.constant 0 : i32
    return %arg0, %c0_i32, %arg1 : i32, i32, i32
  }
}

module attributes {stable_mosaic.version = 11 : i64} {
  func.func @_conv_mm_kernel(%arg0: i32, %arg1: i32, %arg2: memref<1x512x640xbf16, #tpu.memory_space<vmem>>, %arg3: memref<32x512xbf16, #tpu.memory_space<vmem>>, %arg4: memref<32x1xf32, #tpu.memory_space<vmem>>, %arg5: memref<32x1xf32, #tpu.memory_space<vmem>>, %arg6: memref<1x32x640xbf16, #tpu.memory_space<vmem>>) attributes {dimension_semantics = [#tpu.dimension_semantics<parallel>, #tpu.dimension_semantics<parallel>], iteration_bounds = array<i64: 2, 1>, scalar_prefetch = 0 : i64, scratch_operands = 0 : i64, tpu.core_type = #tpu.core_type<tc>, window_params = [{transform_indices = @transform_0, window_bounds = array<i64: 1, 512, 640>}, {pipeline_mode = #tpu.pipeline_mode<synchronous>, transform_indices = @transform_1, window_bounds = array<i64: 32, 512>}, {pipeline_mode = #tpu.pipeline_mode<synchronous>, transform_indices = @transform_2, window_bounds = array<i64: 32, 1>}, {pipeline_mode = #tpu.pipeline_mode<synchronous>, transform_indices = @transform_3, window_bounds = array<i64: 32, 1>}, {transform_indices = @transform_4, window_bounds = array<i64: 1, 32, 640>}]} {
    %c0 = arith.constant 0 : index
    %c0_0 = arith.constant 0 : index
    %0 = vector.load %arg3[%c0, %c0_0] : memref<32x512xbf16, #tpu.memory_space<vmem>>, vector<32x512xbf16>
    %c0_1 = arith.constant 0 : index
    %c0_2 = arith.constant 0 : index
    %c0_3 = arith.constant 0 : index
    %1 = vector.load %arg2[%c0_1, %c0_2, %c0_3] : memref<1x512x640xbf16, #tpu.memory_space<vmem>>, vector<1x512x640xbf16>
    %2 = vector.shape_cast %1 : vector<1x512x640xbf16> to vector<512x640xbf16>
    %cst = arith.constant dense<0.000000e+00> : vector<32x640xf32>
    %3 = tpu.matmul %0, %2, %cst {dimension_numbers = #tpu.dot_dimension_numbers<[1], [0], [0], [1], [0, 0, 1, 1], [], []>} : vector<32x512xbf16>, vector<512x640xbf16>, vector<32x640xf32> -> vector<32x640xf32>
    %c0_4 = arith.constant 0 : index
    %c0_5 = arith.constant 0 : index
    %4 = vector.load %arg4[%c0_4, %c0_5] : memref<32x1xf32, #tpu.memory_space<vmem>>, vector<32x1xf32>
    %5 = vector.broadcast %4 : vector<32x1xf32> to vector<32x640xf32>
    %6 = arith.mulf %3, %5 : vector<32x640xf32>
    %c0_6 = arith.constant 0 : index
    %c0_7 = arith.constant 0 : index
    %7 = vector.load %arg5[%c0_6, %c0_7] : memref<32x1xf32, #tpu.memory_space<vmem>>, vector<32x1xf32>
    %8 = vector.broadcast %7 : vector<32x1xf32> to vector<32x640xf32>
    %9 = arith.addf %6, %8 : vector<32x640xf32>
    %cst_8 = arith.constant 0.000000e+00 : f32
    %10 = vector.broadcast %cst_8 : f32 to vector<32x640xf32>
    %11 = arith.cmpf ogt, %9, %10 : vector<32x640xf32>
    %cst_9 = arith.constant 2.000000e-01 : f32
    %12 = vector.broadcast %cst_9 : f32 to vector<32x640xf32>
    %13 = arith.mulf %12, %9 : vector<32x640xf32>
    %14 = arith.select %11, %9, %13 : vector<32x640xi1>, vector<32x640xf32>
    %15 = arith.truncf %14 : vector<32x640xf32> to vector<32x640xbf16>
    %c0_10 = arith.constant 0 : index
    %c0_11 = arith.constant 0 : index
    %c0_12 = arith.constant 0 : index
    %16 = vector.load %arg6[%c0_10, %c0_11, %c0_12] : memref<1x32x640xbf16, #tpu.memory_space<vmem>>, vector<1x32x640xbf16>
    %17 = vector.shape_cast %16 : vector<1x32x640xbf16> to vector<32x640xbf16>
    %18 = vector.shape_cast %15 : vector<32x640xbf16> to vector<1x32x640xbf16>
    tpu.vector_store %arg6[%c0_10, %c0_11, %c0_12], %18 {strides = array<i32>} : memref<1x32x640xbf16, #tpu.memory_space<vmem>>, vector<1x32x640xbf16>,
    return
  }
  func.func @transform_0(%arg0: i32, %arg1: i32) -> (i32, i32, i32) {
    %c0_i32 = arith.constant 0 : i32
    %c0_i32_0 = arith.constant 0 : i32
    return %arg0, %c0_i32, %arg1 : i32, i32, i32
  }
  func.func @transform_1(%arg0: i32, %arg1: i32) -> (i32, i32) {
    %c0_i32 = arith.constant 0 : i32
    %c0_i32_0 = arith.constant 0 : i32
    %c0_i32_1 = arith.constant 0 : i32
    return %c0_i32, %c0_i32_0 : i32, i32
  }
  func.func @transform_2(%arg0: i32, %arg1: i32) -> (i32, i32) {
    %c0_i32 = arith.constant 0 : i32
    %c0_i32_0 = arith.constant 0 : i32
    %c0_i32_1 = arith.constant 0 : i32
    return %c0_i32, %c0_i32_0 : i32, i32
  }
  func.func @transform_3(%arg0: i32, %arg1: i32) -> (i32, i32) {
    %c0_i32 = arith.constant 0 : i32
    %c0_i32_0 = arith.constant 0 : i32
    %c0_i32_1 = arith.constant 0 : i32
    return %c0_i32, %c0_i32_0 : i32, i32
  }
  func.func @transform_4(%arg0: i32, %arg1: i32) -> (i32, i32, i32) {
    %c0_i32 = arith.constant 0 : i32
    %c0_i32_0 = arith.constant 0 : i32
    return %arg0, %c0_i32, %arg1 : i32, i32, i32
  }
}

module attributes {stable_mosaic.version = 11 : i64} {
  func.func @_conv_pool_kernel(%arg0: i32, %arg1: memref<1x512x640xbf16, #tpu.memory_space<vmem>>, %arg2: memref<8x512xbf16, #tpu.memory_space<vmem>>, %arg3: memref<8x1xf32, #tpu.memory_space<vmem>>, %arg4: memref<640x128xf32, #tpu.memory_space<vmem>>, %arg5: memref<1x8x128xf32, #tpu.memory_space<vmem>>) attributes {dimension_semantics = [#tpu.dimension_semantics<parallel>], iteration_bounds = array<i64: 2>, scalar_prefetch = 0 : i64, scratch_operands = 0 : i64, tpu.core_type = #tpu.core_type<tc>, window_params = [{transform_indices = @transform_0, window_bounds = array<i64: 1, 512, 640>}, {pipeline_mode = #tpu.pipeline_mode<synchronous>, transform_indices = @transform_1, window_bounds = array<i64: 8, 512>}, {pipeline_mode = #tpu.pipeline_mode<synchronous>, transform_indices = @transform_2, window_bounds = array<i64: 8, 1>}, {pipeline_mode = #tpu.pipeline_mode<synchronous>, transform_indices = @transform_3, window_bounds = array<i64: 640, 128>}, {transform_indices = @transform_4, window_bounds = array<i64: 1, 8, 128>}]} {
    %c0 = arith.constant 0 : index
    %c0_0 = arith.constant 0 : index
    %0 = vector.load %arg2[%c0, %c0_0] : memref<8x512xbf16, #tpu.memory_space<vmem>>, vector<8x512xbf16>
    %c0_1 = arith.constant 0 : index
    %c0_2 = arith.constant 0 : index
    %c0_3 = arith.constant 0 : index
    %1 = vector.load %arg1[%c0_1, %c0_2, %c0_3] : memref<1x512x640xbf16, #tpu.memory_space<vmem>>, vector<1x512x640xbf16>
    %2 = vector.shape_cast %1 : vector<1x512x640xbf16> to vector<512x640xbf16>
    %cst = arith.constant dense<0.000000e+00> : vector<8x640xf32>
    %3 = tpu.matmul %0, %2, %cst {dimension_numbers = #tpu.dot_dimension_numbers<[1], [0], [0], [1], [0, 0, 1, 1], [], []>} : vector<8x512xbf16>, vector<512x640xbf16>, vector<8x640xf32> -> vector<8x640xf32>
    %c0_4 = arith.constant 0 : index
    %c0_5 = arith.constant 0 : index
    %4 = vector.load %arg3[%c0_4, %c0_5] : memref<8x1xf32, #tpu.memory_space<vmem>>, vector<8x1xf32>
    %5 = vector.broadcast %4 : vector<8x1xf32> to vector<8x640xf32>
    %6 = arith.addf %3, %5 : vector<8x640xf32>
    %c0_6 = arith.constant 0 : index
    %c0_7 = arith.constant 0 : index
    %7 = vector.load %arg4[%c0_6, %c0_7] : memref<640x128xf32, #tpu.memory_space<vmem>>, vector<640x128xf32>
    %cst_8 = arith.constant dense<0.000000e+00> : vector<8x128xf32>
    %8 = tpu.matmul %6, %7, %cst_8 {dimension_numbers = #tpu.dot_dimension_numbers<[1], [0], [0], [1], [0, 0, 1, 1], [], []>} : vector<8x640xf32>, vector<640x128xf32>, vector<8x128xf32> -> vector<8x128xf32>
    %c0_9 = arith.constant 0 : index
    %c0_10 = arith.constant 0 : index
    %c0_11 = arith.constant 0 : index
    %9 = vector.load %arg5[%c0_9, %c0_10, %c0_11] : memref<1x8x128xf32, #tpu.memory_space<vmem>>, vector<1x8x128xf32>
    %10 = vector.shape_cast %9 : vector<1x8x128xf32> to vector<8x128xf32>
    %11 = vector.shape_cast %8 : vector<8x128xf32> to vector<1x8x128xf32>
    tpu.vector_store %arg5[%c0_9, %c0_10, %c0_11], %11 {strides = array<i32>} : memref<1x8x128xf32, #tpu.memory_space<vmem>>, vector<1x8x128xf32>,
    return
  }
  func.func @transform_0(%arg0: i32) -> (i32, i32, i32) {
    %c0_i32 = arith.constant 0 : i32
    %c0_i32_0 = arith.constant 0 : i32
    %c0_i32_1 = arith.constant 0 : i32
    return %arg0, %c0_i32, %c0_i32_0 : i32, i32, i32
  }
  func.func @transform_1(%arg0: i32) -> (i32, i32) {
    %c0_i32 = arith.constant 0 : i32
    %c0_i32_0 = arith.constant 0 : i32
    %c0_i32_1 = arith.constant 0 : i32
    return %c0_i32, %c0_i32_0 : i32, i32
  }
  func.func @transform_2(%arg0: i32) -> (i32, i32) {
    %c0_i32 = arith.constant 0 : i32
    %c0_i32_0 = arith.constant 0 : i32
    %c0_i32_1 = arith.constant 0 : i32
    return %c0_i32, %c0_i32_0 : i32, i32
  }
  func.func @transform_3(%arg0: i32) -> (i32, i32) {
    %c0_i32 = arith.constant 0 : i32
    %c0_i32_0 = arith.constant 0 : i32
    %c0_i32_1 = arith.constant 0 : i32
    return %c0_i32, %c0_i32_0 : i32, i32
  }
  func.func @transform_4(%arg0: i32) -> (i32, i32, i32) {
    %c0_i32 = arith.constant 0 : i32
    %c0_i32_0 = arith.constant 0 : i32
    %c0_i32_1 = arith.constant 0 : i32
    return %arg0, %c0_i32, %c0_i32_0 : i32, i32, i32
  }
}

</mosaic_0001>

<llo_original>
// kernel: discriminator_forward.5
$region0: #{discriminator_forward.5}
  #allocation0 [shape = 'u32[]', space=smem, size = 0x4, offset = 0x4, fixed_abs, tag = 'smem constant byte address 0x4 - core index']
  #allocation1 [shape = 'u32[144,128]{1,0:T(1,128)}', space=vmem, size = 0x12000, scoped, tag = 'internal scratch']
  %s0 = inlined_call_operand.vmem [shape: bf16[2,96,10240], index: 0, kind: input, shape index: {}]
  %s1 = inlined_call_operand.vmem [shape: bf16[8,96], index: 1, kind: input, shape index: {}]
  %s2 = inlined_call_operand.vmem [shape: f32[8,1], index: 2, kind: input, shape index: {}]
  %s3 = inlined_call_operand.vmem [shape: f32[8,1], index: 3, kind: input, shape index: {}]
  %s4 = inlined_call_operand.vmem [shape: bf16[2,8,10240], index: 4, kind: output, shape index: {}]
  %s5 = sld [smem:[#allocation0]]
  $region72: #{discriminator_forward.5} parent=0
    _
  %s7 = ssub.s32 1, %s5
  %s8 = scalar_select 0, %s7, %s5
  $region1: #{discriminator_forward.5} parent=0
    #allocation2 [shape = 'u8[786432]{0}', space=vmem, size = 0xc0000, scoped, tag = 'input window, operand 0']
    loop: start=0, step=1, limit=12
    $region2: #{discriminator_forward.5} parent=1 // loop_pre_header
      _
    $region3: #{discriminator_forward.5} parent=1 // loop_header
      %s10 = sphi 0, %s14
      %p11 = scmp.ge.s32.totalorder %s10, 12
      %s17 = sphi 0, %s29
      %s18 = sphi 0, %s25
      %s19 = sphi 0, %s17
      %s20 = sphi 0, %s18
      %s21 = sphi 0, %s19
      %s22 = sphi 0, %s20
      %s34 = sphi 0, %s36
      %s37 = sphi 0, %s34
      %s38 = sphi 0, %s37
      %s54 = sphi 0, %s38
      %s58 = sphi 0, %s58
      %s60 = sphi 0, %s58
      %s61 = sphi 0, %s60
      %s75 = sphi 0, %s61
      %s79 = sphi 0, %s79
      %s81 = sphi 0, %s79
      %s82 = sphi 0, %s81
      %s96 = sphi 0, %s82
      %s100 = sphi 0, %s100
      %s102 = sphi 0, %s100
      %s103 = sphi 0, %s102
      %s117 = sphi 0, %s103
      %s125 = sphi 0, %s127
      %s128 = sphi 0, %s125
      %s129 = sphi 0, %s128
      %s145 = sphi 0, %s129
    $region4: #{discriminator_forward.5} parent=1 // loop_header_branch
      %13 = sbr.rel (%p11) target = $region8
    $region5: #{discriminator_forward.5} parent=1 // loop_body
      %s15 = ssub.s32 %s10, 1
      %s16 = ssub.s32 %s10, 2
      %s23 = sadd.s32 1, %s18
      %p24 = scmp.ge.s32.totalorder %s23, 5
      %s25 = scalar_select %p24, 0, %s23
      %s26 = sadd.s32 1, %s17
      %s27 = scalar_select %p24, %s26, %s17
      %p28 = scmp.ge.s32.totalorder %s27, 2
      %s29 = scalar_select %p28, 0, %s27
      %s30 = ssub.s32 %s17, %s29
      %s31 = ssub.s32 %s18, %s25
      %s32 = sor.u32 %s30, %s31
      %p33 = scmp.eq.s32.totalorder %s32, 0
      %s35 = sadd.s32 %s34, 1
      %s36 = scalar_select %p33, %s34, %s35
      %p39 = pneg %p33
      %p40 = scmp.eq.s32.totalorder %s10, 9
      %p41 = por %p39, %p40
      %p42 = scmp.ne.s32.totalorder %s34, %s37
      %p43 = scmp.eq.s32.totalorder %s10, 0
      %p44 = por %p42, %p43
      %p45 = scmp.ne.s32.totalorder %s34, %s37
      %p46 = scmp.eq.s32.totalorder %s15, 9
      %p47 = por %p45, %p46
      %p48 = scmp.ne.s32.totalorder %s37, %s38
      %p49 = scmp.eq.s32.totalorder %s15, 0
      %p50 = por %p48, %p49
      %p51 = scmp.ne.s32.totalorder %s37, %s38
      %p52 = scmp.eq.s32.totalorder %s16, 9
      %p53 = por %p51, %p52
      %p55 = scmp.ne.s32.totalorder %s38, %s54
      %p56 = scmp.eq.s32.totalorder %s16, 0
      %p57 = por %p55, %p56
      %s59 = sadd.s32 %s58, 1
      %p62 = scmp.eq.s32.totalorder %s10, 9
      %p63 = scmp.ne.s32.totalorder %s58, %s60
      %p64 = scmp.eq.s32.totalorder %s10, 0
      %p65 = por %p63, %p64
      %p66 = scmp.ne.s32.totalorder %s58, %s60
      %p67 = scmp.eq.s32.totalorder %s15, 9
      %p68 = por %p66, %p67
      %p69 = scmp.ne.s32.totalorder %s60, %s61
      %p70 = scmp.eq.s32.totalorder %s15, 0
      %p71 = por %p69, %p70
      %p72 = scmp.ne.s32.totalorder %s60, %s61
      %p73 = scmp.eq.s32.totalorder %s16, 9
      %p74 = por %p72, %p73
      %p76 = scmp.ne.s32.totalorder %s61, %s75
      %p77 = scmp.eq.s32.totalorder %s16, 0
      %p78 = por %p76, %p77
      %s80 = sadd.s32 %s79, 1
      %p83 = scmp.eq.s32.totalorder %s10, 9
      %p84 = scmp.ne.s32.totalorder %s79, %s81
      %p85 = scmp.eq.s32.totalorder %s10, 0
      %p86 = por %p84, %p85
      %p87 = scmp.ne.s32.totalorder %s79, %s81
      %p88 = scmp.eq.s32.totalorder %s15, 9
      %p89 = por %p87, %p88
      %p90 = scmp.ne.s32.totalorder %s81, %s82
      %p91 = scmp.eq.s32.totalorder %s15, 0
      %p92 = por %p90, %p91
      %p93 = scmp.ne.s32.totalorder %s81, %s82
      %p94 = scmp.eq.s32.totalorder %s16, 9
      %p95 = por %p93, %p94
      %p97 = scmp.ne.s32.totalorder %s82, %s96
      %p98 = scmp.eq.s32.totalorder %s16, 0
      %p99 = por %p97, %p98
      %s101 = sadd.s32 %s100, 1
      %p104 = scmp.eq.s32.totalorder %s10, 9
      %p105 = scmp.ne.s32.totalorder %s100, %s102
      %p106 = scmp.eq.s32.totalorder %s10, 0
      %p107 = por %p105, %p106
      %p108 = scmp.ne.s32.totalorder %s100, %s102
      %p109 = scmp.eq.s32.totalorder %s15, 9
      %p110 = por %p108, %p109
      %p111 = scmp.ne.s32.totalorder %s102, %s103
      %p112 = scmp.eq.s32.totalorder %s15, 0
      %p113 = por %p111, %p112
      %p114 = scmp.ne.s32.totalorder %s102, %s103
      %p115 = scmp.eq.s32.totalorder %s16, 9
      %p116 = por %p114, %p115
      %p118 = scmp.ne.s32.totalorder %s103, %s117
      %p119 = scmp.eq.s32.totalorder %s16, 0
      %p120 = por %p118, %p119
      %s121 = ssub.s32 %s17, %s29
      %s122 = ssub.s32 %s18, %s25
      %s123 = sor.u32 %s121, %s122
      %p124 = scmp.eq.s32.totalorder %s123, 0
      %s126 = sadd.s32 %s125, 1
      %s127 = scalar_select %p124, %s125, %s126
      %p130 = pneg %p124
      %p131 = scmp.eq.s32.totalorder %s10, 9
      %p132 = por %p130, %p131
      %p133 = scmp.ne.s32.totalorder %s125, %s128
      %p134 = scmp.eq.s32.totalorder %s10, 0
      %p135 = por %p133, %p134
      %p136 = scmp.ne.s32.totalorder %s125, %s128
      %p137 = scmp.eq.s32.totalorder %s15, 9
      %p138 = por %p136, %p137
      %p139 = scmp.ne.s32.totalorder %s128, %s129
      %p140 = scmp.eq.s32.totalorder %s15, 0
      %p141 = por %p139, %p140
      %p142 = scmp.ne.s32.totalorder %s128, %s129
      %p143 = scmp.eq.s32.totalorder %s16, 9
      %p144 = por %p142, %p143
      %p146 = scmp.ne.s32.totalorder %s129, %s145
      %p147 = scmp.eq.s32.totalorder %s16, 0
      %p148 = por %p146, %p147
      %p149 = scmp.le.s32.totalorder 1, %s10
      %p150 = scmp.lt.s32.totalorder %s10, 11
      %p151 = pnand %p149, %p150
      %p152 = pneg %p151
      // Predicated region
      $region9: #{discriminator_forward.5} parent=5 // pred_check
        _
      $region10: #{discriminator_forward.5} parent=5 // pred_check_branch
        %154 = sbr.rel (%p151) target = $region12
      $region11: #{discriminator_forward.5} parent=5 // pred_region
        %s155 = ssub.s32 %s10, 1
        // Predicated region
        $region13: #{discriminator_forward.5} parent=11 // pred_check
          %p156 = pneg %p71
        $region14: #{discriminator_forward.5} parent=11 // pred_check_branch
          %158 = sbr.rel (%p156) target = $region16
        $region15: #{discriminator_forward.5} parent=11 // pred_region
          _
        $region16: #{discriminator_forward.5} parent=11 // pred_fallthru
          _
        // Predicated region
        $region17: #{discriminator_forward.5} parent=11 // pred_check
          %p159 = pneg %p92
        $region18: #{discriminator_forward.5} parent=11 // pred_check_branch
          %161 = sbr.rel (%p159) target = $region20
        $region19: #{discriminator_forward.5} parent=11 // pred_region
          _
        $region20: #{discriminator_forward.5} parent=11 // pred_fallthru
          _
        // Predicated region
        $region21: #{discriminator_forward.5} parent=11 // pred_check
          %p162 = pneg %p113
        $region22: #{discriminator_forward.5} parent=11 // pred_check_branch
          %164 = sbr.rel (%p162) target = $region24
        $region23: #{discriminator_forward.5} parent=11 // pred_region
          _
        $region24: #{discriminator_forward.5} parent=11 // pred_fallthru
          _
      $region12: #{discriminator_forward.5} parent=5 // pred_fallthru
        _
      %p165 = scmp.lt.s32.totalorder %s10, 10
      // Predicated region
      $region25: #{discriminator_forward.5} parent=5 // pred_check
        %p166 = pneg %p165
      $region26: #{discriminator_forward.5} parent=5 // pred_check_branch
        %168 = sbr.rel (%p166) target = $region28
      $region27: #{discriminator_forward.5} parent=5 // pred_region
        // Predicated region
        $region29: #{discriminator_forward.5} parent=27 // pred_check
          %p169 = pneg %p44
        $region30: #{discriminator_forward.5} parent=27 // pred_check_branch
          %171 = sbr.rel (%p169) target = $region32
        $region31: #{discriminator_forward.5} parent=27 // pred_region
          %s172 = sand.u32 %s34, 1
          %s173 = sand.u32 %s34, 1
          %s174 = smul.addr %s173, 768
          %s175 = scalar_lea.vmem [#allocation2], %s174
          %s176 = smul.u32 16, %s18
          %s177 = smul.addr %s17, 960
          %s178 = sadd.s32 %s176, %s177
          %s179 = smul.addr %s178, 4
          %s180 = scalar_lea.vmem %s0, %s179
          // Predicated region
          $region33: #{discriminator_forward.5} parent=31 // pred_check
            _
          $region34: #{discriminator_forward.5} parent=31 // pred_check_branch
            %182 = sbr.rel (0) target = $region36
          $region35: #{discriminator_forward.5} parent=31 // pred_region
            // Predicated region
            $region37: #{discriminator_forward.5} parent=35 // pred_check
              _
            $region38: #{discriminator_forward.5} parent=35 // pred_check_branch
              %184 = sbr.rel (0) target = $region40
            $region39: #{discriminator_forward.5} parent=35 // pred_region
              loop: start=0, step=1, limit=1
              $region41: #{discriminator_forward.5} parent=39 // loop_pre_header
                _
              $region42: #{discriminator_forward.5} parent=39 // loop_header
                %s186 = sphi 0, %s190
                %p187 = scmp.ge.s32.totalorder %s186, 1
                %s191 = sphi %s180, %s180
                %s192 = sphi %s175, %s175
              $region43: #{discriminator_forward.5} parent=39 // loop_header_branch
                %189 = sbr.rel (%p187) target = $region47
              $region44: #{discriminator_forward.5} parent=39 // loop_body
                %v193 = vld [vmem:[%s191] sm:$0xff]
                %194 = vst [vmem:[%s192] sm:$0xff] %v193
                %v195 = vld [vmem:[%s191 + $0x8] sm:$0xff]
                %196 = vst [vmem:[%s192 + $0x8] sm:$0xff] %v195
                %v197 = vld [vmem:[%s191 + $0x10] sm:$0xff]
                %198 = vst [vmem:[%s192 + $0x10] sm:$0xff] %v197
                %v199 = vld [vmem:[%s191 + $0x18] sm:$0xff]
                %200 = vst [vmem:[%s192 + $0x18] sm:$0xff] %v199
                %v201 = vld [vmem:[%s191 + $0x20] sm:$0xff]
                %202 = vst [vmem:[%s192 + $0x20] sm:$0xff] %v201
                %v203 = vld [vmem:[%s191 + $0x28] sm:$0xff]
                %204 = vst [vmem:[%s192 + $0x28] sm:$0xff] %v203
                %v205 = vld [vmem:[%s191 + $0x30] sm:$0xff]
                %206 = vst [vmem:[%s192 + $0x30] sm:$0xff] %v205
                %v207 = vld [vmem:[%s191 + $0x38] sm:$0xff]
                %208 = vst [vmem:[%s192 + $0x38] sm:$0xff] %v207
                %v209 = vld [vmem:[%s191 + $0x140] sm:$0xff]
                %210 = vst [vmem:[%s192 + $0x40] sm:$0xff] %v209
                %v211 = vld [vmem:[%s191 + $0x148] sm:$0xff]
                %212 = vst [vmem:[%s192 + $0x48] sm:$0xff] %v211
                %v213 = vld [vmem:[%s191 + $0x150] sm:$0xff]
                %214 = vst [vmem:[%s192 + $0x50] sm:$0xff] %v213
                %v215 = vld [vmem:[%s191 + $0x158] sm:$0xff]
                %216 = vst [vmem:[%s192 + $0x58] sm:$0xff] %v215
                %v217 = vld [vmem:[%s191 + $0x160] sm:$0xff]
                %218 = vst [vmem:[%s192 + $0x60] sm:$0xff] %v217
                %v219 = vld [vmem:[%s191 + $0x168] sm:$0xff]
                %220 = vst [vmem:[%s192 + $0x68] sm:$0xff] %v219
                %v221 = vld [vmem:[%s191 + $0x170] sm:$0xff]
                %222 = vst [vmem:[%s192 + $0x70] sm:$0xff] %v221
                %v223 = vld [vmem:[%s191 + $0x178] sm:$0xff]
                %224 = vst [vmem:[%s192 + $0x78] sm:$0xff] %v223
                %v225 = vld [vmem:[%s191 + $0x280] sm:$0xff]
                %226 = vst [vmem:[%s192 + $0x80] sm:$0xff] %v225
                %v227 = vld [vmem:[%s191 + $0x288] sm:$0xff]
                %228 = vst [vmem:[%s192 + $0x88] sm:$0xff] %v227
                %v229 = vld [vmem:[%s191 + $0x290] sm:$0xff]
                %230 = vst [vmem:[%s192 + $0x90] sm:$0xff] %v229
                %v231 = vld [vmem:[%s191 + $0x298] sm:$0xff]
                %232 = vst [vmem:[%s192 + $0x98] sm:$0xff] %v231
                %v233 = vld [vmem:[%s191 + $0x2a0] sm:$0xff]
                %234 = vst [vmem:[%s192 + $0xa0] sm:$0xff] %v233
                %v235 = vld [vmem:[%s191 + $0x2a8] sm:$0xff]
                %236 = vst [vmem:[%s192 + $0xa8] sm:$0xff] %v235
                %v237 = vld [vmem:[%s191 + $0x2b0] sm:$0xff]
                %238 = vst [vmem:[%s192 + $0xb0] sm:$0xff] %v237
                %v239 = vld [vmem:[%s191 + $0x2b8] sm:$0xff]
                %240 = vst [vmem:[%s192 + $0xb8] sm:$0xff] %v239
                %v241 = vld [vmem:[%s191 + $0x3c0] sm:$0xff]
                %242 = vst [vmem:[%s192 + $0xc0] sm:$0xff] %v241
                %v243 = vld [vmem:[%s191 + $0x3c8] sm:$0xff]
                %244 = vst [vmem:[%s192 + $0xc8] sm:$0xff] %v243
                %v245 = vld [vmem:[%s191 + $0x3d0] sm:$0xff]
                %246 = vst [vmem:[%s192 + $0xd0] sm:$0xff] %v245
                %v247 = vld [vmem:[%s191 + $0x3d8] sm:$0xff]
                %248 = vst [vmem:[%s192 + $0xd8] sm:$0xff] %v247
                %v249 = vld [vmem:[%s191 + $0x3e0] sm:$0xff]
                %250 = vst [vmem:[%s192 + $0xe0] sm:$0xff] %v249
                %v251 = vld [vmem:[%s191 + $0x3e8] sm:$0xff]
                %252 = vst [vmem:[%s192 + $0xe8] sm:$0xff] %v251
                %v253 = vld [vmem:[%s191 + $0x3f0] sm:$0xff]
                %254 = vst [vmem:[%s192 + $0xf0] sm:$0xff] %v253
                %v255 = vld [vmem:[%s191 + $0x3f8] sm:$0xff]
                %256 = vst [vmem:[%s192 + $0xf8] sm:$0xff] %v255
                %v257 = vld [vmem:[%s191 + $0x500] sm:$0xff]
                %258 = vst [vmem:[%s192 + $0x100] sm:$0xff] %v257
                %v259 = vld [vmem:[%s191 + $0x508] sm:$0xff]
                %260 = vst [vmem:[%s192 + $0x108] sm:$0xff] %v259
                %v261 = vld [vmem:[%s191 + $0x510] sm:$0xff]
                %262 = vst [vmem:[%s192 + $0x110] sm:$0xff] %v261
                %v263 = vld [vmem:[%s191 + $0x518] sm:$0xff]
                %264 = vst [vmem:[%s192 + $0x118] sm:$0xff] %v263
                %v265 = vld [vmem:[%s191 + $0x520] sm:$0xff]
                %266 = vst [vmem:[%s192 + $0x120] sm:$0xff] %v265
                %v267 = vld [vmem:[%s191 + $0x528] sm:$0xff]
                %268 = vst [vmem:[%s192 + $0x128] sm:$0xff] %v267
                %v269 = vld [vmem:[%s191 + $0x530] sm:$0xff]
                %270 = vst [vmem:[%s192 + $0x130] sm:$0xff] %v269
                %v271 = vld [vmem:[%s191 + $0x538] sm:$0xff]
                %272 = vst [vmem:[%s192 + $0x138] sm:$0xff] %v271
                %v273 = vld [vmem:[%s191 + $0x640] sm:$0xff]
                %274 = vst [vmem:[%s192 + $0x140] sm:$0xff] %v273
                %v275 = vld [vmem:[%s191 + $0x648] sm:$0xff]
                %276 = vst [vmem:[%s192 + $0x148] sm:$0xff] %v275
                %v277 = vld [vmem:[%s191 + $0x650] sm:$0xff]
                %278 = vst [vmem:[%s192 + $0x150] sm:$0xff] %v277
                %v279 = vld [vmem:[%s191 + $0x658] sm:$0xff]
                %280 = vst [vmem:[%s192 + $0x158] sm:$0xff] %v279
                %v281 = vld [vmem:[%s191 + $0x660] sm:$0xff]
                %282 = vst [vmem:[%s192 + $0x160] sm:$0xff] %v281
                %v283 = vld [vmem:[%s191 + $0x668] sm:$0xff]
                %284 = vst [vmem:[%s192 + $0x168] sm:$0xff] %v283
                %v285 = vld [vmem:[%s191 + $0x670] sm:$0xff]
                %286 = vst [vmem:[%s192 + $0x170] sm:$0xff] %v285
                %v287 = vld [vmem:[%s191 + $0x678] sm:$0xff]
                %288 = vst [vmem:[%s192 + $0x178] sm:$0xff] %v287
                %v289 = vld [vmem:[%s191 + $0x780] sm:$0xff]
                %290 = vst [vmem:[%s192 + $0x180] sm:$0xff] %v289
                %v291 = vld [vmem:[%s191 + $0x788] sm:$0xff]
                %292 = vst [vmem:[%s192 + $0x188] sm:$0xff] %v291
                %v293 = vld [vmem:[%s191 + $0x790] sm:$0xff]
                %294 = vst [vmem:[%s192 + $0x190] sm:$0xff] %v293
                %v295 = vld [vmem:[%s191 + $0x798] sm:$0xff]
                %296 = vst [vmem:[%s192 + $0x198] sm:$0xff] %v295
                %v297 = vld [vmem:[%s191 + $0x7a0] sm:$0xff]
                %298 = vst [vmem:[%s192 + $0x1a0] sm:$0xff] %v297
                %v299 = vld [vmem:[%s191 + $0x7a8] sm:$0xff]
                %300 = vst [vmem:[%s192 + $0x1a8] sm:$0xff] %v299
                %v301 = vld [vmem:[%s191 + $0x7b0] sm:$0xff]
                %302 = vst [vmem:[%s192 + $0x1b0] sm:$0xff] %v301
                %v303 = vld [vmem:[%s191 + $0x7b8] sm:$0xff]
                %304 = vst [vmem:[%s192 + $0x1b8] sm:$0xff] %v303
                %v305 = vld [vmem:[%s191 + $0x8c0] sm:$0xff]
                %306 = vst [vmem:[%s192 + $0x1c0] sm:$0xff] %v305
                %v307 = vld [vmem:[%s191 + $0x8c8] sm:$0xff]
                %308 = vst [vmem:[%s192 + $0x1c8] sm:$0xff] %v307
                %v309 = vld [vmem:[%s191 + $0x8d0] sm:$0xff]
                %310 = vst [vmem:[%s192 + $0x1d0] sm:$0xff] %v309
                %v311 = vld [vmem:[%s191 + $0x8d8] sm:$0xff]
                %312 = vst [vmem:[%s192 + $0x1d8] sm:$0xff] %v311
                %v313 = vld [vmem:[%s191 + $0x8e0] sm:$0xff]
                %314 = vst [vmem:[%s192 + $0x1e0] sm:$0xff] %v313
                %v315 = vld [vmem:[%s191 + $0x8e8] sm:$0xff]
                %316 = vst [vmem:[%s192 + $0x1e8] sm:$0xff] %v315
                %v317 = vld [vmem:[%s191 + $0x8f0] sm:$0xff]
                %318 = vst [vmem:[%s192 + $0x1f0] sm:$0xff] %v317
                %v319 = vld [vmem:[%s191 + $0x8f8] sm:$0xff]
                %320 = vst [vmem:[%s192 + $0x1f8] sm:$0xff] %v319
                %v321 = vld [vmem:[%s191 + $0xa00] sm:$0xff]
                %322 = vst [vmem:[%s192 + $0x200] sm:$0xff] %v321
                %v323 = vld [vmem:[%s191 + $0xa08] sm:$0xff]
                %324 = vst [vmem:[%s192 + $0x208] sm:$0xff] %v323
                %v325 = vld [vmem:[%s191 + $0xa10] sm:$0xff]
                %326 = vst [vmem:[%s192 + $0x210] sm:$0xff] %v325
                %v327 = vld [vmem:[%s191 + $0xa18] sm:$0xff]
                %328 = vst [vmem:[%s192 + $0x218] sm:$0xff] %v327
                %v329 = vld [vmem:[%s191 + $0xa20] sm:$0xff]
                %330 = vst [vmem:[%s192 + $0x220] sm:$0xff] %v329
                %v331 = vld [vmem:[%s191 + $0xa28] sm:$0xff]
                %332 = vst [vmem:[%s192 + $0x228] sm:$0xff] %v331
                %v333 = vld [vmem:[%s191 + $0xa30] sm:$0xff]
                %334 = vst [vmem:[%s192 + $0x230] sm:$0xff] %v333
                %v335 = vld [vmem:[%s191 + $0xa38] sm:$0xff]
                %336 = vst [vmem:[%s192 + $0x238] sm:$0xff] %v335
                %v337 = vld [vmem:[%s191 + $0xb40] sm:$0xff]
                %338 = vst [vmem:[%s192 + $0x240] sm:$0xff] %v337
                %v339 = vld [vmem:[%s191 + $0xb48] sm:$0xff]
                %340 = vst [vmem:[%s192 + $0x248] sm:$0xff] %v339
                %v341 = vld [vmem:[%s191 + $0xb50] sm:$0xff]
                %342 = vst [vmem:[%s192 + $0x250] sm:$0xff] %v341
                %v343 = vld [vmem:[%s191 + $0xb58] sm:$0xff]
                %344 = vst [vmem:[%s192 + $0x258] sm:$0xff] %v343
                %v345 = vld [vmem:[%s191 + $0xb60] sm:$0xff]
                %346 = vst [vmem:[%s192 + $0x260] sm:$0xff] %v345
                %v347 = vld [vmem:[%s191 + $0xb68] sm:$0xff]
                %348 = vst [vmem:[%s192 + $0x268] sm:$0xff] %v347
                %v349 = vld [vmem:[%s191 + $0xb70] sm:$0xff]
                %350 = vst [vmem:[%s192 + $0x270] sm:$0xff] %v349
                %v351 = vld [vmem:[%s191 + $0xb78] sm:$0xff]
                %352 = vst [vmem:[%s192 + $0x278] sm:$0xff] %v351
                %v353 = vld [vmem:[%s191 + $0xc80] sm:$0xff]
                %354 = vst [vmem:[%s192 + $0x280] sm:$0xff] %v353
                %v355 = vld [vmem:[%s191 + $0xc88] sm:$0xff]
                %356 = vst [vmem:[%s192 + $0x288] sm:$0xff] %v355
                %v357 = vld [vmem:[%s191 + $0xc90] sm:$0xff]
                %358 = vst [vmem:[%s192 + $0x290] sm:$0xff] %v357
                %v359 = vld [vmem:[%s191 + $0xc98] sm:$0xff]
                %360 = vst [vmem:[%s192 + $0x298] sm:$0xff] %v359
                %v361 = vld [vmem:[%s191 + $0xca0] sm:$0xff]
                %362 = vst [vmem:[%s192 + $0x2a0] sm:$0xff] %v361
                %v363 = vld [vmem:[%s191 + $0xca8] sm:$0xff]
                %364 = vst [vmem:[%s192 + $0x2a8] sm:$0xff] %v363
                %v365 = vld [vmem:[%s191 + $0xcb0] sm:$0xff]
                %366 = vst [vmem:[%s192 + $0x2b0] sm:$0xff] %v365
                %v367 = vld [vmem:[%s191 + $0xcb8] sm:$0xff]
                %368 = vst [vmem:[%s192 + $0x2b8] sm:$0xff] %v367
                %v369 = vld [vmem:[%s191 + $0xdc0] sm:$0xff]
                %370 = vst [vmem:[%s192 + $0x2c0] sm:$0xff] %v369
                %v371 = vld [vmem:[%s191 + $0xdc8] sm:$0xff]
                %372 = vst [vmem:[%s192 + $0x2c8] sm:$0xff] %v371
                %v373 = vld [vmem:[%s191 + $0xdd0] sm:$0xff]
                %374 = vst [vmem:[%s192 + $0x2d0] sm:$0xff] %v373
                %v375 = vld [vmem:[%s191 + $0xdd8] sm:$0xff]
                %376 = vst [vmem:[%s192 + $0x2d8] sm:$0xff] %v375
                %v377 = vld [vmem:[%s191 + $0xde0] sm:$0xff]
                %378 = vst [vmem:[%s192 + $0x2e0] sm:$0xff] %v377
                %v379 = vld [vmem:[%s191 + $0xde8] sm:$0xff]
                %380 = vst [vmem:[%s192 + $0x2e8] sm:$0xff] %v379
                %v381 = vld [vmem:[%s191 + $0xdf0] sm:$0xff]
                %382 = vst [vmem:[%s192 + $0x2f0] sm:$0xff] %v381
                %v383 = vld [vmem:[%s191 + $0xdf8] sm:$0xff]
                %384 = vst [vmem:[%s192 + $0x2f8] sm:$0xff] %v383
              $region45: #{discriminator_forward.5} parent=39 // loop_footer
                %s190 = sadd.s32 1, %s186
              $region46: #{discriminator_forward.5} parent=39 // loop_footer_branch
                %185 = sbr.rel target = $region42
              $region47: #{discriminator_forward.5} parent=39 // loop_exit
                _
            $region40: #{discriminator_forward.5} parent=35 // pred_fallthru
              _
            // Predicated region
            $region48: #{discriminator_forward.5} parent=35 // pred_check
              _
            $region49: #{discriminator_forward.5} parent=35 // pred_check_branch
              %386 = sbr.rel target = $region51
            $region50: #{discriminator_forward.5} parent=35 // pred_region
              _
            $region51: #{discriminator_forward.5} parent=35 // pred_fallthru
              _
          $region36: #{discriminator_forward.5} parent=31 // pred_fallthru
            _
          %387 = vnop
        $region32: #{discriminator_forward.5} parent=27 // pred_fallthru
          _
      $region28: #{discriminator_forward.5} parent=5 // pred_fallthru
        _
      %p388 = scmp.le.s32.totalorder 1, %s10
      %p389 = scmp.lt.s32.totalorder %s10, 11
      %p390 = pnand %p388, %p389
      %p391 = pneg %p390
      // Predicated region
      $region52: #{discriminator_forward.5} parent=5 // pred_check
        _
      $region53: #{discriminator_forward.5} parent=5 // pred_check_branch
        %393 = sbr.rel (%p390) target = $region55
      $region54: #{discriminator_forward.5} parent=5 // pred_region
        %s394 = ssub.s32 %s10, 1
        %s395 = sand.u32 %s37, 1
        %s396 = sand.u32 %s37, 1
        %s397 = smul.addr %s396, 768
        %s398 = scalar_lea.vmem [#allocation2], %s397
        // Predicated region
        $region56: #{discriminator_forward.5} parent=54 // pred_check
          %p399 = pneg %p50
        $region57: #{discriminator_forward.5} parent=54 // pred_check_branch
          %401 = sbr.rel (%p399) target = $region59
        $region58: #{discriminator_forward.5} parent=54 // pred_region
          _
        $region59: #{discriminator_forward.5} parent=54 // pred_fallthru
          _
        %s402 = sand.u32 %s37, 1
        %s403 = sand.u32 %s37, 1
        %s404 = smul.addr %s403, 768
        %s405 = scalar_lea.vmem [#allocation2], %s404
        %p406 = pneg %p50
        %p407 = pneg %p47
        %p408 = pneg %p71
        %p409 = pneg %p68
        %p410 = pneg %p92
        %p411 = pneg %p89
        %p412 = pneg %p113
        %p413 = pneg %p110
        %p414 = pneg %p141
        %p415 = pneg %p138
        %s416 = smul.u32 16, %s20
        %p417 = scmp.lt.s32.totalorder %s19, 1
        %s418 = scalar_select %p417, %s19, 1
        %p419 = scmp.lt.s32.totalorder %s416, 79
        %s420 = scalar_select %p419, %s416, 79
        %s421 = smul.addr %s418, 80
        %s422 = sadd.s32 %s420, %s421
        %s423 = smul.addr %s422, 4
        %s424 = scalar_lea.vmem %s4, %s423
        %s425 = smul.u32 16, %s20
        %s426 = smul.u32 16, %s20
        %p427 = scmp.lt.s32.totalorder %s19, 1
        %s428 = scalar_select %p427, %s19, 1
        %p429 = scmp.lt.s32.totalorder %s426, 79
        %s430 = scalar_select %p429, %s426, 79
        %s431 = smul.addr %s428, 80
        %s432 = sadd.s32 %s430, %s431
        %s433 = smul.addr %s432, 4
        %s434 = scalar_lea.vmem %s4, %s433
        %s435 = smul.u32 16, %s20
        %v437 = vld [vmem:[%s1] sm:$0xf]
        %v438 = vld [vmem:[%s398] sm:$0xff]
        %v439 = vld [vmem:[%s398 + $0x8] sm:$0xff]
        %v440 = vld [vmem:[%s398 + $0x10] sm:$0xff]
        %v441 = vld [vmem:[%s398 + $0x18] sm:$0xff]
        %v442 = vld [vmem:[%s398 + $0x20] sm:$0xff]
        %v443 = vld [vmem:[%s398 + $0x28] sm:$0xff]
        %v444 = vld [vmem:[%s398 + $0x30] sm:$0xff]
        %v445 = vld [vmem:[%s398 + $0x38] sm:$0xff]
        %v446 = vld [vmem:[%s398 + $0x40] sm:$0xff]
        %v447 = vld [vmem:[%s398 + $0x48] sm:$0xff]
        %v448 = vld [vmem:[%s398 + $0x50] sm:$0xff]
        %v449 = vld [vmem:[%s398 + $0x58] sm:$0xff]
        %v450 = vld [vmem:[%s398 + $0x60] sm:$0xff]
        %v451 = vld [vmem:[%s398 + $0x68] sm:$0xff]
        %v452 = vld [vmem:[%s398 + $0x70] sm:$0xff]
        %v453 = vld [vmem:[%s398 + $0x78] sm:$0xff]
        %v454 = vld [vmem:[%s398 + $0x80] sm:$0xff]
        %v455 = vld [vmem:[%s398 + $0x88] sm:$0xff]
        %v456 = vld [vmem:[%s398 + $0x90] sm:$0xff]
        %v457 = vld [vmem:[%s398 + $0x98] sm:$0xff]
        %v458 = vld [vmem:[%s398 + $0xa0] sm:$0xff]
        %v459 = vld [vmem:[%s398 + $0xa8] sm:$0xff]
        %v460 = vld [vmem:[%s398 + $0xb0] sm:$0xff]
        %v461 = vld [vmem:[%s398 + $0xb8] sm:$0xff]
        %v462 = vld [vmem:[%s398 + $0xc0] sm:$0xff]
        %v463 = vld [vmem:[%s398 + $0xc8] sm:$0xff]
        %v464 = vld [vmem:[%s398 + $0xd0] sm:$0xff]
        %v465 = vld [vmem:[%s398 + $0xd8] sm:$0xff]
        %v466 = vld [vmem:[%s398 + $0xe0] sm:$0xff]
        %v467 = vld [vmem:[%s398 + $0xe8] sm:$0xff]
        %v468 = vld [vmem:[%s398 + $0xf0] sm:$0xff]
        %v469 = vld [vmem:[%s398 + $0xf8] sm:$0xff]
        %v470 = vld [vmem:[%s398 + $0x100] sm:$0xff]
        %v471 = vld [vmem:[%s398 + $0x108] sm:$0xff]
        %v472 = vld [vmem:[%s398 + $0x110] sm:$0xff]
        %v473 = vld [vmem:[%s398 + $0x118] sm:$0xff]
        %v474 = vld [vmem:[%s398 + $0x120] sm:$0xff]
        %v475 = vld [vmem:[%s398 + $0x128] sm:$0xff]
        %v476 = vld [vmem:[%s398 + $0x130] sm:$0xff]
        %v477 = vld [vmem:[%s398 + $0x138] sm:$0xff]
        %v478 = vld [vmem:[%s398 + $0x140] sm:$0xff]
        %v479 = vld [vmem:[%s398 + $0x148] sm:$0xff]
        %v480 = vld [vmem:[%s398 + $0x150] sm:$0xff]
        %v481 = vld [vmem:[%s398 + $0x158] sm:$0xff]
        %v482 = vld [vmem:[%s398 + $0x160] sm:$0xff]
        %v483 = vld [vmem:[%s398 + $0x168] sm:$0xff]
        %v484 = vld [vmem:[%s398 + $0x170] sm:$0xff]
        %v485 = vld [vmem:[%s398 + $0x178] sm:$0xff]
        %v486 = vld [vmem:[%s398 + $0x180] sm:$0xff]
        %v487 = vld [vmem:[%s398 + $0x188] sm:$0xff]
        %v488 = vld [vmem:[%s398 + $0x190] sm:$0xff]
        %v489 = vld [vmem:[%s398 + $0x198] sm:$0xff]
        %v490 = vld [vmem:[%s398 + $0x1a0] sm:$0xff]
        %v491 = vld [vmem:[%s398 + $0x1a8] sm:$0xff]
        %v492 = vld [vmem:[%s398 + $0x1b0] sm:$0xff]
        %v493 = vld [vmem:[%s398 + $0x1b8] sm:$0xff]
        %v494 = vld [vmem:[%s398 + $0x1c0] sm:$0xff]
        %v495 = vld [vmem:[%s398 + $0x1c8] sm:$0xff]
        %v496 = vld [vmem:[%s398 + $0x1d0] sm:$0xff]
        %v497 = vld [vmem:[%s398 + $0x1d8] sm:$0xff]
        %v498 = vld [vmem:[%s398 + $0x1e0] sm:$0xff]
        %v499 = vld [vmem:[%s398 + $0x1e8] sm:$0xff]
        %v500 = vld [vmem:[%s398 + $0x1f0] sm:$0xff]
        %v501 = vld [vmem:[%s398 + $0x1f8] sm:$0xff]
        %v502 = vld [vmem:[%s398 + $0x200] sm:$0xff]
        %v503 = vld [vmem:[%s398 + $0x208] sm:$0xff]
        %v504 = vld [vmem:[%s398 + $0x210] sm:$0xff]
        %v505 = vld [vmem:[%s398 + $0x218] sm:$0xff]
        %v506 = vld [vmem:[%s398 + $0x220] sm:$0xff]
        %v507 = vld [vmem:[%s398 + $0x228] sm:$0xff]
        %v508 = vld [vmem:[%s398 + $0x230] sm:$0xff]
        %v509 = vld [vmem:[%s398 + $0x238] sm:$0xff]
        %v510 = vld [vmem:[%s398 + $0x240] sm:$0xff]
        %v511 = vld [vmem:[%s398 + $0x248] sm:$0xff]
        %v512 = vld [vmem:[%s398 + $0x250] sm:$0xff]
        %v513 = vld [vmem:[%s398 + $0x258] sm:$0xff]
        %v514 = vld [vmem:[%s398 + $0x260] sm:$0xff]
        %v515 = vld [vmem:[%s398 + $0x268] sm:$0xff]
        %v516 = vld [vmem:[%s398 + $0x270] sm:$0xff]
        %v517 = vld [vmem:[%s398 + $0x278] sm:$0xff]
        %v518 = vld [vmem:[%s398 + $0x280] sm:$0xff]
        %v519 = vld [vmem:[%s398 + $0x288] sm:$0xff]
        %v520 = vld [vmem:[%s398 + $0x290] sm:$0xff]
        %v521 = vld [vmem:[%s398 + $0x298] sm:$0xff]
        %v522 = vld [vmem:[%s398 + $0x2a0] sm:$0xff]
        %v523 = vld [vmem:[%s398 + $0x2a8] sm:$0xff]
        %v524 = vld [vmem:[%s398 + $0x2b0] sm:$0xff]
        %v525 = vld [vmem:[%s398 + $0x2b8] sm:$0xff]
        %v526 = vld [vmem:[%s398 + $0x2c0] sm:$0xff]
        %v527 = vld [vmem:[%s398 + $0x2c8] sm:$0xff]
        %v528 = vld [vmem:[%s398 + $0x2d0] sm:$0xff]
        %v529 = vld [vmem:[%s398 + $0x2d8] sm:$0xff]
        %v530 = vld [vmem:[%s398 + $0x2e0] sm:$0xff]
        %v531 = vld [vmem:[%s398 + $0x2e8] sm:$0xff]
        %v532 = vld [vmem:[%s398 + $0x2f0] sm:$0xff]
        %v533 = vld [vmem:[%s398 + $0x2f8] sm:$0xff]
        %v630 = vunpack.c.l.b16 %v438
        %v631 = vunpack.c.h.b16 %v438
        %v632 = vunpack.c.l.b16 %v439
        %v633 = vunpack.c.h.b16 %v439
        %v634 = vunpack.c.l.b16 %v440
        %v635 = vunpack.c.h.b16 %v440
        %v636 = vunpack.c.l.b16 %v441
        %v637 = vunpack.c.h.b16 %v441
        %v638 = vunpack.c.l.b16 %v442
        %v639 = vunpack.c.h.b16 %v442
        %v640 = vunpack.c.l.b16 %v443
        %v641 = vunpack.c.h.b16 %v443
        %v642 = vunpack.c.l.b16 %v444
        %v643 = vunpack.c.h.b16 %v444
        %v644 = vunpack.c.l.b16 %v445
        %v645 = vunpack.c.h.b16 %v445
        %v646 = vunpack.c.l.b16 %v446
        %v647 = vunpack.c.h.b16 %v446
        %v648 = vunpack.c.l.b16 %v447
        %v649 = vunpack.c.h.b16 %v447
        %v650 = vunpack.c.l.b16 %v448
        %v651 = vunpack.c.h.b16 %v448
        %v652 = vunpack.c.l.b16 %v449
        %v653 = vunpack.c.h.b16 %v449
        %v654 = vunpack.c.l.b16 %v450
        %v655 = vunpack.c.h.b16 %v450
        %v656 = vunpack.c.l.b16 %v451
        %v657 = vunpack.c.h.b16 %v451
        %v658 = vunpack.c.l.b16 %v452
        %v659 = vunpack.c.h.b16 %v452
        %v660 = vunpack.c.l.b16 %v453
        %v661 = vunpack.c.h.b16 %v453
        %v662 = vunpack.c.l.b16 %v454
        %v663 = vunpack.c.h.b16 %v454
        %v664 = vunpack.c.l.b16 %v455
        %v665 = vunpack.c.h.b16 %v455
        %v666 = vunpack.c.l.b16 %v456
        %v667 = vunpack.c.h.b16 %v456
        %v668 = vunpack.c.l.b16 %v457
        %v669 = vunpack.c.h.b16 %v457
        %v670 = vunpack.c.l.b16 %v458
        %v671 = vunpack.c.h.b16 %v458
        %v672 = vunpack.c.l.b16 %v459
        %v673 = vunpack.c.h.b16 %v459
        %v674 = vunpack.c.l.b16 %v460
        %v675 = vunpack.c.h.b16 %v460
        %v676 = vunpack.c.l.b16 %v461
        %v677 = vunpack.c.h.b16 %v461
        %v678 = vunpack.c.l.b16 %v462
        %v679 = vunpack.c.h.b16 %v462
        %v680 = vunpack.c.l.b16 %v463
        %v681 = vunpack.c.h.b16 %v463
        %v682 = vunpack.c.l.b16 %v464
        %v683 = vunpack.c.h.b16 %v464
        %v684 = vunpack.c.l.b16 %v465
        %v685 = vunpack.c.h.b16 %v465
        %v686 = vunpack.c.l.b16 %v466
        %v687 = vunpack.c.h.b16 %v466
        %v688 = vunpack.c.l.b16 %v467
        %v689 = vunpack.c.h.b16 %v467
        %v690 = vunpack.c.l.b16 %v468
        %v691 = vunpack.c.h.b16 %v468
        %v692 = vunpack.c.l.b16 %v469
        %v693 = vunpack.c.h.b16 %v469
        %v694 = vunpack.c.l.b16 %v470
        %v695 = vunpack.c.h.b16 %v470
        %v696 = vunpack.c.l.b16 %v471
        %v697 = vunpack.c.h.b16 %v471
        %v698 = vunpack.c.l.b16 %v472
        %v699 = vunpack.c.h.b16 %v472
        %v700 = vunpack.c.l.b16 %v473
        %v701 = vunpack.c.h.b16 %v473
        %v702 = vunpack.c.l.b16 %v474
        %v703 = vunpack.c.h.b16 %v474
        %v704 = vunpack.c.l.b16 %v475
        %v705 = vunpack.c.h.b16 %v475
        %v706 = vunpack.c.l.b16 %v476
        %v707 = vunpack.c.h.b16 %v476
        %v708 = vunpack.c.l.b16 %v477
        %v709 = vunpack.c.h.b16 %v477
        %v710 = vunpack.c.l.b16 %v478
        %v711 = vunpack.c.h.b16 %v478
        %v712 = vunpack.c.l.b16 %v479
        %v713 = vunpack.c.h.b16 %v479
        %v714 = vunpack.c.l.b16 %v480
        %v715 = vunpack.c.h.b16 %v480
        %v716 = vunpack.c.l.b16 %v481
        %v717 = vunpack.c.h.b16 %v481
        %v718 = vunpack.c.l.b16 %v482
        %v719 = vunpack.c.h.b16 %v482
        %v720 = vunpack.c.l.b16 %v483
        %v721 = vunpack.c.h.b16 %v483
        %v722 = vunpack.c.l.b16 %v484
        %v723 = vunpack.c.h.b16 %v484
        %v724 = vunpack.c.l.b16 %v485
        %v725 = vunpack.c.h.b16 %v485
        %v726 = vunpack.c.l.b16 %v486
        %v727 = vunpack.c.h.b16 %v486
        %v728 = vunpack.c.l.b16 %v487
        %v729 = vunpack.c.h.b16 %v487
        %v730 = vunpack.c.l.b16 %v488
        %v731 = vunpack.c.h.b16 %v488
        %v732 = vunpack.c.l.b16 %v489
        %v733 = vunpack.c.h.b16 %v489
        %v734 = vunpack.c.l.b16 %v490
        %v735 = vunpack.c.h.b16 %v490
        %v736 = vunpack.c.l.b16 %v491
        %v737 = vunpack.c.h.b16 %v491
        %v738 = vunpack.c.l.b16 %v492
        %v739 = vunpack.c.h.b16 %v492
        %v740 = vunpack.c.l.b16 %v493
        %v741 = vunpack.c.h.b16 %v493
        %v742 = vunpack.c.l.b16 %v494
        %v743 = vunpack.c.h.b16 %v494
        %v744 = vunpack.c.l.b16 %v495
        %v745 = vunpack.c.h.b16 %v495
        %v746 = vunpack.c.l.b16 %v496
        %v747 = vunpack.c.h.b16 %v496
        %v748 = vunpack.c.l.b16 %v497
        %v749 = vunpack.c.h.b16 %v497
        %v750 = vunpack.c.l.b16 %v498
        %v751 = vunpack.c.h.b16 %v498
        %v752 = vunpack.c.l.b16 %v499
        %v753 = vunpack.c.h.b16 %v499
        %v754 = vunpack.c.l.b16 %v500
        %v755 = vunpack.c.h.b16 %v500
        %v756 = vunpack.c.l.b16 %v501
        %v757 = vunpack.c.h.b16 %v501
        %v758 = vunpack.c.l.b16 %v502
        %v759 = vunpack.c.h.b16 %v502
        %v760 = vunpack.c.l.b16 %v503
        %v761 = vunpack.c.h.b16 %v503
        %v762 = vunpack.c.l.b16 %v504
        %v763 = vunpack.c.h.b16 %v504
        %v764 = vunpack.c.l.b16 %v505
        %v765 = vunpack.c.h.b16 %v505
        %v766 = vunpack.c.l.b16 %v506
        %v767 = vunpack.c.h.b16 %v506
        %v768 = vunpack.c.l.b16 %v507
        %v769 = vunpack.c.h.b16 %v507
        %v770 = vunpack.c.l.b16 %v508
        %v771 = vunpack.c.h.b16 %v508
        %v772 = vunpack.c.l.b16 %v509
        %v773 = vunpack.c.h.b16 %v509
        %v774 = vunpack.c.l.b16 %v510
        %v775 = vunpack.c.h.b16 %v510
        %v776 = vunpack.c.l.b16 %v511
        %v777 = vunpack.c.h.b16 %v511
        %v778 = vunpack.c.l.b16 %v512
        %v779 = vunpack.c.h.b16 %v512
        %v780 = vunpack.c.l.b16 %v513
        %v781 = vunpack.c.h.b16 %v513
        %v782 = vunpack.c.l.b16 %v514
        %v783 = vunpack.c.h.b16 %v514
        %v784 = vunpack.c.l.b16 %v515
        %v785 = vunpack.c.h.b16 %v515
        %v786 = vunpack.c.l.b16 %v516
        %v787 = vunpack.c.h.b16 %v516
        %v788 = vunpack.c.l.b16 %v517
        %v789 = vunpack.c.h.b16 %v517
        %v790 = vunpack.c.l.b16 %v518
        %v791 = vunpack.c.h.b16 %v518
        %v792 = vunpack.c.l.b16 %v519
        %v793 = vunpack.c.h.b16 %v519
        %v794 = vunpack.c.l.b16 %v520
        %v795 = vunpack.c.h.b16 %v520
        %v796 = vunpack.c.l.b16 %v521
        %v797 = vunpack.c.h.b16 %v521
        %v798 = vunpack.c.l.b16 %v522
        %v799 = vunpack.c.h.b16 %v522
        %v800 = vunpack.c.l.b16 %v523
        %v801 = vunpack.c.h.b16 %v523
        %v802 = vunpack.c.l.b16 %v524
        %v803 = vunpack.c.h.b16 %v524
        %v804 = vunpack.c.l.b16 %v525
        %v805 = vunpack.c.h.b16 %v525
        %v806 = vunpack.c.l.b16 %v526
        %v807 = vunpack.c.h.b16 %v526
        %v808 = vunpack.c.l.b16 %v527
        %v809 = vunpack.c.h.b16 %v527
        %v810 = vunpack.c.l.b16 %v528
        %v811 = vunpack.c.h.b16 %v528
        %v812 = vunpack.c.l.b16 %v529
        %v813 = vunpack.c.h.b16 %v529
        %v814 = vunpack.c.l.b16 %v530
        %v815 = vunpack.c.h.b16 %v530
        %v816 = vunpack.c.l.b16 %v531
        %v817 = vunpack.c.h.b16 %v531
        %v818 = vunpack.c.l.b16 %v532
        %v819 = vunpack.c.h.b16 %v532
        %v820 = vunpack.c.l.b16 %v533
        %v821 = vunpack.c.h.b16 %v533
        %v822 = vpack.c.b16 %v646, %v630
        %v823 = vpack.c.b16 %v647, %v631
        %v824 = vpack.c.b16 %v648, %v632
        %v825 = vpack.c.b16 %v649, %v633
        %v826 = vpack.c.b16 %v650, %v634
        %v827 = vpack.c.b16 %v651, %v635
        %v828 = vpack.c.b16 %v652, %v636
        %v829 = vpack.c.b16 %v653, %v637
        %v830 = vpack.c.b16 %v654, %v638
        %v831 = vpack.c.b16 %v655, %v639
        %v832 = vpack.c.b16 %v656, %v640
        %v833 = vpack.c.b16 %v657, %v641
        %v834 = vpack.c.b16 %v658, %v642
        %v835 = vpack.c.b16 %v659, %v643
        %v836 = vpack.c.b16 %v660, %v644
        %v837 = vpack.c.b16 %v661, %v645
        %v838 = vpack.c.b16 %v678, %v662
        %v839 = vpack.c.b16 %v679, %v663
        %v840 = vpack.c.b16 %v680, %v664
        %v841 = vpack.c.b16 %v681, %v665
        %v842 = vpack.c.b16 %v682, %v666
        %v843 = vpack.c.b16 %v683, %v667
        %v844 = vpack.c.b16 %v684, %v668
        %v845 = vpack.c.b16 %v685, %v669
        %v846 = vpack.c.b16 %v686, %v670
        %v847 = vpack.c.b16 %v687, %v671
        %v848 = vpack.c.b16 %v688, %v672
        %v849 = vpack.c.b16 %v689, %v673
        %v850 = vpack.c.b16 %v690, %v674
        %v851 = vpack.c.b16 %v691, %v675
        %v852 = vpack.c.b16 %v692, %v676
        %v853 = vpack.c.b16 %v693, %v677
        %v854 = vpack.c.b16 %v710, %v694
        %v855 = vpack.c.b16 %v711, %v695
        %v856 = vpack.c.b16 %v712, %v696
        %v857 = vpack.c.b16 %v713, %v697
        %v858 = vpack.c.b16 %v714, %v698
        %v859 = vpack.c.b16 %v715, %v699
        %v860 = vpack.c.b16 %v716, %v700
        %v861 = vpack.c.b16 %v717, %v701
        %v862 = vpack.c.b16 %v718, %v702
        %v863 = vpack.c.b16 %v719, %v703
        %v864 = vpack.c.b16 %v720, %v704
        %v865 = vpack.c.b16 %v721, %v705
        %v866 = vpack.c.b16 %v722, %v706
        %v867 = vpack.c.b16 %v723, %v707
        %v868 = vpack.c.b16 %v724, %v708
        %v869 = vpack.c.b16 %v725, %v709
        %v870 = vpack.c.b16 %v742, %v726
        %v871 = vpack.c.b16 %v743, %v727
        %v872 = vpack.c.b16 %v744, %v728
        %v873 = vpack.c.b16 %v745, %v729
        %v874 = vpack.c.b16 %v746, %v730
        %v875 = vpack.c.b16 %v747, %v731
        %v876 = vpack.c.b16 %v748, %v732
        %v877 = vpack.c.b16 %v749, %v733
        %v878 = vpack.c.b16 %v750, %v734
        %v879 = vpack.c.b16 %v751, %v735
        %v880 = vpack.c.b16 %v752, %v736
        %v881 = vpack.c.b16 %v753, %v737
        %v882 = vpack.c.b16 %v754, %v738
        %v883 = vpack.c.b16 %v755, %v739
        %v884 = vpack.c.b16 %v756, %v740
        %v885 = vpack.c.b16 %v757, %v741
        %v886 = vpack.c.b16 %v774, %v758
        %v887 = vpack.c.b16 %v775, %v759
        %v888 = vpack.c.b16 %v776, %v760
        %v889 = vpack.c.b16 %v777, %v761
        %v890 = vpack.c.b16 %v778, %v762
        %v891 = vpack.c.b16 %v779, %v763
        %v892 = vpack.c.b16 %v780, %v764
        %v893 = vpack.c.b16 %v781, %v765
        %v894 = vpack.c.b16 %v782, %v766
        %v895 = vpack.c.b16 %v783, %v767
        %v896 = vpack.c.b16 %v784, %v768
        %v897 = vpack.c.b16 %v785, %v769
        %v898 = vpack.c.b16 %v786, %v770
        %v899 = vpack.c.b16 %v787, %v771
        %v900 = vpack.c.b16 %v788, %v772
        %v901 = vpack.c.b16 %v789, %v773
        %v902 = vpack.c.b16 %v806, %v790
        %v903 = vpack.c.b16 %v807, %v791
        %v904 = vpack.c.b16 %v808, %v792
        %v905 = vpack.c.b16 %v809, %v793
        %v906 = vpack.c.b16 %v810, %v794
        %v907 = vpack.c.b16 %v811, %v795
        %v908 = vpack.c.b16 %v812, %v796
        %v909 = vpack.c.b16 %v813, %v797
        %v910 = vpack.c.b16 %v814, %v798
        %v911 = vpack.c.b16 %v815, %v799
        %v912 = vpack.c.b16 %v816, %v800
        %v913 = vpack.c.b16 %v817, %v801
        %v914 = vpack.c.b16 %v818, %v802
        %v915 = vpack.c.b16 %v819, %v803
        %v916 = vpack.c.b16 %v820, %v804
        %v917 = vpack.c.b16 %v821, %v805
        %vm1014 = vcmask 785408
        %v1016 = vsel %vm1014, %v437, 0
        %1018 = vmatprep.subr.bf16.mxu0 %v823
        %1019 = vmatpush1.bf16.msra.mxu0 %v822
        %1020 = vmatprep.subr.bf16.mxu0 %v839
        %1021 = vmatpush1.bf16.msra.mxu0 %v838
        %1022 = vmatprep.subr.bf16.mxu0 %v855
        %1023 = vmatpush1.bf16.msra.mxu0 %v854
        %1024 = vmatprep.subr.bf16.mxu0 %v871
        %1025 = vmatpush1.bf16.msra.mxu0 %v870
        %1026 = vmatprep.subr.bf16.mxu0 %v887
        %1027 = vmatpush1.bf16.msra.mxu0 %v886
        %1028 = vmatprep.subr.bf16.mxu0 %v903
        %1029 = vmatpush1.bf16.msra.mxu0 %v902
        %1030 = vmatprep.subr.bf16.mxu0 0
        %1031 = vmatpush1.bf16.msra.mxu0 0
        %1032 = vmatprep.subr.bf16.mxu0 0
        %1033 = vmatpush1.bf16.msra.mxu0 0
        %1034 = vmatprep.subr.bf16.mxu0 0
        %1035 = vmatpush1.bf16.msra.mxu0 0
        %1036 = vmatprep.subr.bf16.mxu0 0
        %1037 = vmatpush1.bf16.msra.mxu0 0
        %1038 = vmatprep.subr.bf16.mxu0 0
        %1039 = vmatpush1.bf16.msra.mxu0 0
        %1040 = vmatprep.subr.bf16.mxu0 0
        %1041 = vmatpush1.bf16.msra.mxu0 0
        %1042 = vmatprep.subr.bf16.mxu0 0
        %1043 = vmatpush1.bf16.msra.mxu0 0
        %1044 = vmatprep.subr.bf16.mxu0 0
        %1045 = vmatpush1.bf16.msra.mxu0 0
        %1046 = vmatprep.subr.bf16.mxu0 0
        %1047 = vmatpush1.bf16.msra.mxu0 0
        %1048 = vmatprep.subr.bf16.mxu0 0
        %1049 = vmatpush1.bf16.msra.mxu0 0
        %1050 = vmatprep.mubr.bf16.mxu0 0
        %1051 = vmatmul.mubr.bf16.gmra.mrb[0].mxu0 %v1016
        %v1052 = vpop.f32.mrb[0].mxu0
        %v1053 = vadd.f32 0.0, %v1052
        %v1054 = vpop.f32.mrb[0].mxu0
        %v1055 = vadd.f32 0.0, %v1054
        %v1056 = vpop.f32.mrb[0].mxu0
        %v1057 = vpop.f32.mrb[0].mxu0
        %1058 = vdwg.mxu0
        %1059 = vmatprep.subr.bf16.mxu0 %v825
        %1060 = vmatpush1.bf16.msra.mxu0 %v824
        %1061 = vmatprep.subr.bf16.mxu0 %v841
        %1062 = vmatpush1.bf16.msra.mxu0 %v840
        %1063 = vmatprep.subr.bf16.mxu0 %v857
        %1064 = vmatpush1.bf16.msra.mxu0 %v856
        %1065 = vmatprep.subr.bf16.mxu0 %v873
        %1066 = vmatpush1.bf16.msra.mxu0 %v872
        %1067 = vmatprep.subr.bf16.mxu0 %v889
        %1068 = vmatpush1.bf16.msra.mxu0 %v888
        %1069 = vmatprep.subr.bf16.mxu0 %v905
        %1070 = vmatpush1.bf16.msra.mxu0 %v904
        %1071 = vmatprep.subr.bf16.mxu0 0
        %1072 = vmatpush1.bf16.msra.mxu0 0
        %1073 = vmatprep.subr.bf16.mxu0 0
        %1074 = vmatpush1.bf16.msra.mxu0 0
        %1075 = vmatprep.subr.bf16.mxu0 0
        %1076 = vmatpush1.bf16.msra.mxu0 0
        %1077 = vmatprep.subr.bf16.mxu0 0
        %1078 = vmatpush1.bf16.msra.mxu0 0
        %1079 = vmatprep.subr.bf16.mxu0 0
        %1080 = vmatpush1.bf16.msra.mxu0 0
        %1081 = vmatprep.subr.bf16.mxu0 0
        %1082 = vmatpush1.bf16.msra.mxu0 0
        %1083 = vmatprep.subr.bf16.mxu0 0
        %1084 = vmatpush1.bf16.msra.mxu0 0
        %1085 = vmatprep.subr.bf16.mxu0 0
        %1086 = vmatpush1.bf16.msra.mxu0 0
        %1087 = vmatprep.subr.bf16.mxu0 0
        %1088 = vmatpush1.bf16.msra.mxu0 0
        %1089 = vmatprep.subr.bf16.mxu0 0
        %1090 = vmatpush1.bf16.msra.mxu0 0
        %1091 = vmatprep.mubr.bf16.mxu0 0
        %1092 = vmatmul.mubr.bf16.gmra.mrb[0].mxu0 %v1016
        %v1093 = vpop.f32.mrb[0].mxu0
        %v1094 = vadd.f32 0.0, %v1093
        %v1095 = vpop.f32.mrb[0].mxu0
        %v1096 = vadd.f32 0.0, %v1095
        %v1097 = vpop.f32.mrb[0].mxu0
        %v1098 = vpop.f32.mrb[0].mxu0
        %1099 = vdwg.mxu0
        %1100 = vmatprep.subr.bf16.mxu0 %v827
        %1101 = vmatpush1.bf16.msra.mxu0 %v826
        %1102 = vmatprep.subr.bf16.mxu0 %v843
        %1103 = vmatpush1.bf16.msra.mxu0 %v842
        %1104 = vmatprep.subr.bf16.mxu0 %v859
        %1105 = vmatpush1.bf16.msra.mxu0 %v858
        %1106 = vmatprep.subr.bf16.mxu0 %v875
        %1107 = vmatpush1.bf16.msra.mxu0 %v874
        %1108 = vmatprep.subr.bf16.mxu0 %v891
        %1109 = vmatpush1.bf16.msra.mxu0 %v890
        %1110 = vmatprep.subr.bf16.mxu0 %v907
        %1111 = vmatpush1.bf16.msra.mxu0 %v906
        %1112 = vmatprep.subr.bf16.mxu0 0
        %1113 = vmatpush1.bf16.msra.mxu0 0
        %1114 = vmatprep.subr.bf16.mxu0 0
        %1115 = vmatpush1.bf16.msra.mxu0 0
        %1116 = vmatprep.subr.bf16.mxu0 0
        %1117 = vmatpush1.bf16.msra.mxu0 0
        %1118 = vmatprep.subr.bf16.mxu0 0
        %1119 = vmatpush1.bf16.msra.mxu0 0
        %1120 = vmatprep.subr.bf16.mxu0 0
        %1121 = vmatpush1.bf16.msra.mxu0 0
        %1122 = vmatprep.subr.bf16.mxu0 0
        %1123 = vmatpush1.bf16.msra.mxu0 0
        %1124 = vmatprep.subr.bf16.mxu0 0
        %1125 = vmatpush1.bf16.msra.mxu0 0
        %1126 = vmatprep.subr.bf16.mxu0 0
        %1127 = vmatpush1.bf16.msra.mxu0 0
        %1128 = vmatprep.subr.bf16.mxu0 0
        %1129 = vmatpush1.bf16.msra.mxu0 0
        %1130 = vmatprep.subr.bf16.mxu0 0
        %1131 = vmatpush1.bf16.msra.mxu0 0
        %1132 = vmatprep.mubr.bf16.mxu0 0
        %1133 = vmatmul.mubr.bf16.gmra.mrb[0].mxu0 %v1016
        %v1134 = vpop.f32.mrb[0].mxu0
        %v1135 = vadd.f32 0.0, %v1134
        %v1136 = vpop.f32.mrb[0].mxu0
        %v1137 = vadd.f32 0.0, %v1136
        %v1138 = vpop.f32.mrb[0].mxu0
        %v1139 = vpop.f32.mrb[0].mxu0
        %1140 = vdwg.mxu0
        %1141 = vmatprep.subr.bf16.mxu0 %v829
        %1142 = vmatpush1.bf16.msra.mxu0 %v828
        %1143 = vmatprep.subr.bf16.mxu0 %v845
        %1144 = vmatpush1.bf16.msra.mxu0 %v844
        %1145 = vmatprep.subr.bf16.mxu0 %v861
        %1146 = vmatpush1.bf16.msra.mxu0 %v860
        %1147 = vmatprep.subr.bf16.mxu0 %v877
        %1148 = vmatpush1.bf16.msra.mxu0 %v876
        %1149 = vmatprep.subr.bf16.mxu0 %v893
        %1150 = vmatpush1.bf16.msra.mxu0 %v892
        %1151 = vmatprep.subr.bf16.mxu0 %v909
        %1152 = vmatpush1.bf16.msra.mxu0 %v908
        %1153 = vmatprep.subr.bf16.mxu0 0
        %1154 = vmatpush1.bf16.msra.mxu0 0
        %1155 = vmatprep.subr.bf16.mxu0 0
        %1156 = vmatpush1.bf16.msra.mxu0 0
        %1157 = vmatprep.subr.bf16.mxu0 0
        %1158 = vmatpush1.bf16.msra.mxu0 0
        %1159 = vmatprep.subr.bf16.mxu0 0
        %1160 = vmatpush1.bf16.msra.mxu0 0
        %1161 = vmatprep.subr.bf16.mxu0 0
        %1162 = vmatpush1.bf16.msra.mxu0 0
        %1163 = vmatprep.subr.bf16.mxu0 0
        %1164 = vmatpush1.bf16.msra.mxu0 0
        %1165 = vmatprep.subr.bf16.mxu0 0
        %1166 = vmatpush1.bf16.msra.mxu0 0
        %1167 = vmatprep.subr.bf16.mxu0 0
        %1168 = vmatpush1.bf16.msra.mxu0 0
        %1169 = vmatprep.subr.bf16.mxu0 0
        %1170 = vmatpush1.bf16.msra.mxu0 0
        %1171 = vmatprep.subr.bf16.mxu0 0
        %1172 = vmatpush1.bf16.msra.mxu0 0
        %1173 = vmatprep.mubr.bf16.mxu0 0
        %1174 = vmatmul.mubr.bf16.gmra.mrb[0].mxu0 %v1016
        %v1175 = vpop.f32.mrb[0].mxu0
        %v1176 = vadd.f32 0.0, %v1175
        %v1177 = vpop.f32.mrb[0].mxu0
        %v1178 = vadd.f32 0.0, %v1177
        %v1179 = vpop.f32.mrb[0].mxu0
        %v1180 = vpop.f32.mrb[0].mxu0
        %1181 = vdwg.mxu0
        %1182 = vmatprep.subr.bf16.mxu0 %v831
        %1183 = vmatpush1.bf16.msra.mxu0 %v830
        %1184 = vmatprep.subr.bf16.mxu0 %v847
        %1185 = vmatpush1.bf16.msra.mxu0 %v846
        %1186 = vmatprep.subr.bf16.mxu0 %v863
        %1187 = vmatpush1.bf16.msra.mxu0 %v862
        %1188 = vmatprep.subr.bf16.mxu0 %v879
        %1189 = vmatpush1.bf16.msra.mxu0 %v878
        %1190 = vmatprep.subr.bf16.mxu0 %v895
        %1191 = vmatpush1.bf16.msra.mxu0 %v894
        %1192 = vmatprep.subr.bf16.mxu0 %v911
        %1193 = vmatpush1.bf16.msra.mxu0 %v910
        %1194 = vmatprep.subr.bf16.mxu0 0
        %1195 = vmatpush1.bf16.msra.mxu0 0
        %1196 = vmatprep.subr.bf16.mxu0 0
        %1197 = vmatpush1.bf16.msra.mxu0 0
        %1198 = vmatprep.subr.bf16.mxu0 0
        %1199 = vmatpush1.bf16.msra.mxu0 0
        %1200 = vmatprep.subr.bf16.mxu0 0
        %1201 = vmatpush1.bf16.msra.mxu0 0
        %1202 = vmatprep.subr.bf16.mxu0 0
        %1203 = vmatpush1.bf16.msra.mxu0 0
        %1204 = vmatprep.subr.bf16.mxu0 0
        %1205 = vmatpush1.bf16.msra.mxu0 0
        %1206 = vmatprep.subr.bf16.mxu0 0
        %1207 = vmatpush1.bf16.msra.mxu0 0
        %1208 = vmatprep.subr.bf16.mxu0 0
        %1209 = vmatpush1.bf16.msra.mxu0 0
        %1210 = vmatprep.subr.bf16.mxu0 0
        %1211 = vmatpush1.bf16.msra.mxu0 0
        %1212 = vmatprep.subr.bf16.mxu0 0
        %1213 = vmatpush1.bf16.msra.mxu0 0
        %1214 = vmatprep.mubr.bf16.mxu0 0
        %1215 = vmatmul.mubr.bf16.gmra.mrb[0].mxu0 %v1016
        %v1216 = vpop.f32.mrb[0].mxu0
        %v1217 = vadd.f32 0.0, %v1216
        %v1218 = vpop.f32.mrb[0].mxu0
        %v1219 = vadd.f32 0.0, %v1218
        %v1220 = vpop.f32.mrb[0].mxu0
        %v1221 = vpop.f32.mrb[0].mxu0
        %1222 = vdwg.mxu0
        %1223 = vmatprep.subr.bf16.mxu0 %v833
        %1224 = vmatpush1.bf16.msra.mxu0 %v832
        %1225 = vmatprep.subr.bf16.mxu0 %v849
        %1226 = vmatpush1.bf16.msra.mxu0 %v848
        %1227 = vmatprep.subr.bf16.mxu0 %v865
        %1228 = vmatpush1.bf16.msra.mxu0 %v864
        %1229 = vmatprep.subr.bf16.mxu0 %v881
        %1230 = vmatpush1.bf16.msra.mxu0 %v880
        %1231 = vmatprep.subr.bf16.mxu0 %v897
        %1232 = vmatpush1.bf16.msra.mxu0 %v896
        %1233 = vmatprep.subr.bf16.mxu0 %v913
        %1234 = vmatpush1.bf16.msra.mxu0 %v912
        %1235 = vmatprep.subr.bf16.mxu0 0
        %1236 = vmatpush1.bf16.msra.mxu0 0
        %1237 = vmatprep.subr.bf16.mxu0 0
        %1238 = vmatpush1.bf16.msra.mxu0 0
        %1239 = vmatprep.subr.bf16.mxu0 0
        %1240 = vmatpush1.bf16.msra.mxu0 0
        %1241 = vmatprep.subr.bf16.mxu0 0
        %1242 = vmatpush1.bf16.msra.mxu0 0
        %1243 = vmatprep.subr.bf16.mxu0 0
        %1244 = vmatpush1.bf16.msra.mxu0 0
        %1245 = vmatprep.subr.bf16.mxu0 0
        %1246 = vmatpush1.bf16.msra.mxu0 0
        %1247 = vmatprep.subr.bf16.mxu0 0
        %1248 = vmatpush1.bf16.msra.mxu0 0
        %1249 = vmatprep.subr.bf16.mxu0 0
        %1250 = vmatpush1.bf16.msra.mxu0 0
        %1251 = vmatprep.subr.bf16.mxu0 0
        %1252 = vmatpush1.bf16.msra.mxu0 0
        %1253 = vmatprep.subr.bf16.mxu0 0
        %1254 = vmatpush1.bf16.msra.mxu0 0
        %1255 = vmatprep.mubr.bf16.mxu0 0
        %1256 = vmatmul.mubr.bf16.gmra.mrb[0].mxu0 %v1016
        %v1257 = vpop.f32.mrb[0].mxu0
        %v1258 = vadd.f32 0.0, %v1257
        %v1259 = vpop.f32.mrb[0].mxu0
        %v1260 = vadd.f32 0.0, %v1259
        %v1261 = vpop.f32.mrb[0].mxu0
        %v1262 = vpop.f32.mrb[0].mxu0
        %1263 = vdwg.mxu0
        %1264 = vmatprep.subr.bf16.mxu0 %v835
        %1265 = vmatpush1.bf16.msra.mxu0 %v834
        %1266 = vmatprep.subr.bf16.mxu0 %v851
        %1267 = vmatpush1.bf16.msra.mxu0 %v850
        %1268 = vmatprep.subr.bf16.mxu0 %v867
        %1269 = vmatpush1.bf16.msra.mxu0 %v866
        %1270 = vmatprep.subr.bf16.mxu0 %v883
        %1271 = vmatpush1.bf16.msra.mxu0 %v882
        %1272 = vmatprep.subr.bf16.mxu0 %v899
        %1273 = vmatpush1.bf16.msra.mxu0 %v898
        %1274 = vmatprep.subr.bf16.mxu0 %v915
        %1275 = vmatpush1.bf16.msra.mxu0 %v914
        %1276 = vmatprep.subr.bf16.mxu0 0
        %1277 = vmatpush1.bf16.msra.mxu0 0
        %1278 = vmatprep.subr.bf16.mxu0 0
        %1279 = vmatpush1.bf16.msra.mxu0 0
        %1280 = vmatprep.subr.bf16.mxu0 0
        %1281 = vmatpush1.bf16.msra.mxu0 0
        %1282 = vmatprep.subr.bf16.mxu0 0
        %1283 = vmatpush1.bf16.msra.mxu0 0
        %1284 = vmatprep.subr.bf16.mxu0 0
        %1285 = vmatpush1.bf16.msra.mxu0 0
        %1286 = vmatprep.subr.bf16.mxu0 0
        %1287 = vmatpush1.bf16.msra.mxu0 0
        %1288 = vmatprep.subr.bf16.mxu0 0
        %1289 = vmatpush1.bf16.msra.mxu0 0
        %1290 = vmatprep.subr.bf16.mxu0 0
        %1291 = vmatpush1.bf16.msra.mxu0 0
        %1292 = vmatprep.subr.bf16.mxu0 0
        %1293 = vmatpush1.bf16.msra.mxu0 0
        %1294 = vmatprep.subr.bf16.mxu0 0
        %1295 = vmatpush1.bf16.msra.mxu0 0
        %1296 = vmatprep.mubr.bf16.mxu0 0
        %1297 = vmatmul.mubr.bf16.gmra.mrb[0].mxu0 %v1016
        %v1298 = vpop.f32.mrb[0].mxu0
        %v1299 = vadd.f32 0.0, %v1298
        %v1300 = vpop.f32.mrb[0].mxu0
        %v1301 = vadd.f32 0.0, %v1300
        %v1302 = vpop.f32.mrb[0].mxu0
        %v1303 = vpop.f32.mrb[0].mxu0
        %1304 = vdwg.mxu0
        %1305 = vmatprep.subr.bf16.mxu0 %v837
        %1306 = vmatpush1.bf16.msra.mxu0 %v836
        %1307 = vmatprep.subr.bf16.mxu0 %v853
        %1308 = vmatpush1.bf16.msra.mxu0 %v852
        %1309 = vmatprep.subr.bf16.mxu0 %v869
        %1310 = vmatpush1.bf16.msra.mxu0 %v868
        %1311 = vmatprep.subr.bf16.mxu0 %v885
        %1312 = vmatpush1.bf16.msra.mxu0 %v884
        %1313 = vmatprep.subr.bf16.mxu0 %v901
        %1314 = vmatpush1.bf16.msra.mxu0 %v900
        %1315 = vmatprep.subr.bf16.mxu0 %v917
        %1316 = vmatpush1.bf16.msra.mxu0 %v916
        %1317 = vmatprep.subr.bf16.mxu0 0
        %1318 = vmatpush1.bf16.msra.mxu0 0
        %1319 = vmatprep.subr.bf16.mxu0 0
        %1320 = vmatpush1.bf16.msra.mxu0 0
        %1321 = vmatprep.subr.bf16.mxu0 0
        %1322 = vmatpush1.bf16.msra.mxu0 0
        %1323 = vmatprep.subr.bf16.mxu0 0
        %1324 = vmatpush1.bf16.msra.mxu0 0
        %1325 = vmatprep.subr.bf16.mxu0 0
        %1326 = vmatpush1.bf16.msra.mxu0 0
        %1327 = vmatprep.subr.bf16.mxu0 0
        %1328 = vmatpush1.bf16.msra.mxu0 0
        %1329 = vmatprep.subr.bf16.mxu0 0
        %1330 = vmatpush1.bf16.msra.mxu0 0
        %1331 = vmatprep.subr.bf16.mxu0 0
        %1332 = vmatpush1.bf16.msra.mxu0 0
        %1333 = vmatprep.subr.bf16.mxu0 0
        %1334 = vmatpush1.bf16.msra.mxu0 0
        %1335 = vmatprep.subr.bf16.mxu0 0
        %1336 = vmatpush1.bf16.msra.mxu0 0
        %1337 = vmatprep.mubr.bf16.mxu0 0
        %1338 = vmatmul.mubr.bf16.gmra.mrb[0].mxu0 %v1016
        %v1339 = vpop.f32.mrb[0].mxu0
        %v1340 = vadd.f32 0.0, %v1339
        %v1341 = vpop.f32.mrb[0].mxu0
        %v1342 = vadd.f32 0.0, %v1341
        %v1343 = vpop.f32.mrb[0].mxu0
        %v1344 = vpop.f32.mrb[0].mxu0
        %1345 = vdwg.mxu0
        %v1346 = vld [vmem:[%s2] sm:$0xff]
        %1348 = vset.pattern.permute.xlu0 0
        %1349 = vperm.xlu0 %1348, %v1346
        %v1350 = vpop.permute.xlu0 %1349
        %v1352 = vmul.f32 %v1053, %v1350
        %v1353 = vmul.f32 %v1055, %v1350
        %v1354 = vmul.f32 %v1094, %v1350
        %v1355 = vmul.f32 %v1096, %v1350
        %v1356 = vmul.f32 %v1135, %v1350
        %v1357 = vmul.f32 %v1137, %v1350
        %v1358 = vmul.f32 %v1176, %v1350
        %v1359 = vmul.f32 %v1178, %v1350
        %v1360 = vmul.f32 %v1217, %v1350
        %v1361 = vmul.f32 %v1219, %v1350
        %v1362 = vmul.f32 %v1258, %v1350
        %v1363 = vmul.f32 %v1260, %v1350
        %v1364 = vmul.f32 %v1299, %v1350
        %v1365 = vmul.f32 %v1301, %v1350
        %v1366 = vmul.f32 %v1340, %v1350
        %v1367 = vmul.f32 %v1342, %v1350
        %v1368 = vld [vmem:[%s3] sm:$0xff]
        %1370 = vset.pattern.permute.xlu0 0
        %1371 = vperm.xlu0 %1370, %v1368
        %v1372 = vpop.permute.xlu0 %1371
        %v1374 = vadd.f32 %v1352, %v1372
        %v1375 = vadd.f32 %v1353, %v1372
        %v1376 = vadd.f32 %v1354, %v1372
        %v1377 = vadd.f32 %v1355, %v1372
        %v1378 = vadd.f32 %v1356, %v1372
        %v1379 = vadd.f32 %v1357, %v1372
        %v1380 = vadd.f32 %v1358, %v1372
        %v1381 = vadd.f32 %v1359, %v1372
        %v1382 = vadd.f32 %v1360, %v1372
        %v1383 = vadd.f32 %v1361, %v1372
        %v1384 = vadd.f32 %v1362, %v1372
        %v1385 = vadd.f32 %v1363, %v1372
        %v1386 = vadd.f32 %v1364, %v1372
        %v1387 = vadd.f32 %v1365, %v1372
        %v1388 = vadd.f32 %v1366, %v1372
        %v1389 = vadd.f32 %v1367, %v1372
        %vm1390 = vcmp.gt.f32.partialorder %v1374, 0.0
        %vm1391 = vcmp.gt.f32.partialorder %v1375, 0.0
        %vm1392 = vcmp.gt.f32.partialorder %v1376, 0.0
        %vm1393 = vcmp.gt.f32.partialorder %v1377, 0.0
        %vm1394 = vcmp.gt.f32.partialorder %v1378, 0.0
        %vm1395 = vcmp.gt.f32.partialorder %v1379, 0.0
        %vm1396 = vcmp.gt.f32.partialorder %v1380, 0.0
        %vm1397 = vcmp.gt.f32.partialorder %v1381, 0.0
        %vm1398 = vcmp.gt.f32.partialorder %v1382, 0.0
        %vm1399 = vcmp.gt.f32.partialorder %v1383, 0.0
        %vm1400 = vcmp.gt.f32.partialorder %v1384, 0.0
        %vm1401 = vcmp.gt.f32.partialorder %v1385, 0.0
        %vm1402 = vcmp.gt.f32.partialorder %v1386, 0.0
        %vm1403 = vcmp.gt.f32.partialorder %v1387, 0.0
        %vm1404 = vcmp.gt.f32.partialorder %v1388, 0.0
        %vm1405 = vcmp.gt.f32.partialorder %v1389, 0.0
        %v1406 = vmul.f32 %v1374, 0.2
        %v1407 = vmul.f32 %v1375, 0.2
        %v1408 = vmul.f32 %v1376, 0.2
        %v1409 = vmul.f32 %v1377, 0.2
        %v1410 = vmul.f32 %v1378, 0.2
        %v1411 = vmul.f32 %v1379, 0.2
        %v1412 = vmul.f32 %v1380, 0.2
        %v1413 = vmul.f32 %v1381, 0.2
        %v1414 = vmul.f32 %v1382, 0.2
        %v1415 = vmul.f32 %v1383, 0.2
        %v1416 = vmul.f32 %v1384, 0.2
        %v1417 = vmul.f32 %v1385, 0.2
        %v1418 = vmul.f32 %v1386, 0.2
        %v1419 = vmul.f32 %v1387, 0.2
        %v1420 = vmul.f32 %v1388, 0.2
        %v1421 = vmul.f32 %v1389, 0.2
        %v1422 = vsel %vm1390, %v1374, %v1406
        %v1423 = vsel %vm1391, %v1375, %v1407
        %v1424 = vsel %vm1392, %v1376, %v1408
        %v1425 = vsel %vm1393, %v1377, %v1409
        %v1426 = vsel %vm1394, %v1378, %v1410
        %v1427 = vsel %vm1395, %v1379, %v1411
        %v1428 = vsel %vm1396, %v1380, %v1412
        %v1429 = vsel %vm1397, %v1381, %v1413
        %v1430 = vsel %vm1398, %v1382, %v1414
        %v1431 = vsel %vm1399, %v1383, %v1415
        %v1432 = vsel %vm1400, %v1384, %v1416
        %v1433 = vsel %vm1401, %v1385, %v1417
        %v1434 = vsel %vm1402, %v1386, %v1418
        %v1435 = vsel %vm1403, %v1387, %v1419
        %v1436 = vsel %vm1404, %v1388, %v1420
        %v1437 = vsel %vm1405, %v1389, %v1421
        %v1438 = vpack.c.bf16 %v1422, %v1422
        %v1439 = vpack.c.bf16 %v1423, %v1423
        %v1440 = vpack.c.bf16 %v1424, %v1424
        %v1441 = vpack.c.bf16 %v1425, %v1425
        %v1442 = vpack.c.bf16 %v1426, %v1426
        %v1443 = vpack.c.bf16 %v1427, %v1427
        %v1444 = vpack.c.bf16 %v1428, %v1428
        %v1445 = vpack.c.bf16 %v1429, %v1429
        %v1446 = vpack.c.bf16 %v1430, %v1430
        %v1447 = vpack.c.bf16 %v1431, %v1431
        %v1448 = vpack.c.bf16 %v1432, %v1432
        %v1449 = vpack.c.bf16 %v1433, %v1433
        %v1450 = vpack.c.bf16 %v1434, %v1434
        %v1451 = vpack.c.bf16 %v1435, %v1435
        %v1452 = vpack.c.bf16 %v1436, %v1436
        %v1453 = vpack.c.bf16 %v1437, %v1437
        %v1470 = vunpack.c.l.b16 %v1438
        %v1471 = vunpack.c.l.b16 %v1439
        %v1472 = vunpack.c.l.b16 %v1440
        %v1473 = vunpack.c.l.b16 %v1441
        %v1474 = vunpack.c.l.b16 %v1442
        %v1475 = vunpack.c.l.b16 %v1443
        %v1476 = vunpack.c.l.b16 %v1444
        %v1477 = vunpack.c.l.b16 %v1445
        %v1478 = vunpack.c.l.b16 %v1446
        %v1479 = vunpack.c.l.b16 %v1447
        %v1480 = vunpack.c.l.b16 %v1448
        %v1481 = vunpack.c.l.b16 %v1449
        %v1482 = vunpack.c.l.b16 %v1450
        %v1483 = vunpack.c.l.b16 %v1451
        %v1484 = vunpack.c.l.b16 %v1452
        %v1485 = vunpack.c.l.b16 %v1453
        %v1486 = vpack.c.b16 %v1471, %v1470
        %v1487 = vpack.c.b16 %v1473, %v1472
        %v1488 = vpack.c.b16 %v1475, %v1474
        %v1489 = vpack.c.b16 %v1477, %v1476
        %v1490 = vpack.c.b16 %v1479, %v1478
        %v1491 = vpack.c.b16 %v1481, %v1480
        %v1492 = vpack.c.b16 %v1483, %v1482
        %v1493 = vpack.c.b16 %v1485, %v1484
        %1502 = vst [vmem:[%s434] sm:$0xff] %v1486
        %1503 = vst [vmem:[%s434 + $0x8] sm:$0xff] %v1487
        %1504 = vst [vmem:[%s434 + $0x10] sm:$0xff] %v1488
        %1505 = vst [vmem:[%s434 + $0x18] sm:$0xff] %v1489
        %1506 = vst [vmem:[%s434 + $0x20] sm:$0xff] %v1490
        %1507 = vst [vmem:[%s434 + $0x28] sm:$0xff] %v1491
        %1508 = vst [vmem:[%s434 + $0x30] sm:$0xff] %v1492
        %1509 = vst [vmem:[%s434 + $0x38] sm:$0xff] %v1493
        %s1510 = smul.u32 16, %s20
        %p1511 = scmp.lt.s32.totalorder %s19, 1
        %s1512 = scalar_select %p1511, %s19, 1
        %p1513 = scmp.lt.s32.totalorder %s1510, 79
        %s1514 = scalar_select %p1513, %s1510, 79
        %s1515 = smul.addr %s1512, 80
        %s1516 = sadd.s32 %s1514, %s1515
        %s1517 = smul.addr %s1516, 4
        %s1518 = scalar_lea.vmem %s4, %s1517
        // Predicated region
        $region60: #{discriminator_forward.5} parent=54 // pred_check
          %p1519 = pneg %p138
        $region61: #{discriminator_forward.5} parent=54 // pred_check_branch
          %1521 = sbr.rel (%p1519) target = $region63
        $region62: #{discriminator_forward.5} parent=54 // pred_region
          %s1522 = smul.u32 16, %s20
        $region63: #{discriminator_forward.5} parent=54 // pred_fallthru
          _
      $region55: #{discriminator_forward.5} parent=5 // pred_fallthru
        _
      %p1523 = scmp.le.s32.totalorder 2, %s10
      // Predicated region
      $region64: #{discriminator_forward.5} parent=5 // pred_check
        %p1524 = pneg %p1523
      $region65: #{discriminator_forward.5} parent=5 // pred_check_branch
        %1526 = sbr.rel (%p1524) target = $region67
      $region66: #{discriminator_forward.5} parent=5 // pred_region
        %s1527 = ssub.s32 %s10, 2
        // Predicated region
        $region68: #{discriminator_forward.5} parent=66 // pred_check
          %p1528 = pneg %p144
        $region69: #{discriminator_forward.5} parent=66 // pred_check_branch
          %1530 = sbr.rel (%p1528) target = $region71
        $region70: #{discriminator_forward.5} parent=66 // pred_region
          %s1531 = smul.u32 16, %s22
          %p1532 = scmp.lt.s32.totalorder %s21, 1
          %s1533 = scalar_select %p1532, %s21, 1
          %p1534 = scmp.lt.s32.totalorder %s1531, 79
          %s1535 = scalar_select %p1534, %s1531, 79
          %s1536 = smul.addr %s1533, 80
          %s1537 = sadd.s32 %s1535, %s1536
          %s1538 = smul.addr %s1537, 4
          %s1539 = scalar_lea.vmem %s4, %s1538
        $region71: #{discriminator_forward.5} parent=66 // pred_fallthru
          _
      $region67: #{discriminator_forward.5} parent=5 // pred_fallthru
        _
    $region6: #{discriminator_forward.5} parent=1 // loop_footer
      %s14 = sadd.s32 1, %s10
    $region7: #{discriminator_forward.5} parent=1 // loop_footer_branch
      %9 = sbr.rel target = $region3
    $region8: #{discriminator_forward.5} parent=1 // loop_exit
      _

// kernel: discriminator_forward.6
$region0: #{discriminator_forward.6}
  #allocation0 [shape = 'u32[]', space=smem, size = 0x4, offset = 0x4, fixed_abs, tag = 'smem constant byte address 0x4 - core index']
  #allocation1 [shape = 'u32[144,128]{1,0:T(1,128)}', space=vmem, size = 0x12000, scoped, tag = 'internal scratch']
  %s0 = inlined_call_operand.vmem [shape: bf16[2,128,2560], index: 0, kind: input, shape index: {}]
  %s1 = inlined_call_operand.vmem [shape: bf16[16,128], index: 1, kind: input, shape index: {}]
  %s2 = inlined_call_operand.vmem [shape: f32[16,1], index: 2, kind: input, shape index: {}]
  %s3 = inlined_call_operand.vmem [shape: f32[16,1], index: 3, kind: input, shape index: {}]
  %s4 = inlined_call_operand.vmem [shape: bf16[2,16,2560], index: 4, kind: output, shape index: {}]
  %s5 = sld [smem:[#allocation0]]
  $region91: #{discriminator_forward.6} parent=0
    _
  %s7 = ssub.s32 1, %s5
  %s8 = scalar_select 0, %s7, %s5
  $region1: #{discriminator_forward.6} parent=0
    #allocation2 [shape = 'u8[655360]{0}', space=vmem, size = 0xa0000, scoped, tag = 'input window, operand 0']
    #allocation3 [shape = 'u8[81920]{0}', space=vmem, size = 0x14000, scoped, tag = 'output window, operand 0']
    loop: start=0, step=1, limit=6
    $region2: #{discriminator_forward.6} parent=1 // loop_pre_header
      _
    $region3: #{discriminator_forward.6} parent=1 // loop_header
      %s10 = sphi 0, %s14
      %p11 = scmp.ge.s32.totalorder %s10, 6
      %s17 = sphi 0, %s29
      %s18 = sphi 0, %s25
      %s19 = sphi 0, %s17
      %s20 = sphi 0, %s18
      %s21 = sphi 0, %s19
      %s22 = sphi 0, %s20
      %s34 = sphi 0, %s36
      %s37 = sphi 0, %s34
      %s38 = sphi 0, %s37
      %s54 = sphi 0, %s38
      %s58 = sphi 0, %s58
      %s60 = sphi 0, %s58
      %s61 = sphi 0, %s60
      %s75 = sphi 0, %s61
      %s79 = sphi 0, %s79
      %s81 = sphi 0, %s79
      %s82 = sphi 0, %s81
      %s96 = sphi 0, %s82
      %s100 = sphi 0, %s100
      %s102 = sphi 0, %s100
      %s103 = sphi 0, %s102
      %s117 = sphi 0, %s103
      %s125 = sphi 0, %s127
      %s128 = sphi 0, %s125
      %s129 = sphi 0, %s128
      %s145 = sphi 0, %s129
    $region4: #{discriminator_forward.6} parent=1 // loop_header_branch
      %13 = sbr.rel (%p11) target = $region8
    $region5: #{discriminator_forward.6} parent=1 // loop_body
      %s15 = ssub.s32 %s10, 1
      %s16 = ssub.s32 %s10, 2
      %s23 = sadd.s32 1, %s18
      %p24 = scmp.ge.s32.totalorder %s23, 2
      %s25 = scalar_select %p24, 0, %s23
      %s26 = sadd.s32 1, %s17
      %s27 = scalar_select %p24, %s26, %s17
      %p28 = scmp.ge.s32.totalorder %s27, 2
      %s29 = scalar_select %p28, 0, %s27
      %s30 = ssub.s32 %s17, %s29
      %s31 = ssub.s32 %s18, %s25
      %s32 = sor.u32 %s30, %s31
      %p33 = scmp.eq.s32.totalorder %s32, 0
      %s35 = sadd.s32 %s34, 1
      %s36 = scalar_select %p33, %s34, %s35
      %p39 = pneg %p33
      %p40 = scmp.eq.s32.totalorder %s10, 3
      %p41 = por %p39, %p40
      %p42 = scmp.ne.s32.totalorder %s34, %s37
      %p43 = scmp.eq.s32.totalorder %s10, 0
      %p44 = por %p42, %p43
      %p45 = scmp.ne.s32.totalorder %s34, %s37
      %p46 = scmp.eq.s32.totalorder %s15, 3
      %p47 = por %p45, %p46
      %p48 = scmp.ne.s32.totalorder %s37, %s38
      %p49 = scmp.eq.s32.totalorder %s15, 0
      %p50 = por %p48, %p49
      %p51 = scmp.ne.s32.totalorder %s37, %s38
      %p52 = scmp.eq.s32.totalorder %s16, 3
      %p53 = por %p51, %p52
      %p55 = scmp.ne.s32.totalorder %s38, %s54
      %p56 = scmp.eq.s32.totalorder %s16, 0
      %p57 = por %p55, %p56
      %s59 = sadd.s32 %s58, 1
      %p62 = scmp.eq.s32.totalorder %s10, 3
      %p63 = scmp.ne.s32.totalorder %s58, %s60
      %p64 = scmp.eq.s32.totalorder %s10, 0
      %p65 = por %p63, %p64
      %p66 = scmp.ne.s32.totalorder %s58, %s60
      %p67 = scmp.eq.s32.totalorder %s15, 3
      %p68 = por %p66, %p67
      %p69 = scmp.ne.s32.totalorder %s60, %s61
      %p70 = scmp.eq.s32.totalorder %s15, 0
      %p71 = por %p69, %p70
      %p72 = scmp.ne.s32.totalorder %s60, %s61
      %p73 = scmp.eq.s32.totalorder %s16, 3
      %p74 = por %p72, %p73
      %p76 = scmp.ne.s32.totalorder %s61, %s75
      %p77 = scmp.eq.s32.totalorder %s16, 0
      %p78 = por %p76, %p77
      %s80 = sadd.s32 %s79, 1
      %p83 = scmp.eq.s32.totalorder %s10, 3
      %p84 = scmp.ne.s32.totalorder %s79, %s81
      %p85 = scmp.eq.s32.totalorder %s10, 0
      %p86 = por %p84, %p85
      %p87 = scmp.ne.s32.totalorder %s79, %s81
      %p88 = scmp.eq.s32.totalorder %s15, 3
      %p89 = por %p87, %p88
      %p90 = scmp.ne.s32.totalorder %s81, %s82
      %p91 = scmp.eq.s32.totalorder %s15, 0
      %p92 = por %p90, %p91
      %p93 = scmp.ne.s32.totalorder %s81, %s82
      %p94 = scmp.eq.s32.totalorder %s16, 3
      %p95 = por %p93, %p94
      %p97 = scmp.ne.s32.totalorder %s82, %s96
      %p98 = scmp.eq.s32.totalorder %s16, 0
      %p99 = por %p97, %p98
      %s101 = sadd.s32 %s100, 1
      %p104 = scmp.eq.s32.totalorder %s10, 3
      %p105 = scmp.ne.s32.totalorder %s100, %s102
      %p106 = scmp.eq.s32.totalorder %s10, 0
      %p107 = por %p105, %p106
      %p108 = scmp.ne.s32.totalorder %s100, %s102
      %p109 = scmp.eq.s32.totalorder %s15, 3
      %p110 = por %p108, %p109
      %p111 = scmp.ne.s32.totalorder %s102, %s103
      %p112 = scmp.eq.s32.totalorder %s15, 0
      %p113 = por %p111, %p112
      %p114 = scmp.ne.s32.totalorder %s102, %s103
      %p115 = scmp.eq.s32.totalorder %s16, 3
      %p116 = por %p114, %p115
      %p118 = scmp.ne.s32.totalorder %s103, %s117
      %p119 = scmp.eq.s32.totalorder %s16, 0
      %p120 = por %p118, %p119
      %s121 = ssub.s32 %s17, %s29
      %s122 = ssub.s32 %s18, %s25
      %s123 = sor.u32 %s121, %s122
      %p124 = scmp.eq.s32.totalorder %s123, 0
      %s126 = sadd.s32 %s125, 1
      %s127 = scalar_select %p124, %s125, %s126
      %p130 = pneg %p124
      %p131 = scmp.eq.s32.totalorder %s10, 3
      %p132 = por %p130, %p131
      %p133 = scmp.ne.s32.totalorder %s125, %s128
      %p134 = scmp.eq.s32.totalorder %s10, 0
      %p135 = por %p133, %p134
      %p136 = scmp.ne.s32.totalorder %s125, %s128
      %p137 = scmp.eq.s32.totalorder %s15, 3
      %p138 = por %p136, %p137
      %p139 = scmp.ne.s32.totalorder %s128, %s129
      %p140 = scmp.eq.s32.totalorder %s15, 0
      %p141 = por %p139, %p140
      %p142 = scmp.ne.s32.totalorder %s128, %s129
      %p143 = scmp.eq.s32.totalorder %s16, 3
      %p144 = por %p142, %p143
      %p146 = scmp.ne.s32.totalorder %s129, %s145
      %p147 = scmp.eq.s32.totalorder %s16, 0
      %p148 = por %p146, %p147
      %p149 = scmp.le.s32.totalorder 1, %s10
      %p150 = scmp.lt.s32.totalorder %s10, 5
      %p151 = pnand %p149, %p150
      %p152 = pneg %p151
      // Predicated region
      $region9: #{discriminator_forward.6} parent=5 // pred_check
        _
      $region10: #{discriminator_forward.6} parent=5 // pred_check_branch
        %154 = sbr.rel (%p151) target = $region12
      $region11: #{discriminator_forward.6} parent=5 // pred_region
        %s155 = ssub.s32 %s10, 1
        // Predicated region
        $region13: #{discriminator_forward.6} parent=11 // pred_check
          %p156 = pneg %p71
        $region14: #{discriminator_forward.6} parent=11 // pred_check_branch
          %158 = sbr.rel (%p156) target = $region16
        $region15: #{discriminator_forward.6} parent=11 // pred_region
          _
        $region16: #{discriminator_forward.6} parent=11 // pred_fallthru
          _
        // Predicated region
        $region17: #{discriminator_forward.6} parent=11 // pred_check
          %p159 = pneg %p92
        $region18: #{discriminator_forward.6} parent=11 // pred_check_branch
          %161 = sbr.rel (%p159) target = $region20
        $region19: #{discriminator_forward.6} parent=11 // pred_region
          _
        $region20: #{discriminator_forward.6} parent=11 // pred_fallthru
          _
        // Predicated region
        $region21: #{discriminator_forward.6} parent=11 // pred_check
          %p162 = pneg %p113
        $region22: #{discriminator_forward.6} parent=11 // pred_check_branch
          %164 = sbr.rel (%p162) target = $region24
        $region23: #{discriminator_forward.6} parent=11 // pred_region
          _
        $region24: #{discriminator_forward.6} parent=11 // pred_fallthru
          _
      $region12: #{discriminator_forward.6} parent=5 // pred_fallthru
        _
      %p165 = scmp.lt.s32.totalorder %s10, 4
      // Predicated region
      $region25: #{discriminator_forward.6} parent=5 // pred_check
        %p166 = pneg %p165
      $region26: #{discriminator_forward.6} parent=5 // pred_check_branch
        %168 = sbr.rel (%p166) target = $region28
      $region27: #{discriminator_forward.6} parent=5 // pred_region
        // Predicated region
        $region29: #{discriminator_forward.6} parent=27 // pred_check
          %p169 = pneg %p44
        $region30: #{discriminator_forward.6} parent=27 // pred_check_branch
          %171 = sbr.rel (%p169) target = $region32
        $region31: #{discriminator_forward.6} parent=27 // pred_region
          %s172 = sand.u32 %s34, 1
          %s173 = sand.u32 %s34, 1
          %s174 = smul.addr %s173, 640
          %s175 = scalar_lea.vmem [#allocation2], %s174
          %s176 = smul.u32 10, %s18
          %s177 = smul.addr %s17, 320
          %s178 = sadd.s32 %s176, %s177
          %s179 = smul.addr %s178, 4
          %s180 = scalar_lea.vmem %s0, %s179
          // Predicated region
          $region33: #{discriminator_forward.6} parent=31 // pred_check
            _
          $region34: #{discriminator_forward.6} parent=31 // pred_check_branch
            %182 = sbr.rel (0) target = $region36
          $region35: #{discriminator_forward.6} parent=31 // pred_region
            // Predicated region
            $region37: #{discriminator_forward.6} parent=35 // pred_check
              _
            $region38: #{discriminator_forward.6} parent=35 // pred_check_branch
              %184 = sbr.rel (0) target = $region40
            $region39: #{discriminator_forward.6} parent=35 // pred_region
              loop: start=0, step=1, limit=1
              $region41: #{discriminator_forward.6} parent=39 // loop_pre_header
                _
              $region42: #{discriminator_forward.6} parent=39 // loop_header
                %s186 = sphi 0, %s190
                %p187 = scmp.ge.s32.totalorder %s186, 1
                %s191 = sphi %s180, %s180
                %s192 = sphi %s175, %s175
              $region43: #{discriminator_forward.6} parent=39 // loop_header_branch
                %189 = sbr.rel (%p187) target = $region47
              $region44: #{discriminator_forward.6} parent=39 // loop_body
                %v193 = vld [vmem:[%s191] sm:$0xff]
                %194 = vst [vmem:[%s192] sm:$0xff] %v193
                %v195 = vld [vmem:[%s191 + $0x8] sm:$0xff]
                %196 = vst [vmem:[%s192 + $0x8] sm:$0xff] %v195
                %v197 = vld [vmem:[%s191 + $0x10] sm:$0xff]
                %198 = vst [vmem:[%s192 + $0x10] sm:$0xff] %v197
                %v199 = vld [vmem:[%s191 + $0x18] sm:$0xff]
                %200 = vst [vmem:[%s192 + $0x18] sm:$0xff] %v199
                %v201 = vld [vmem:[%s191 + $0x20] sm:$0xff]
                %202 = vst [vmem:[%s192 + $0x20] sm:$0xff] %v201
                %v203 = vld [vmem:[%s191 + $0x50] sm:$0xff]
                %204 = vst [vmem:[%s192 + $0x28] sm:$0xff] %v203
                %v205 = vld [vmem:[%s191 + $0x58] sm:$0xff]
                %206 = vst [vmem:[%s192 + $0x30] sm:$0xff] %v205
                %v207 = vld [vmem:[%s191 + $0x60] sm:$0xff]
                %208 = vst [vmem:[%s192 + $0x38] sm:$0xff] %v207
                %v209 = vld [vmem:[%s191 + $0x68] sm:$0xff]
                %210 = vst [vmem:[%s192 + $0x40] sm:$0xff] %v209
                %v211 = vld [vmem:[%s191 + $0x70] sm:$0xff]
                %212 = vst [vmem:[%s192 + $0x48] sm:$0xff] %v211
                %v213 = vld [vmem:[%s191 + $0xa0] sm:$0xff]
                %214 = vst [vmem:[%s192 + $0x50] sm:$0xff] %v213
                %v215 = vld [vmem:[%s191 + $0xa8] sm:$0xff]
                %216 = vst [vmem:[%s192 + $0x58] sm:$0xff] %v215
                %v217 = vld [vmem:[%s191 + $0xb0] sm:$0xff]
                %218 = vst [vmem:[%s192 + $0x60] sm:$0xff] %v217
                %v219 = vld [vmem:[%s191 + $0xb8] sm:$0xff]
                %220 = vst [vmem:[%s192 + $0x68] sm:$0xff] %v219
                %v221 = vld [vmem:[%s191 + $0xc0] sm:$0xff]
                %222 = vst [vmem:[%s192 + $0x70] sm:$0xff] %v221
                %v223 = vld [vmem:[%s191 + $0xf0] sm:$0xff]
                %224 = vst [vmem:[%s192 + $0x78] sm:$0xff] %v223
                %v225 = vld [vmem:[%s191 + $0xf8] sm:$0xff]
                %226 = vst [vmem:[%s192 + $0x80] sm:$0xff] %v225
                %v227 = vld [vmem:[%s191 + $0x100] sm:$0xff]
                %228 = vst [vmem:[%s192 + $0x88] sm:$0xff] %v227
                %v229 = vld [vmem:[%s191 + $0x108] sm:$0xff]
                %230 = vst [vmem:[%s192 + $0x90] sm:$0xff] %v229
                %v231 = vld [vmem:[%s191 + $0x110] sm:$0xff]
                %232 = vst [vmem:[%s192 + $0x98] sm:$0xff] %v231
                %v233 = vld [vmem:[%s191 + $0x140] sm:$0xff]
                %234 = vst [vmem:[%s192 + $0xa0] sm:$0xff] %v233
                %v235 = vld [vmem:[%s191 + $0x148] sm:$0xff]
                %236 = vst [vmem:[%s192 + $0xa8] sm:$0xff] %v235
                %v237 = vld [vmem:[%s191 + $0x150] sm:$0xff]
                %238 = vst [vmem:[%s192 + $0xb0] sm:$0xff] %v237
                %v239 = vld [vmem:[%s191 + $0x158] sm:$0xff]
                %240 = vst [vmem:[%s192 + $0xb8] sm:$0xff] %v239
                %v241 = vld [vmem:[%s191 + $0x160] sm:$0xff]
                %242 = vst [vmem:[%s192 + $0xc0] sm:$0xff] %v241
                %v243 = vld [vmem:[%s191 + $0x190] sm:$0xff]
                %244 = vst [vmem:[%s192 + $0xc8] sm:$0xff] %v243
                %v245 = vld [vmem:[%s191 + $0x198] sm:$0xff]
                %246 = vst [vmem:[%s192 + $0xd0] sm:$0xff] %v245
                %v247 = vld [vmem:[%s191 + $0x1a0] sm:$0xff]
                %248 = vst [vmem:[%s192 + $0xd8] sm:$0xff] %v247
                %v249 = vld [vmem:[%s191 + $0x1a8] sm:$0xff]
                %250 = vst [vmem:[%s192 + $0xe0] sm:$0xff] %v249
                %v251 = vld [vmem:[%s191 + $0x1b0] sm:$0xff]
                %252 = vst [vmem:[%s192 + $0xe8] sm:$0xff] %v251
                %v253 = vld [vmem:[%s191 + $0x1e0] sm:$0xff]
                %254 = vst [vmem:[%s192 + $0xf0] sm:$0xff] %v253
                %v255 = vld [vmem:[%s191 + $0x1e8] sm:$0xff]
                %256 = vst [vmem:[%s192 + $0xf8] sm:$0xff] %v255
                %v257 = vld [vmem:[%s191 + $0x1f0] sm:$0xff]
                %258 = vst [vmem:[%s192 + $0x100] sm:$0xff] %v257
                %v259 = vld [vmem:[%s191 + $0x1f8] sm:$0xff]
                %260 = vst [vmem:[%s192 + $0x108] sm:$0xff] %v259
                %v261 = vld [vmem:[%s191 + $0x200] sm:$0xff]
                %262 = vst [vmem:[%s192 + $0x110] sm:$0xff] %v261
                %v263 = vld [vmem:[%s191 + $0x230] sm:$0xff]
                %264 = vst [vmem:[%s192 + $0x118] sm:$0xff] %v263
                %v265 = vld [vmem:[%s191 + $0x238] sm:$0xff]
                %266 = vst [vmem:[%s192 + $0x120] sm:$0xff] %v265
                %v267 = vld [vmem:[%s191 + $0x240] sm:$0xff]
                %268 = vst [vmem:[%s192 + $0x128] sm:$0xff] %v267
                %v269 = vld [vmem:[%s191 + $0x248] sm:$0xff]
                %270 = vst [vmem:[%s192 + $0x130] sm:$0xff] %v269
                %v271 = vld [vmem:[%s191 + $0x250] sm:$0xff]
                %272 = vst [vmem:[%s192 + $0x138] sm:$0xff] %v271
                %v273 = vld [vmem:[%s191 + $0x280] sm:$0xff]
                %274 = vst [vmem:[%s192 + $0x140] sm:$0xff] %v273
                %v275 = vld [vmem:[%s191 + $0x288] sm:$0xff]
                %276 = vst [vmem:[%s192 + $0x148] sm:$0xff] %v275
                %v277 = vld [vmem:[%s191 + $0x290] sm:$0xff]
                %278 = vst [vmem:[%s192 + $0x150] sm:$0xff] %v277
                %v279 = vld [vmem:[%s191 + $0x298] sm:$0xff]
                %280 = vst [vmem:[%s192 + $0x158] sm:$0xff] %v279
                %v281 = vld [vmem:[%s191 + $0x2a0] sm:$0xff]
                %282 = vst [vmem:[%s192 + $0x160] sm:$0xff] %v281
                %v283 = vld [vmem:[%s191 + $0x2d0] sm:$0xff]
                %284 = vst [vmem:[%s192 + $0x168] sm:$0xff] %v283
                %v285 = vld [vmem:[%s191 + $0x2d8] sm:$0xff]
                %286 = vst [vmem:[%s192 + $0x170] sm:$0xff] %v285
                %v287 = vld [vmem:[%s191 + $0x2e0] sm:$0xff]
                %288 = vst [vmem:[%s192 + $0x178] sm:$0xff] %v287
                %v289 = vld [vmem:[%s191 + $0x2e8] sm:$0xff]
                %290 = vst [vmem:[%s192 + $0x180] sm:$0xff] %v289
                %v291 = vld [vmem:[%s191 + $0x2f0] sm:$0xff]
                %292 = vst [vmem:[%s192 + $0x188] sm:$0xff] %v291
                %v293 = vld [vmem:[%s191 + $0x320] sm:$0xff]
                %294 = vst [vmem:[%s192 + $0x190] sm:$0xff] %v293
                %v295 = vld [vmem:[%s191 + $0x328] sm:$0xff]
                %296 = vst [vmem:[%s192 + $0x198] sm:$0xff] %v295
                %v297 = vld [vmem:[%s191 + $0x330] sm:$0xff]
                %298 = vst [vmem:[%s192 + $0x1a0] sm:$0xff] %v297
                %v299 = vld [vmem:[%s191 + $0x338] sm:$0xff]
                %300 = vst [vmem:[%s192 + $0x1a8] sm:$0xff] %v299
                %v301 = vld [vmem:[%s191 + $0x340] sm:$0xff]
                %302 = vst [vmem:[%s192 + $0x1b0] sm:$0xff] %v301
                %v303 = vld [vmem:[%s191 + $0x370] sm:$0xff]
                %304 = vst [vmem:[%s192 + $0x1b8] sm:$0xff] %v303
                %v305 = vld [vmem:[%s191 + $0x378] sm:$0xff]
                %306 = vst [vmem:[%s192 + $0x1c0] sm:$0xff] %v305
                %v307 = vld [vmem:[%s191 + $0x380] sm:$0xff]
                %308 = vst [vmem:[%s192 + $0x1c8] sm:$0xff] %v307
                %v309 = vld [vmem:[%s191 + $0x388] sm:$0xff]
                %310 = vst [vmem:[%s192 + $0x1d0] sm:$0xff] %v309
                %v311 = vld [vmem:[%s191 + $0x390] sm:$0xff]
                %312 = vst [vmem:[%s192 + $0x1d8] sm:$0xff] %v311
                %v313 = vld [vmem:[%s191 + $0x3c0] sm:$0xff]
                %314 = vst [vmem:[%s192 + $0x1e0] sm:$0xff] %v313
                %v315 = vld [vmem:[%s191 + $0x3c8] sm:$0xff]
                %316 = vst [vmem:[%s192 + $0x1e8] sm:$0xff] %v315
                %v317 = vld [vmem:[%s191 + $0x3d0] sm:$0xff]
                %318 = vst [vmem:[%s192 + $0x1f0] sm:$0xff] %v317
                %v319 = vld [vmem:[%s191 + $0x3d8] sm:$0xff]
                %320 = vst [vmem:[%s192 + $0x1f8] sm:$0xff] %v319
                %v321 = vld [vmem:[%s191 + $0x3e0] sm:$0xff]
                %322 = vst [vmem:[%s192 + $0x200] sm:$0xff] %v321
                %v323 = vld [vmem:[%s191 + $0x410] sm:$0xff]
                %324 = vst [vmem:[%s192 + $0x208] sm:$0xff] %v323
                %v325 = vld [vmem:[%s191 + $0x418] sm:$0xff]
                %326 = vst [vmem:[%s192 + $0x210] sm:$0xff] %v325
                %v327 = vld [vmem:[%s191 + $0x420] sm:$0xff]
                %328 = vst [vmem:[%s192 + $0x218] sm:$0xff] %v327
                %v329 = vld [vmem:[%s191 + $0x428] sm:$0xff]
                %330 = vst [vmem:[%s192 + $0x220] sm:$0xff] %v329
                %v331 = vld [vmem:[%s191 + $0x430] sm:$0xff]
                %332 = vst [vmem:[%s192 + $0x228] sm:$0xff] %v331
                %v333 = vld [vmem:[%s191 + $0x460] sm:$0xff]
                %334 = vst [vmem:[%s192 + $0x230] sm:$0xff] %v333
                %v335 = vld [vmem:[%s191 + $0x468] sm:$0xff]
                %336 = vst [vmem:[%s192 + $0x238] sm:$0xff] %v335
                %v337 = vld [vmem:[%s191 + $0x470] sm:$0xff]
                %338 = vst [vmem:[%s192 + $0x240] sm:$0xff] %v337
                %v339 = vld [vmem:[%s191 + $0x478] sm:$0xff]
                %340 = vst [vmem:[%s192 + $0x248] sm:$0xff] %v339
                %v341 = vld [vmem:[%s191 + $0x480] sm:$0xff]
                %342 = vst [vmem:[%s192 + $0x250] sm:$0xff] %v341
                %v343 = vld [vmem:[%s191 + $0x4b0] sm:$0xff]
                %344 = vst [vmem:[%s192 + $0x258] sm:$0xff] %v343
                %v345 = vld [vmem:[%s191 + $0x4b8] sm:$0xff]
                %346 = vst [vmem:[%s192 + $0x260] sm:$0xff] %v345
                %v347 = vld [vmem:[%s191 + $0x4c0] sm:$0xff]
                %348 = vst [vmem:[%s192 + $0x268] sm:$0xff] %v347
                %v349 = vld [vmem:[%s191 + $0x4c8] sm:$0xff]
                %350 = vst [vmem:[%s192 + $0x270] sm:$0xff] %v349
                %v351 = vld [vmem:[%s191 + $0x4d0] sm:$0xff]
                %352 = vst [vmem:[%s192 + $0x278] sm:$0xff] %v351
              $region45: #{discriminator_forward.6} parent=39 // loop_footer
                %s190 = sadd.s32 1, %s186
              $region46: #{discriminator_forward.6} parent=39 // loop_footer_branch
                %185 = sbr.rel target = $region42
              $region47: #{discriminator_forward.6} parent=39 // loop_exit
                _
            $region40: #{discriminator_forward.6} parent=35 // pred_fallthru
              _
            // Predicated region
            $region48: #{discriminator_forward.6} parent=35 // pred_check
              _
            $region49: #{discriminator_forward.6} parent=35 // pred_check_branch
              %354 = sbr.rel target = $region51
            $region50: #{discriminator_forward.6} parent=35 // pred_region
              _
            $region51: #{discriminator_forward.6} parent=35 // pred_fallthru
              _
          $region36: #{discriminator_forward.6} parent=31 // pred_fallthru
            _
          %355 = vnop
        $region32: #{discriminator_forward.6} parent=27 // pred_fallthru
          _
      $region28: #{discriminator_forward.6} parent=5 // pred_fallthru
        _
      %p356 = scmp.le.s32.totalorder 1, %s10
      %p357 = scmp.lt.s32.totalorder %s10, 5
      %p358 = pnand %p356, %p357
      %p359 = pneg %p358
      // Predicated region
      $region52: #{discriminator_forward.6} parent=5 // pred_check
        _
      $region53: #{discriminator_forward.6} parent=5 // pred_check_branch
        %361 = sbr.rel (%p358) target = $region55
      $region54: #{discriminator_forward.6} parent=5 // pred_region
        %s362 = ssub.s32 %s10, 1
        %s363 = sand.u32 %s37, 1
        %s364 = sand.u32 %s37, 1
        %s365 = smul.addr %s364, 640
        %s366 = scalar_lea.vmem [#allocation2], %s365
        // Predicated region
        $region56: #{discriminator_forward.6} parent=54 // pred_check
          %p367 = pneg %p50
        $region57: #{discriminator_forward.6} parent=54 // pred_check_branch
          %369 = sbr.rel (%p367) target = $region59
        $region58: #{discriminator_forward.6} parent=54 // pred_region
          _
        $region59: #{discriminator_forward.6} parent=54 // pred_fallthru
          _
        %s370 = sand.u32 %s37, 1
        %s371 = sand.u32 %s37, 1
        %s372 = smul.addr %s371, 640
        %s373 = scalar_lea.vmem [#allocation2], %s372
        %p374 = pneg %p50
        %p375 = pneg %p47
        %p376 = pneg %p71
        %p377 = pneg %p68
        %p378 = pneg %p92
        %p379 = pneg %p89
        %p380 = pneg %p113
        %p381 = pneg %p110
        %p382 = pneg %p141
        %p383 = pneg %p138
        %s384 = sand.u32 %s128, 1
        %s385 = sand.u32 %s128, 1
        %s386 = smul.addr %s385, 80
        %s387 = scalar_lea.vmem [#allocation3], %s386
        %s388 = smul.u32 10, %s20
        %s389 = smul.u32 10, %s20
        %v391 = vld [vmem:[%s1] sm:$0xf]
        %v392 = vld [vmem:[%s1 + $0x4] sm:$0xf]
        %v393 = vld [vmem:[%s366] sm:$0xff]
        %v394 = vld [vmem:[%s366 + $0x8] sm:$0xff]
        %v395 = vld [vmem:[%s366 + $0x10] sm:$0xff]
        %v396 = vld [vmem:[%s366 + $0x18] sm:$0xff]
        %v397 = vld [vmem:[%s366 + $0x20] sm:$0xff]
        %v398 = vld [vmem:[%s366 + $0x28] sm:$0xff]
        %v399 = vld [vmem:[%s366 + $0x30] sm:$0xff]
        %v400 = vld [vmem:[%s366 + $0x38] sm:$0xff]
        %v401 = vld [vmem:[%s366 + $0x40] sm:$0xff]
        %v402 = vld [vmem:[%s366 + $0x48] sm:$0xff]
        %v403 = vld [vmem:[%s366 + $0x50] sm:$0xff]
        %v404 = vld [vmem:[%s366 + $0x58] sm:$0xff]
        %v405 = vld [vmem:[%s366 + $0x60] sm:$0xff]
        %v406 = vld [vmem:[%s366 + $0x68] sm:$0xff]
        %v407 = vld [vmem:[%s366 + $0x70] sm:$0xff]
        %v408 = vld [vmem:[%s366 + $0x78] sm:$0xff]
        %v409 = vld [vmem:[%s366 + $0x80] sm:$0xff]
        %v410 = vld [vmem:[%s366 + $0x88] sm:$0xff]
        %v411 = vld [vmem:[%s366 + $0x90] sm:$0xff]
        %v412 = vld [vmem:[%s366 + $0x98] sm:$0xff]
        %v413 = vld [vmem:[%s366 + $0xa0] sm:$0xff]
        %v414 = vld [vmem:[%s366 + $0xa8] sm:$0xff]
        %v415 = vld [vmem:[%s366 + $0xb0] sm:$0xff]
        %v416 = vld [vmem:[%s366 + $0xb8] sm:$0xff]
        %v417 = vld [vmem:[%s366 + $0xc0] sm:$0xff]
        %v418 = vld [vmem:[%s366 + $0xc8] sm:$0xff]
        %v419 = vld [vmem:[%s366 + $0xd0] sm:$0xff]
        %v420 = vld [vmem:[%s366 + $0xd8] sm:$0xff]
        %v421 = vld [vmem:[%s366 + $0xe0] sm:$0xff]
        %v422 = vld [vmem:[%s366 + $0xe8] sm:$0xff]
        %v423 = vld [vmem:[%s366 + $0xf0] sm:$0xff]
        %v424 = vld [vmem:[%s366 + $0xf8] sm:$0xff]
        %v425 = vld [vmem:[%s366 + $0x100] sm:$0xff]
        %v426 = vld [vmem:[%s366 + $0x108] sm:$0xff]
        %v427 = vld [vmem:[%s366 + $0x110] sm:$0xff]
        %v428 = vld [vmem:[%s366 + $0x118] sm:$0xff]
        %v429 = vld [vmem:[%s366 + $0x120] sm:$0xff]
        %v430 = vld [vmem:[%s366 + $0x128] sm:$0xff]
        %v431 = vld [vmem:[%s366 + $0x130] sm:$0xff]
        %v432 = vld [vmem:[%s366 + $0x138] sm:$0xff]
        %v433 = vld [vmem:[%s366 + $0x140] sm:$0xff]
        %v434 = vld [vmem:[%s366 + $0x148] sm:$0xff]
        %v435 = vld [vmem:[%s366 + $0x150] sm:$0xff]
        %v436 = vld [vmem:[%s366 + $0x158] sm:$0xff]
        %v437 = vld [vmem:[%s366 + $0x160] sm:$0xff]
        %v438 = vld [vmem:[%s366 + $0x168] sm:$0xff]
        %v439 = vld [vmem:[%s366 + $0x170] sm:$0xff]
        %v440 = vld [vmem:[%s366 + $0x178] sm:$0xff]
        %v441 = vld [vmem:[%s366 + $0x180] sm:$0xff]
        %v442 = vld [vmem:[%s366 + $0x188] sm:$0xff]
        %v443 = vld [vmem:[%s366 + $0x190] sm:$0xff]
        %v444 = vld [vmem:[%s366 + $0x198] sm:$0xff]
        %v445 = vld [vmem:[%s366 + $0x1a0] sm:$0xff]
        %v446 = vld [vmem:[%s366 + $0x1a8] sm:$0xff]
        %v447 = vld [vmem:[%s366 + $0x1b0] sm:$0xff]
        %v448 = vld [vmem:[%s366 + $0x1b8] sm:$0xff]
        %v449 = vld [vmem:[%s366 + $0x1c0] sm:$0xff]
        %v450 = vld [vmem:[%s366 + $0x1c8] sm:$0xff]
        %v451 = vld [vmem:[%s366 + $0x1d0] sm:$0xff]
        %v452 = vld [vmem:[%s366 + $0x1d8] sm:$0xff]
        %v453 = vld [vmem:[%s366 + $0x1e0] sm:$0xff]
        %v454 = vld [vmem:[%s366 + $0x1e8] sm:$0xff]
        %v455 = vld [vmem:[%s366 + $0x1f0] sm:$0xff]
        %v456 = vld [vmem:[%s366 + $0x1f8] sm:$0xff]
        %v457 = vld [vmem:[%s366 + $0x200] sm:$0xff]
        %v458 = vld [vmem:[%s366 + $0x208] sm:$0xff]
        %v459 = vld [vmem:[%s366 + $0x210] sm:$0xff]
        %v460 = vld [vmem:[%s366 + $0x218] sm:$0xff]
        %v461 = vld [vmem:[%s366 + $0x220] sm:$0xff]
        %v462 = vld [vmem:[%s366 + $0x228] sm:$0xff]
        %v463 = vld [vmem:[%s366 + $0x230] sm:$0xff]
        %v464 = vld [vmem:[%s366 + $0x238] sm:$0xff]
        %v465 = vld [vmem:[%s366 + $0x240] sm:$0xff]
        %v466 = vld [vmem:[%s366 + $0x248] sm:$0xff]
        %v467 = vld [vmem:[%s366 + $0x250] sm:$0xff]
        %v468 = vld [vmem:[%s366 + $0x258] sm:$0xff]
        %v469 = vld [vmem:[%s366 + $0x260] sm:$0xff]
        %v470 = vld [vmem:[%s366 + $0x268] sm:$0xff]
        %v471 = vld [vmem:[%s366 + $0x270] sm:$0xff]
        %v472 = vld [vmem:[%s366 + $0x278] sm:$0xff]
        %v475 = vunpack.c.l.b16 %v391
        %v476 = vunpack.c.l.b16 %v392
        %v477 = vpack.c.b16 %v476, %v475
        %v559 = vunpack.c.l.b16 %v393
        %v560 = vunpack.c.h.b16 %v393
        %v561 = vunpack.c.l.b16 %v394
        %v562 = vunpack.c.h.b16 %v394
        %v563 = vunpack.c.l.b16 %v395
        %v564 = vunpack.c.h.b16 %v395
        %v565 = vunpack.c.l.b16 %v396
        %v566 = vunpack.c.h.b16 %v396
        %v567 = vunpack.c.l.b16 %v397
        %v568 = vunpack.c.h.b16 %v397
        %v569 = vunpack.c.l.b16 %v398
        %v570 = vunpack.c.h.b16 %v398
        %v571 = vunpack.c.l.b16 %v399
        %v572 = vunpack.c.h.b16 %v399
        %v573 = vunpack.c.l.b16 %v400
        %v574 = vunpack.c.h.b16 %v400
        %v575 = vunpack.c.l.b16 %v401
        %v576 = vunpack.c.h.b16 %v401
        %v577 = vunpack.c.l.b16 %v402
        %v578 = vunpack.c.h.b16 %v402
        %v579 = vunpack.c.l.b16 %v403
        %v580 = vunpack.c.h.b16 %v403
        %v581 = vunpack.c.l.b16 %v404
        %v582 = vunpack.c.h.b16 %v404
        %v583 = vunpack.c.l.b16 %v405
        %v584 = vunpack.c.h.b16 %v405
        %v585 = vunpack.c.l.b16 %v406
        %v586 = vunpack.c.h.b16 %v406
        %v587 = vunpack.c.l.b16 %v407
        %v588 = vunpack.c.h.b16 %v407
        %v589 = vunpack.c.l.b16 %v408
        %v590 = vunpack.c.h.b16 %v408
        %v591 = vunpack.c.l.b16 %v409
        %v592 = vunpack.c.h.b16 %v409
        %v593 = vunpack.c.l.b16 %v410
        %v594 = vunpack.c.h.b16 %v410
        %v595 = vunpack.c.l.b16 %v411
        %v596 = vunpack.c.h.b16 %v411
        %v597 = vunpack.c.l.b16 %v412
        %v598 = vunpack.c.h.b16 %v412
        %v599 = vunpack.c.l.b16 %v413
        %v600 = vunpack.c.h.b16 %v413
        %v601 = vunpack.c.l.b16 %v414
        %v602 = vunpack.c.h.b16 %v414
        %v603 = vunpack.c.l.b16 %v415
        %v604 = vunpack.c.h.b16 %v415
        %v605 = vunpack.c.l.b16 %v416
        %v606 = vunpack.c.h.b16 %v416
        %v607 = vunpack.c.l.b16 %v417
        %v608 = vunpack.c.h.b16 %v417
        %v609 = vunpack.c.l.b16 %v418
        %v610 = vunpack.c.h.b16 %v418
        %v611 = vunpack.c.l.b16 %v419
        %v612 = vunpack.c.h.b16 %v419
        %v613 = vunpack.c.l.b16 %v420
        %v614 = vunpack.c.h.b16 %v420
        %v615 = vunpack.c.l.b16 %v421
        %v616 = vunpack.c.h.b16 %v421
        %v617 = vunpack.c.l.b16 %v422
        %v618 = vunpack.c.h.b16 %v422
        %v619 = vunpack.c.l.b16 %v423
        %v620 = vunpack.c.h.b16 %v423
        %v621 = vunpack.c.l.b16 %v424
        %v622 = vunpack.c.h.b16 %v424
        %v623 = vunpack.c.l.b16 %v425
        %v624 = vunpack.c.h.b16 %v425
        %v625 = vunpack.c.l.b16 %v426
        %v626 = vunpack.c.h.b16 %v426
        %v627 = vunpack.c.l.b16 %v427
        %v628 = vunpack.c.h.b16 %v427
        %v629 = vunpack.c.l.b16 %v428
        %v630 = vunpack.c.h.b16 %v428
        %v631 = vunpack.c.l.b16 %v429
        %v632 = vunpack.c.h.b16 %v429
        %v633 = vunpack.c.l.b16 %v430
        %v634 = vunpack.c.h.b16 %v430
        %v635 = vunpack.c.l.b16 %v431
        %v636 = vunpack.c.h.b16 %v431
        %v637 = vunpack.c.l.b16 %v432
        %v638 = vunpack.c.h.b16 %v432
        %v639 = vunpack.c.l.b16 %v433
        %v640 = vunpack.c.h.b16 %v433
        %v641 = vunpack.c.l.b16 %v434
        %v642 = vunpack.c.h.b16 %v434
        %v643 = vunpack.c.l.b16 %v435
        %v644 = vunpack.c.h.b16 %v435
        %v645 = vunpack.c.l.b16 %v436
        %v646 = vunpack.c.h.b16 %v436
        %v647 = vunpack.c.l.b16 %v437
        %v648 = vunpack.c.h.b16 %v437
        %v649 = vunpack.c.l.b16 %v438
        %v650 = vunpack.c.h.b16 %v438
        %v651 = vunpack.c.l.b16 %v439
        %v652 = vunpack.c.h.b16 %v439
        %v653 = vunpack.c.l.b16 %v440
        %v654 = vunpack.c.h.b16 %v440
        %v655 = vunpack.c.l.b16 %v441
        %v656 = vunpack.c.h.b16 %v441
        %v657 = vunpack.c.l.b16 %v442
        %v658 = vunpack.c.h.b16 %v442
        %v659 = vunpack.c.l.b16 %v443
        %v660 = vunpack.c.h.b16 %v443
        %v661 = vunpack.c.l.b16 %v444
        %v662 = vunpack.c.h.b16 %v444
        %v663 = vunpack.c.l.b16 %v445
        %v664 = vunpack.c.h.b16 %v445
        %v665 = vunpack.c.l.b16 %v446
        %v666 = vunpack.c.h.b16 %v446
        %v667 = vunpack.c.l.b16 %v447
        %v668 = vunpack.c.h.b16 %v447
        %v669 = vunpack.c.l.b16 %v448
        %v670 = vunpack.c.h.b16 %v448
        %v671 = vunpack.c.l.b16 %v449
        %v672 = vunpack.c.h.b16 %v449
        %v673 = vunpack.c.l.b16 %v450
        %v674 = vunpack.c.h.b16 %v450
        %v675 = vunpack.c.l.b16 %v451
        %v676 = vunpack.c.h.b16 %v451
        %v677 = vunpack.c.l.b16 %v452
        %v678 = vunpack.c.h.b16 %v452
        %v679 = vunpack.c.l.b16 %v453
        %v680 = vunpack.c.h.b16 %v453
        %v681 = vunpack.c.l.b16 %v454
        %v682 = vunpack.c.h.b16 %v454
        %v683 = vunpack.c.l.b16 %v455
        %v684 = vunpack.c.h.b16 %v455
        %v685 = vunpack.c.l.b16 %v456
        %v686 = vunpack.c.h.b16 %v456
        %v687 = vunpack.c.l.b16 %v457
        %v688 = vunpack.c.h.b16 %v457
        %v689 = vunpack.c.l.b16 %v458
        %v690 = vunpack.c.h.b16 %v458
        %v691 = vunpack.c.l.b16 %v459
        %v692 = vunpack.c.h.b16 %v459
        %v693 = vunpack.c.l.b16 %v460
        %v694 = vunpack.c.h.b16 %v460
        %v695 = vunpack.c.l.b16 %v461
        %v696 = vunpack.c.h.b16 %v461
        %v697 = vunpack.c.l.b16 %v462
        %v698 = vunpack.c.h.b16 %v462
        %v699 = vunpack.c.l.b16 %v463
        %v700 = vunpack.c.h.b16 %v463
        %v701 = vunpack.c.l.b16 %v464
        %v702 = vunpack.c.h.b16 %v464
        %v703 = vunpack.c.l.b16 %v465
        %v704 = vunpack.c.h.b16 %v465
        %v705 = vunpack.c.l.b16 %v466
        %v706 = vunpack.c.h.b16 %v466
        %v707 = vunpack.c.l.b16 %v467
        %v708 = vunpack.c.h.b16 %v467
        %v709 = vunpack.c.l.b16 %v468
        %v710 = vunpack.c.h.b16 %v468
        %v711 = vunpack.c.l.b16 %v469
        %v712 = vunpack.c.h.b16 %v469
        %v713 = vunpack.c.l.b16 %v470
        %v714 = vunpack.c.h.b16 %v470
        %v715 = vunpack.c.l.b16 %v471
        %v716 = vunpack.c.h.b16 %v471
        %v717 = vunpack.c.l.b16 %v472
        %v718 = vunpack.c.h.b16 %v472
        %v719 = vpack.c.b16 %v569, %v559
        %v720 = vpack.c.b16 %v570, %v560
        %v721 = vpack.c.b16 %v571, %v561
        %v722 = vpack.c.b16 %v572, %v562
        %v723 = vpack.c.b16 %v573, %v563
        %v724 = vpack.c.b16 %v574, %v564
        %v725 = vpack.c.b16 %v575, %v565
        %v726 = vpack.c.b16 %v576, %v566
        %v727 = vpack.c.b16 %v577, %v567
        %v728 = vpack.c.b16 %v578, %v568
        %v729 = vpack.c.b16 %v589, %v579
        %v730 = vpack.c.b16 %v590, %v580
        %v731 = vpack.c.b16 %v591, %v581
        %v732 = vpack.c.b16 %v592, %v582
        %v733 = vpack.c.b16 %v593, %v583
        %v734 = vpack.c.b16 %v594, %v584
        %v735 = vpack.c.b16 %v595, %v585
        %v736 = vpack.c.b16 %v596, %v586
        %v737 = vpack.c.b16 %v597, %v587
        %v738 = vpack.c.b16 %v598, %v588
        %v739 = vpack.c.b16 %v609, %v599
        %v740 = vpack.c.b16 %v610, %v600
        %v741 = vpack.c.b16 %v611, %v601
        %v742 = vpack.c.b16 %v612, %v602
        %v743 = vpack.c.b16 %v613, %v603
        %v744 = vpack.c.b16 %v614, %v604
        %v745 = vpack.c.b16 %v615, %v605
        %v746 = vpack.c.b16 %v616, %v606
        %v747 = vpack.c.b16 %v617, %v607
        %v748 = vpack.c.b16 %v618, %v608
        %v749 = vpack.c.b16 %v629, %v619
        %v750 = vpack.c.b16 %v630, %v620
        %v751 = vpack.c.b16 %v631, %v621
        %v752 = vpack.c.b16 %v632, %v622
        %v753 = vpack.c.b16 %v633, %v623
        %v754 = vpack.c.b16 %v634, %v624
        %v755 = vpack.c.b16 %v635, %v625
        %v756 = vpack.c.b16 %v636, %v626
        %v757 = vpack.c.b16 %v637, %v627
        %v758 = vpack.c.b16 %v638, %v628
        %v759 = vpack.c.b16 %v649, %v639
        %v760 = vpack.c.b16 %v650, %v640
        %v761 = vpack.c.b16 %v651, %v641
        %v762 = vpack.c.b16 %v652, %v642
        %v763 = vpack.c.b16 %v653, %v643
        %v764 = vpack.c.b16 %v654, %v644
        %v765 = vpack.c.b16 %v655, %v645
        %v766 = vpack.c.b16 %v656, %v646
        %v767 = vpack.c.b16 %v657, %v647
        %v768 = vpack.c.b16 %v658, %v648
        %v769 = vpack.c.b16 %v669, %v659
        %v770 = vpack.c.b16 %v670, %v660
        %v771 = vpack.c.b16 %v671, %v661
        %v772 = vpack.c.b16 %v672, %v662
        %v773 = vpack.c.b16 %v673, %v663
        %v774 = vpack.c.b16 %v674, %v664
        %v775 = vpack.c.b16 %v675, %v665
        %v776 = vpack.c.b16 %v676, %v666
        %v777 = vpack.c.b16 %v677, %v667
        %v778 = vpack.c.b16 %v678, %v668
        %v779 = vpack.c.b16 %v689, %v679
        %v780 = vpack.c.b16 %v690, %v680
        %v781 = vpack.c.b16 %v691, %v681
        %v782 = vpack.c.b16 %v692, %v682
        %v783 = vpack.c.b16 %v693, %v683
        %v784 = vpack.c.b16 %v694, %v684
        %v785 = vpack.c.b16 %v695, %v685
        %v786 = vpack.c.b16 %v696, %v686
        %v787 = vpack.c.b16 %v697, %v687
        %v788 = vpack.c.b16 %v698, %v688
        %v789 = vpack.c.b16 %v709, %v699
        %v790 = vpack.c.b16 %v710, %v700
        %v791 = vpack.c.b16 %v711, %v701
        %v792 = vpack.c.b16 %v712, %v702
        %v793 = vpack.c.b16 %v713, %v703
        %v794 = vpack.c.b16 %v714, %v704
        %v795 = vpack.c.b16 %v715, %v705
        %v796 = vpack.c.b16 %v716, %v706
        %v797 = vpack.c.b16 %v717, %v707
        %v798 = vpack.c.b16 %v718, %v708
        %879 = vmatprep.subr.bf16.mxu0 %v720
        %880 = vmatpush1.bf16.msra.mxu0 %v719
        %881 = vmatprep.subr.bf16.mxu0 %v730
        %882 = vmatpush1.bf16.msra.mxu0 %v729
        %883 = vmatprep.subr.bf16.mxu0 %v740
        %884 = vmatpush1.bf16.msra.mxu0 %v739
        %885 = vmatprep.subr.bf16.mxu0 %v750
        %886 = vmatpush1.bf16.msra.mxu0 %v749
        %887 = vmatprep.subr.bf16.mxu0 %v760
        %888 = vmatpush1.bf16.msra.mxu0 %v759
        %889 = vmatprep.subr.bf16.mxu0 %v770
        %890 = vmatpush1.bf16.msra.mxu0 %v769
        %891 = vmatprep.subr.bf16.mxu0 %v780
        %892 = vmatpush1.bf16.msra.mxu0 %v779
        %893 = vmatprep.subr.bf16.mxu0 %v790
        %894 = vmatpush1.bf16.msra.mxu0 %v789
        %895 = vmatprep.subr.bf16.mxu0 0
        %896 = vmatpush1.bf16.msra.mxu0 0
        %897 = vmatprep.subr.bf16.mxu0 0
        %898 = vmatpush1.bf16.msra.mxu0 0
        %899 = vmatprep.subr.bf16.mxu0 0
        %900 = vmatpush1.bf16.msra.mxu0 0
        %901 = vmatprep.subr.bf16.mxu0 0
        %902 = vmatpush1.bf16.msra.mxu0 0
        %903 = vmatprep.subr.bf16.mxu0 0
        %904 = vmatpush1.bf16.msra.mxu0 0
        %905 = vmatprep.subr.bf16.mxu0 0
        %906 = vmatpush1.bf16.msra.mxu0 0
        %907 = vmatprep.subr.bf16.mxu0 0
        %908 = vmatpush1.bf16.msra.mxu0 0
        %909 = vmatprep.subr.bf16.mxu0 0
        %910 = vmatpush1.bf16.msra.mxu0 0
        %911 = vmatprep.mubr.bf16.mxu0 0
        %912 = vmatmul.mubr.bf16.gmra.mrb[0].mxu0 %v477
        %v913 = vpop.f32.mrb[0].mxu0
        %v914 = vadd.f32 0.0, %v913
        %v915 = vpop.f32.mrb[0].mxu0
        %v916 = vadd.f32 0.0, %v915
        %v917 = vpop.f32.mrb[0].mxu0
        %v918 = vadd.f32 0.0, %v917
        %v919 = vpop.f32.mrb[0].mxu0
        %v920 = vadd.f32 0.0, %v919
        %921 = vdwg.mxu0
        %922 = vmatprep.subr.bf16.mxu0 %v722
        %923 = vmatpush1.bf16.msra.mxu0 %v721
        %924 = vmatprep.subr.bf16.mxu0 %v732
        %925 = vmatpush1.bf16.msra.mxu0 %v731
        %926 = vmatprep.subr.bf16.mxu0 %v742
        %927 = vmatpush1.bf16.msra.mxu0 %v741
        %928 = vmatprep.subr.bf16.mxu0 %v752
        %929 = vmatpush1.bf16.msra.mxu0 %v751
        %930 = vmatprep.subr.bf16.mxu0 %v762
        %931 = vmatpush1.bf16.msra.mxu0 %v761
        %932 = vmatprep.subr.bf16.mxu0 %v772
        %933 = vmatpush1.bf16.msra.mxu0 %v771
        %934 = vmatprep.subr.bf16.mxu0 %v782
        %935 = vmatpush1.bf16.msra.mxu0 %v781
        %936 = vmatprep.subr.bf16.mxu0 %v792
        %937 = vmatpush1.bf16.msra.mxu0 %v791
        %938 = vmatprep.subr.bf16.mxu0 0
        %939 = vmatpush1.bf16.msra.mxu0 0
        %940 = vmatprep.subr.bf16.mxu0 0
        %941 = vmatpush1.bf16.msra.mxu0 0
        %942 = vmatprep.subr.bf16.mxu0 0
        %943 = vmatpush1.bf16.msra.mxu0 0
        %944 = vmatprep.subr.bf16.mxu0 0
        %945 = vmatpush1.bf16.msra.mxu0 0
        %946 = vmatprep.subr.bf16.mxu0 0
        %947 = vmatpush1.bf16.msra.mxu0 0
        %948 = vmatprep.subr.bf16.mxu0 0
        %949 = vmatpush1.bf16.msra.mxu0 0
        %950 = vmatprep.subr.bf16.mxu0 0
        %951 = vmatpush1.bf16.msra.mxu0 0
        %952 = vmatprep.subr.bf16.mxu0 0
        %953 = vmatpush1.bf16.msra.mxu0 0
        %954 = vmatprep.mubr.bf16.mxu0 0
        %955 = vmatmul.mubr.bf16.gmra.mrb[0].mxu0 %v477
        %v956 = vpop.f32.mrb[0].mxu0
        %v957 = vadd.f32 0.0, %v956
        %v958 = vpop.f32.mrb[0].mxu0
        %v959 = vadd.f32 0.0, %v958
        %v960 = vpop.f32.mrb[0].mxu0
        %v961 = vadd.f32 0.0, %v960
        %v962 = vpop.f32.mrb[0].mxu0
        %v963 = vadd.f32 0.0, %v962
        %964 = vdwg.mxu0
        %965 = vmatprep.subr.bf16.mxu0 %v724
        %966 = vmatpush1.bf16.msra.mxu0 %v723
        %967 = vmatprep.subr.bf16.mxu0 %v734
        %968 = vmatpush1.bf16.msra.mxu0 %v733
        %969 = vmatprep.subr.bf16.mxu0 %v744
        %970 = vmatpush1.bf16.msra.mxu0 %v743
        %971 = vmatprep.subr.bf16.mxu0 %v754
        %972 = vmatpush1.bf16.msra.mxu0 %v753
        %973 = vmatprep.subr.bf16.mxu0 %v764
        %974 = vmatpush1.bf16.msra.mxu0 %v763
        %975 = vmatprep.subr.bf16.mxu0 %v774
        %976 = vmatpush1.bf16.msra.mxu0 %v773
        %977 = vmatprep.subr.bf16.mxu0 %v784
        %978 = vmatpush1.bf16.msra.mxu0 %v783
        %979 = vmatprep.subr.bf16.mxu0 %v794
        %980 = vmatpush1.bf16.msra.mxu0 %v793
        %981 = vmatprep.subr.bf16.mxu0 0
        %982 = vmatpush1.bf16.msra.mxu0 0
        %983 = vmatprep.subr.bf16.mxu0 0
        %984 = vmatpush1.bf16.msra.mxu0 0
        %985 = vmatprep.subr.bf16.mxu0 0
        %986 = vmatpush1.bf16.msra.mxu0 0
        %987 = vmatprep.subr.bf16.mxu0 0
        %988 = vmatpush1.bf16.msra.mxu0 0
        %989 = vmatprep.subr.bf16.mxu0 0
        %990 = vmatpush1.bf16.msra.mxu0 0
        %991 = vmatprep.subr.bf16.mxu0 0
        %992 = vmatpush1.bf16.msra.mxu0 0
        %993 = vmatprep.subr.bf16.mxu0 0
        %994 = vmatpush1.bf16.msra.mxu0 0
        %995 = vmatprep.subr.bf16.mxu0 0
        %996 = vmatpush1.bf16.msra.mxu0 0
        %997 = vmatprep.mubr.bf16.mxu0 0
        %998 = vmatmul.mubr.bf16.gmra.mrb[0].mxu0 %v477
        %v999 = vpop.f32.mrb[0].mxu0
        %v1000 = vadd.f32 0.0, %v999
        %v1001 = vpop.f32.mrb[0].mxu0
        %v1002 = vadd.f32 0.0, %v1001
        %v1003 = vpop.f32.mrb[0].mxu0
        %v1004 = vadd.f32 0.0, %v1003
        %v1005 = vpop.f32.mrb[0].mxu0
        %v1006 = vadd.f32 0.0, %v1005
        %1007 = vdwg.mxu0
        %1008 = vmatprep.subr.bf16.mxu0 %v726
        %1009 = vmatpush1.bf16.msra.mxu0 %v725
        %1010 = vmatprep.subr.bf16.mxu0 %v736
        %1011 = vmatpush1.bf16.msra.mxu0 %v735
        %1012 = vmatprep.subr.bf16.mxu0 %v746
        %1013 = vmatpush1.bf16.msra.mxu0 %v745
        %1014 = vmatprep.subr.bf16.mxu0 %v756
        %1015 = vmatpush1.bf16.msra.mxu0 %v755
        %1016 = vmatprep.subr.bf16.mxu0 %v766
        %1017 = vmatpush1.bf16.msra.mxu0 %v765
        %1018 = vmatprep.subr.bf16.mxu0 %v776
        %1019 = vmatpush1.bf16.msra.mxu0 %v775
        %1020 = vmatprep.subr.bf16.mxu0 %v786
        %1021 = vmatpush1.bf16.msra.mxu0 %v785
        %1022 = vmatprep.subr.bf16.mxu0 %v796
        %1023 = vmatpush1.bf16.msra.mxu0 %v795
        %1024 = vmatprep.subr.bf16.mxu0 0
        %1025 = vmatpush1.bf16.msra.mxu0 0
        %1026 = vmatprep.subr.bf16.mxu0 0
        %1027 = vmatpush1.bf16.msra.mxu0 0
        %1028 = vmatprep.subr.bf16.mxu0 0
        %1029 = vmatpush1.bf16.msra.mxu0 0
        %1030 = vmatprep.subr.bf16.mxu0 0
        %1031 = vmatpush1.bf16.msra.mxu0 0
        %1032 = vmatprep.subr.bf16.mxu0 0
        %1033 = vmatpush1.bf16.msra.mxu0 0
        %1034 = vmatprep.subr.bf16.mxu0 0
        %1035 = vmatpush1.bf16.msra.mxu0 0
        %1036 = vmatprep.subr.bf16.mxu0 0
        %1037 = vmatpush1.bf16.msra.mxu0 0
        %1038 = vmatprep.subr.bf16.mxu0 0
        %1039 = vmatpush1.bf16.msra.mxu0 0
        %1040 = vmatprep.mubr.bf16.mxu0 0
        %1041 = vmatmul.mubr.bf16.gmra.mrb[0].mxu0 %v477
        %v1042 = vpop.f32.mrb[0].mxu0
        %v1043 = vadd.f32 0.0, %v1042
        %v1044 = vpop.f32.mrb[0].mxu0
        %v1045 = vadd.f32 0.0, %v1044
        %v1046 = vpop.f32.mrb[0].mxu0
        %v1047 = vadd.f32 0.0, %v1046
        %v1048 = vpop.f32.mrb[0].mxu0
        %v1049 = vadd.f32 0.0, %v1048
        %1050 = vdwg.mxu0
        %1051 = vmatprep.subr.bf16.mxu0 %v728
        %1052 = vmatpush1.bf16.msra.mxu0 %v727
        %1053 = vmatprep.subr.bf16.mxu0 %v738
        %1054 = vmatpush1.bf16.msra.mxu0 %v737
        %1055 = vmatprep.subr.bf16.mxu0 %v748
        %1056 = vmatpush1.bf16.msra.mxu0 %v747
        %1057 = vmatprep.subr.bf16.mxu0 %v758
        %1058 = vmatpush1.bf16.msra.mxu0 %v757
        %1059 = vmatprep.subr.bf16.mxu0 %v768
        %1060 = vmatpush1.bf16.msra.mxu0 %v767
        %1061 = vmatprep.subr.bf16.mxu0 %v778
        %1062 = vmatpush1.bf16.msra.mxu0 %v777
        %1063 = vmatprep.subr.bf16.mxu0 %v788
        %1064 = vmatpush1.bf16.msra.mxu0 %v787
        %1065 = vmatprep.subr.bf16.mxu0 %v798
        %1066 = vmatpush1.bf16.msra.mxu0 %v797
        %1067 = vmatprep.subr.bf16.mxu0 0
        %1068 = vmatpush1.bf16.msra.mxu0 0
        %1069 = vmatprep.subr.bf16.mxu0 0
        %1070 = vmatpush1.bf16.msra.mxu0 0
        %1071 = vmatprep.subr.bf16.mxu0 0
        %1072 = vmatpush1.bf16.msra.mxu0 0
        %1073 = vmatprep.subr.bf16.mxu0 0
        %1074 = vmatpush1.bf16.msra.mxu0 0
        %1075 = vmatprep.subr.bf16.mxu0 0
        %1076 = vmatpush1.bf16.msra.mxu0 0
        %1077 = vmatprep.subr.bf16.mxu0 0
        %1078 = vmatpush1.bf16.msra.mxu0 0
        %1079 = vmatprep.subr.bf16.mxu0 0
        %1080 = vmatpush1.bf16.msra.mxu0 0
        %1081 = vmatprep.subr.bf16.mxu0 0
        %1082 = vmatpush1.bf16.msra.mxu0 0
        %1083 = vmatprep.mubr.bf16.mxu0 0
        %1084 = vmatmul.mubr.bf16.gmra.mrb[0].mxu0 %v477
        %v1085 = vpop.f32.mrb[0].mxu0
        %v1086 = vadd.f32 0.0, %v1085
        %v1087 = vpop.f32.mrb[0].mxu0
        %v1088 = vadd.f32 0.0, %v1087
        %v1089 = vpop.f32.mrb[0].mxu0
        %v1090 = vadd.f32 0.0, %v1089
        %v1091 = vpop.f32.mrb[0].mxu0
        %v1092 = vadd.f32 0.0, %v1091
        %1093 = vdwg.mxu0
        %v1094 = vld [vmem:[%s2] sm:$0xff]
        %v1095 = vld [vmem:[%s2 + $0x8] sm:$0xff]
        %1097 = vset.pattern.permute.xlu0 0
        %1098 = vperm.xlu0 %1097, %v1094
        %v1099 = vpop.permute.xlu0 %1098
        %1102 = vset.pattern.permute.xlu0 0
        %1103 = vperm.xlu0 %1102, %v1095
        %v1104 = vpop.permute.xlu0 %1103
        %v1106 = vmul.f32 %v914, %v1099
        %v1107 = vmul.f32 %v916, %v1099
        %v1108 = vmul.f32 %v957, %v1099
        %v1109 = vmul.f32 %v959, %v1099
        %v1110 = vmul.f32 %v1000, %v1099
        %v1111 = vmul.f32 %v1002, %v1099
        %v1112 = vmul.f32 %v1043, %v1099
        %v1113 = vmul.f32 %v1045, %v1099
        %v1114 = vmul.f32 %v1086, %v1099
        %v1115 = vmul.f32 %v1088, %v1099
        %v1116 = vmul.f32 %v918, %v1104
        %v1117 = vmul.f32 %v920, %v1104
        %v1118 = vmul.f32 %v961, %v1104
        %v1119 = vmul.f32 %v963, %v1104
        %v1120 = vmul.f32 %v1004, %v1104
        %v1121 = vmul.f32 %v1006, %v1104
        %v1122 = vmul.f32 %v1047, %v1104
        %v1123 = vmul.f32 %v1049, %v1104
        %v1124 = vmul.f32 %v1090, %v1104
        %v1125 = vmul.f32 %v1092, %v1104
        %v1126 = vld [vmem:[%s3] sm:$0xff]
        %v1127 = vld [vmem:[%s3 + $0x8] sm:$0xff]
        %1129 = vset.pattern.permute.xlu0 0
        %1130 = vperm.xlu0 %1129, %v1126
        %v1131 = vpop.permute.xlu0 %1130
        %1134 = vset.pattern.permute.xlu0 0
        %1135 = vperm.xlu0 %1134, %v1127
        %v1136 = vpop.permute.xlu0 %1135
        %v1138 = vadd.f32 %v1106, %v1131
        %v1139 = vadd.f32 %v1107, %v1131
        %v1140 = vadd.f32 %v1108, %v1131
        %v1141 = vadd.f32 %v1109, %v1131
        %v1142 = vadd.f32 %v1110, %v1131
        %v1143 = vadd.f32 %v1111, %v1131
        %v1144 = vadd.f32 %v1112, %v1131
        %v1145 = vadd.f32 %v1113, %v1131
        %v1146 = vadd.f32 %v1114, %v1131
        %v1147 = vadd.f32 %v1115, %v1131
        %v1148 = vadd.f32 %v1116, %v1136
        %v1149 = vadd.f32 %v1117, %v1136
        %v1150 = vadd.f32 %v1118, %v1136
        %v1151 = vadd.f32 %v1119, %v1136
        %v1152 = vadd.f32 %v1120, %v1136
        %v1153 = vadd.f32 %v1121, %v1136
        %v1154 = vadd.f32 %v1122, %v1136
        %v1155 = vadd.f32 %v1123, %v1136
        %v1156 = vadd.f32 %v1124, %v1136
        %v1157 = vadd.f32 %v1125, %v1136
        %vm1158 = vcmp.gt.f32.partialorder %v1138, 0.0
        %vm1159 = vcmp.gt.f32.partialorder %v1139, 0.0
        %vm1160 = vcmp.gt.f32.partialorder %v1140, 0.0
        %vm1161 = vcmp.gt.f32.partialorder %v1141, 0.0
        %vm1162 = vcmp.gt.f32.partialorder %v1142, 0.0
        %vm1163 = vcmp.gt.f32.partialorder %v1143, 0.0
        %vm1164 = vcmp.gt.f32.partialorder %v1144, 0.0
        %vm1165 = vcmp.gt.f32.partialorder %v1145, 0.0
        %vm1166 = vcmp.gt.f32.partialorder %v1146, 0.0
        %vm1167 = vcmp.gt.f32.partialorder %v1147, 0.0
        %vm1168 = vcmp.gt.f32.partialorder %v1148, 0.0
        %vm1169 = vcmp.gt.f32.partialorder %v1149, 0.0
        %vm1170 = vcmp.gt.f32.partialorder %v1150, 0.0
        %vm1171 = vcmp.gt.f32.partialorder %v1151, 0.0
        %vm1172 = vcmp.gt.f32.partialorder %v1152, 0.0
        %vm1173 = vcmp.gt.f32.partialorder %v1153, 0.0
        %vm1174 = vcmp.gt.f32.partialorder %v1154, 0.0
        %vm1175 = vcmp.gt.f32.partialorder %v1155, 0.0
        %vm1176 = vcmp.gt.f32.partialorder %v1156, 0.0
        %vm1177 = vcmp.gt.f32.partialorder %v1157, 0.0
        %v1178 = vmul.f32 %v1138, 0.2
        %v1179 = vmul.f32 %v1139, 0.2
        %v1180 = vmul.f32 %v1140, 0.2
        %v1181 = vmul.f32 %v1141, 0.2
        %v1182 = vmul.f32 %v1142, 0.2
        %v1183 = vmul.f32 %v1143, 0.2
        %v1184 = vmul.f32 %v1144, 0.2
        %v1185 = vmul.f32 %v1145, 0.2
        %v1186 = vmul.f32 %v1146, 0.2
        %v1187 = vmul.f32 %v1147, 0.2
        %v1188 = vmul.f32 %v1148, 0.2
        %v1189 = vmul.f32 %v1149, 0.2
        %v1190 = vmul.f32 %v1150, 0.2
        %v1191 = vmul.f32 %v1151, 0.2
        %v1192 = vmul.f32 %v1152, 0.2
        %v1193 = vmul.f32 %v1153, 0.2
        %v1194 = vmul.f32 %v1154, 0.2
        %v1195 = vmul.f32 %v1155, 0.2
        %v1196 = vmul.f32 %v1156, 0.2
        %v1197 = vmul.f32 %v1157, 0.2
        %v1198 = vsel %vm1158, %v1138, %v1178
        %v1199 = vsel %vm1159, %v1139, %v1179
        %v1200 = vsel %vm1160, %v1140, %v1180
        %v1201 = vsel %vm1161, %v1141, %v1181
        %v1202 = vsel %vm1162, %v1142, %v1182
        %v1203 = vsel %vm1163, %v1143, %v1183
        %v1204 = vsel %vm1164, %v1144, %v1184
        %v1205 = vsel %vm1165, %v1145, %v1185
        %v1206 = vsel %vm1166, %v1146, %v1186
        %v1207 = vsel %vm1167, %v1147, %v1187
        %v1208 = vsel %vm1168, %v1148, %v1188
        %v1209 = vsel %vm1169, %v1149, %v1189
        %v1210 = vsel %vm1170, %v1150, %v1190
        %v1211 = vsel %vm1171, %v1151, %v1191
        %v1212 = vsel %vm1172, %v1152, %v1192
        %v1213 = vsel %vm1173, %v1153, %v1193
        %v1214 = vsel %vm1174, %v1154, %v1194
        %v1215 = vsel %vm1175, %v1155, %v1195
        %v1216 = vsel %vm1176, %v1156, %v1196
        %v1217 = vsel %vm1177, %v1157, %v1197
        %v1218 = vpack.c.bf16 %v1208, %v1198
        %v1219 = vpack.c.bf16 %v1209, %v1199
        %v1220 = vpack.c.bf16 %v1210, %v1200
        %v1221 = vpack.c.bf16 %v1211, %v1201
        %v1222 = vpack.c.bf16 %v1212, %v1202
        %v1223 = vpack.c.bf16 %v1213, %v1203
        %v1224 = vpack.c.bf16 %v1214, %v1204
        %v1225 = vpack.c.bf16 %v1215, %v1205
        %v1226 = vpack.c.bf16 %v1216, %v1206
        %v1227 = vpack.c.bf16 %v1217, %v1207
        %v1238 = vunpack.c.l.b16 %v1218
        %v1239 = vunpack.c.l.b16 %v1219
        %v1240 = vunpack.c.l.b16 %v1220
        %v1241 = vunpack.c.l.b16 %v1221
        %v1242 = vunpack.c.l.b16 %v1222
        %v1243 = vunpack.c.l.b16 %v1223
        %v1244 = vunpack.c.l.b16 %v1224
        %v1245 = vunpack.c.l.b16 %v1225
        %v1246 = vunpack.c.l.b16 %v1226
        %v1247 = vunpack.c.l.b16 %v1227
        %v1248 = vunpack.c.h.b16 %v1218
        %v1249 = vunpack.c.h.b16 %v1219
        %v1250 = vunpack.c.h.b16 %v1220
        %v1251 = vunpack.c.h.b16 %v1221
        %v1252 = vunpack.c.h.b16 %v1222
        %v1253 = vunpack.c.h.b16 %v1223
        %v1254 = vunpack.c.h.b16 %v1224
        %v1255 = vunpack.c.h.b16 %v1225
        %v1256 = vunpack.c.h.b16 %v1226
        %v1257 = vunpack.c.h.b16 %v1227
        %v1258 = vpack.c.b16 %v1239, %v1238
        %v1259 = vpack.c.b16 %v1241, %v1240
        %v1260 = vpack.c.b16 %v1243, %v1242
        %v1261 = vpack.c.b16 %v1245, %v1244
        %v1262 = vpack.c.b16 %v1247, %v1246
        %v1263 = vpack.c.b16 %v1249, %v1248
        %v1264 = vpack.c.b16 %v1251, %v1250
        %v1265 = vpack.c.b16 %v1253, %v1252
        %v1266 = vpack.c.b16 %v1255, %v1254
        %v1267 = vpack.c.b16 %v1257, %v1256
        %1278 = vst [vmem:[%s387] sm:$0xff] %v1258
        %1279 = vst [vmem:[%s387 + $0x8] sm:$0xff] %v1259
        %1280 = vst [vmem:[%s387 + $0x10] sm:$0xff] %v1260
        %1281 = vst [vmem:[%s387 + $0x18] sm:$0xff] %v1261
        %1282 = vst [vmem:[%s387 + $0x20] sm:$0xff] %v1262
        %1283 = vst [vmem:[%s387 + $0x28] sm:$0xff] %v1263
        %1284 = vst [vmem:[%s387 + $0x30] sm:$0xff] %v1264
        %1285 = vst [vmem:[%s387 + $0x38] sm:$0xff] %v1265
        %1286 = vst [vmem:[%s387 + $0x40] sm:$0xff] %v1266
        %1287 = vst [vmem:[%s387 + $0x48] sm:$0xff] %v1267
        %s1288 = sand.u32 %s128, 1
        %s1289 = sand.u32 %s128, 1
        %s1290 = smul.addr %s1289, 80
        %s1291 = scalar_lea.vmem [#allocation3], %s1290
        // Predicated region
        $region60: #{discriminator_forward.6} parent=54 // pred_check
          %p1292 = pneg %p138
        $region61: #{discriminator_forward.6} parent=54 // pred_check_branch
          %1294 = sbr.rel (%p1292) target = $region63
        $region62: #{discriminator_forward.6} parent=54 // pred_region
          %s1295 = smul.u32 10, %s20
          %s1296 = smul.addr %s19, 40
          %s1297 = sadd.s32 %s1295, %s1296
          %s1298 = smul.addr %s1297, 4
          %s1299 = scalar_lea.vmem %s4, %s1298
          // Predicated region
          $region64: #{discriminator_forward.6} parent=62 // pred_check
            _
          $region65: #{discriminator_forward.6} parent=62 // pred_check_branch
            %1301 = sbr.rel (0) target = $region67
          $region66: #{discriminator_forward.6} parent=62 // pred_region
            // Predicated region
            $region68: #{discriminator_forward.6} parent=66 // pred_check
              _
            $region69: #{discriminator_forward.6} parent=66 // pred_check_branch
              %1303 = sbr.rel (0) target = $region71
            $region70: #{discriminator_forward.6} parent=66 // pred_region
              loop: start=0, step=1, limit=1
              $region72: #{discriminator_forward.6} parent=70 // loop_pre_header
                _
              $region73: #{discriminator_forward.6} parent=70 // loop_header
                %s1305 = sphi 0, %s1309
                %p1306 = scmp.ge.s32.totalorder %s1305, 1
                %s1310 = sphi %s1291, %s1291
                %s1311 = sphi %s1299, %s1299
              $region74: #{discriminator_forward.6} parent=70 // loop_header_branch
                %1308 = sbr.rel (%p1306) target = $region78
              $region75: #{discriminator_forward.6} parent=70 // loop_body
                %v1312 = vld [vmem:[%s1310] sm:$0xff]
                %1313 = vst [vmem:[%s1311] sm:$0xff] %v1312
                %v1314 = vld [vmem:[%s1310 + $0x8] sm:$0xff]
                %1315 = vst [vmem:[%s1311 + $0x8] sm:$0xff] %v1314
                %v1316 = vld [vmem:[%s1310 + $0x10] sm:$0xff]
                %1317 = vst [vmem:[%s1311 + $0x10] sm:$0xff] %v1316
                %v1318 = vld [vmem:[%s1310 + $0x18] sm:$0xff]
                %1319 = vst [vmem:[%s1311 + $0x18] sm:$0xff] %v1318
                %v1320 = vld [vmem:[%s1310 + $0x20] sm:$0xff]
                %1321 = vst [vmem:[%s1311 + $0x20] sm:$0xff] %v1320
                %v1322 = vld [vmem:[%s1310 + $0x28] sm:$0xff]
                %1323 = vst [vmem:[%s1311 + $0x50] sm:$0xff] %v1322
                %v1324 = vld [vmem:[%s1310 + $0x30] sm:$0xff]
                %1325 = vst [vmem:[%s1311 + $0x58] sm:$0xff] %v1324
                %v1326 = vld [vmem:[%s1310 + $0x38] sm:$0xff]
                %1327 = vst [vmem:[%s1311 + $0x60] sm:$0xff] %v1326
                %v1328 = vld [vmem:[%s1310 + $0x40] sm:$0xff]
                %1329 = vst [vmem:[%s1311 + $0x68] sm:$0xff] %v1328
                %v1330 = vld [vmem:[%s1310 + $0x48] sm:$0xff]
                %1331 = vst [vmem:[%s1311 + $0x70] sm:$0xff] %v1330
              $region76: #{discriminator_forward.6} parent=70 // loop_footer
                %s1309 = sadd.s32 1, %s1305
              $region77: #{discriminator_forward.6} parent=70 // loop_footer_branch
                %1304 = sbr.rel target = $region73
              $region78: #{discriminator_forward.6} parent=70 // loop_exit
                _
            $region71: #{discriminator_forward.6} parent=66 // pred_fallthru
              _
            // Predicated region
            $region79: #{discriminator_forward.6} parent=66 // pred_check
              _
            $region80: #{discriminator_forward.6} parent=66 // pred_check_branch
              %1333 = sbr.rel target = $region82
            $region81: #{discriminator_forward.6} parent=66 // pred_region
              _
            $region82: #{discriminator_forward.6} parent=66 // pred_fallthru
              _
          $region67: #{discriminator_forward.6} parent=62 // pred_fallthru
            _
          %1334 = vnop
        $region63: #{discriminator_forward.6} parent=54 // pred_fallthru
          _
      $region55: #{discriminator_forward.6} parent=5 // pred_fallthru
        _
      %p1335 = scmp.le.s32.totalorder 2, %s10
      // Predicated region
      $region83: #{discriminator_forward.6} parent=5 // pred_check
        %p1336 = pneg %p1335
      $region84: #{discriminator_forward.6} parent=5 // pred_check_branch
        %1338 = sbr.rel (%p1336) target = $region86
      $region85: #{discriminator_forward.6} parent=5 // pred_region
        %s1339 = ssub.s32 %s10, 2
        // Predicated region
        $region87: #{discriminator_forward.6} parent=85 // pred_check
          %p1340 = pneg %p144
        $region88: #{discriminator_forward.6} parent=85 // pred_check_branch
          %1342 = sbr.rel (%p1340) target = $region90
        $region89: #{discriminator_forward.6} parent=85 // pred_region
          %s1343 = sand.u32 %s129, 1
          %s1344 = sand.u32 %s129, 1
          %s1345 = smul.addr %s1344, 80
          %s1346 = scalar_lea.vmem [#allocation3], %s1345
        $region90: #{discriminator_forward.6} parent=85 // pred_fallthru
          _
      $region86: #{discriminator_forward.6} parent=5 // pred_fallthru
        _
    $region6: #{discriminator_forward.6} parent=1 // loop_footer
      %s14 = sadd.s32 1, %s10
    $region7: #{discriminator_forward.6} parent=1 // loop_footer_branch
      %9 = sbr.rel target = $region3
    $region8: #{discriminator_forward.6} parent=1 // loop_exit
      _

// kernel: discriminator_forward.7
$region0: #{discriminator_forward.7}
  #allocation0 [shape = 'u32[]', space=smem, size = 0x4, offset = 0x4, fixed_abs, tag = 'smem constant byte address 0x4 - core index']
  #allocation1 [shape = 'u32[144,128]{1,0:T(1,128)}', space=vmem, size = 0x12000, scoped, tag = 'internal scratch']
  %s0 = inlined_call_operand.vmem [shape: bf16[2,256,640], index: 0, kind: input, shape index: {}]
  %s1 = inlined_call_operand.vmem [shape: bf16[32,256], index: 1, kind: input, shape index: {}]
  %s2 = inlined_call_operand.vmem [shape: f32[32,1], index: 2, kind: input, shape index: {}]
  %s3 = inlined_call_operand.vmem [shape: f32[32,1], index: 3, kind: input, shape index: {}]
  %s4 = inlined_call_operand.vmem [shape: bf16[2,32,640], index: 4, kind: output, shape index: {}]
  %s5 = sld [smem:[#allocation0]]
  $region49: #{discriminator_forward.7} parent=0
    _
  %s7 = ssub.s32 1, %s5
  %s8 = scalar_select 0, %s7, %s5
  loop: start=0, step=1, limit=4
  $region2: #{discriminator_forward.7} parent=0 // loop_pre_header
    _
  $region3: #{discriminator_forward.7} parent=0 // loop_header
    %s10 = sphi 0, %s14
    %p11 = scmp.ge.s32.totalorder %s10, 4
    %s17 = sphi 0, %s29
    %s18 = sphi 0, %s25
    %s19 = sphi 0, %s17
    %s20 = sphi 0, %s18
    %s21 = sphi 0, %s19
    %s22 = sphi 0, %s20
    %s34 = sphi 0, %s36
    %s37 = sphi 0, %s34
    %s38 = sphi 0, %s37
    %s54 = sphi 0, %s38
    %s58 = sphi 0, %s58
    %s60 = sphi 0, %s58
    %s61 = sphi 0, %s60
    %s75 = sphi 0, %s61
    %s79 = sphi 0, %s79
    %s81 = sphi 0, %s79
    %s82 = sphi 0, %s81
    %s96 = sphi 0, %s82
    %s100 = sphi 0, %s100
    %s102 = sphi 0, %s100
    %s103 = sphi 0, %s102
    %s117 = sphi 0, %s103
    %s125 = sphi 0, %s127
    %s128 = sphi 0, %s125
    %s129 = sphi 0, %s128
    %s145 = sphi 0, %s129
  $region4: #{discriminator_forward.7} parent=0 // loop_header_branch
    %13 = sbr.rel (%p11) target = $region8
  $region5: #{discriminator_forward.7} parent=0 // loop_body
    %s15 = ssub.s32 %s10, 1
    %s16 = ssub.s32 %s10, 2
    %s23 = sadd.s32 1, %s18
    %p24 = scmp.ge.s32.totalorder %s23, 1
    %s25 = scalar_select %p24, 0, %s23
    %s26 = sadd.s32 1, %s17
    %s27 = scalar_select %p24, %s26, %s17
    %p28 = scmp.ge.s32.totalorder %s27, 2
    %s29 = scalar_select %p28, 0, %s27
    %s30 = ssub.s32 %s17, %s29
    %s31 = ssub.s32 %s18, %s25
    %s32 = sor.u32 %s30, %s31
    %p33 = scmp.eq.s32.totalorder %s32, 0
    %s35 = sadd.s32 %s34, 1
    %s36 = scalar_select %p33, %s34, %s35
    %p39 = pneg %p33
    %p40 = scmp.eq.s32.totalorder %s10, 1
    %p41 = por %p39, %p40
    %p42 = scmp.ne.s32.totalorder %s34, %s37
    %p43 = scmp.eq.s32.totalorder %s10, 0
    %p44 = por %p42, %p43
    %p45 = scmp.ne.s32.totalorder %s34, %s37
    %p46 = scmp.eq.s32.totalorder %s15, 1
    %p47 = por %p45, %p46
    %p48 = scmp.ne.s32.totalorder %s37, %s38
    %p49 = scmp.eq.s32.totalorder %s15, 0
    %p50 = por %p48, %p49
    %p51 = scmp.ne.s32.totalorder %s37, %s38
    %p52 = scmp.eq.s32.totalorder %s16, 1
    %p53 = por %p51, %p52
    %p55 = scmp.ne.s32.totalorder %s38, %s54
    %p56 = scmp.eq.s32.totalorder %s16, 0
    %p57 = por %p55, %p56
    %s59 = sadd.s32 %s58, 1
    %p62 = scmp.eq.s32.totalorder %s10, 1
    %p63 = scmp.ne.s32.totalorder %s58, %s60
    %p64 = scmp.eq.s32.totalorder %s10, 0
    %p65 = por %p63, %p64
    %p66 = scmp.ne.s32.totalorder %s58, %s60
    %p67 = scmp.eq.s32.totalorder %s15, 1
    %p68 = por %p66, %p67
    %p69 = scmp.ne.s32.totalorder %s60, %s61
    %p70 = scmp.eq.s32.totalorder %s15, 0
    %p71 = por %p69, %p70
    %p72 = scmp.ne.s32.totalorder %s60, %s61
    %p73 = scmp.eq.s32.totalorder %s16, 1
    %p74 = por %p72, %p73
    %p76 = scmp.ne.s32.totalorder %s61, %s75
    %p77 = scmp.eq.s32.totalorder %s16, 0
    %p78 = por %p76, %p77
    %s80 = sadd.s32 %s79, 1
    %p83 = scmp.eq.s32.totalorder %s10, 1
    %p84 = scmp.ne.s32.totalorder %s79, %s81
    %p85 = scmp.eq.s32.totalorder %s10, 0
    %p86 = por %p84, %p85
    %p87 = scmp.ne.s32.totalorder %s79, %s81
    %p88 = scmp.eq.s32.totalorder %s15, 1
    %p89 = por %p87, %p88
    %p90 = scmp.ne.s32.totalorder %s81, %s82
    %p91 = scmp.eq.s32.totalorder %s15, 0
    %p92 = por %p90, %p91
    %p93 = scmp.ne.s32.totalorder %s81, %s82
    %p94 = scmp.eq.s32.totalorder %s16, 1
    %p95 = por %p93, %p94
    %p97 = scmp.ne.s32.totalorder %s82, %s96
    %p98 = scmp.eq.s32.totalorder %s16, 0
    %p99 = por %p97, %p98
    %s101 = sadd.s32 %s100, 1
    %p104 = scmp.eq.s32.totalorder %s10, 1
    %p105 = scmp.ne.s32.totalorder %s100, %s102
    %p106 = scmp.eq.s32.totalorder %s10, 0
    %p107 = por %p105, %p106
    %p108 = scmp.ne.s32.totalorder %s100, %s102
    %p109 = scmp.eq.s32.totalorder %s15, 1
    %p110 = por %p108, %p109
    %p111 = scmp.ne.s32.totalorder %s102, %s103
    %p112 = scmp.eq.s32.totalorder %s15, 0
    %p113 = por %p111, %p112
    %p114 = scmp.ne.s32.totalorder %s102, %s103
    %p115 = scmp.eq.s32.totalorder %s16, 1
    %p116 = por %p114, %p115
    %p118 = scmp.ne.s32.totalorder %s103, %s117
    %p119 = scmp.eq.s32.totalorder %s16, 0
    %p120 = por %p118, %p119
    %s121 = ssub.s32 %s17, %s29
    %s122 = ssub.s32 %s18, %s25
    %s123 = sor.u32 %s121, %s122
    %p124 = scmp.eq.s32.totalorder %s123, 0
    %s126 = sadd.s32 %s125, 1
    %s127 = scalar_select %p124, %s125, %s126
    %p130 = pneg %p124
    %p131 = scmp.eq.s32.totalorder %s10, 1
    %p132 = por %p130, %p131
    %p133 = scmp.ne.s32.totalorder %s125, %s128
    %p134 = scmp.eq.s32.totalorder %s10, 0
    %p135 = por %p133, %p134
    %p136 = scmp.ne.s32.totalorder %s125, %s128
    %p137 = scmp.eq.s32.totalorder %s15, 1
    %p138 = por %p136, %p137
    %p139 = scmp.ne.s32.totalorder %s128, %s129
    %p140 = scmp.eq.s32.totalorder %s15, 0
    %p141 = por %p139, %p140
    %p142 = scmp.ne.s32.totalorder %s128, %s129
    %p143 = scmp.eq.s32.totalorder %s16, 1
    %p144 = por %p142, %p143
    %p146 = scmp.ne.s32.totalorder %s129, %s145
    %p147 = scmp.eq.s32.totalorder %s16, 0
    %p148 = por %p146, %p147
    %p149 = scmp.le.s32.totalorder 1, %s10
    %p150 = scmp.lt.s32.totalorder %s10, 3
    %p151 = pnand %p149, %p150
    %p152 = pneg %p151
    // Predicated region
    $region9: #{discriminator_forward.7} parent=5 // pred_check
      _
    $region10: #{discriminator_forward.7} parent=5 // pred_check_branch
      %154 = sbr.rel (%p151) target = $region12
    $region11: #{discriminator_forward.7} parent=5 // pred_region
      %s155 = ssub.s32 %s10, 1
      // Predicated region
      $region13: #{discriminator_forward.7} parent=11 // pred_check
        %p156 = pneg %p71
      $region14: #{discriminator_forward.7} parent=11 // pred_check_branch
        %158 = sbr.rel (%p156) target = $region16
      $region15: #{discriminator_forward.7} parent=11 // pred_region
        _
      $region16: #{discriminator_forward.7} parent=11 // pred_fallthru
        _
      // Predicated region
      $region17: #{discriminator_forward.7} parent=11 // pred_check
        %p159 = pneg %p92
      $region18: #{discriminator_forward.7} parent=11 // pred_check_branch
        %161 = sbr.rel (%p159) target = $region20
      $region19: #{discriminator_forward.7} parent=11 // pred_region
        _
      $region20: #{discriminator_forward.7} parent=11 // pred_fallthru
        _
      // Predicated region
      $region21: #{discriminator_forward.7} parent=11 // pred_check
        %p162 = pneg %p113
      $region22: #{discriminator_forward.7} parent=11 // pred_check_branch
        %164 = sbr.rel (%p162) target = $region24
      $region23: #{discriminator_forward.7} parent=11 // pred_region
        _
      $region24: #{discriminator_forward.7} parent=11 // pred_fallthru
        _
    $region12: #{discriminator_forward.7} parent=5 // pred_fallthru
      _
    %p165 = scmp.lt.s32.totalorder %s10, 2
    // Predicated region
    $region25: #{discriminator_forward.7} parent=5 // pred_check
      %p166 = pneg %p165
    $region26: #{discriminator_forward.7} parent=5 // pred_check_branch
      %168 = sbr.rel (%p166) target = $region28
    $region27: #{discriminator_forward.7} parent=5 // pred_region
      // Predicated region
      $region29: #{discriminator_forward.7} parent=27 // pred_check
        %p169 = pneg %p44
      $region30: #{discriminator_forward.7} parent=27 // pred_check_branch
        %171 = sbr.rel (%p169) target = $region32
      $region31: #{discriminator_forward.7} parent=27 // pred_region
        %s172 = smul.u32 5, %s18
        %p173 = scmp.lt.s32.totalorder %s17, 1
        %s174 = scalar_select %p173, %s17, 1
        %p175 = scmp.lt.s32.totalorder %s172, 4
        %s176 = scalar_select %p175, %s172, 4
        %s177 = smul.addr %s174, 160
        %s178 = sadd.s32 %s176, %s177
        %s179 = smul.addr %s178, 4
        %s180 = scalar_lea.vmem %s0, %s179
        %s181 = smul.u32 5, %s18
      $region32: #{discriminator_forward.7} parent=27 // pred_fallthru
        _
    $region28: #{discriminator_forward.7} parent=5 // pred_fallthru
      _
    %p182 = scmp.le.s32.totalorder 1, %s10
    %p183 = scmp.lt.s32.totalorder %s10, 3
    %p184 = pnand %p182, %p183
    %p185 = pneg %p184
    // Predicated region
    $region33: #{discriminator_forward.7} parent=5 // pred_check
      _
    $region34: #{discriminator_forward.7} parent=5 // pred_check_branch
      %187 = sbr.rel (%p184) target = $region36
    $region35: #{discriminator_forward.7} parent=5 // pred_region
      %s188 = ssub.s32 %s10, 1
      %s189 = smul.u32 5, %s20
      %p190 = scmp.lt.s32.totalorder %s19, 1
      %s191 = scalar_select %p190, %s19, 1
      %p192 = scmp.lt.s32.totalorder %s189, 4
      %s193 = scalar_select %p192, %s189, 4
      %s194 = smul.addr %s191, 160
      %s195 = sadd.s32 %s193, %s194
      %s196 = smul.addr %s195, 4
      %s197 = scalar_lea.vmem %s0, %s196
      %p198 = pneg %p50
      %p199 = pneg %p47
      %p200 = pneg %p71
      %p201 = pneg %p68
      %p202 = pneg %p92
      %p203 = pneg %p89
      %p204 = pneg %p113
      %p205 = pneg %p110
      %p206 = pneg %p141
      %p207 = pneg %p138
      %s208 = smul.u32 5, %s20
      %p209 = scmp.lt.s32.totalorder %s19, 1
      %s210 = scalar_select %p209, %s19, 1
      %p211 = scmp.lt.s32.totalorder %s208, 4
      %s212 = scalar_select %p211, %s208, 4
      %s213 = smul.addr %s210, 20
      %s214 = sadd.s32 %s212, %s213
      %s215 = smul.addr %s214, 4
      %s216 = scalar_lea.vmem %s4, %s215
      %s217 = smul.u32 5, %s20
      %p218 = scmp.lt.s32.totalorder %s19, 1
      %s219 = scalar_select %p218, %s19, 1
      %p220 = scmp.lt.s32.totalorder %s217, 4
      %s221 = scalar_select %p220, %s217, 4
      %s222 = smul.addr %s219, 160
      %s223 = sadd.s32 %s221, %s222
      %s224 = smul.addr %s223, 4
      %s225 = scalar_lea.vmem %s0, %s224
      %s226 = smul.u32 5, %s20
      %s227 = smul.u32 5, %s20
      %p228 = scmp.lt.s32.totalorder %s19, 1
      %s229 = scalar_select %p228, %s19, 1
      %p230 = scmp.lt.s32.totalorder %s227, 4
      %s231 = scalar_select %p230, %s227, 4
      %s232 = smul.addr %s229, 20
      %s233 = sadd.s32 %s231, %s232
      %s234 = smul.addr %s233, 4
      %s235 = scalar_lea.vmem %s4, %s234
      %s236 = smul.u32 5, %s20
      %v238 = vld [vmem:[%s1] sm:$0xff]
      %v239 = vld [vmem:[%s1 + $0x8] sm:$0xff]
      %v240 = vld [vmem:[%s1 + $0x10] sm:$0xff]
      %v241 = vld [vmem:[%s1 + $0x18] sm:$0xff]
      %v242 = vld [vmem:[%s225] sm:$0xff]
      %v243 = vld [vmem:[%s225 + $0x8] sm:$0xff]
      %v244 = vld [vmem:[%s225 + $0x10] sm:$0xf]
      %v245 = vld [vmem:[%s225 + $0x14] sm:$0xff]
      %v246 = vld [vmem:[%s225 + $0x1c] sm:$0xff]
      %v247 = vld [vmem:[%s225 + $0x24] sm:$0xf]
      %v248 = vld [vmem:[%s225 + $0x28] sm:$0xff]
      %v249 = vld [vmem:[%s225 + $0x30] sm:$0xff]
      %v250 = vld [vmem:[%s225 + $0x38] sm:$0xf]
      %v251 = vld [vmem:[%s225 + $0x3c] sm:$0xff]
      %v252 = vld [vmem:[%s225 + $0x44] sm:$0xff]
      %v253 = vld [vmem:[%s225 + $0x4c] sm:$0xf]
      %v254 = vld [vmem:[%s225 + $0x50] sm:$0xff]
      %v255 = vld [vmem:[%s225 + $0x58] sm:$0xff]
      %v256 = vld [vmem:[%s225 + $0x60] sm:$0xf]
      %v257 = vld [vmem:[%s225 + $0x64] sm:$0xff]
      %v258 = vld [vmem:[%s225 + $0x6c] sm:$0xff]
      %v259 = vld [vmem:[%s225 + $0x74] sm:$0xf]
      %v260 = vld [vmem:[%s225 + $0x78] sm:$0xff]
      %v261 = vld [vmem:[%s225 + $0x80] sm:$0xff]
      %v262 = vld [vmem:[%s225 + $0x88] sm:$0xf]
      %v263 = vld [vmem:[%s225 + $0x8c] sm:$0xff]
      %v264 = vld [vmem:[%s225 + $0x94] sm:$0xff]
      %v265 = vld [vmem:[%s225 + $0x9c] sm:$0xf]
      %v266 = vld [vmem:[%s225 + $0xa0] sm:$0xff]
      %v267 = vld [vmem:[%s225 + $0xa8] sm:$0xff]
      %v268 = vld [vmem:[%s225 + $0xb0] sm:$0xf]
      %v269 = vld [vmem:[%s225 + $0xb4] sm:$0xff]
      %v270 = vld [vmem:[%s225 + $0xbc] sm:$0xff]
      %v271 = vld [vmem:[%s225 + $0xc4] sm:$0xf]
      %v272 = vld [vmem:[%s225 + $0xc8] sm:$0xff]
      %v273 = vld [vmem:[%s225 + $0xd0] sm:$0xff]
      %v274 = vld [vmem:[%s225 + $0xd8] sm:$0xf]
      %v275 = vld [vmem:[%s225 + $0xdc] sm:$0xff]
      %v276 = vld [vmem:[%s225 + $0xe4] sm:$0xff]
      %v277 = vld [vmem:[%s225 + $0xec] sm:$0xf]
      %v278 = vld [vmem:[%s225 + $0xf0] sm:$0xff]
      %v279 = vld [vmem:[%s225 + $0xf8] sm:$0xff]
      %v280 = vld [vmem:[%s225 + $0x100] sm:$0xf]
      %v281 = vld [vmem:[%s225 + $0x104] sm:$0xff]
      %v282 = vld [vmem:[%s225 + $0x10c] sm:$0xff]
      %v283 = vld [vmem:[%s225 + $0x114] sm:$0xf]
      %v284 = vld [vmem:[%s225 + $0x118] sm:$0xff]
      %v285 = vld [vmem:[%s225 + $0x120] sm:$0xff]
      %v286 = vld [vmem:[%s225 + $0x128] sm:$0xf]
      %v287 = vld [vmem:[%s225 + $0x12c] sm:$0xff]
      %v288 = vld [vmem:[%s225 + $0x134] sm:$0xff]
      %v289 = vld [vmem:[%s225 + $0x13c] sm:$0xf]
      %v290 = vld [vmem:[%s225 + $0x140] sm:$0xff]
      %v291 = vld [vmem:[%s225 + $0x148] sm:$0xff]
      %v292 = vld [vmem:[%s225 + $0x150] sm:$0xf]
      %v293 = vld [vmem:[%s225 + $0x154] sm:$0xff]
      %v294 = vld [vmem:[%s225 + $0x15c] sm:$0xff]
      %v295 = vld [vmem:[%s225 + $0x164] sm:$0xf]
      %v296 = vld [vmem:[%s225 + $0x168] sm:$0xff]
      %v297 = vld [vmem:[%s225 + $0x170] sm:$0xff]
      %v298 = vld [vmem:[%s225 + $0x178] sm:$0xf]
      %v299 = vld [vmem:[%s225 + $0x17c] sm:$0xff]
      %v300 = vld [vmem:[%s225 + $0x184] sm:$0xff]
      %v301 = vld [vmem:[%s225 + $0x18c] sm:$0xf]
      %v302 = vld [vmem:[%s225 + $0x190] sm:$0xff]
      %v303 = vld [vmem:[%s225 + $0x198] sm:$0xff]
      %v304 = vld [vmem:[%s225 + $0x1a0] sm:$0xf]
      %v305 = vld [vmem:[%s225 + $0x1a4] sm:$0xff]
      %v306 = vld [vmem:[%s225 + $0x1ac] sm:$0xff]
      %v307 = vld [vmem:[%s225 + $0x1b4] sm:$0xf]
      %v308 = vld [vmem:[%s225 + $0x1b8] sm:$0xff]
      %v309 = vld [vmem:[%s225 + $0x1c0] sm:$0xff]
      %v310 = vld [vmem:[%s225 + $0x1c8] sm:$0xf]
      %v311 = vld [vmem:[%s225 + $0x1cc] sm:$0xff]
      %v312 = vld [vmem:[%s225 + $0x1d4] sm:$0xff]
      %v313 = vld [vmem:[%s225 + $0x1dc] sm:$0xf]
      %v314 = vld [vmem:[%s225 + $0x1e0] sm:$0xff]
      %v315 = vld [vmem:[%s225 + $0x1e8] sm:$0xff]
      %v316 = vld [vmem:[%s225 + $0x1f0] sm:$0xf]
      %v317 = vld [vmem:[%s225 + $0x1f4] sm:$0xff]
      %v318 = vld [vmem:[%s225 + $0x1fc] sm:$0xff]
      %v319 = vld [vmem:[%s225 + $0x204] sm:$0xf]
      %v320 = vld [vmem:[%s225 + $0x208] sm:$0xff]
      %v321 = vld [vmem:[%s225 + $0x210] sm:$0xff]
      %v322 = vld [vmem:[%s225 + $0x218] sm:$0xf]
      %v323 = vld [vmem:[%s225 + $0x21c] sm:$0xff]
      %v324 = vld [vmem:[%s225 + $0x224] sm:$0xff]
      %v325 = vld [vmem:[%s225 + $0x22c] sm:$0xf]
      %v326 = vld [vmem:[%s225 + $0x230] sm:$0xff]
      %v327 = vld [vmem:[%s225 + $0x238] sm:$0xff]
      %v328 = vld [vmem:[%s225 + $0x240] sm:$0xf]
      %v329 = vld [vmem:[%s225 + $0x244] sm:$0xff]
      %v330 = vld [vmem:[%s225 + $0x24c] sm:$0xff]
      %v331 = vld [vmem:[%s225 + $0x254] sm:$0xf]
      %v332 = vld [vmem:[%s225 + $0x258] sm:$0xff]
      %v333 = vld [vmem:[%s225 + $0x260] sm:$0xff]
      %v334 = vld [vmem:[%s225 + $0x268] sm:$0xf]
      %v335 = vld [vmem:[%s225 + $0x26c] sm:$0xff]
      %v336 = vld [vmem:[%s225 + $0x274] sm:$0xff]
      %v337 = vld [vmem:[%s225 + $0x27c] sm:$0xf]
      %v342 = vunpack.c.l.b16 %v238
      %v343 = vunpack.c.h.b16 %v238
      %v344 = vunpack.c.l.b16 %v239
      %v345 = vunpack.c.h.b16 %v239
      %v346 = vunpack.c.l.b16 %v240
      %v347 = vunpack.c.h.b16 %v240
      %v348 = vunpack.c.l.b16 %v241
      %v349 = vunpack.c.h.b16 %v241
      %v350 = vpack.c.b16 %v344, %v342
      %v351 = vpack.c.b16 %v345, %v343
      %v352 = vpack.c.b16 %v348, %v346
      %v353 = vpack.c.b16 %v349, %v347
      %v454 = vunpack.c.l.b16 %v242
      %v455 = vunpack.c.h.b16 %v242
      %v456 = vunpack.c.l.b16 %v243
      %v457 = vunpack.c.h.b16 %v243
      %v458 = vunpack.c.l.b16 %v244
      %v459 = vunpack.c.l.b16 %v245
      %v460 = vunpack.c.h.b16 %v245
      %v461 = vunpack.c.l.b16 %v246
      %v462 = vunpack.c.h.b16 %v246
      %v463 = vunpack.c.l.b16 %v247
      %v464 = vunpack.c.l.b16 %v248
      %v465 = vunpack.c.h.b16 %v248
      %v466 = vunpack.c.l.b16 %v249
      %v467 = vunpack.c.h.b16 %v249
      %v468 = vunpack.c.l.b16 %v250
      %v469 = vunpack.c.l.b16 %v251
      %v470 = vunpack.c.h.b16 %v251
      %v471 = vunpack.c.l.b16 %v252
      %v472 = vunpack.c.h.b16 %v252
      %v473 = vunpack.c.l.b16 %v253
      %v474 = vunpack.c.l.b16 %v254
      %v475 = vunpack.c.h.b16 %v254
      %v476 = vunpack.c.l.b16 %v255
      %v477 = vunpack.c.h.b16 %v255
      %v478 = vunpack.c.l.b16 %v256
      %v479 = vunpack.c.l.b16 %v257
      %v480 = vunpack.c.h.b16 %v257
      %v481 = vunpack.c.l.b16 %v258
      %v482 = vunpack.c.h.b16 %v258
      %v483 = vunpack.c.l.b16 %v259
      %v484 = vunpack.c.l.b16 %v260
      %v485 = vunpack.c.h.b16 %v260
      %v486 = vunpack.c.l.b16 %v261
      %v487 = vunpack.c.h.b16 %v261
      %v488 = vunpack.c.l.b16 %v262
      %v489 = vunpack.c.l.b16 %v263
      %v490 = vunpack.c.h.b16 %v263
      %v491 = vunpack.c.l.b16 %v264
      %v492 = vunpack.c.h.b16 %v264
      %v493 = vunpack.c.l.b16 %v265
      %v494 = vunpack.c.l.b16 %v266
      %v495 = vunpack.c.h.b16 %v266
      %v496 = vunpack.c.l.b16 %v267
      %v497 = vunpack.c.h.b16 %v267
      %v498 = vunpack.c.l.b16 %v268
      %v499 = vunpack.c.l.b16 %v269
      %v500 = vunpack.c.h.b16 %v269
      %v501 = vunpack.c.l.b16 %v270
      %v502 = vunpack.c.h.b16 %v270
      %v503 = vunpack.c.l.b16 %v271
      %v504 = vunpack.c.l.b16 %v272
      %v505 = vunpack.c.h.b16 %v272
      %v506 = vunpack.c.l.b16 %v273
      %v507 = vunpack.c.h.b16 %v273
      %v508 = vunpack.c.l.b16 %v274
      %v509 = vunpack.c.l.b16 %v275
      %v510 = vunpack.c.h.b16 %v275
      %v511 = vunpack.c.l.b16 %v276
      %v512 = vunpack.c.h.b16 %v276
      %v513 = vunpack.c.l.b16 %v277
      %v514 = vunpack.c.l.b16 %v278
      %v515 = vunpack.c.h.b16 %v278
      %v516 = vunpack.c.l.b16 %v279
      %v517 = vunpack.c.h.b16 %v279
      %v518 = vunpack.c.l.b16 %v280
      %v519 = vunpack.c.l.b16 %v281
      %v520 = vunpack.c.h.b16 %v281
      %v521 = vunpack.c.l.b16 %v282
      %v522 = vunpack.c.h.b16 %v282
      %v523 = vunpack.c.l.b16 %v283
      %v524 = vunpack.c.l.b16 %v284
      %v525 = vunpack.c.h.b16 %v284
      %v526 = vunpack.c.l.b16 %v285
      %v527 = vunpack.c.h.b16 %v285
      %v528 = vunpack.c.l.b16 %v286
      %v529 = vunpack.c.l.b16 %v287
      %v530 = vunpack.c.h.b16 %v287
      %v531 = vunpack.c.l.b16 %v288
      %v532 = vunpack.c.h.b16 %v288
      %v533 = vunpack.c.l.b16 %v289
      %v534 = vunpack.c.l.b16 %v290
      %v535 = vunpack.c.h.b16 %v290
      %v536 = vunpack.c.l.b16 %v291
      %v537 = vunpack.c.h.b16 %v291
      %v538 = vunpack.c.l.b16 %v292
      %v539 = vunpack.c.l.b16 %v293
      %v540 = vunpack.c.h.b16 %v293
      %v541 = vunpack.c.l.b16 %v294
      %v542 = vunpack.c.h.b16 %v294
      %v543 = vunpack.c.l.b16 %v295
      %v544 = vunpack.c.l.b16 %v296
      %v545 = vunpack.c.h.b16 %v296
      %v546 = vunpack.c.l.b16 %v297
      %v547 = vunpack.c.h.b16 %v297
      %v548 = vunpack.c.l.b16 %v298
      %v549 = vunpack.c.l.b16 %v299
      %v550 = vunpack.c.h.b16 %v299
      %v551 = vunpack.c.l.b16 %v300
      %v552 = vunpack.c.h.b16 %v300
      %v553 = vunpack.c.l.b16 %v301
      %v554 = vunpack.c.l.b16 %v302
      %v555 = vunpack.c.h.b16 %v302
      %v556 = vunpack.c.l.b16 %v303
      %v557 = vunpack.c.h.b16 %v303
      %v558 = vunpack.c.l.b16 %v304
      %v559 = vunpack.c.l.b16 %v305
      %v560 = vunpack.c.h.b16 %v305
      %v561 = vunpack.c.l.b16 %v306
      %v562 = vunpack.c.h.b16 %v306
      %v563 = vunpack.c.l.b16 %v307
      %v564 = vunpack.c.l.b16 %v308
      %v565 = vunpack.c.h.b16 %v308
      %v566 = vunpack.c.l.b16 %v309
      %v567 = vunpack.c.h.b16 %v309
      %v568 = vunpack.c.l.b16 %v310
      %v569 = vunpack.c.l.b16 %v311
      %v570 = vunpack.c.h.b16 %v311
      %v571 = vunpack.c.l.b16 %v312
      %v572 = vunpack.c.h.b16 %v312
      %v573 = vunpack.c.l.b16 %v313
      %v574 = vunpack.c.l.b16 %v314
      %v575 = vunpack.c.h.b16 %v314
      %v576 = vunpack.c.l.b16 %v315
      %v577 = vunpack.c.h.b16 %v315
      %v578 = vunpack.c.l.b16 %v316
      %v579 = vunpack.c.l.b16 %v317
      %v580 = vunpack.c.h.b16 %v317
      %v581 = vunpack.c.l.b16 %v318
      %v582 = vunpack.c.h.b16 %v318
      %v583 = vunpack.c.l.b16 %v319
      %v584 = vunpack.c.l.b16 %v320
      %v585 = vunpack.c.h.b16 %v320
      %v586 = vunpack.c.l.b16 %v321
      %v587 = vunpack.c.h.b16 %v321
      %v588 = vunpack.c.l.b16 %v322
      %v589 = vunpack.c.l.b16 %v323
      %v590 = vunpack.c.h.b16 %v323
      %v591 = vunpack.c.l.b16 %v324
      %v592 = vunpack.c.h.b16 %v324
      %v593 = vunpack.c.l.b16 %v325
      %v594 = vunpack.c.l.b16 %v326
      %v595 = vunpack.c.h.b16 %v326
      %v596 = vunpack.c.l.b16 %v327
      %v597 = vunpack.c.h.b16 %v327
      %v598 = vunpack.c.l.b16 %v328
      %v599 = vunpack.c.l.b16 %v329
      %v600 = vunpack.c.h.b16 %v329
      %v601 = vunpack.c.l.b16 %v330
      %v602 = vunpack.c.h.b16 %v330
      %v603 = vunpack.c.l.b16 %v331
      %v604 = vunpack.c.l.b16 %v332
      %v605 = vunpack.c.h.b16 %v332
      %v606 = vunpack.c.l.b16 %v333
      %v607 = vunpack.c.h.b16 %v333
      %v608 = vunpack.c.l.b16 %v334
      %v609 = vunpack.c.l.b16 %v335
      %v610 = vunpack.c.h.b16 %v335
      %v611 = vunpack.c.l.b16 %v336
      %v612 = vunpack.c.h.b16 %v336
      %v613 = vunpack.c.l.b16 %v337
      %v614 = vpack.c.b16 %v459, %v454
      %v615 = vpack.c.b16 %v460, %v455
      %v616 = vpack.c.b16 %v461, %v456
      %v617 = vpack.c.b16 %v462, %v457
      %v618 = vpack.c.b16 %v463, %v458
      %v619 = vpack.c.b16 %v469, %v464
      %v620 = vpack.c.b16 %v470, %v465
      %v621 = vpack.c.b16 %v471, %v466
      %v622 = vpack.c.b16 %v472, %v467
      %v623 = vpack.c.b16 %v473, %v468
      %v624 = vpack.c.b16 %v479, %v474
      %v625 = vpack.c.b16 %v480, %v475
      %v626 = vpack.c.b16 %v481, %v476
      %v627 = vpack.c.b16 %v482, %v477
      %v628 = vpack.c.b16 %v483, %v478
      %v629 = vpack.c.b16 %v489, %v484
      %v630 = vpack.c.b16 %v490, %v485
      %v631 = vpack.c.b16 %v491, %v486
      %v632 = vpack.c.b16 %v492, %v487
      %v633 = vpack.c.b16 %v493, %v488
      %v634 = vpack.c.b16 %v499, %v494
      %v635 = vpack.c.b16 %v500, %v495
      %v636 = vpack.c.b16 %v501, %v496
      %v637 = vpack.c.b16 %v502, %v497
      %v638 = vpack.c.b16 %v503, %v498
      %v639 = vpack.c.b16 %v509, %v504
      %v640 = vpack.c.b16 %v510, %v505
      %v641 = vpack.c.b16 %v511, %v506
      %v642 = vpack.c.b16 %v512, %v507
      %v643 = vpack.c.b16 %v513, %v508
      %v644 = vpack.c.b16 %v519, %v514
      %v645 = vpack.c.b16 %v520, %v515
      %v646 = vpack.c.b16 %v521, %v516
      %v647 = vpack.c.b16 %v522, %v517
      %v648 = vpack.c.b16 %v523, %v518
      %v649 = vpack.c.b16 %v529, %v524
      %v650 = vpack.c.b16 %v530, %v525
      %v651 = vpack.c.b16 %v531, %v526
      %v652 = vpack.c.b16 %v532, %v527
      %v653 = vpack.c.b16 %v533, %v528
      %v654 = vpack.c.b16 %v539, %v534
      %v655 = vpack.c.b16 %v540, %v535
      %v656 = vpack.c.b16 %v541, %v536
      %v657 = vpack.c.b16 %v542, %v537
      %v658 = vpack.c.b16 %v543, %v538
      %v659 = vpack.c.b16 %v549, %v544
      %v660 = vpack.c.b16 %v550, %v545
      %v661 = vpack.c.b16 %v551, %v546
      %v662 = vpack.c.b16 %v552, %v547
      %v663 = vpack.c.b16 %v553, %v548
      %v664 = vpack.c.b16 %v559, %v554
      %v665 = vpack.c.b16 %v560, %v555
      %v666 = vpack.c.b16 %v561, %v556
      %v667 = vpack.c.b16 %v562, %v557
      %v668 = vpack.c.b16 %v563, %v558
      %v669 = vpack.c.b16 %v569, %v564
      %v670 = vpack.c.b16 %v570, %v565
      %v671 = vpack.c.b16 %v571, %v566
      %v672 = vpack.c.b16 %v572, %v567
      %v673 = vpack.c.b16 %v573, %v568
      %v674 = vpack.c.b16 %v579, %v574
      %v675 = vpack.c.b16 %v580, %v575
      %v676 = vpack.c.b16 %v581, %v576
      %v677 = vpack.c.b16 %v582, %v577
      %v678 = vpack.c.b16 %v583, %v578
      %v679 = vpack.c.b16 %v589, %v584
      %v680 = vpack.c.b16 %v590, %v585
      %v681 = vpack.c.b16 %v591, %v586
      %v682 = vpack.c.b16 %v592, %v587
      %v683 = vpack.c.b16 %v593, %v588
      %v684 = vpack.c.b16 %v599, %v594
      %v685 = vpack.c.b16 %v600, %v595
      %v686 = vpack.c.b16 %v601, %v596
      %v687 = vpack.c.b16 %v602, %v597
      %v688 = vpack.c.b16 %v603, %v598
      %v689 = vpack.c.b16 %v609, %v604
      %v690 = vpack.c.b16 %v610, %v605
      %v691 = vpack.c.b16 %v611, %v606
      %v692 = vpack.c.b16 %v612, %v607
      %v693 = vpack.c.b16 %v613, %v608
      %774 = vmatprep.subr.bf16.mxu0 %v615
      %775 = vmatpush1.bf16.msra.mxu0 %v614
      %776 = vmatprep.subr.bf16.mxu0 %v620
      %777 = vmatpush1.bf16.msra.mxu0 %v619
      %778 = vmatprep.subr.bf16.mxu0 %v625
      %779 = vmatpush1.bf16.msra.mxu0 %v624
      %780 = vmatprep.subr.bf16.mxu0 %v630
      %781 = vmatpush1.bf16.msra.mxu0 %v629
      %782 = vmatprep.subr.bf16.mxu0 %v635
      %783 = vmatpush1.bf16.msra.mxu0 %v634
      %784 = vmatprep.subr.bf16.mxu0 %v640
      %785 = vmatpush1.bf16.msra.mxu0 %v639
      %786 = vmatprep.subr.bf16.mxu0 %v645
      %787 = vmatpush1.bf16.msra.mxu0 %v644
      %788 = vmatprep.subr.bf16.mxu0 %v650
      %789 = vmatpush1.bf16.msra.mxu0 %v649
      %790 = vmatprep.subr.bf16.mxu0 %v655
      %791 = vmatpush1.bf16.msra.mxu0 %v654
      %792 = vmatprep.subr.bf16.mxu0 %v660
      %793 = vmatpush1.bf16.msra.mxu0 %v659
      %794 = vmatprep.subr.bf16.mxu0 %v665
      %795 = vmatpush1.bf16.msra.mxu0 %v664
      %796 = vmatprep.subr.bf16.mxu0 %v670
      %797 = vmatpush1.bf16.msra.mxu0 %v669
      %798 = vmatprep.subr.bf16.mxu0 %v675
      %799 = vmatpush1.bf16.msra.mxu0 %v674
      %800 = vmatprep.subr.bf16.mxu0 %v680
      %801 = vmatpush1.bf16.msra.mxu0 %v679
      %802 = vmatprep.subr.bf16.mxu0 %v685
      %803 = vmatpush1.bf16.msra.mxu0 %v684
      %804 = vmatprep.subr.bf16.mxu0 %v690
      %805 = vmatpush1.bf16.msra.mxu0 %v689
      %806 = vmatprep.mubr.bf16.mxu0 %v351
      %807 = vmatmul.mubr.bf16.gmra.mrb[0].mxu0 %v350
      %v808 = vpop.f32.mrb[0].mxu0
      %v809 = vadd.f32 0.0, %v808
      %v810 = vpop.f32.mrb[0].mxu0
      %v811 = vadd.f32 0.0, %v810
      %v812 = vpop.f32.mrb[0].mxu0
      %v813 = vadd.f32 0.0, %v812
      %v814 = vpop.f32.mrb[0].mxu0
      %v815 = vadd.f32 0.0, %v814
      %816 = vmatprep.mubr.bf16.mxu0 %v353
      %817 = vmatmul.mubr.bf16.gmra.mrb[0].mxu0 %v352
      %v818 = vpop.f32.mrb[0].mxu0
      %v819 = vadd.f32 0.0, %v818
      %v820 = vpop.f32.mrb[0].mxu0
      %v821 = vadd.f32 0.0, %v820
      %v822 = vpop.f32.mrb[0].mxu0
      %v823 = vadd.f32 0.0, %v822
      %v824 = vpop.f32.mrb[0].mxu0
      %v825 = vadd.f32 0.0, %v824
      %826 = vdwg.mxu0
      %827 = vmatprep.subr.bf16.mxu0 %v617
      %828 = vmatpush1.bf16.msra.mxu0 %v616
      %829 = vmatprep.subr.bf16.mxu0 %v622
      %830 = vmatpush1.bf16.msra.mxu0 %v621
      %831 = vmatprep.subr.bf16.mxu0 %v627
      %832 = vmatpush1.bf16.msra.mxu0 %v626
      %833 = vmatprep.subr.bf16.mxu0 %v632
      %834 = vmatpush1.bf16.msra.mxu0 %v631
      %835 = vmatprep.subr.bf16.mxu0 %v637
      %836 = vmatpush1.bf16.msra.mxu0 %v636
      %837 = vmatprep.subr.bf16.mxu0 %v642
      %838 = vmatpush1.bf16.msra.mxu0 %v641
      %839 = vmatprep.subr.bf16.mxu0 %v647
      %840 = vmatpush1.bf16.msra.mxu0 %v646
      %841 = vmatprep.subr.bf16.mxu0 %v652
      %842 = vmatpush1.bf16.msra.mxu0 %v651
      %843 = vmatprep.subr.bf16.mxu0 %v657
      %844 = vmatpush1.bf16.msra.mxu0 %v656
      %845 = vmatprep.subr.bf16.mxu0 %v662
      %846 = vmatpush1.bf16.msra.mxu0 %v661
      %847 = vmatprep.subr.bf16.mxu0 %v667
      %848 = vmatpush1.bf16.msra.mxu0 %v666
      %849 = vmatprep.subr.bf16.mxu0 %v672
      %850 = vmatpush1.bf16.msra.mxu0 %v671
      %851 = vmatprep.subr.bf16.mxu0 %v677
      %852 = vmatpush1.bf16.msra.mxu0 %v676
      %853 = vmatprep.subr.bf16.mxu0 %v682
      %854 = vmatpush1.bf16.msra.mxu0 %v681
      %855 = vmatprep.subr.bf16.mxu0 %v687
      %856 = vmatpush1.bf16.msra.mxu0 %v686
      %857 = vmatprep.subr.bf16.mxu0 %v692
      %858 = vmatpush1.bf16.msra.mxu0 %v691
      %859 = vmatprep.mubr.bf16.mxu0 %v351
      %860 = vmatmul.mubr.bf16.gmra.mrb[0].mxu0 %v350
      %v861 = vpop.f32.mrb[0].mxu0
      %v862 = vadd.f32 0.0, %v861
      %v863 = vpop.f32.mrb[0].mxu0
      %v864 = vadd.f32 0.0, %v863
      %v865 = vpop.f32.mrb[0].mxu0
      %v866 = vadd.f32 0.0, %v865
      %v867 = vpop.f32.mrb[0].mxu0
      %v868 = vadd.f32 0.0, %v867
      %869 = vmatprep.mubr.bf16.mxu0 %v353
      %870 = vmatmul.mubr.bf16.gmra.mrb[0].mxu0 %v352
      %v871 = vpop.f32.mrb[0].mxu0
      %v872 = vadd.f32 0.0, %v871
      %v873 = vpop.f32.mrb[0].mxu0
      %v874 = vadd.f32 0.0, %v873
      %v875 = vpop.f32.mrb[0].mxu0
      %v876 = vadd.f32 0.0, %v875
      %v877 = vpop.f32.mrb[0].mxu0
      %v878 = vadd.f32 0.0, %v877
      %879 = vdwg.mxu0
      %880 = vmatprep.subr.bf16.mxu0 0
      %881 = vmatpush1.bf16.msra.mxu0 %v618
      %882 = vmatprep.subr.bf16.mxu0 0
      %883 = vmatpush1.bf16.msra.mxu0 %v623
      %884 = vmatprep.subr.bf16.mxu0 0
      %885 = vmatpush1.bf16.msra.mxu0 %v628
      %886 = vmatprep.subr.bf16.mxu0 0
      %887 = vmatpush1.bf16.msra.mxu0 %v633
      %888 = vmatprep.subr.bf16.mxu0 0
      %889 = vmatpush1.bf16.msra.mxu0 %v638
      %890 = vmatprep.subr.bf16.mxu0 0
      %891 = vmatpush1.bf16.msra.mxu0 %v643
      %892 = vmatprep.subr.bf16.mxu0 0
      %893 = vmatpush1.bf16.msra.mxu0 %v648
      %894 = vmatprep.subr.bf16.mxu0 0
      %895 = vmatpush1.bf16.msra.mxu0 %v653
      %896 = vmatprep.subr.bf16.mxu0 0
      %897 = vmatpush1.bf16.msra.mxu0 %v658
      %898 = vmatprep.subr.bf16.mxu0 0
      %899 = vmatpush1.bf16.msra.mxu0 %v663
      %900 = vmatprep.subr.bf16.mxu0 0
      %901 = vmatpush1.bf16.msra.mxu0 %v668
      %902 = vmatprep.subr.bf16.mxu0 0
      %903 = vmatpush1.bf16.msra.mxu0 %v673
      %904 = vmatprep.subr.bf16.mxu0 0
      %905 = vmatpush1.bf16.msra.mxu0 %v678
      %906 = vmatprep.subr.bf16.mxu0 0
      %907 = vmatpush1.bf16.msra.mxu0 %v683
      %908 = vmatprep.subr.bf16.mxu0 0
      %909 = vmatpush1.bf16.msra.mxu0 %v688
      %910 = vmatprep.subr.bf16.mxu0 0
      %911 = vmatpush1.bf16.msra.mxu0 %v693
      %912 = vmatprep.mubr.bf16.mxu0 %v351
      %913 = vmatmul.mubr.bf16.gmra.mrb[0].mxu0 %v350
      %v914 = vpop.f32.mrb[0].mxu0
      %v915 = vadd.f32 0.0, %v914
      %v916 = vpop.f32.mrb[0].mxu0
      %v917 = vpop.f32.mrb[0].mxu0
      %v918 = vadd.f32 0.0, %v917
      %v919 = vpop.f32.mrb[0].mxu0
      %920 = vmatprep.mubr.bf16.mxu0 %v353
      %921 = vmatmul.mubr.bf16.gmra.mrb[0].mxu0 %v352
      %v922 = vpop.f32.mrb[0].mxu0
      %v923 = vadd.f32 0.0, %v922
      %v924 = vpop.f32.mrb[0].mxu0
      %v925 = vpop.f32.mrb[0].mxu0
      %v926 = vadd.f32 0.0, %v925
      %v927 = vpop.f32.mrb[0].mxu0
      %928 = vdwg.mxu0
      %v929 = vld [vmem:[%s2] sm:$0xff]
      %v930 = vld [vmem:[%s2 + $0x8] sm:$0xff]
      %v931 = vld [vmem:[%s2 + $0x10] sm:$0xff]
      %v932 = vld [vmem:[%s2 + $0x18] sm:$0xff]
      %934 = vset.pattern.permute.xlu0 0
      %935 = vperm.xlu0 %934, %v929
      %v936 = vpop.permute.xlu0 %935
      %939 = vset.pattern.permute.xlu0 0
      %940 = vperm.xlu0 %939, %v930
      %v941 = vpop.permute.xlu0 %940
      %944 = vset.pattern.permute.xlu0 0
      %945 = vperm.xlu0 %944, %v931
      %v946 = vpop.permute.xlu0 %945
      %949 = vset.pattern.permute.xlu0 0
      %950 = vperm.xlu0 %949, %v932
      %v951 = vpop.permute.xlu0 %950
      %v953 = vmul.f32 %v809, %v936
      %v954 = vmul.f32 %v811, %v936
      %v955 = vmul.f32 %v862, %v936
      %v956 = vmul.f32 %v864, %v936
      %v957 = vmul.f32 %v915, %v936
      %v958 = vmul.f32 %v813, %v941
      %v959 = vmul.f32 %v815, %v941
      %v960 = vmul.f32 %v866, %v941
      %v961 = vmul.f32 %v868, %v941
      %v962 = vmul.f32 %v918, %v941
      %v963 = vmul.f32 %v819, %v946
      %v964 = vmul.f32 %v821, %v946
      %v965 = vmul.f32 %v872, %v946
      %v966 = vmul.f32 %v874, %v946
      %v967 = vmul.f32 %v923, %v946
      %v968 = vmul.f32 %v823, %v951
      %v969 = vmul.f32 %v825, %v951
      %v970 = vmul.f32 %v876, %v951
      %v971 = vmul.f32 %v878, %v951
      %v972 = vmul.f32 %v926, %v951
      %v973 = vld [vmem:[%s3] sm:$0xff]
      %v974 = vld [vmem:[%s3 + $0x8] sm:$0xff]
      %v975 = vld [vmem:[%s3 + $0x10] sm:$0xff]
      %v976 = vld [vmem:[%s3 + $0x18] sm:$0xff]
      %978 = vset.pattern.permute.xlu0 0
      %979 = vperm.xlu0 %978, %v973
      %v980 = vpop.permute.xlu0 %979
      %983 = vset.pattern.permute.xlu0 0
      %984 = vperm.xlu0 %983, %v974
      %v985 = vpop.permute.xlu0 %984
      %988 = vset.pattern.permute.xlu0 0
      %989 = vperm.xlu0 %988, %v975
      %v990 = vpop.permute.xlu0 %989
      %993 = vset.pattern.permute.xlu0 0
      %994 = vperm.xlu0 %993, %v976
      %v995 = vpop.permute.xlu0 %994
      %v997 = vadd.f32 %v953, %v980
      %v998 = vadd.f32 %v954, %v980
      %v999 = vadd.f32 %v955, %v980
      %v1000 = vadd.f32 %v956, %v980
      %v1001 = vadd.f32 %v957, %v980
      %v1002 = vadd.f32 %v958, %v985
      %v1003 = vadd.f32 %v959, %v985
      %v1004 = vadd.f32 %v960, %v985
      %v1005 = vadd.f32 %v961, %v985
      %v1006 = vadd.f32 %v962, %v985
      %v1007 = vadd.f32 %v963, %v990
      %v1008 = vadd.f32 %v964, %v990
      %v1009 = vadd.f32 %v965, %v990
      %v1010 = vadd.f32 %v966, %v990
      %v1011 = vadd.f32 %v967, %v990
      %v1012 = vadd.f32 %v968, %v995
      %v1013 = vadd.f32 %v969, %v995
      %v1014 = vadd.f32 %v970, %v995
      %v1015 = vadd.f32 %v971, %v995
      %v1016 = vadd.f32 %v972, %v995
      %vm1017 = vcmp.gt.f32.partialorder %v997, 0.0
      %vm1018 = vcmp.gt.f32.partialorder %v998, 0.0
      %vm1019 = vcmp.gt.f32.partialorder %v999, 0.0
      %vm1020 = vcmp.gt.f32.partialorder %v1000, 0.0
      %vm1021 = vcmp.gt.f32.partialorder %v1001, 0.0
      %vm1022 = vcmp.gt.f32.partialorder %v1002, 0.0
      %vm1023 = vcmp.gt.f32.partialorder %v1003, 0.0
      %vm1024 = vcmp.gt.f32.partialorder %v1004, 0.0
      %vm1025 = vcmp.gt.f32.partialorder %v1005, 0.0
      %vm1026 = vcmp.gt.f32.partialorder %v1006, 0.0
      %vm1027 = vcmp.gt.f32.partialorder %v1007, 0.0
      %vm1028 = vcmp.gt.f32.partialorder %v1008, 0.0
      %vm1029 = vcmp.gt.f32.partialorder %v1009, 0.0
      %vm1030 = vcmp.gt.f32.partialorder %v1010, 0.0
      %vm1031 = vcmp.gt.f32.partialorder %v1011, 0.0
      %vm1032 = vcmp.gt.f32.partialorder %v1012, 0.0
      %vm1033 = vcmp.gt.f32.partialorder %v1013, 0.0
      %vm1034 = vcmp.gt.f32.partialorder %v1014, 0.0
      %vm1035 = vcmp.gt.f32.partialorder %v1015, 0.0
      %vm1036 = vcmp.gt.f32.partialorder %v1016, 0.0
      %v1037 = vmul.f32 %v997, 0.2
      %v1038 = vmul.f32 %v998, 0.2
      %v1039 = vmul.f32 %v999, 0.2
      %v1040 = vmul.f32 %v1000, 0.2
      %v1041 = vmul.f32 %v1001, 0.2
      %v1042 = vmul.f32 %v1002, 0.2
      %v1043 = vmul.f32 %v1003, 0.2
      %v1044 = vmul.f32 %v1004, 0.2
      %v1045 = vmul.f32 %v1005, 0.2
      %v1046 = vmul.f32 %v1006, 0.2
      %v1047 = vmul.f32 %v1007, 0.2
      %v1048 = vmul.f32 %v1008, 0.2
      %v1049 = vmul.f32 %v1009, 0.2
      %v1050 = vmul.f32 %v1010, 0.2
      %v1051 = vmul.f32 %v1011, 0.2
      %v1052 = vmul.f32 %v1012, 0.2
      %v1053 = vmul.f32 %v1013, 0.2
      %v1054 = vmul.f32 %v1014, 0.2
      %v1055 = vmul.f32 %v1015, 0.2
      %v1056 = vmul.f32 %v1016, 0.2
      %v1057 = vsel %vm1017, %v997, %v1037
      %v1058 = vsel %vm1018, %v998, %v1038
      %v1059 = vsel %vm1019, %v999, %v1039
      %v1060 = vsel %vm1020, %v1000, %v1040
      %v1061 = vsel %vm1021, %v1001, %v1041
      %v1062 = vsel %vm1022, %v1002, %v1042
      %v1063 = vsel %vm1023, %v1003, %v1043
      %v1064 = vsel %vm1024, %v1004, %v1044
      %v1065 = vsel %vm1025, %v1005, %v1045
      %v1066 = vsel %vm1026, %v1006, %v1046
      %v1067 = vsel %vm1027, %v1007, %v1047
      %v1068 = vsel %vm1028, %v1008, %v1048
      %v1069 = vsel %vm1029, %v1009, %v1049
      %v1070 = vsel %vm1030, %v1010, %v1050
      %v1071 = vsel %vm1031, %v1011, %v1051
      %v1072 = vsel %vm1032, %v1012, %v1052
      %v1073 = vsel %vm1033, %v1013, %v1053
      %v1074 = vsel %vm1034, %v1014, %v1054
      %v1075 = vsel %vm1035, %v1015, %v1055
      %v1076 = vsel %vm1036, %v1016, %v1056
      %v1077 = vpack.c.bf16 %v1062, %v1057
      %v1078 = vpack.c.bf16 %v1063, %v1058
      %v1079 = vpack.c.bf16 %v1064, %v1059
      %v1080 = vpack.c.bf16 %v1065, %v1060
      %v1081 = vpack.c.bf16 %v1066, %v1061
      %v1082 = vpack.c.bf16 %v1072, %v1067
      %v1083 = vpack.c.bf16 %v1073, %v1068
      %v1084 = vpack.c.bf16 %v1074, %v1069
      %v1085 = vpack.c.bf16 %v1075, %v1070
      %v1086 = vpack.c.bf16 %v1076, %v1071
      %v1097 = vunpack.c.l.b16 %v1077
      %v1098 = vunpack.c.l.b16 %v1078
      %v1099 = vunpack.c.l.b16 %v1079
      %v1100 = vunpack.c.l.b16 %v1080
      %v1101 = vunpack.c.l.b16 %v1081
      %v1102 = vunpack.c.h.b16 %v1077
      %v1103 = vunpack.c.h.b16 %v1078
      %v1104 = vunpack.c.h.b16 %v1079
      %v1105 = vunpack.c.h.b16 %v1080
      %v1106 = vunpack.c.h.b16 %v1081
      %v1107 = vunpack.c.l.b16 %v1082
      %v1108 = vunpack.c.l.b16 %v1083
      %v1109 = vunpack.c.l.b16 %v1084
      %v1110 = vunpack.c.l.b16 %v1085
      %v1111 = vunpack.c.l.b16 %v1086
      %v1112 = vunpack.c.h.b16 %v1082
      %v1113 = vunpack.c.h.b16 %v1083
      %v1114 = vunpack.c.h.b16 %v1084
      %v1115 = vunpack.c.h.b16 %v1085
      %v1116 = vunpack.c.h.b16 %v1086
      %v1117 = vpack.c.b16 %v1098, %v1097
      %v1118 = vpack.c.b16 %v1100, %v1099
      %v1119 = vpack.c.b16 %v1101, %v1101
      %v1120 = vpack.c.b16 %v1103, %v1102
      %v1121 = vpack.c.b16 %v1105, %v1104
      %v1122 = vpack.c.b16 %v1106, %v1106
      %v1123 = vpack.c.b16 %v1108, %v1107
      %v1124 = vpack.c.b16 %v1110, %v1109
      %v1125 = vpack.c.b16 %v1111, %v1111
      %v1126 = vpack.c.b16 %v1113, %v1112
      %v1127 = vpack.c.b16 %v1115, %v1114
      %v1128 = vpack.c.b16 %v1116, %v1116
      %1141 = vst [vmem:[%s235] sm:$0xff] %v1117
      %1142 = vst [vmem:[%s235 + $0x8] sm:$0xff] %v1118
      %1143 = vst [vmem:[%s235 + $0x10] sm:$0xf] %v1119
      %1144 = vst [vmem:[%s235 + $0x14] sm:$0xff] %v1120
      %1145 = vst [vmem:[%s235 + $0x1c] sm:$0xff] %v1121
      %1146 = vst [vmem:[%s235 + $0x24] sm:$0xf] %v1122
      %1147 = vst [vmem:[%s235 + $0x28] sm:$0xff] %v1123
      %1148 = vst [vmem:[%s235 + $0x30] sm:$0xff] %v1124
      %1149 = vst [vmem:[%s235 + $0x38] sm:$0xf] %v1125
      %1150 = vst [vmem:[%s235 + $0x3c] sm:$0xff] %v1126
      %1151 = vst [vmem:[%s235 + $0x44] sm:$0xff] %v1127
      %1152 = vst [vmem:[%s235 + $0x4c] sm:$0xf] %v1128
      %s1153 = smul.u32 5, %s20
      %p1154 = scmp.lt.s32.totalorder %s19, 1
      %s1155 = scalar_select %p1154, %s19, 1
      %p1156 = scmp.lt.s32.totalorder %s1153, 4
      %s1157 = scalar_select %p1156, %s1153, 4
      %s1158 = smul.addr %s1155, 20
      %s1159 = sadd.s32 %s1157, %s1158
      %s1160 = smul.addr %s1159, 4
      %s1161 = scalar_lea.vmem %s4, %s1160
      // Predicated region
      $region37: #{discriminator_forward.7} parent=35 // pred_check
        %p1162 = pneg %p138
      $region38: #{discriminator_forward.7} parent=35 // pred_check_branch
        %1164 = sbr.rel (%p1162) target = $region40
      $region39: #{discriminator_forward.7} parent=35 // pred_region
        %s1165 = smul.u32 5, %s20
      $region40: #{discriminator_forward.7} parent=35 // pred_fallthru
        _
    $region36: #{discriminator_forward.7} parent=5 // pred_fallthru
      _
    %p1166 = scmp.le.s32.totalorder 2, %s10
    // Predicated region
    $region41: #{discriminator_forward.7} parent=5 // pred_check
      %p1167 = pneg %p1166
    $region42: #{discriminator_forward.7} parent=5 // pred_check_branch
      %1169 = sbr.rel (%p1167) target = $region44
    $region43: #{discriminator_forward.7} parent=5 // pred_region
      %s1170 = ssub.s32 %s10, 2
      // Predicated region
      $region45: #{discriminator_forward.7} parent=43 // pred_check
        %p1171 = pneg %p144
      $region46: #{discriminator_forward.7} parent=43 // pred_check_branch
        %1173 = sbr.rel (%p1171) target = $region48
      $region47: #{discriminator_forward.7} parent=43 // pred_region
        %s1174 = smul.u32 5, %s22
        %p1175 = scmp.lt.s32.totalorder %s21, 1
        %s1176 = scalar_select %p1175, %s21, 1
        %p1177 = scmp.lt.s32.totalorder %s1174, 4
        %s1178 = scalar_select %p1177, %s1174, 4
        %s1179 = smul.addr %s1176, 20
        %s1180 = sadd.s32 %s1178, %s1179
        %s1181 = smul.addr %s1180, 4
        %s1182 = scalar_lea.vmem %s4, %s1181
      $region48: #{discriminator_forward.7} parent=43 // pred_fallthru
        _
    $region44: #{discriminator_forward.7} parent=5 // pred_fallthru
      _
  $region6: #{discriminator_forward.7} parent=0 // loop_footer
    %s14 = sadd.s32 1, %s10
  $region7: #{discriminator_forward.7} parent=0 // loop_footer_branch
    %9 = sbr.rel target = $region3
  $region8: #{discriminator_forward.7} parent=0 // loop_exit
    _

// kernel: discriminator_forward.8
$region0: #{discriminator_forward.8}
  #allocation0 [shape = 'u32[]', space=smem, size = 0x4, offset = 0x4, fixed_abs, tag = 'smem constant byte address 0x4 - core index']
  #allocation1 [shape = 'u32[144,128]{1,0:T(1,128)}', space=vmem, size = 0x12000, scoped, tag = 'internal scratch']
  %s0 = inlined_call_operand.vmem [shape: bf16[2,512,640], index: 0, kind: input, shape index: {}]
  %s1 = inlined_call_operand.vmem [shape: bf16[32,512], index: 1, kind: input, shape index: {}]
  %s2 = inlined_call_operand.vmem [shape: f32[32,1], index: 2, kind: input, shape index: {}]
  %s3 = inlined_call_operand.vmem [shape: f32[32,1], index: 3, kind: input, shape index: {}]
  %s4 = inlined_call_operand.vmem [shape: bf16[2,32,640], index: 4, kind: output, shape index: {}]
  %s5 = sld [smem:[#allocation0]]
  $region49: #{discriminator_forward.8} parent=0
    _
  %s7 = ssub.s32 1, %s5
  %s8 = scalar_select 0, %s7, %s5
  loop: start=0, step=1, limit=4
  $region2: #{discriminator_forward.8} parent=0 // loop_pre_header
    _
  $region3: #{discriminator_forward.8} parent=0 // loop_header
    %s10 = sphi 0, %s14
    %p11 = scmp.ge.s32.totalorder %s10, 4
    %s17 = sphi 0, %s29
    %s18 = sphi 0, %s25
    %s19 = sphi 0, %s17
    %s20 = sphi 0, %s18
    %s21 = sphi 0, %s19
    %s22 = sphi 0, %s20
    %s34 = sphi 0, %s36
    %s37 = sphi 0, %s34
    %s38 = sphi 0, %s37
    %s54 = sphi 0, %s38
    %s58 = sphi 0, %s58
    %s60 = sphi 0, %s58
    %s61 = sphi 0, %s60
    %s75 = sphi 0, %s61
    %s79 = sphi 0, %s79
    %s81 = sphi 0, %s79
    %s82 = sphi 0, %s81
    %s96 = sphi 0, %s82
    %s100 = sphi 0, %s100
    %s102 = sphi 0, %s100
    %s103 = sphi 0, %s102
    %s117 = sphi 0, %s103
    %s125 = sphi 0, %s127
    %s128 = sphi 0, %s125
    %s129 = sphi 0, %s128
    %s145 = sphi 0, %s129
  $region4: #{discriminator_forward.8} parent=0 // loop_header_branch
    %13 = sbr.rel (%p11) target = $region8
  $region5: #{discriminator_forward.8} parent=0 // loop_body
    %s15 = ssub.s32 %s10, 1
    %s16 = ssub.s32 %s10, 2
    %s23 = sadd.s32 1, %s18
    %p24 = scmp.ge.s32.totalorder %s23, 1
    %s25 = scalar_select %p24, 0, %s23
    %s26 = sadd.s32 1, %s17
    %s27 = scalar_select %p24, %s26, %s17
    %p28 = scmp.ge.s32.totalorder %s27, 2
    %s29 = scalar_select %p28, 0, %s27
    %s30 = ssub.s32 %s17, %s29
    %s31 = ssub.s32 %s18, %s25
    %s32 = sor.u32 %s30, %s31
    %p33 = scmp.eq.s32.totalorder %s32, 0
    %s35 = sadd.s32 %s34, 1
    %s36 = scalar_select %p33, %s34, %s35
    %p39 = pneg %p33
    %p40 = scmp.eq.s32.totalorder %s10, 1
    %p41 = por %p39, %p40
    %p42 = scmp.ne.s32.totalorder %s34, %s37
    %p43 = scmp.eq.s32.totalorder %s10, 0
    %p44 = por %p42, %p43
    %p45 = scmp.ne.s32.totalorder %s34, %s37
    %p46 = scmp.eq.s32.totalorder %s15, 1
    %p47 = por %p45, %p46
    %p48 = scmp.ne.s32.totalorder %s37, %s38
    %p49 = scmp.eq.s32.totalorder %s15, 0
    %p50 = por %p48, %p49
    %p51 = scmp.ne.s32.totalorder %s37, %s38
    %p52 = scmp.eq.s32.totalorder %s16, 1
    %p53 = por %p51, %p52
    %p55 = scmp.ne.s32.totalorder %s38, %s54
    %p56 = scmp.eq.s32.totalorder %s16, 0
    %p57 = por %p55, %p56
    %s59 = sadd.s32 %s58, 1
    %p62 = scmp.eq.s32.totalorder %s10, 1
    %p63 = scmp.ne.s32.totalorder %s58, %s60
    %p64 = scmp.eq.s32.totalorder %s10, 0
    %p65 = por %p63, %p64
    %p66 = scmp.ne.s32.totalorder %s58, %s60
    %p67 = scmp.eq.s32.totalorder %s15, 1
    %p68 = por %p66, %p67
    %p69 = scmp.ne.s32.totalorder %s60, %s61
    %p70 = scmp.eq.s32.totalorder %s15, 0
    %p71 = por %p69, %p70
    %p72 = scmp.ne.s32.totalorder %s60, %s61
    %p73 = scmp.eq.s32.totalorder %s16, 1
    %p74 = por %p72, %p73
    %p76 = scmp.ne.s32.totalorder %s61, %s75
    %p77 = scmp.eq.s32.totalorder %s16, 0
    %p78 = por %p76, %p77
    %s80 = sadd.s32 %s79, 1
    %p83 = scmp.eq.s32.totalorder %s10, 1
    %p84 = scmp.ne.s32.totalorder %s79, %s81
    %p85 = scmp.eq.s32.totalorder %s10, 0
    %p86 = por %p84, %p85
    %p87 = scmp.ne.s32.totalorder %s79, %s81
    %p88 = scmp.eq.s32.totalorder %s15, 1
    %p89 = por %p87, %p88
    %p90 = scmp.ne.s32.totalorder %s81, %s82
    %p91 = scmp.eq.s32.totalorder %s15, 0
    %p92 = por %p90, %p91
    %p93 = scmp.ne.s32.totalorder %s81, %s82
    %p94 = scmp.eq.s32.totalorder %s16, 1
    %p95 = por %p93, %p94
    %p97 = scmp.ne.s32.totalorder %s82, %s96
    %p98 = scmp.eq.s32.totalorder %s16, 0
    %p99 = por %p97, %p98
    %s101 = sadd.s32 %s100, 1
    %p104 = scmp.eq.s32.totalorder %s10, 1
    %p105 = scmp.ne.s32.totalorder %s100, %s102
    %p106 = scmp.eq.s32.totalorder %s10, 0
    %p107 = por %p105, %p106
    %p108 = scmp.ne.s32.totalorder %s100, %s102
    %p109 = scmp.eq.s32.totalorder %s15, 1
    %p110 = por %p108, %p109
    %p111 = scmp.ne.s32.totalorder %s102, %s103
    %p112 = scmp.eq.s32.totalorder %s15, 0
    %p113 = por %p111, %p112
    %p114 = scmp.ne.s32.totalorder %s102, %s103
    %p115 = scmp.eq.s32.totalorder %s16, 1
    %p116 = por %p114, %p115
    %p118 = scmp.ne.s32.totalorder %s103, %s117
    %p119 = scmp.eq.s32.totalorder %s16, 0
    %p120 = por %p118, %p119
    %s121 = ssub.s32 %s17, %s29
    %s122 = ssub.s32 %s18, %s25
    %s123 = sor.u32 %s121, %s122
    %p124 = scmp.eq.s32.totalorder %s123, 0
    %s126 = sadd.s32 %s125, 1
    %s127 = scalar_select %p124, %s125, %s126
    %p130 = pneg %p124
    %p131 = scmp.eq.s32.totalorder %s10, 1
    %p132 = por %p130, %p131
    %p133 = scmp.ne.s32.totalorder %s125, %s128
    %p134 = scmp.eq.s32.totalorder %s10, 0
    %p135 = por %p133, %p134
    %p136 = scmp.ne.s32.totalorder %s125, %s128
    %p137 = scmp.eq.s32.totalorder %s15, 1
    %p138 = por %p136, %p137
    %p139 = scmp.ne.s32.totalorder %s128, %s129
    %p140 = scmp.eq.s32.totalorder %s15, 0
    %p141 = por %p139, %p140
    %p142 = scmp.ne.s32.totalorder %s128, %s129
    %p143 = scmp.eq.s32.totalorder %s16, 1
    %p144 = por %p142, %p143
    %p146 = scmp.ne.s32.totalorder %s129, %s145
    %p147 = scmp.eq.s32.totalorder %s16, 0
    %p148 = por %p146, %p147
    %p149 = scmp.le.s32.totalorder 1, %s10
    %p150 = scmp.lt.s32.totalorder %s10, 3
    %p151 = pnand %p149, %p150
    %p152 = pneg %p151
    // Predicated region
    $region9: #{discriminator_forward.8} parent=5 // pred_check
      _
    $region10: #{discriminator_forward.8} parent=5 // pred_check_branch
      %154 = sbr.rel (%p151) target = $region12
    $region11: #{discriminator_forward.8} parent=5 // pred_region
      %s155 = ssub.s32 %s10, 1
      // Predicated region
      $region13: #{discriminator_forward.8} parent=11 // pred_check
        %p156 = pneg %p71
      $region14: #{discriminator_forward.8} parent=11 // pred_check_branch
        %158 = sbr.rel (%p156) target = $region16
      $region15: #{discriminator_forward.8} parent=11 // pred_region
        _
      $region16: #{discriminator_forward.8} parent=11 // pred_fallthru
        _
      // Predicated region
      $region17: #{discriminator_forward.8} parent=11 // pred_check
        %p159 = pneg %p92
      $region18: #{discriminator_forward.8} parent=11 // pred_check_branch
        %161 = sbr.rel (%p159) target = $region20
      $region19: #{discriminator_forward.8} parent=11 // pred_region
        _
      $region20: #{discriminator_forward.8} parent=11 // pred_fallthru
        _
      // Predicated region
      $region21: #{discriminator_forward.8} parent=11 // pred_check
        %p162 = pneg %p113
      $region22: #{discriminator_forward.8} parent=11 // pred_check_branch
        %164 = sbr.rel (%p162) target = $region24
      $region23: #{discriminator_forward.8} parent=11 // pred_region
        _
      $region24: #{discriminator_forward.8} parent=11 // pred_fallthru
        _
    $region12: #{discriminator_forward.8} parent=5 // pred_fallthru
      _
    %p165 = scmp.lt.s32.totalorder %s10, 2
    // Predicated region
    $region25: #{discriminator_forward.8} parent=5 // pred_check
      %p166 = pneg %p165
    $region26: #{discriminator_forward.8} parent=5 // pred_check_branch
      %168 = sbr.rel (%p166) target = $region28
    $region27: #{discriminator_forward.8} parent=5 // pred_region
      // Predicated region
      $region29: #{discriminator_forward.8} parent=27 // pred_check
        %p169 = pneg %p44
      $region30: #{discriminator_forward.8} parent=27 // pred_check_branch
        %171 = sbr.rel (%p169) target = $region32
      $region31: #{discriminator_forward.8} parent=27 // pred_region
        %s172 = smul.u32 5, %s18
        %p173 = scmp.lt.s32.totalorder %s17, 1
        %s174 = scalar_select %p173, %s17, 1
        %p175 = scmp.lt.s32.totalorder %s172, 4
        %s176 = scalar_select %p175, %s172, 4
        %s177 = smul.addr %s174, 320
        %s178 = sadd.s32 %s176, %s177
        %s179 = smul.addr %s178, 4
        %s180 = scalar_lea.vmem %s0, %s179
        %s181 = smul.u32 5, %s18
      $region32: #{discriminator_forward.8} parent=27 // pred_fallthru
        _
    $region28: #{discriminator_forward.8} parent=5 // pred_fallthru
      _
    %p182 = scmp.le.s32.totalorder 1, %s10
    %p183 = scmp.lt.s32.totalorder %s10, 3
    %p184 = pnand %p182, %p183
    %p185 = pneg %p184
    // Predicated region
    $region33: #{discriminator_forward.8} parent=5 // pred_check
      _
    $region34: #{discriminator_forward.8} parent=5 // pred_check_branch
      %187 = sbr.rel (%p184) target = $region36
    $region35: #{discriminator_forward.8} parent=5 // pred_region
      %s188 = ssub.s32 %s10, 1
      %s189 = smul.u32 5, %s20
      %p190 = scmp.lt.s32.totalorder %s19, 1
      %s191 = scalar_select %p190, %s19, 1
      %p192 = scmp.lt.s32.totalorder %s189, 4
      %s193 = scalar_select %p192, %s189, 4
      %s194 = smul.addr %s191, 320
      %s195 = sadd.s32 %s193, %s194
      %s196 = smul.addr %s195, 4
      %s197 = scalar_lea.vmem %s0, %s196
      %p198 = pneg %p50
      %p199 = pneg %p47
      %p200 = pneg %p71
      %p201 = pneg %p68
      %p202 = pneg %p92
      %p203 = pneg %p89
      %p204 = pneg %p113
      %p205 = pneg %p110
      %p206 = pneg %p141
      %p207 = pneg %p138
      %s208 = smul.u32 5, %s20
      %p209 = scmp.lt.s32.totalorder %s19, 1
      %s210 = scalar_select %p209, %s19, 1
      %p211 = scmp.lt.s32.totalorder %s208, 4
      %s212 = scalar_select %p211, %s208, 4
      %s213 = smul.addr %s210, 20
      %s214 = sadd.s32 %s212, %s213
      %s215 = smul.addr %s214, 4
      %s216 = scalar_lea.vmem %s4, %s215
      %s217 = smul.u32 5, %s20
      %p218 = scmp.lt.s32.totalorder %s19, 1
      %s219 = scalar_select %p218, %s19, 1
      %p220 = scmp.lt.s32.totalorder %s217, 4
      %s221 = scalar_select %p220, %s217, 4
      %s222 = smul.addr %s219, 320
      %s223 = sadd.s32 %s221, %s222
      %s224 = smul.addr %s223, 4
      %s225 = scalar_lea.vmem %s0, %s224
      %s226 = smul.u32 5, %s20
      %s227 = smul.u32 5, %s20
      %p228 = scmp.lt.s32.totalorder %s19, 1
      %s229 = scalar_select %p228, %s19, 1
      %p230 = scmp.lt.s32.totalorder %s227, 4
      %s231 = scalar_select %p230, %s227, 4
      %s232 = smul.addr %s229, 20
      %s233 = sadd.s32 %s231, %s232
      %s234 = smul.addr %s233, 4
      %s235 = scalar_lea.vmem %s4, %s234
      %s236 = smul.u32 5, %s20
      %v238 = vld [vmem:[%s1] sm:$0xff]
      %v239 = vld [vmem:[%s1 + $0x8] sm:$0xff]
      %v240 = vld [vmem:[%s1 + $0x10] sm:$0xff]
      %v241 = vld [vmem:[%s1 + $0x18] sm:$0xff]
      %v242 = vld [vmem:[%s1 + $0x20] sm:$0xff]
      %v243 = vld [vmem:[%s1 + $0x28] sm:$0xff]
      %v244 = vld [vmem:[%s1 + $0x30] sm:$0xff]
      %v245 = vld [vmem:[%s1 + $0x38] sm:$0xff]
      %v246 = vld [vmem:[%s225] sm:$0xff]
      %v247 = vld [vmem:[%s225 + $0x8] sm:$0xff]
      %v248 = vld [vmem:[%s225 + $0x10] sm:$0xf]
      %v249 = vld [vmem:[%s225 + $0x14] sm:$0xff]
      %v250 = vld [vmem:[%s225 + $0x1c] sm:$0xff]
      %v251 = vld [vmem:[%s225 + $0x24] sm:$0xf]
      %v252 = vld [vmem:[%s225 + $0x28] sm:$0xff]
      %v253 = vld [vmem:[%s225 + $0x30] sm:$0xff]
      %v254 = vld [vmem:[%s225 + $0x38] sm:$0xf]
      %v255 = vld [vmem:[%s225 + $0x3c] sm:$0xff]
      %v256 = vld [vmem:[%s225 + $0x44] sm:$0xff]
      %v257 = vld [vmem:[%s225 + $0x4c] sm:$0xf]
      %v258 = vld [vmem:[%s225 + $0x50] sm:$0xff]
      %v259 = vld [vmem:[%s225 + $0x58] sm:$0xff]
      %v260 = vld [vmem:[%s225 + $0x60] sm:$0xf]
      %v261 = vld [vmem:[%s225 + $0x64] sm:$0xff]
      %v262 = vld [vmem:[%s225 + $0x6c] sm:$0xff]
      %v263 = vld [vmem:[%s225 + $0x74] sm:$0xf]
      %v264 = vld [vmem:[%s225 + $0x78] sm:$0xff]
      %v265 = vld [vmem:[%s225 + $0x80] sm:$0xff]
      %v266 = vld [vmem:[%s225 + $0x88] sm:$0xf]
      %v267 = vld [vmem:[%s225 + $0x8c] sm:$0xff]
      %v268 = vld [vmem:[%s225 + $0x94] sm:$0xff]
      %v269 = vld [vmem:[%s225 + $0x9c] sm:$0xf]
      %v270 = vld [vmem:[%s225 + $0xa0] sm:$0xff]
      %v271 = vld [vmem:[%s225 + $0xa8] sm:$0xff]
      %v272 = vld [vmem:[%s225 + $0xb0] sm:$0xf]
      %v273 = vld [vmem:[%s225 + $0xb4] sm:$0xff]
      %v274 = vld [vmem:[%s225 + $0xbc] sm:$0xff]
      %v275 = vld [vmem:[%s225 + $0xc4] sm:$0xf]
      %v276 = vld [vmem:[%s225 + $0xc8] sm:$0xff]
      %v277 = vld [vmem:[%s225 + $0xd0] sm:$0xff]
      %v278 = vld [vmem:[%s225 + $0xd8] sm:$0xf]
      %v279 = vld [vmem:[%s225 + $0xdc] sm:$0xff]
      %v280 = vld [vmem:[%s225 + $0xe4] sm:$0xff]
      %v281 = vld [vmem:[%s225 + $0xec] sm:$0xf]
      %v282 = vld [vmem:[%s225 + $0xf0] sm:$0xff]
      %v283 = vld [vmem:[%s225 + $0xf8] sm:$0xff]
      %v284 = vld [vmem:[%s225 + $0x100] sm:$0xf]
      %v285 = vld [vmem:[%s225 + $0x104] sm:$0xff]
      %v286 = vld [vmem:[%s225 + $0x10c] sm:$0xff]
      %v287 = vld [vmem:[%s225 + $0x114] sm:$0xf]
      %v288 = vld [vmem:[%s225 + $0x118] sm:$0xff]
      %v289 = vld [vmem:[%s225 + $0x120] sm:$0xff]
      %v290 = vld [vmem:[%s225 + $0x128] sm:$0xf]
      %v291 = vld [vmem:[%s225 + $0x12c] sm:$0xff]
      %v292 = vld [vmem:[%s225 + $0x134] sm:$0xff]
      %v293 = vld [vmem:[%s225 + $0x13c] sm:$0xf]
      %v294 = vld [vmem:[%s225 + $0x140] sm:$0xff]
      %v295 = vld [vmem:[%s225 + $0x148] sm:$0xff]
      %v296 = vld [vmem:[%s225 + $0x150] sm:$0xf]
      %v297 = vld [vmem:[%s225 + $0x154] sm:$0xff]
      %v298 = vld [vmem:[%s225 + $0x15c] sm:$0xff]
      %v299 = vld [vmem:[%s225 + $0x164] sm:$0xf]
      %v300 = vld [vmem:[%s225 + $0x168] sm:$0xff]
      %v301 = vld [vmem:[%s225 + $0x170] sm:$0xff]
      %v302 = vld [vmem:[%s225 + $0x178] sm:$0xf]
      %v303 = vld [vmem:[%s225 + $0x17c] sm:$0xff]
      %v304 = vld [vmem:[%s225 + $0x184] sm:$0xff]
      %v305 = vld [vmem:[%s225 + $0x18c] sm:$0xf]
      %v306 = vld [vmem:[%s225 + $0x190] sm:$0xff]
      %v307 = vld [vmem:[%s225 + $0x198] sm:$0xff]
      %v308 = vld [vmem:[%s225 + $0x1a0] sm:$0xf]
      %v309 = vld [vmem:[%s225 + $0x1a4] sm:$0xff]
      %v310 = vld [vmem:[%s225 + $0x1ac] sm:$0xff]
      %v311 = vld [vmem:[%s225 + $0x1b4] sm:$0xf]
      %v312 = vld [vmem:[%s225 + $0x1b8] sm:$0xff]
      %v313 = vld [vmem:[%s225 + $0x1c0] sm:$0xff]
      %v314 = vld [vmem:[%s225 + $0x1c8] sm:$0xf]
      %v315 = vld [vmem:[%s225 + $0x1cc] sm:$0xff]
      %v316 = vld [vmem:[%s225 + $0x1d4] sm:$0xff]
      %v317 = vld [vmem:[%s225 + $0x1dc] sm:$0xf]
      %v318 = vld [vmem:[%s225 + $0x1e0] sm:$0xff]
      %v319 = vld [vmem:[%s225 + $0x1e8] sm:$0xff]
      %v320 = vld [vmem:[%s225 + $0x1f0] sm:$0xf]
      %v321 = vld [vmem:[%s225 + $0x1f4] sm:$0xff]
      %v322 = vld [vmem:[%s225 + $0x1fc] sm:$0xff]
      %v323 = vld [vmem:[%s225 + $0x204] sm:$0xf]
      %v324 = vld [vmem:[%s225 + $0x208] sm:$0xff]
      %v325 = vld [vmem:[%s225 + $0x210] sm:$0xff]
      %v326 = vld [vmem:[%s225 + $0x218] sm:$0xf]
      %v327 = vld [vmem:[%s225 + $0x21c] sm:$0xff]
      %v328 = vld [vmem:[%s225 + $0x224] sm:$0xff]
      %v329 = vld [vmem:[%s225 + $0x22c] sm:$0xf]
      %v330 = vld [vmem:[%s225 + $0x230] sm:$0xff]
      %v331 = vld [vmem:[%s225 + $0x238] sm:$0xff]
      %v332 = vld [vmem:[%s225 + $0x240] sm:$0xf]
      %v333 = vld [vmem:[%s225 + $0x244] sm:$0xff]
      %v334 = vld [vmem:[%s225 + $0x24c] sm:$0xff]
      %v335 = vld [vmem:[%s225 + $0x254] sm:$0xf]
      %v336 = vld [vmem:[%s225 + $0x258] sm:$0xff]
      %v337 = vld [vmem:[%s225 + $0x260] sm:$0xff]
      %v338 = vld [vmem:[%s225 + $0x268] sm:$0xf]
      %v339 = vld [vmem:[%s225 + $0x26c] sm:$0xff]
      %v340 = vld [vmem:[%s225 + $0x274] sm:$0xff]
      %v341 = vld [vmem:[%s225 + $0x27c] sm:$0xf]
      %v342 = vld [vmem:[%s225 + $0x280] sm:$0xff]
      %v343 = vld [vmem:[%s225 + $0x288] sm:$0xff]
      %v344 = vld [vmem:[%s225 + $0x290] sm:$0xf]
      %v345 = vld [vmem:[%s225 + $0x294] sm:$0xff]
      %v346 = vld [vmem:[%s225 + $0x29c] sm:$0xff]
      %v347 = vld [vmem:[%s225 + $0x2a4] sm:$0xf]
      %v348 = vld [vmem:[%s225 + $0x2a8] sm:$0xff]
      %v349 = vld [vmem:[%s225 + $0x2b0] sm:$0xff]
      %v350 = vld [vmem:[%s225 + $0x2b8] sm:$0xf]
      %v351 = vld [vmem:[%s225 + $0x2bc] sm:$0xff]
      %v352 = vld [vmem:[%s225 + $0x2c4] sm:$0xff]
      %v353 = vld [vmem:[%s225 + $0x2cc] sm:$0xf]
      %v354 = vld [vmem:[%s225 + $0x2d0] sm:$0xff]
      %v355 = vld [vmem:[%s225 + $0x2d8] sm:$0xff]
      %v356 = vld [vmem:[%s225 + $0x2e0] sm:$0xf]
      %v357 = vld [vmem:[%s225 + $0x2e4] sm:$0xff]
      %v358 = vld [vmem:[%s225 + $0x2ec] sm:$0xff]
      %v359 = vld [vmem:[%s225 + $0x2f4] sm:$0xf]
      %v360 = vld [vmem:[%s225 + $0x2f8] sm:$0xff]
      %v361 = vld [vmem:[%s225 + $0x300] sm:$0xff]
      %v362 = vld [vmem:[%s225 + $0x308] sm:$0xf]
      %v363 = vld [vmem:[%s225 + $0x30c] sm:$0xff]
      %v364 = vld [vmem:[%s225 + $0x314] sm:$0xff]
      %v365 = vld [vmem:[%s225 + $0x31c] sm:$0xf]
      %v366 = vld [vmem:[%s225 + $0x320] sm:$0xff]
      %v367 = vld [vmem:[%s225 + $0x328] sm:$0xff]
      %v368 = vld [vmem:[%s225 + $0x330] sm:$0xf]
      %v369 = vld [vmem:[%s225 + $0x334] sm:$0xff]
      %v370 = vld [vmem:[%s225 + $0x33c] sm:$0xff]
      %v371 = vld [vmem:[%s225 + $0x344] sm:$0xf]
      %v372 = vld [vmem:[%s225 + $0x348] sm:$0xff]
      %v373 = vld [vmem:[%s225 + $0x350] sm:$0xff]
      %v374 = vld [vmem:[%s225 + $0x358] sm:$0xf]
      %v375 = vld [vmem:[%s225 + $0x35c] sm:$0xff]
      %v376 = vld [vmem:[%s225 + $0x364] sm:$0xff]
      %v377 = vld [vmem:[%s225 + $0x36c] sm:$0xf]
      %v378 = vld [vmem:[%s225 + $0x370] sm:$0xff]
      %v379 = vld [vmem:[%s225 + $0x378] sm:$0xff]
      %v380 = vld [vmem:[%s225 + $0x380] sm:$0xf]
      %v381 = vld [vmem:[%s225 + $0x384] sm:$0xff]
      %v382 = vld [vmem:[%s225 + $0x38c] sm:$0xff]
      %v383 = vld [vmem:[%s225 + $0x394] sm:$0xf]
      %v384 = vld [vmem:[%s225 + $0x398] sm:$0xff]
      %v385 = vld [vmem:[%s225 + $0x3a0] sm:$0xff]
      %v386 = vld [vmem:[%s225 + $0x3a8] sm:$0xf]
      %v387 = vld [vmem:[%s225 + $0x3ac] sm:$0xff]
      %v388 = vld [vmem:[%s225 + $0x3b4] sm:$0xff]
      %v389 = vld [vmem:[%s225 + $0x3bc] sm:$0xf]
      %v390 = vld [vmem:[%s225 + $0x3c0] sm:$0xff]
      %v391 = vld [vmem:[%s225 + $0x3c8] sm:$0xff]
      %v392 = vld [vmem:[%s225 + $0x3d0] sm:$0xf]
      %v393 = vld [vmem:[%s225 + $0x3d4] sm:$0xff]
      %v394 = vld [vmem:[%s225 + $0x3dc] sm:$0xff]
      %v395 = vld [vmem:[%s225 + $0x3e4] sm:$0xf]
      %v396 = vld [vmem:[%s225 + $0x3e8] sm:$0xff]
      %v397 = vld [vmem:[%s225 + $0x3f0] sm:$0xff]
      %v398 = vld [vmem:[%s225 + $0x3f8] sm:$0xf]
      %v399 = vld [vmem:[%s225 + $0x3fc] sm:$0xff]
      %v400 = vld [vmem:[%s225 + $0x404] sm:$0xff]
      %v401 = vld [vmem:[%s225 + $0x40c] sm:$0xf]
      %v402 = vld [vmem:[%s225 + $0x410] sm:$0xff]
      %v403 = vld [vmem:[%s225 + $0x418] sm:$0xff]
      %v404 = vld [vmem:[%s225 + $0x420] sm:$0xf]
      %v405 = vld [vmem:[%s225 + $0x424] sm:$0xff]
      %v406 = vld [vmem:[%s225 + $0x42c] sm:$0xff]
      %v407 = vld [vmem:[%s225 + $0x434] sm:$0xf]
      %v408 = vld [vmem:[%s225 + $0x438] sm:$0xff]
      %v409 = vld [vmem:[%s225 + $0x440] sm:$0xff]
      %v410 = vld [vmem:[%s225 + $0x448] sm:$0xf]
      %v411 = vld [vmem:[%s225 + $0x44c] sm:$0xff]
      %v412 = vld [vmem:[%s225 + $0x454] sm:$0xff]
      %v413 = vld [vmem:[%s225 + $0x45c] sm:$0xf]
      %v414 = vld [vmem:[%s225 + $0x460] sm:$0xff]
      %v415 = vld [vmem:[%s225 + $0x468] sm:$0xff]
      %v416 = vld [vmem:[%s225 + $0x470] sm:$0xf]
      %v417 = vld [vmem:[%s225 + $0x474] sm:$0xff]
      %v418 = vld [vmem:[%s225 + $0x47c] sm:$0xff]
      %v419 = vld [vmem:[%s225 + $0x484] sm:$0xf]
      %v420 = vld [vmem:[%s225 + $0x488] sm:$0xff]
      %v421 = vld [vmem:[%s225 + $0x490] sm:$0xff]
      %v422 = vld [vmem:[%s225 + $0x498] sm:$0xf]
      %v423 = vld [vmem:[%s225 + $0x49c] sm:$0xff]
      %v424 = vld [vmem:[%s225 + $0x4a4] sm:$0xff]
      %v425 = vld [vmem:[%s225 + $0x4ac] sm:$0xf]
      %v426 = vld [vmem:[%s225 + $0x4b0] sm:$0xff]
      %v427 = vld [vmem:[%s225 + $0x4b8] sm:$0xff]
      %v428 = vld [vmem:[%s225 + $0x4c0] sm:$0xf]
      %v429 = vld [vmem:[%s225 + $0x4c4] sm:$0xff]
      %v430 = vld [vmem:[%s225 + $0x4cc] sm:$0xff]
      %v431 = vld [vmem:[%s225 + $0x4d4] sm:$0xf]
      %v432 = vld [vmem:[%s225 + $0x4d8] sm:$0xff]
      %v433 = vld [vmem:[%s225 + $0x4e0] sm:$0xff]
      %v434 = vld [vmem:[%s225 + $0x4e8] sm:$0xf]
      %v435 = vld [vmem:[%s225 + $0x4ec] sm:$0xff]
      %v436 = vld [vmem:[%s225 + $0x4f4] sm:$0xff]
      %v437 = vld [vmem:[%s225 + $0x4fc] sm:$0xf]
      %v446 = vunpack.c.l.b16 %v238
      %v447 = vunpack.c.h.b16 %v238
      %v448 = vunpack.c.l.b16 %v239
      %v449 = vunpack.c.h.b16 %v239
      %v450 = vunpack.c.l.b16 %v240
      %v451 = vunpack.c.h.b16 %v240
      %v452 = vunpack.c.l.b16 %v241
      %v453 = vunpack.c.h.b16 %v241
      %v454 = vunpack.c.l.b16 %v242
      %v455 = vunpack.c.h.b16 %v242
      %v456 = vunpack.c.l.b16 %v243
      %v457 = vunpack.c.h.b16 %v243
      %v458 = vunpack.c.l.b16 %v244
      %v459 = vunpack.c.h.b16 %v244
      %v460 = vunpack.c.l.b16 %v245
      %v461 = vunpack.c.h.b16 %v245
      %v462 = vpack.c.b16 %v450, %v446
      %v463 = vpack.c.b16 %v451, %v447
      %v464 = vpack.c.b16 %v452, %v448
      %v465 = vpack.c.b16 %v453, %v449
      %v466 = vpack.c.b16 %v458, %v454
      %v467 = vpack.c.b16 %v459, %v455
      %v468 = vpack.c.b16 %v460, %v456
      %v469 = vpack.c.b16 %v461, %v457
      %v670 = vunpack.c.l.b16 %v246
      %v671 = vunpack.c.h.b16 %v246
      %v672 = vunpack.c.l.b16 %v247
      %v673 = vunpack.c.h.b16 %v247
      %v674 = vunpack.c.l.b16 %v248
      %v675 = vunpack.c.l.b16 %v249
      %v676 = vunpack.c.h.b16 %v249
      %v677 = vunpack.c.l.b16 %v250
      %v678 = vunpack.c.h.b16 %v250
      %v679 = vunpack.c.l.b16 %v251
      %v680 = vunpack.c.l.b16 %v252
      %v681 = vunpack.c.h.b16 %v252
      %v682 = vunpack.c.l.b16 %v253
      %v683 = vunpack.c.h.b16 %v253
      %v684 = vunpack.c.l.b16 %v254
      %v685 = vunpack.c.l.b16 %v255
      %v686 = vunpack.c.h.b16 %v255
      %v687 = vunpack.c.l.b16 %v256
      %v688 = vunpack.c.h.b16 %v256
      %v689 = vunpack.c.l.b16 %v257
      %v690 = vunpack.c.l.b16 %v258
      %v691 = vunpack.c.h.b16 %v258
      %v692 = vunpack.c.l.b16 %v259
      %v693 = vunpack.c.h.b16 %v259
      %v694 = vunpack.c.l.b16 %v260
      %v695 = vunpack.c.l.b16 %v261
      %v696 = vunpack.c.h.b16 %v261
      %v697 = vunpack.c.l.b16 %v262
      %v698 = vunpack.c.h.b16 %v262
      %v699 = vunpack.c.l.b16 %v263
      %v700 = vunpack.c.l.b16 %v264
      %v701 = vunpack.c.h.b16 %v264
      %v702 = vunpack.c.l.b16 %v265
      %v703 = vunpack.c.h.b16 %v265
      %v704 = vunpack.c.l.b16 %v266
      %v705 = vunpack.c.l.b16 %v267
      %v706 = vunpack.c.h.b16 %v267
      %v707 = vunpack.c.l.b16 %v268
      %v708 = vunpack.c.h.b16 %v268
      %v709 = vunpack.c.l.b16 %v269
      %v710 = vunpack.c.l.b16 %v270
      %v711 = vunpack.c.h.b16 %v270
      %v712 = vunpack.c.l.b16 %v271
      %v713 = vunpack.c.h.b16 %v271
      %v714 = vunpack.c.l.b16 %v272
      %v715 = vunpack.c.l.b16 %v273
      %v716 = vunpack.c.h.b16 %v273
      %v717 = vunpack.c.l.b16 %v274
      %v718 = vunpack.c.h.b16 %v274
      %v719 = vunpack.c.l.b16 %v275
      %v720 = vunpack.c.l.b16 %v276
      %v721 = vunpack.c.h.b16 %v276
      %v722 = vunpack.c.l.b16 %v277
      %v723 = vunpack.c.h.b16 %v277
      %v724 = vunpack.c.l.b16 %v278
      %v725 = vunpack.c.l.b16 %v279
      %v726 = vunpack.c.h.b16 %v279
      %v727 = vunpack.c.l.b16 %v280
      %v728 = vunpack.c.h.b16 %v280
      %v729 = vunpack.c.l.b16 %v281
      %v730 = vunpack.c.l.b16 %v282
      %v731 = vunpack.c.h.b16 %v282
      %v732 = vunpack.c.l.b16 %v283
      %v733 = vunpack.c.h.b16 %v283
      %v734 = vunpack.c.l.b16 %v284
      %v735 = vunpack.c.l.b16 %v285
      %v736 = vunpack.c.h.b16 %v285
      %v737 = vunpack.c.l.b16 %v286
      %v738 = vunpack.c.h.b16 %v286
      %v739 = vunpack.c.l.b16 %v287
      %v740 = vunpack.c.l.b16 %v288
      %v741 = vunpack.c.h.b16 %v288
      %v742 = vunpack.c.l.b16 %v289
      %v743 = vunpack.c.h.b16 %v289
      %v744 = vunpack.c.l.b16 %v290
      %v745 = vunpack.c.l.b16 %v291
      %v746 = vunpack.c.h.b16 %v291
      %v747 = vunpack.c.l.b16 %v292
      %v748 = vunpack.c.h.b16 %v292
      %v749 = vunpack.c.l.b16 %v293
      %v750 = vunpack.c.l.b16 %v294
      %v751 = vunpack.c.h.b16 %v294
      %v752 = vunpack.c.l.b16 %v295
      %v753 = vunpack.c.h.b16 %v295
      %v754 = vunpack.c.l.b16 %v296
      %v755 = vunpack.c.l.b16 %v297
      %v756 = vunpack.c.h.b16 %v297
      %v757 = vunpack.c.l.b16 %v298
      %v758 = vunpack.c.h.b16 %v298
      %v759 = vunpack.c.l.b16 %v299
      %v760 = vunpack.c.l.b16 %v300
      %v761 = vunpack.c.h.b16 %v300
      %v762 = vunpack.c.l.b16 %v301
      %v763 = vunpack.c.h.b16 %v301
      %v764 = vunpack.c.l.b16 %v302
      %v765 = vunpack.c.l.b16 %v303
      %v766 = vunpack.c.h.b16 %v303
      %v767 = vunpack.c.l.b16 %v304
      %v768 = vunpack.c.h.b16 %v304
      %v769 = vunpack.c.l.b16 %v305
      %v770 = vunpack.c.l.b16 %v306
      %v771 = vunpack.c.h.b16 %v306
      %v772 = vunpack.c.l.b16 %v307
      %v773 = vunpack.c.h.b16 %v307
      %v774 = vunpack.c.l.b16 %v308
      %v775 = vunpack.c.l.b16 %v309
      %v776 = vunpack.c.h.b16 %v309
      %v777 = vunpack.c.l.b16 %v310
      %v778 = vunpack.c.h.b16 %v310
      %v779 = vunpack.c.l.b16 %v311
      %v780 = vunpack.c.l.b16 %v312
      %v781 = vunpack.c.h.b16 %v312
      %v782 = vunpack.c.l.b16 %v313
      %v783 = vunpack.c.h.b16 %v313
      %v784 = vunpack.c.l.b16 %v314
      %v785 = vunpack.c.l.b16 %v315
      %v786 = vunpack.c.h.b16 %v315
      %v787 = vunpack.c.l.b16 %v316
      %v788 = vunpack.c.h.b16 %v316
      %v789 = vunpack.c.l.b16 %v317
      %v790 = vunpack.c.l.b16 %v318
      %v791 = vunpack.c.h.b16 %v318
      %v792 = vunpack.c.l.b16 %v319
      %v793 = vunpack.c.h.b16 %v319
      %v794 = vunpack.c.l.b16 %v320
      %v795 = vunpack.c.l.b16 %v321
      %v796 = vunpack.c.h.b16 %v321
      %v797 = vunpack.c.l.b16 %v322
      %v798 = vunpack.c.h.b16 %v322
      %v799 = vunpack.c.l.b16 %v323
      %v800 = vunpack.c.l.b16 %v324
      %v801 = vunpack.c.h.b16 %v324
      %v802 = vunpack.c.l.b16 %v325
      %v803 = vunpack.c.h.b16 %v325
      %v804 = vunpack.c.l.b16 %v326
      %v805 = vunpack.c.l.b16 %v327
      %v806 = vunpack.c.h.b16 %v327
      %v807 = vunpack.c.l.b16 %v328
      %v808 = vunpack.c.h.b16 %v328
      %v809 = vunpack.c.l.b16 %v329
      %v810 = vunpack.c.l.b16 %v330
      %v811 = vunpack.c.h.b16 %v330
      %v812 = vunpack.c.l.b16 %v331
      %v813 = vunpack.c.h.b16 %v331
      %v814 = vunpack.c.l.b16 %v332
      %v815 = vunpack.c.l.b16 %v333
      %v816 = vunpack.c.h.b16 %v333
      %v817 = vunpack.c.l.b16 %v334
      %v818 = vunpack.c.h.b16 %v334
      %v819 = vunpack.c.l.b16 %v335
      %v820 = vunpack.c.l.b16 %v336
      %v821 = vunpack.c.h.b16 %v336
      %v822 = vunpack.c.l.b16 %v337
      %v823 = vunpack.c.h.b16 %v337
      %v824 = vunpack.c.l.b16 %v338
      %v825 = vunpack.c.l.b16 %v339
      %v826 = vunpack.c.h.b16 %v339
      %v827 = vunpack.c.l.b16 %v340
      %v828 = vunpack.c.h.b16 %v340
      %v829 = vunpack.c.l.b16 %v341
      %v830 = vunpack.c.l.b16 %v342
      %v831 = vunpack.c.h.b16 %v342
      %v832 = vunpack.c.l.b16 %v343
      %v833 = vunpack.c.h.b16 %v343
      %v834 = vunpack.c.l.b16 %v344
      %v835 = vunpack.c.l.b16 %v345
      %v836 = vunpack.c.h.b16 %v345
      %v837 = vunpack.c.l.b16 %v346
      %v838 = vunpack.c.h.b16 %v346
      %v839 = vunpack.c.l.b16 %v347
      %v840 = vunpack.c.l.b16 %v348
      %v841 = vunpack.c.h.b16 %v348
      %v842 = vunpack.c.l.b16 %v349
      %v843 = vunpack.c.h.b16 %v349
      %v844 = vunpack.c.l.b16 %v350
      %v845 = vunpack.c.l.b16 %v351
      %v846 = vunpack.c.h.b16 %v351
      %v847 = vunpack.c.l.b16 %v352
      %v848 = vunpack.c.h.b16 %v352
      %v849 = vunpack.c.l.b16 %v353
      %v850 = vunpack.c.l.b16 %v354
      %v851 = vunpack.c.h.b16 %v354
      %v852 = vunpack.c.l.b16 %v355
      %v853 = vunpack.c.h.b16 %v355
      %v854 = vunpack.c.l.b16 %v356
      %v855 = vunpack.c.l.b16 %v357
      %v856 = vunpack.c.h.b16 %v357
      %v857 = vunpack.c.l.b16 %v358
      %v858 = vunpack.c.h.b16 %v358
      %v859 = vunpack.c.l.b16 %v359
      %v860 = vunpack.c.l.b16 %v360
      %v861 = vunpack.c.h.b16 %v360
      %v862 = vunpack.c.l.b16 %v361
      %v863 = vunpack.c.h.b16 %v361
      %v864 = vunpack.c.l.b16 %v362
      %v865 = vunpack.c.l.b16 %v363
      %v866 = vunpack.c.h.b16 %v363
      %v867 = vunpack.c.l.b16 %v364
      %v868 = vunpack.c.h.b16 %v364
      %v869 = vunpack.c.l.b16 %v365
      %v870 = vunpack.c.l.b16 %v366
      %v871 = vunpack.c.h.b16 %v366
      %v872 = vunpack.c.l.b16 %v367
      %v873 = vunpack.c.h.b16 %v367
      %v874 = vunpack.c.l.b16 %v368
      %v875 = vunpack.c.l.b16 %v369
      %v876 = vunpack.c.h.b16 %v369
      %v877 = vunpack.c.l.b16 %v370
      %v878 = vunpack.c.h.b16 %v370
      %v879 = vunpack.c.l.b16 %v371
      %v880 = vunpack.c.l.b16 %v372
      %v881 = vunpack.c.h.b16 %v372
      %v882 = vunpack.c.l.b16 %v373
      %v883 = vunpack.c.h.b16 %v373
      %v884 = vunpack.c.l.b16 %v374
      %v885 = vunpack.c.l.b16 %v375
      %v886 = vunpack.c.h.b16 %v375
      %v887 = vunpack.c.l.b16 %v376
      %v888 = vunpack.c.h.b16 %v376
      %v889 = vunpack.c.l.b16 %v377
      %v890 = vunpack.c.l.b16 %v378
      %v891 = vunpack.c.h.b16 %v378
      %v892 = vunpack.c.l.b16 %v379
      %v893 = vunpack.c.h.b16 %v379
      %v894 = vunpack.c.l.b16 %v380
      %v895 = vunpack.c.l.b16 %v381
      %v896 = vunpack.c.h.b16 %v381
      %v897 = vunpack.c.l.b16 %v382
      %v898 = vunpack.c.h.b16 %v382
      %v899 = vunpack.c.l.b16 %v383
      %v900 = vunpack.c.l.b16 %v384
      %v901 = vunpack.c.h.b16 %v384
      %v902 = vunpack.c.l.b16 %v385
      %v903 = vunpack.c.h.b16 %v385
      %v904 = vunpack.c.l.b16 %v386
      %v905 = vunpack.c.l.b16 %v387
      %v906 = vunpack.c.h.b16 %v387
      %v907 = vunpack.c.l.b16 %v388
      %v908 = vunpack.c.h.b16 %v388
      %v909 = vunpack.c.l.b16 %v389
      %v910 = vunpack.c.l.b16 %v390
      %v911 = vunpack.c.h.b16 %v390
      %v912 = vunpack.c.l.b16 %v391
      %v913 = vunpack.c.h.b16 %v391
      %v914 = vunpack.c.l.b16 %v392
      %v915 = vunpack.c.l.b16 %v393
      %v916 = vunpack.c.h.b16 %v393
      %v917 = vunpack.c.l.b16 %v394
      %v918 = vunpack.c.h.b16 %v394
      %v919 = vunpack.c.l.b16 %v395
      %v920 = vunpack.c.l.b16 %v396
      %v921 = vunpack.c.h.b16 %v396
      %v922 = vunpack.c.l.b16 %v397
      %v923 = vunpack.c.h.b16 %v397
      %v924 = vunpack.c.l.b16 %v398
      %v925 = vunpack.c.l.b16 %v399
      %v926 = vunpack.c.h.b16 %v399
      %v927 = vunpack.c.l.b16 %v400
      %v928 = vunpack.c.h.b16 %v400
      %v929 = vunpack.c.l.b16 %v401
      %v930 = vunpack.c.l.b16 %v402
      %v931 = vunpack.c.h.b16 %v402
      %v932 = vunpack.c.l.b16 %v403
      %v933 = vunpack.c.h.b16 %v403
      %v934 = vunpack.c.l.b16 %v404
      %v935 = vunpack.c.l.b16 %v405
      %v936 = vunpack.c.h.b16 %v405
      %v937 = vunpack.c.l.b16 %v406
      %v938 = vunpack.c.h.b16 %v406
      %v939 = vunpack.c.l.b16 %v407
      %v940 = vunpack.c.l.b16 %v408
      %v941 = vunpack.c.h.b16 %v408
      %v942 = vunpack.c.l.b16 %v409
      %v943 = vunpack.c.h.b16 %v409
      %v944 = vunpack.c.l.b16 %v410
      %v945 = vunpack.c.l.b16 %v411
      %v946 = vunpack.c.h.b16 %v411
      %v947 = vunpack.c.l.b16 %v412
      %v948 = vunpack.c.h.b16 %v412
      %v949 = vunpack.c.l.b16 %v413
      %v950 = vunpack.c.l.b16 %v414
      %v951 = vunpack.c.h.b16 %v414
      %v952 = vunpack.c.l.b16 %v415
      %v953 = vunpack.c.h.b16 %v415
      %v954 = vunpack.c.l.b16 %v416
      %v955 = vunpack.c.l.b16 %v417
      %v956 = vunpack.c.h.b16 %v417
      %v957 = vunpack.c.l.b16 %v418
      %v958 = vunpack.c.h.b16 %v418
      %v959 = vunpack.c.l.b16 %v419
      %v960 = vunpack.c.l.b16 %v420
      %v961 = vunpack.c.h.b16 %v420
      %v962 = vunpack.c.l.b16 %v421
      %v963 = vunpack.c.h.b16 %v421
      %v964 = vunpack.c.l.b16 %v422
      %v965 = vunpack.c.l.b16 %v423
      %v966 = vunpack.c.h.b16 %v423
      %v967 = vunpack.c.l.b16 %v424
      %v968 = vunpack.c.h.b16 %v424
      %v969 = vunpack.c.l.b16 %v425
      %v970 = vunpack.c.l.b16 %v426
      %v971 = vunpack.c.h.b16 %v426
      %v972 = vunpack.c.l.b16 %v427
      %v973 = vunpack.c.h.b16 %v427
      %v974 = vunpack.c.l.b16 %v428
      %v975 = vunpack.c.l.b16 %v429
      %v976 = vunpack.c.h.b16 %v429
      %v977 = vunpack.c.l.b16 %v430
      %v978 = vunpack.c.h.b16 %v430
      %v979 = vunpack.c.l.b16 %v431
      %v980 = vunpack.c.l.b16 %v432
      %v981 = vunpack.c.h.b16 %v432
      %v982 = vunpack.c.l.b16 %v433
      %v983 = vunpack.c.h.b16 %v433
      %v984 = vunpack.c.l.b16 %v434
      %v985 = vunpack.c.l.b16 %v435
      %v986 = vunpack.c.h.b16 %v435
      %v987 = vunpack.c.l.b16 %v436
      %v988 = vunpack.c.h.b16 %v436
      %v989 = vunpack.c.l.b16 %v437
      %v990 = vpack.c.b16 %v675, %v670
      %v991 = vpack.c.b16 %v676, %v671
      %v992 = vpack.c.b16 %v677, %v672
      %v993 = vpack.c.b16 %v678, %v673
      %v994 = vpack.c.b16 %v679, %v674
      %v995 = vpack.c.b16 %v685, %v680
      %v996 = vpack.c.b16 %v686, %v681
      %v997 = vpack.c.b16 %v687, %v682
      %v998 = vpack.c.b16 %v688, %v683
      %v999 = vpack.c.b16 %v689, %v684
      %v1000 = vpack.c.b16 %v695, %v690
      %v1001 = vpack.c.b16 %v696, %v691
      %v1002 = vpack.c.b16 %v697, %v692
      %v1003 = vpack.c.b16 %v698, %v693
      %v1004 = vpack.c.b16 %v699, %v694
      %v1005 = vpack.c.b16 %v705, %v700
      %v1006 = vpack.c.b16 %v706, %v701
      %v1007 = vpack.c.b16 %v707, %v702
      %v1008 = vpack.c.b16 %v708, %v703
      %v1009 = vpack.c.b16 %v709, %v704
      %v1010 = vpack.c.b16 %v715, %v710
      %v1011 = vpack.c.b16 %v716, %v711
      %v1012 = vpack.c.b16 %v717, %v712
      %v1013 = vpack.c.b16 %v718, %v713
      %v1014 = vpack.c.b16 %v719, %v714
      %v1015 = vpack.c.b16 %v725, %v720
      %v1016 = vpack.c.b16 %v726, %v721
      %v1017 = vpack.c.b16 %v727, %v722
      %v1018 = vpack.c.b16 %v728, %v723
      %v1019 = vpack.c.b16 %v729, %v724
      %v1020 = vpack.c.b16 %v735, %v730
      %v1021 = vpack.c.b16 %v736, %v731
      %v1022 = vpack.c.b16 %v737, %v732
      %v1023 = vpack.c.b16 %v738, %v733
      %v1024 = vpack.c.b16 %v739, %v734
      %v1025 = vpack.c.b16 %v745, %v740
      %v1026 = vpack.c.b16 %v746, %v741
      %v1027 = vpack.c.b16 %v747, %v742
      %v1028 = vpack.c.b16 %v748, %v743
      %v1029 = vpack.c.b16 %v749, %v744
      %v1030 = vpack.c.b16 %v755, %v750
      %v1031 = vpack.c.b16 %v756, %v751
      %v1032 = vpack.c.b16 %v757, %v752
      %v1033 = vpack.c.b16 %v758, %v753
      %v1034 = vpack.c.b16 %v759, %v754
      %v1035 = vpack.c.b16 %v765, %v760
      %v1036 = vpack.c.b16 %v766, %v761
      %v1037 = vpack.c.b16 %v767, %v762
      %v1038 = vpack.c.b16 %v768, %v763
      %v1039 = vpack.c.b16 %v769, %v764
      %v1040 = vpack.c.b16 %v775, %v770
      %v1041 = vpack.c.b16 %v776, %v771
      %v1042 = vpack.c.b16 %v777, %v772
      %v1043 = vpack.c.b16 %v778, %v773
      %v1044 = vpack.c.b16 %v779, %v774
      %v1045 = vpack.c.b16 %v785, %v780
      %v1046 = vpack.c.b16 %v786, %v781
      %v1047 = vpack.c.b16 %v787, %v782
      %v1048 = vpack.c.b16 %v788, %v783
      %v1049 = vpack.c.b16 %v789, %v784
      %v1050 = vpack.c.b16 %v795, %v790
      %v1051 = vpack.c.b16 %v796, %v791
      %v1052 = vpack.c.b16 %v797, %v792
      %v1053 = vpack.c.b16 %v798, %v793
      %v1054 = vpack.c.b16 %v799, %v794
      %v1055 = vpack.c.b16 %v805, %v800
      %v1056 = vpack.c.b16 %v806, %v801
      %v1057 = vpack.c.b16 %v807, %v802
      %v1058 = vpack.c.b16 %v808, %v803
      %v1059 = vpack.c.b16 %v809, %v804
      %v1060 = vpack.c.b16 %v815, %v810
      %v1061 = vpack.c.b16 %v816, %v811
      %v1062 = vpack.c.b16 %v817, %v812
      %v1063 = vpack.c.b16 %v818, %v813
      %v1064 = vpack.c.b16 %v819, %v814
      %v1065 = vpack.c.b16 %v825, %v820
      %v1066 = vpack.c.b16 %v826, %v821
      %v1067 = vpack.c.b16 %v827, %v822
      %v1068 = vpack.c.b16 %v828, %v823
      %v1069 = vpack.c.b16 %v829, %v824
      %v1070 = vpack.c.b16 %v835, %v830
      %v1071 = vpack.c.b16 %v836, %v831
      %v1072 = vpack.c.b16 %v837, %v832
      %v1073 = vpack.c.b16 %v838, %v833
      %v1074 = vpack.c.b16 %v839, %v834
      %v1075 = vpack.c.b16 %v845, %v840
      %v1076 = vpack.c.b16 %v846, %v841
      %v1077 = vpack.c.b16 %v847, %v842
      %v1078 = vpack.c.b16 %v848, %v843
      %v1079 = vpack.c.b16 %v849, %v844
      %v1080 = vpack.c.b16 %v855, %v850
      %v1081 = vpack.c.b16 %v856, %v851
      %v1082 = vpack.c.b16 %v857, %v852
      %v1083 = vpack.c.b16 %v858, %v853
      %v1084 = vpack.c.b16 %v859, %v854
      %v1085 = vpack.c.b16 %v865, %v860
      %v1086 = vpack.c.b16 %v866, %v861
      %v1087 = vpack.c.b16 %v867, %v862
      %v1088 = vpack.c.b16 %v868, %v863
      %v1089 = vpack.c.b16 %v869, %v864
      %v1090 = vpack.c.b16 %v875, %v870
      %v1091 = vpack.c.b16 %v876, %v871
      %v1092 = vpack.c.b16 %v877, %v872
      %v1093 = vpack.c.b16 %v878, %v873
      %v1094 = vpack.c.b16 %v879, %v874
      %v1095 = vpack.c.b16 %v885, %v880
      %v1096 = vpack.c.b16 %v886, %v881
      %v1097 = vpack.c.b16 %v887, %v882
      %v1098 = vpack.c.b16 %v888, %v883
      %v1099 = vpack.c.b16 %v889, %v884
      %v1100 = vpack.c.b16 %v895, %v890
      %v1101 = vpack.c.b16 %v896, %v891
      %v1102 = vpack.c.b16 %v897, %v892
      %v1103 = vpack.c.b16 %v898, %v893
      %v1104 = vpack.c.b16 %v899, %v894
      %v1105 = vpack.c.b16 %v905, %v900
      %v1106 = vpack.c.b16 %v906, %v901
      %v1107 = vpack.c.b16 %v907, %v902
      %v1108 = vpack.c.b16 %v908, %v903
      %v1109 = vpack.c.b16 %v909, %v904
      %v1110 = vpack.c.b16 %v915, %v910
      %v1111 = vpack.c.b16 %v916, %v911
      %v1112 = vpack.c.b16 %v917, %v912
      %v1113 = vpack.c.b16 %v918, %v913
      %v1114 = vpack.c.b16 %v919, %v914
      %v1115 = vpack.c.b16 %v925, %v920
      %v1116 = vpack.c.b16 %v926, %v921
      %v1117 = vpack.c.b16 %v927, %v922
      %v1118 = vpack.c.b16 %v928, %v923
      %v1119 = vpack.c.b16 %v929, %v924
      %v1120 = vpack.c.b16 %v935, %v930
      %v1121 = vpack.c.b16 %v936, %v931
      %v1122 = vpack.c.b16 %v937, %v932
      %v1123 = vpack.c.b16 %v938, %v933
      %v1124 = vpack.c.b16 %v939, %v934
      %v1125 = vpack.c.b16 %v945, %v940
      %v1126 = vpack.c.b16 %v946, %v941
      %v1127 = vpack.c.b16 %v947, %v942
      %v1128 = vpack.c.b16 %v948, %v943
      %v1129 = vpack.c.b16 %v949, %v944
      %v1130 = vpack.c.b16 %v955, %v950
      %v1131 = vpack.c.b16 %v956, %v951
      %v1132 = vpack.c.b16 %v957, %v952
      %v1133 = vpack.c.b16 %v958, %v953
      %v1134 = vpack.c.b16 %v959, %v954
      %v1135 = vpack.c.b16 %v965, %v960
      %v1136 = vpack.c.b16 %v966, %v961
      %v1137 = vpack.c.b16 %v967, %v962
      %v1138 = vpack.c.b16 %v968, %v963
      %v1139 = vpack.c.b16 %v969, %v964
      %v1140 = vpack.c.b16 %v975, %v970
      %v1141 = vpack.c.b16 %v976, %v971
      %v1142 = vpack.c.b16 %v977, %v972
      %v1143 = vpack.c.b16 %v978, %v973
      %v1144 = vpack.c.b16 %v979, %v974
      %v1145 = vpack.c.b16 %v985, %v980
      %v1146 = vpack.c.b16 %v986, %v981
      %v1147 = vpack.c.b16 %v987, %v982
      %v1148 = vpack.c.b16 %v988, %v983
      %v1149 = vpack.c.b16 %v989, %v984
      %1310 = vmatprep.subr.bf16.mxu0 %v991
      %1311 = vmatpush1.bf16.msra.mxu0 %v990
      %1312 = vmatprep.subr.bf16.mxu0 %v996
      %1313 = vmatpush1.bf16.msra.mxu0 %v995
      %1314 = vmatprep.subr.bf16.mxu0 %v1001
      %1315 = vmatpush1.bf16.msra.mxu0 %v1000
      %1316 = vmatprep.subr.bf16.mxu0 %v1006
      %1317 = vmatpush1.bf16.msra.mxu0 %v1005
      %1318 = vmatprep.subr.bf16.mxu0 %v1011
      %1319 = vmatpush1.bf16.msra.mxu0 %v1010
      %1320 = vmatprep.subr.bf16.mxu0 %v1016
      %1321 = vmatpush1.bf16.msra.mxu0 %v1015
      %1322 = vmatprep.subr.bf16.mxu0 %v1021
      %1323 = vmatpush1.bf16.msra.mxu0 %v1020
      %1324 = vmatprep.subr.bf16.mxu0 %v1026
      %1325 = vmatpush1.bf16.msra.mxu0 %v1025
      %1326 = vmatprep.subr.bf16.mxu0 %v1031
      %1327 = vmatpush1.bf16.msra.mxu0 %v1030
      %1328 = vmatprep.subr.bf16.mxu0 %v1036
      %1329 = vmatpush1.bf16.msra.mxu0 %v1035
      %1330 = vmatprep.subr.bf16.mxu0 %v1041
      %1331 = vmatpush1.bf16.msra.mxu0 %v1040
      %1332 = vmatprep.subr.bf16.mxu0 %v1046
      %1333 = vmatpush1.bf16.msra.mxu0 %v1045
      %1334 = vmatprep.subr.bf16.mxu0 %v1051
      %1335 = vmatpush1.bf16.msra.mxu0 %v1050
      %1336 = vmatprep.subr.bf16.mxu0 %v1056
      %1337 = vmatpush1.bf16.msra.mxu0 %v1055
      %1338 = vmatprep.subr.bf16.mxu0 %v1061
      %1339 = vmatpush1.bf16.msra.mxu0 %v1060
      %1340 = vmatprep.subr.bf16.mxu0 %v1066
      %1341 = vmatpush1.bf16.msra.mxu0 %v1065
      %1342 = vmatprep.mubr.bf16.mxu0 %v463
      %1343 = vmatmul.mubr.bf16.gmra.mrb[0].mxu0 %v462
      %v1344 = vpop.f32.mrb[0].mxu0
      %v1345 = vadd.f32 0.0, %v1344
      %v1346 = vpop.f32.mrb[0].mxu0
      %v1347 = vadd.f32 0.0, %v1346
      %v1348 = vpop.f32.mrb[0].mxu0
      %v1349 = vadd.f32 0.0, %v1348
      %v1350 = vpop.f32.mrb[0].mxu0
      %v1351 = vadd.f32 0.0, %v1350
      %1352 = vmatprep.mubr.bf16.mxu0 %v467
      %1353 = vmatmul.mubr.bf16.gmra.mrb[0].mxu0 %v466
      %v1354 = vpop.f32.mrb[0].mxu0
      %v1355 = vadd.f32 0.0, %v1354
      %v1356 = vpop.f32.mrb[0].mxu0
      %v1357 = vadd.f32 0.0, %v1356
      %v1358 = vpop.f32.mrb[0].mxu0
      %v1359 = vadd.f32 0.0, %v1358
      %v1360 = vpop.f32.mrb[0].mxu0
      %v1361 = vadd.f32 0.0, %v1360
      %1362 = vdwg.mxu0
      %1363 = vmatprep.subr.bf16.mxu0 %v1071
      %1364 = vmatpush1.bf16.msra.mxu0 %v1070
      %1365 = vmatprep.subr.bf16.mxu0 %v1076
      %1366 = vmatpush1.bf16.msra.mxu0 %v1075
      %1367 = vmatprep.subr.bf16.mxu0 %v1081
      %1368 = vmatpush1.bf16.msra.mxu0 %v1080
      %1369 = vmatprep.subr.bf16.mxu0 %v1086
      %1370 = vmatpush1.bf16.msra.mxu0 %v1085
      %1371 = vmatprep.subr.bf16.mxu0 %v1091
      %1372 = vmatpush1.bf16.msra.mxu0 %v1090
      %1373 = vmatprep.subr.bf16.mxu0 %v1096
      %1374 = vmatpush1.bf16.msra.mxu0 %v1095
      %1375 = vmatprep.subr.bf16.mxu0 %v1101
      %1376 = vmatpush1.bf16.msra.mxu0 %v1100
      %1377 = vmatprep.subr.bf16.mxu0 %v1106
      %1378 = vmatpush1.bf16.msra.mxu0 %v1105
      %1379 = vmatprep.subr.bf16.mxu0 %v1111
      %1380 = vmatpush1.bf16.msra.mxu0 %v1110
      %1381 = vmatprep.subr.bf16.mxu0 %v1116
      %1382 = vmatpush1.bf16.msra.mxu0 %v1115
      %1383 = vmatprep.subr.bf16.mxu0 %v1121
      %1384 = vmatpush1.bf16.msra.mxu0 %v1120
      %1385 = vmatprep.subr.bf16.mxu0 %v1126
      %1386 = vmatpush1.bf16.msra.mxu0 %v1125
      %1387 = vmatprep.subr.bf16.mxu0 %v1131
      %1388 = vmatpush1.bf16.msra.mxu0 %v1130
      %1389 = vmatprep.subr.bf16.mxu0 %v1136
      %1390 = vmatpush1.bf16.msra.mxu0 %v1135
      %1391 = vmatprep.subr.bf16.mxu0 %v1141
      %1392 = vmatpush1.bf16.msra.mxu0 %v1140
      %1393 = vmatprep.subr.bf16.mxu0 %v1146
      %1394 = vmatpush1.bf16.msra.mxu0 %v1145
      %1395 = vmatprep.mubr.bf16.mxu0 %v465
      %1396 = vmatmul.mubr.bf16.gmra.mrb[0].mxu0 %v464
      %v1397 = vpop.f32.mrb[0].mxu0
      %v1398 = vadd.f32 %v1345, %v1397
      %v1399 = vpop.f32.mrb[0].mxu0
      %v1400 = vadd.f32 %v1347, %v1399
      %v1401 = vpop.f32.mrb[0].mxu0
      %v1402 = vadd.f32 %v1349, %v1401
      %v1403 = vpop.f32.mrb[0].mxu0
      %v1404 = vadd.f32 %v1351, %v1403
      %1405 = vmatprep.mubr.bf16.mxu0 %v469
      %1406 = vmatmul.mubr.bf16.gmra.mrb[0].mxu0 %v468
      %v1407 = vpop.f32.mrb[0].mxu0
      %v1408 = vadd.f32 %v1355, %v1407
      %v1409 = vpop.f32.mrb[0].mxu0
      %v1410 = vadd.f32 %v1357, %v1409
      %v1411 = vpop.f32.mrb[0].mxu0
      %v1412 = vadd.f32 %v1359, %v1411
      %v1413 = vpop.f32.mrb[0].mxu0
      %v1414 = vadd.f32 %v1361, %v1413
      %1415 = vdwg.mxu0
      %1416 = vmatprep.subr.bf16.mxu0 %v993
      %1417 = vmatpush1.bf16.msra.mxu0 %v992
      %1418 = vmatprep.subr.bf16.mxu0 %v998
      %1419 = vmatpush1.bf16.msra.mxu0 %v997
      %1420 = vmatprep.subr.bf16.mxu0 %v1003
      %1421 = vmatpush1.bf16.msra.mxu0 %v1002
      %1422 = vmatprep.subr.bf16.mxu0 %v1008
      %1423 = vmatpush1.bf16.msra.mxu0 %v1007
      %1424 = vmatprep.subr.bf16.mxu0 %v1013
      %1425 = vmatpush1.bf16.msra.mxu0 %v1012
      %1426 = vmatprep.subr.bf16.mxu0 %v1018
      %1427 = vmatpush1.bf16.msra.mxu0 %v1017
      %1428 = vmatprep.subr.bf16.mxu0 %v1023
      %1429 = vmatpush1.bf16.msra.mxu0 %v1022
      %1430 = vmatprep.subr.bf16.mxu0 %v1028
      %1431 = vmatpush1.bf16.msra.mxu0 %v1027
      %1432 = vmatprep.subr.bf16.mxu0 %v1033
      %1433 = vmatpush1.bf16.msra.mxu0 %v1032
      %1434 = vmatprep.subr.bf16.mxu0 %v1038
      %1435 = vmatpush1.bf16.msra.mxu0 %v1037
      %1436 = vmatprep.subr.bf16.mxu0 %v1043
      %1437 = vmatpush1.bf16.msra.mxu0 %v1042
      %1438 = vmatprep.subr.bf16.mxu0 %v1048
      %1439 = vmatpush1.bf16.msra.mxu0 %v1047
      %1440 = vmatprep.subr.bf16.mxu0 %v1053
      %1441 = vmatpush1.bf16.msra.mxu0 %v1052
      %1442 = vmatprep.subr.bf16.mxu0 %v1058
      %1443 = vmatpush1.bf16.msra.mxu0 %v1057
      %1444 = vmatprep.subr.bf16.mxu0 %v1063
      %1445 = vmatpush1.bf16.msra.mxu0 %v1062
      %1446 = vmatprep.subr.bf16.mxu0 %v1068
      %1447 = vmatpush1.bf16.msra.mxu0 %v1067
      %1448 = vmatprep.mubr.bf16.mxu0 %v463
      %1449 = vmatmul.mubr.bf16.gmra.mrb[0].mxu0 %v462
      %v1450 = vpop.f32.mrb[0].mxu0
      %v1451 = vadd.f32 0.0, %v1450
      %v1452 = vpop.f32.mrb[0].mxu0
      %v1453 = vadd.f32 0.0, %v1452
      %v1454 = vpop.f32.mrb[0].mxu0
      %v1455 = vadd.f32 0.0, %v1454
      %v1456 = vpop.f32.mrb[0].mxu0
      %v1457 = vadd.f32 0.0, %v1456
      %1458 = vmatprep.mubr.bf16.mxu0 %v467
      %1459 = vmatmul.mubr.bf16.gmra.mrb[0].mxu0 %v466
      %v1460 = vpop.f32.mrb[0].mxu0
      %v1461 = vadd.f32 0.0, %v1460
      %v1462 = vpop.f32.mrb[0].mxu0
      %v1463 = vadd.f32 0.0, %v1462
      %v1464 = vpop.f32.mrb[0].mxu0
      %v1465 = vadd.f32 0.0, %v1464
      %v1466 = vpop.f32.mrb[0].mxu0
      %v1467 = vadd.f32 0.0, %v1466
      %1468 = vdwg.mxu0
      %1469 = vmatprep.subr.bf16.mxu0 %v1073
      %1470 = vmatpush1.bf16.msra.mxu0 %v1072
      %1471 = vmatprep.subr.bf16.mxu0 %v1078
      %1472 = vmatpush1.bf16.msra.mxu0 %v1077
      %1473 = vmatprep.subr.bf16.mxu0 %v1083
      %1474 = vmatpush1.bf16.msra.mxu0 %v1082
      %1475 = vmatprep.subr.bf16.mxu0 %v1088
      %1476 = vmatpush1.bf16.msra.mxu0 %v1087
      %1477 = vmatprep.subr.bf16.mxu0 %v1093
      %1478 = vmatpush1.bf16.msra.mxu0 %v1092
      %1479 = vmatprep.subr.bf16.mxu0 %v1098
      %1480 = vmatpush1.bf16.msra.mxu0 %v1097
      %1481 = vmatprep.subr.bf16.mxu0 %v1103
      %1482 = vmatpush1.bf16.msra.mxu0 %v1102
      %1483 = vmatprep.subr.bf16.mxu0 %v1108
      %1484 = vmatpush1.bf16.msra.mxu0 %v1107
      %1485 = vmatprep.subr.bf16.mxu0 %v1113
      %1486 = vmatpush1.bf16.msra.mxu0 %v1112
      %1487 = vmatprep.subr.bf16.mxu0 %v1118
      %1488 = vmatpush1.bf16.msra.mxu0 %v1117
      %1489 = vmatprep.subr.bf16.mxu0 %v1123
      %1490 = vmatpush1.bf16.msra.mxu0 %v1122
      %1491 = vmatprep.subr.bf16.mxu0 %v1128
      %1492 = vmatpush1.bf16.msra.mxu0 %v1127
      %1493 = vmatprep.subr.bf16.mxu0 %v1133
      %1494 = vmatpush1.bf16.msra.mxu0 %v1132
      %1495 = vmatprep.subr.bf16.mxu0 %v1138
      %1496 = vmatpush1.bf16.msra.mxu0 %v1137
      %1497 = vmatprep.subr.bf16.mxu0 %v1143
      %1498 = vmatpush1.bf16.msra.mxu0 %v1142
      %1499 = vmatprep.subr.bf16.mxu0 %v1148
      %1500 = vmatpush1.bf16.msra.mxu0 %v1147
      %1501 = vmatprep.mubr.bf16.mxu0 %v465
      %1502 = vmatmul.mubr.bf16.gmra.mrb[0].mxu0 %v464
      %v1503 = vpop.f32.mrb[0].mxu0
      %v1504 = vadd.f32 %v1451, %v1503
      %v1505 = vpop.f32.mrb[0].mxu0
      %v1506 = vadd.f32 %v1453, %v1505
      %v1507 = vpop.f32.mrb[0].mxu0
      %v1508 = vadd.f32 %v1455, %v1507
      %v1509 = vpop.f32.mrb[0].mxu0
      %v1510 = vadd.f32 %v1457, %v1509
      %1511 = vmatprep.mubr.bf16.mxu0 %v469
      %1512 = vmatmul.mubr.bf16.gmra.mrb[0].mxu0 %v468
      %v1513 = vpop.f32.mrb[0].mxu0
      %v1514 = vadd.f32 %v1461, %v1513
      %v1515 = vpop.f32.mrb[0].mxu0
      %v1516 = vadd.f32 %v1463, %v1515
      %v1517 = vpop.f32.mrb[0].mxu0
      %v1518 = vadd.f32 %v1465, %v1517
      %v1519 = vpop.f32.mrb[0].mxu0
      %v1520 = vadd.f32 %v1467, %v1519
      %1521 = vdwg.mxu0
      %1522 = vmatprep.subr.bf16.mxu0 0
      %1523 = vmatpush1.bf16.msra.mxu0 %v994
      %1524 = vmatprep.subr.bf16.mxu0 0
      %1525 = vmatpush1.bf16.msra.mxu0 %v999
      %1526 = vmatprep.subr.bf16.mxu0 0
      %1527 = vmatpush1.bf16.msra.mxu0 %v1004
      %1528 = vmatprep.subr.bf16.mxu0 0
      %1529 = vmatpush1.bf16.msra.mxu0 %v1009
      %1530 = vmatprep.subr.bf16.mxu0 0
      %1531 = vmatpush1.bf16.msra.mxu0 %v1014
      %1532 = vmatprep.subr.bf16.mxu0 0
      %1533 = vmatpush1.bf16.msra.mxu0 %v1019
      %1534 = vmatprep.subr.bf16.mxu0 0
      %1535 = vmatpush1.bf16.msra.mxu0 %v1024
      %1536 = vmatprep.subr.bf16.mxu0 0
      %1537 = vmatpush1.bf16.msra.mxu0 %v1029
      %1538 = vmatprep.subr.bf16.mxu0 0
      %1539 = vmatpush1.bf16.msra.mxu0 %v1034
      %1540 = vmatprep.subr.bf16.mxu0 0
      %1541 = vmatpush1.bf16.msra.mxu0 %v1039
      %1542 = vmatprep.subr.bf16.mxu0 0
      %1543 = vmatpush1.bf16.msra.mxu0 %v1044
      %1544 = vmatprep.subr.bf16.mxu0 0
      %1545 = vmatpush1.bf16.msra.mxu0 %v1049
      %1546 = vmatprep.subr.bf16.mxu0 0
      %1547 = vmatpush1.bf16.msra.mxu0 %v1054
      %1548 = vmatprep.subr.bf16.mxu0 0
      %1549 = vmatpush1.bf16.msra.mxu0 %v1059
      %1550 = vmatprep.subr.bf16.mxu0 0
      %1551 = vmatpush1.bf16.msra.mxu0 %v1064
      %1552 = vmatprep.subr.bf16.mxu0 0
      %1553 = vmatpush1.bf16.msra.mxu0 %v1069
      %1554 = vmatprep.mubr.bf16.mxu0 %v463
      %1555 = vmatmul.mubr.bf16.gmra.mrb[0].mxu0 %v462
      %v1556 = vpop.f32.mrb[0].mxu0
      %v1557 = vadd.f32 0.0, %v1556
      %v1558 = vpop.f32.mrb[0].mxu0
      %v1559 = vpop.f32.mrb[0].mxu0
      %v1560 = vadd.f32 0.0, %v1559
      %v1561 = vpop.f32.mrb[0].mxu0
      %1562 = vmatprep.mubr.bf16.mxu0 %v467
      %1563 = vmatmul.mubr.bf16.gmra.mrb[0].mxu0 %v466
      %v1564 = vpop.f32.mrb[0].mxu0
      %v1565 = vadd.f32 0.0, %v1564
      %v1566 = vpop.f32.mrb[0].mxu0
      %v1567 = vpop.f32.mrb[0].mxu0
      %v1568 = vadd.f32 0.0, %v1567
      %v1569 = vpop.f32.mrb[0].mxu0
      %1570 = vdwg.mxu0
      %1571 = vmatprep.subr.bf16.mxu0 0
      %1572 = vmatpush1.bf16.msra.mxu0 %v1074
      %1573 = vmatprep.subr.bf16.mxu0 0
      %1574 = vmatpush1.bf16.msra.mxu0 %v1079
      %1575 = vmatprep.subr.bf16.mxu0 0
      %1576 = vmatpush1.bf16.msra.mxu0 %v1084
      %1577 = vmatprep.subr.bf16.mxu0 0
      %1578 = vmatpush1.bf16.msra.mxu0 %v1089
      %1579 = vmatprep.subr.bf16.mxu0 0
      %1580 = vmatpush1.bf16.msra.mxu0 %v1094
      %1581 = vmatprep.subr.bf16.mxu0 0
      %1582 = vmatpush1.bf16.msra.mxu0 %v1099
      %1583 = vmatprep.subr.bf16.mxu0 0
      %1584 = vmatpush1.bf16.msra.mxu0 %v1104
      %1585 = vmatprep.subr.bf16.mxu0 0
      %1586 = vmatpush1.bf16.msra.mxu0 %v1109
      %1587 = vmatprep.subr.bf16.mxu0 0
      %1588 = vmatpush1.bf16.msra.mxu0 %v1114
      %1589 = vmatprep.subr.bf16.mxu0 0
      %1590 = vmatpush1.bf16.msra.mxu0 %v1119
      %1591 = vmatprep.subr.bf16.mxu0 0
      %1592 = vmatpush1.bf16.msra.mxu0 %v1124
      %1593 = vmatprep.subr.bf16.mxu0 0
      %1594 = vmatpush1.bf16.msra.mxu0 %v1129
      %1595 = vmatprep.subr.bf16.mxu0 0
      %1596 = vmatpush1.bf16.msra.mxu0 %v1134
      %1597 = vmatprep.subr.bf16.mxu0 0
      %1598 = vmatpush1.bf16.msra.mxu0 %v1139
      %1599 = vmatprep.subr.bf16.mxu0 0
      %1600 = vmatpush1.bf16.msra.mxu0 %v1144
      %1601 = vmatprep.subr.bf16.mxu0 0
      %1602 = vmatpush1.bf16.msra.mxu0 %v1149
      %1603 = vmatprep.mubr.bf16.mxu0 %v465
      %1604 = vmatmul.mubr.bf16.gmra.mrb[0].mxu0 %v464
      %v1605 = vpop.f32.mrb[0].mxu0
      %v1606 = vadd.f32 %v1557, %v1605
      %v1607 = vpop.f32.mrb[0].mxu0
      %v1608 = vpop.f32.mrb[0].mxu0
      %v1609 = vadd.f32 %v1560, %v1608
      %v1610 = vpop.f32.mrb[0].mxu0
      %1611 = vmatprep.mubr.bf16.mxu0 %v469
      %1612 = vmatmul.mubr.bf16.gmra.mrb[0].mxu0 %v468
      %v1613 = vpop.f32.mrb[0].mxu0
      %v1614 = vadd.f32 %v1565, %v1613
      %v1615 = vpop.f32.mrb[0].mxu0
      %v1616 = vpop.f32.mrb[0].mxu0
      %v1617 = vadd.f32 %v1568, %v1616
      %v1618 = vpop.f32.mrb[0].mxu0
      %1619 = vdwg.mxu0
      %v1620 = vld [vmem:[%s2] sm:$0xff]
      %v1621 = vld [vmem:[%s2 + $0x8] sm:$0xff]
      %v1622 = vld [vmem:[%s2 + $0x10] sm:$0xff]
      %v1623 = vld [vmem:[%s2 + $0x18] sm:$0xff]
      %1625 = vset.pattern.permute.xlu0 0
      %1626 = vperm.xlu0 %1625, %v1620
      %v1627 = vpop.permute.xlu0 %1626
      %1630 = vset.pattern.permute.xlu0 0
      %1631 = vperm.xlu0 %1630, %v1621
      %v1632 = vpop.permute.xlu0 %1631
      %1635 = vset.pattern.permute.xlu0 0
      %1636 = vperm.xlu0 %1635, %v1622
      %v1637 = vpop.permute.xlu0 %1636
      %1640 = vset.pattern.permute.xlu0 0
      %1641 = vperm.xlu0 %1640, %v1623
      %v1642 = vpop.permute.xlu0 %1641
      %v1644 = vmul.f32 %v1398, %v1627
      %v1645 = vmul.f32 %v1400, %v1627
      %v1646 = vmul.f32 %v1504, %v1627
      %v1647 = vmul.f32 %v1506, %v1627
      %v1648 = vmul.f32 %v1606, %v1627
      %v1649 = vmul.f32 %v1402, %v1632
      %v1650 = vmul.f32 %v1404, %v1632
      %v1651 = vmul.f32 %v1508, %v1632
      %v1652 = vmul.f32 %v1510, %v1632
      %v1653 = vmul.f32 %v1609, %v1632
      %v1654 = vmul.f32 %v1408, %v1637
      %v1655 = vmul.f32 %v1410, %v1637
      %v1656 = vmul.f32 %v1514, %v1637
      %v1657 = vmul.f32 %v1516, %v1637
      %v1658 = vmul.f32 %v1614, %v1637
      %v1659 = vmul.f32 %v1412, %v1642
      %v1660 = vmul.f32 %v1414, %v1642
      %v1661 = vmul.f32 %v1518, %v1642
      %v1662 = vmul.f32 %v1520, %v1642
      %v1663 = vmul.f32 %v1617, %v1642
      %v1664 = vld [vmem:[%s3] sm:$0xff]
      %v1665 = vld [vmem:[%s3 + $0x8] sm:$0xff]
      %v1666 = vld [vmem:[%s3 + $0x10] sm:$0xff]
      %v1667 = vld [vmem:[%s3 + $0x18] sm:$0xff]
      %1669 = vset.pattern.permute.xlu0 0
      %1670 = vperm.xlu0 %1669, %v1664
      %v1671 = vpop.permute.xlu0 %1670
      %1674 = vset.pattern.permute.xlu0 0
      %1675 = vperm.xlu0 %1674, %v1665
      %v1676 = vpop.permute.xlu0 %1675
      %1679 = vset.pattern.permute.xlu0 0
      %1680 = vperm.xlu0 %1679, %v1666
      %v1681 = vpop.permute.xlu0 %1680
      %1684 = vset.pattern.permute.xlu0 0
      %1685 = vperm.xlu0 %1684, %v1667
      %v1686 = vpop.permute.xlu0 %1685
      %v1688 = vadd.f32 %v1644, %v1671
      %v1689 = vadd.f32 %v1645, %v1671
      %v1690 = vadd.f32 %v1646, %v1671
      %v1691 = vadd.f32 %v1647, %v1671
      %v1692 = vadd.f32 %v1648, %v1671
      %v1693 = vadd.f32 %v1649, %v1676
      %v1694 = vadd.f32 %v1650, %v1676
      %v1695 = vadd.f32 %v1651, %v1676
      %v1696 = vadd.f32 %v1652, %v1676
      %v1697 = vadd.f32 %v1653, %v1676
      %v1698 = vadd.f32 %v1654, %v1681
      %v1699 = vadd.f32 %v1655, %v1681
      %v1700 = vadd.f32 %v1656, %v1681
      %v1701 = vadd.f32 %v1657, %v1681
      %v1702 = vadd.f32 %v1658, %v1681
      %v1703 = vadd.f32 %v1659, %v1686
      %v1704 = vadd.f32 %v1660, %v1686
      %v1705 = vadd.f32 %v1661, %v1686
      %v1706 = vadd.f32 %v1662, %v1686
      %v1707 = vadd.f32 %v1663, %v1686
      %vm1708 = vcmp.gt.f32.partialorder %v1688, 0.0
      %vm1709 = vcmp.gt.f32.partialorder %v1689, 0.0
      %vm1710 = vcmp.gt.f32.partialorder %v1690, 0.0
      %vm1711 = vcmp.gt.f32.partialorder %v1691, 0.0
      %vm1712 = vcmp.gt.f32.partialorder %v1692, 0.0
      %vm1713 = vcmp.gt.f32.partialorder %v1693, 0.0
      %vm1714 = vcmp.gt.f32.partialorder %v1694, 0.0
      %vm1715 = vcmp.gt.f32.partialorder %v1695, 0.0
      %vm1716 = vcmp.gt.f32.partialorder %v1696, 0.0
      %vm1717 = vcmp.gt.f32.partialorder %v1697, 0.0
      %vm1718 = vcmp.gt.f32.partialorder %v1698, 0.0
      %vm1719 = vcmp.gt.f32.partialorder %v1699, 0.0
      %vm1720 = vcmp.gt.f32.partialorder %v1700, 0.0
      %vm1721 = vcmp.gt.f32.partialorder %v1701, 0.0
      %vm1722 = vcmp.gt.f32.partialorder %v1702, 0.0
      %vm1723 = vcmp.gt.f32.partialorder %v1703, 0.0
      %vm1724 = vcmp.gt.f32.partialorder %v1704, 0.0
      %vm1725 = vcmp.gt.f32.partialorder %v1705, 0.0
      %vm1726 = vcmp.gt.f32.partialorder %v1706, 0.0
      %vm1727 = vcmp.gt.f32.partialorder %v1707, 0.0
      %v1728 = vmul.f32 %v1688, 0.2
      %v1729 = vmul.f32 %v1689, 0.2
      %v1730 = vmul.f32 %v1690, 0.2
      %v1731 = vmul.f32 %v1691, 0.2
      %v1732 = vmul.f32 %v1692, 0.2
      %v1733 = vmul.f32 %v1693, 0.2
      %v1734 = vmul.f32 %v1694, 0.2
      %v1735 = vmul.f32 %v1695, 0.2
      %v1736 = vmul.f32 %v1696, 0.2
      %v1737 = vmul.f32 %v1697, 0.2
      %v1738 = vmul.f32 %v1698, 0.2
      %v1739 = vmul.f32 %v1699, 0.2
      %v1740 = vmul.f32 %v1700, 0.2
      %v1741 = vmul.f32 %v1701, 0.2
      %v1742 = vmul.f32 %v1702, 0.2
      %v1743 = vmul.f32 %v1703, 0.2
      %v1744 = vmul.f32 %v1704, 0.2
      %v1745 = vmul.f32 %v1705, 0.2
      %v1746 = vmul.f32 %v1706, 0.2
      %v1747 = vmul.f32 %v1707, 0.2
      %v1748 = vsel %vm1708, %v1688, %v1728
      %v1749 = vsel %vm1709, %v1689, %v1729
      %v1750 = vsel %vm1710, %v1690, %v1730
      %v1751 = vsel %vm1711, %v1691, %v1731
      %v1752 = vsel %vm1712, %v1692, %v1732
      %v1753 = vsel %vm1713, %v1693, %v1733
      %v1754 = vsel %vm1714, %v1694, %v1734
      %v1755 = vsel %vm1715, %v1695, %v1735
      %v1756 = vsel %vm1716, %v1696, %v1736
      %v1757 = vsel %vm1717, %v1697, %v1737
      %v1758 = vsel %vm1718, %v1698, %v1738
      %v1759 = vsel %vm1719, %v1699, %v1739
      %v1760 = vsel %vm1720, %v1700, %v1740
      %v1761 = vsel %vm1721, %v1701, %v1741
      %v1762 = vsel %vm1722, %v1702, %v1742
      %v1763 = vsel %vm1723, %v1703, %v1743
      %v1764 = vsel %vm1724, %v1704, %v1744
      %v1765 = vsel %vm1725, %v1705, %v1745
      %v1766 = vsel %vm1726, %v1706, %v1746
      %v1767 = vsel %vm1727, %v1707, %v1747
      %v1768 = vpack.c.bf16 %v1753, %v1748
      %v1769 = vpack.c.bf16 %v1754, %v1749
      %v1770 = vpack.c.bf16 %v1755, %v1750
      %v1771 = vpack.c.bf16 %v1756, %v1751
      %v1772 = vpack.c.bf16 %v1757, %v1752
      %v1773 = vpack.c.bf16 %v1763, %v1758
      %v1774 = vpack.c.bf16 %v1764, %v1759
      %v1775 = vpack.c.bf16 %v1765, %v1760
      %v1776 = vpack.c.bf16 %v1766, %v1761
      %v1777 = vpack.c.bf16 %v1767, %v1762
      %v1788 = vunpack.c.l.b16 %v1768
      %v1789 = vunpack.c.l.b16 %v1769
      %v1790 = vunpack.c.l.b16 %v1770
      %v1791 = vunpack.c.l.b16 %v1771
      %v1792 = vunpack.c.l.b16 %v1772
      %v1793 = vunpack.c.h.b16 %v1768
      %v1794 = vunpack.c.h.b16 %v1769
      %v1795 = vunpack.c.h.b16 %v1770
      %v1796 = vunpack.c.h.b16 %v1771
      %v1797 = vunpack.c.h.b16 %v1772
      %v1798 = vunpack.c.l.b16 %v1773
      %v1799 = vunpack.c.l.b16 %v1774
      %v1800 = vunpack.c.l.b16 %v1775
      %v1801 = vunpack.c.l.b16 %v1776
      %v1802 = vunpack.c.l.b16 %v1777
      %v1803 = vunpack.c.h.b16 %v1773
      %v1804 = vunpack.c.h.b16 %v1774
      %v1805 = vunpack.c.h.b16 %v1775
      %v1806 = vunpack.c.h.b16 %v1776
      %v1807 = vunpack.c.h.b16 %v1777
      %v1808 = vpack.c.b16 %v1789, %v1788
      %v1809 = vpack.c.b16 %v1791, %v1790
      %v1810 = vpack.c.b16 %v1792, %v1792
      %v1811 = vpack.c.b16 %v1794, %v1793
      %v1812 = vpack.c.b16 %v1796, %v1795
      %v1813 = vpack.c.b16 %v1797, %v1797
      %v1814 = vpack.c.b16 %v1799, %v1798
      %v1815 = vpack.c.b16 %v1801, %v1800
      %v1816 = vpack.c.b16 %v1802, %v1802
      %v1817 = vpack.c.b16 %v1804, %v1803
      %v1818 = vpack.c.b16 %v1806, %v1805
      %v1819 = vpack.c.b16 %v1807, %v1807
      %1832 = vst [vmem:[%s235] sm:$0xff] %v1808
      %1833 = vst [vmem:[%s235 + $0x8] sm:$0xff] %v1809
      %1834 = vst [vmem:[%s235 + $0x10] sm:$0xf] %v1810
      %1835 = vst [vmem:[%s235 + $0x14] sm:$0xff] %v1811
      %1836 = vst [vmem:[%s235 + $0x1c] sm:$0xff] %v1812
      %1837 = vst [vmem:[%s235 + $0x24] sm:$0xf] %v1813
      %1838 = vst [vmem:[%s235 + $0x28] sm:$0xff] %v1814
      %1839 = vst [vmem:[%s235 + $0x30] sm:$0xff] %v1815
      %1840 = vst [vmem:[%s235 + $0x38] sm:$0xf] %v1816
      %1841 = vst [vmem:[%s235 + $0x3c] sm:$0xff] %v1817
      %1842 = vst [vmem:[%s235 + $0x44] sm:$0xff] %v1818
      %1843 = vst [vmem:[%s235 + $0x4c] sm:$0xf] %v1819
      %s1844 = smul.u32 5, %s20
      %p1845 = scmp.lt.s32.totalorder %s19, 1
      %s1846 = scalar_select %p1845, %s19, 1
      %p1847 = scmp.lt.s32.totalorder %s1844, 4
      %s1848 = scalar_select %p1847, %s1844, 4
      %s1849 = smul.addr %s1846, 20
      %s1850 = sadd.s32 %s1848, %s1849
      %s1851 = smul.addr %s1850, 4
      %s1852 = scalar_lea.vmem %s4, %s1851
      // Predicated region
      $region37: #{discriminator_forward.8} parent=35 // pred_check
        %p1853 = pneg %p138
      $region38: #{discriminator_forward.8} parent=35 // pred_check_branch
        %1855 = sbr.rel (%p1853) target = $region40
      $region39: #{discriminator_forward.8} parent=35 // pred_region
        %s1856 = smul.u32 5, %s20
      $region40: #{discriminator_forward.8} parent=35 // pred_fallthru
        _
    $region36: #{discriminator_forward.8} parent=5 // pred_fallthru
      _
    %p1857 = scmp.le.s32.totalorder 2, %s10
    // Predicated region
    $region41: #{discriminator_forward.8} parent=5 // pred_check
      %p1858 = pneg %p1857
    $region42: #{discriminator_forward.8} parent=5 // pred_check_branch
      %1860 = sbr.rel (%p1858) target = $region44
    $region43: #{discriminator_forward.8} parent=5 // pred_region
      %s1861 = ssub.s32 %s10, 2
      // Predicated region
      $region45: #{discriminator_forward.8} parent=43 // pred_check
        %p1862 = pneg %p144
      $region46: #{discriminator_forward.8} parent=43 // pred_check_branch
        %1864 = sbr.rel (%p1862) target = $region48
      $region47: #{discriminator_forward.8} parent=43 // pred_region
        %s1865 = smul.u32 5, %s22
        %p1866 = scmp.lt.s32.totalorder %s21, 1
        %s1867 = scalar_select %p1866, %s21, 1
        %p1868 = scmp.lt.s32.totalorder %s1865, 4
        %s1869 = scalar_select %p1868, %s1865, 4
        %s1870 = smul.addr %s1867, 20
        %s1871 = sadd.s32 %s1869, %s1870
        %s1872 = smul.addr %s1871, 4
        %s1873 = scalar_lea.vmem %s4, %s1872
      $region48: #{discriminator_forward.8} parent=43 // pred_fallthru
        _
    $region44: #{discriminator_forward.8} parent=5 // pred_fallthru
      _
  $region6: #{discriminator_forward.8} parent=0 // loop_footer
    %s14 = sadd.s32 1, %s10
  $region7: #{discriminator_forward.8} parent=0 // loop_footer_branch
    %9 = sbr.rel target = $region3
  $region8: #{discriminator_forward.8} parent=0 // loop_exit
    _

// kernel: discriminator_forward.9
$region0: #{discriminator_forward.9}
  #allocation0 [shape = 'u32[]', space=smem, size = 0x4, offset = 0x4, fixed_abs, tag = 'smem constant byte address 0x4 - core index']
  #allocation1 [shape = 'u32[144,128]{1,0:T(1,128)}', space=vmem, size = 0x12000, scoped, tag = 'internal scratch']
  %s0 = inlined_call_operand.vmem [shape: bf16[2,512,640], index: 0, kind: input, shape index: {}]
  %s1 = inlined_call_operand.vmem [shape: bf16[8,512], index: 1, kind: input, shape index: {}]
  %s2 = inlined_call_operand.vmem [shape: f32[8,1], index: 2, kind: input, shape index: {}]
  %s3 = inlined_call_operand.vmem [shape: f32[640,128], index: 3, kind: input, shape index: {}]
  %s4 = inlined_call_operand.vmem [shape: f32[2,8,128], index: 4, kind: output, shape index: {}]
  %s5 = sld [smem:[#allocation0]]
  $region49: #{discriminator_forward.9} parent=0
    _
  %s7 = ssub.s32 1, %s5
  %s8 = scalar_select 0, %s7, %s5
  loop: start=0, step=1, limit=4
  $region2: #{discriminator_forward.9} parent=0 // loop_pre_header
    _
  $region3: #{discriminator_forward.9} parent=0 // loop_header
    %s10 = sphi 0, %s14
    %p11 = scmp.ge.s32.totalorder %s10, 4
    %s20 = sphi 0, %s22
    %s23 = sphi 0, %s20
    %s24 = sphi 0, %s23
    %s40 = sphi 0, %s24
    %s44 = sphi 0, %s44
    %s46 = sphi 0, %s44
    %s47 = sphi 0, %s46
    %s61 = sphi 0, %s47
    %s65 = sphi 0, %s65
    %s67 = sphi 0, %s65
    %s68 = sphi 0, %s67
    %s82 = sphi 0, %s68
    %s86 = sphi 0, %s86
    %s88 = sphi 0, %s86
    %s89 = sphi 0, %s88
    %s103 = sphi 0, %s89
    %s109 = sphi 0, %s111
    %s112 = sphi 0, %s109
    %s113 = sphi 0, %s112
    %s129 = sphi 0, %s113
  $region4: #{discriminator_forward.9} parent=0 // loop_header_branch
    %13 = sbr.rel (%p11) target = $region8
  $region5: #{discriminator_forward.9} parent=0 // loop_body
    %s15 = ssub.s32 %s10, 1
    %s16 = ssub.s32 %s10, 2
    %s17 = sadd.s32 %s10, 1
    %s18 = ssub.s32 %s10, %s17
    %p19 = scmp.eq.s32.totalorder %s18, 0
    %s21 = sadd.s32 %s20, 1
    %s22 = scalar_select %p19, %s20, %s21
    %p25 = pneg %p19
    %p26 = scmp.eq.s32.totalorder %s10, 1
    %p27 = por %p25, %p26
    %p28 = scmp.ne.s32.totalorder %s20, %s23
    %p29 = scmp.eq.s32.totalorder %s10, 0
    %p30 = por %p28, %p29
    %p31 = scmp.ne.s32.totalorder %s20, %s23
    %p32 = scmp.eq.s32.totalorder %s15, 1
    %p33 = por %p31, %p32
    %p34 = scmp.ne.s32.totalorder %s23, %s24
    %p35 = scmp.eq.s32.totalorder %s15, 0
    %p36 = por %p34, %p35
    %p37 = scmp.ne.s32.totalorder %s23, %s24
    %p38 = scmp.eq.s32.totalorder %s16, 1
    %p39 = por %p37, %p38
    %p41 = scmp.ne.s32.totalorder %s24, %s40
    %p42 = scmp.eq.s32.totalorder %s16, 0
    %p43 = por %p41, %p42
    %s45 = sadd.s32 %s44, 1
    %p48 = scmp.eq.s32.totalorder %s10, 1
    %p49 = scmp.ne.s32.totalorder %s44, %s46
    %p50 = scmp.eq.s32.totalorder %s10, 0
    %p51 = por %p49, %p50
    %p52 = scmp.ne.s32.totalorder %s44, %s46
    %p53 = scmp.eq.s32.totalorder %s15, 1
    %p54 = por %p52, %p53
    %p55 = scmp.ne.s32.totalorder %s46, %s47
    %p56 = scmp.eq.s32.totalorder %s15, 0
    %p57 = por %p55, %p56
    %p58 = scmp.ne.s32.totalorder %s46, %s47
    %p59 = scmp.eq.s32.totalorder %s16, 1
    %p60 = por %p58, %p59
    %p62 = scmp.ne.s32.totalorder %s47, %s61
    %p63 = scmp.eq.s32.totalorder %s16, 0
    %p64 = por %p62, %p63
    %s66 = sadd.s32 %s65, 1
    %p69 = scmp.eq.s32.totalorder %s10, 1
    %p70 = scmp.ne.s32.totalorder %s65, %s67
    %p71 = scmp.eq.s32.totalorder %s10, 0
    %p72 = por %p70, %p71
    %p73 = scmp.ne.s32.totalorder %s65, %s67
    %p74 = scmp.eq.s32.totalorder %s15, 1
    %p75 = por %p73, %p74
    %p76 = scmp.ne.s32.totalorder %s67, %s68
    %p77 = scmp.eq.s32.totalorder %s15, 0
    %p78 = por %p76, %p77
    %p79 = scmp.ne.s32.totalorder %s67, %s68
    %p80 = scmp.eq.s32.totalorder %s16, 1
    %p81 = por %p79, %p80
    %p83 = scmp.ne.s32.totalorder %s68, %s82
    %p84 = scmp.eq.s32.totalorder %s16, 0
    %p85 = por %p83, %p84
    %s87 = sadd.s32 %s86, 1
    %p90 = scmp.eq.s32.totalorder %s10, 1
    %p91 = scmp.ne.s32.totalorder %s86, %s88
    %p92 = scmp.eq.s32.totalorder %s10, 0
    %p93 = por %p91, %p92
    %p94 = scmp.ne.s32.totalorder %s86, %s88
    %p95 = scmp.eq.s32.totalorder %s15, 1
    %p96 = por %p94, %p95
    %p97 = scmp.ne.s32.totalorder %s88, %s89
    %p98 = scmp.eq.s32.totalorder %s15, 0
    %p99 = por %p97, %p98
    %p100 = scmp.ne.s32.totalorder %s88, %s89
    %p101 = scmp.eq.s32.totalorder %s16, 1
    %p102 = por %p100, %p101
    %p104 = scmp.ne.s32.totalorder %s89, %s103
    %p105 = scmp.eq.s32.totalorder %s16, 0
    %p106 = por %p104, %p105
    %s107 = ssub.s32 %s10, %s17
    %p108 = scmp.eq.s32.totalorder %s107, 0
    %s110 = sadd.s32 %s109, 1
    %s111 = scalar_select %p108, %s109, %s110
    %p114 = pneg %p108
    %p115 = scmp.eq.s32.totalorder %s10, 1
    %p116 = por %p114, %p115
    %p117 = scmp.ne.s32.totalorder %s109, %s112
    %p118 = scmp.eq.s32.totalorder %s10, 0
    %p119 = por %p117, %p118
    %p120 = scmp.ne.s32.totalorder %s109, %s112
    %p121 = scmp.eq.s32.totalorder %s15, 1
    %p122 = por %p120, %p121
    %p123 = scmp.ne.s32.totalorder %s112, %s113
    %p124 = scmp.eq.s32.totalorder %s15, 0
    %p125 = por %p123, %p124
    %p126 = scmp.ne.s32.totalorder %s112, %s113
    %p127 = scmp.eq.s32.totalorder %s16, 1
    %p128 = por %p126, %p127
    %p130 = scmp.ne.s32.totalorder %s113, %s129
    %p131 = scmp.eq.s32.totalorder %s16, 0
    %p132 = por %p130, %p131
    %p133 = scmp.le.s32.totalorder 1, %s10
    %p134 = scmp.lt.s32.totalorder %s10, 3
    %p135 = pnand %p133, %p134
    %p136 = pneg %p135
    // Predicated region
    $region9: #{discriminator_forward.9} parent=5 // pred_check
      _
    $region10: #{discriminator_forward.9} parent=5 // pred_check_branch
      %138 = sbr.rel (%p135) target = $region12
    $region11: #{discriminator_forward.9} parent=5 // pred_region
      %s139 = ssub.s32 %s10, 1
      // Predicated region
      $region13: #{discriminator_forward.9} parent=11 // pred_check
        %p140 = pneg %p57
      $region14: #{discriminator_forward.9} parent=11 // pred_check_branch
        %142 = sbr.rel (%p140) target = $region16
      $region15: #{discriminator_forward.9} parent=11 // pred_region
        _
      $region16: #{discriminator_forward.9} parent=11 // pred_fallthru
        _
      // Predicated region
      $region17: #{discriminator_forward.9} parent=11 // pred_check
        %p143 = pneg %p78
      $region18: #{discriminator_forward.9} parent=11 // pred_check_branch
        %145 = sbr.rel (%p143) target = $region20
      $region19: #{discriminator_forward.9} parent=11 // pred_region
        _
      $region20: #{discriminator_forward.9} parent=11 // pred_fallthru
        _
      // Predicated region
      $region21: #{discriminator_forward.9} parent=11 // pred_check
        %p146 = pneg %p99
      $region22: #{discriminator_forward.9} parent=11 // pred_check_branch
        %148 = sbr.rel (%p146) target = $region24
      $region23: #{discriminator_forward.9} parent=11 // pred_region
        _
      $region24: #{discriminator_forward.9} parent=11 // pred_fallthru
        _
    $region12: #{discriminator_forward.9} parent=5 // pred_fallthru
      _
    %p149 = scmp.lt.s32.totalorder %s10, 2
    // Predicated region
    $region25: #{discriminator_forward.9} parent=5 // pred_check
      %p150 = pneg %p149
    $region26: #{discriminator_forward.9} parent=5 // pred_check_branch
      %152 = sbr.rel (%p150) target = $region28
    $region27: #{discriminator_forward.9} parent=5 // pred_region
      // Predicated region
      $region29: #{discriminator_forward.9} parent=27 // pred_check
        %p153 = pneg %p30
      $region30: #{discriminator_forward.9} parent=27 // pred_check_branch
        %155 = sbr.rel (%p153) target = $region32
      $region31: #{discriminator_forward.9} parent=27 // pred_region
        %p156 = scmp.lt.s32.totalorder %s10, 1
        %s157 = scalar_select %p156, %s10, 1
        %s158 = smul.addr %s157, 320
        %s159 = smul.addr %s158, 4
        %s160 = scalar_lea.vmem %s0, %s159
      $region32: #{discriminator_forward.9} parent=27 // pred_fallthru
        _
    $region28: #{discriminator_forward.9} parent=5 // pred_fallthru
      _
    %p161 = scmp.le.s32.totalorder 1, %s10
    %p162 = scmp.lt.s32.totalorder %s10, 3
    %p163 = pnand %p161, %p162
    %p164 = pneg %p163
    // Predicated region
    $region33: #{discriminator_forward.9} parent=5 // pred_check
      _
    $region34: #{discriminator_forward.9} parent=5 // pred_check_branch
      %166 = sbr.rel (%p163) target = $region36
    $region35: #{discriminator_forward.9} parent=5 // pred_region
      %s167 = ssub.s32 %s10, 1
      %p168 = scmp.lt.s32.totalorder %s15, 1
      %s169 = scalar_select %p168, %s15, 1
      %s170 = smul.addr %s169, 320
      %s171 = smul.addr %s170, 4
      %s172 = scalar_lea.vmem %s0, %s171
      %p173 = pneg %p36
      %p174 = pneg %p33
      %p175 = pneg %p57
      %p176 = pneg %p54
      %p177 = pneg %p78
      %p178 = pneg %p75
      %p179 = pneg %p99
      %p180 = pneg %p96
      %p181 = pneg %p125
      %p182 = pneg %p122
      %p183 = scmp.lt.s32.totalorder %s15, 1
      %s184 = scalar_select %p183, %s15, 1
      %s185 = smul.addr %s184, 8
      %s186 = scalar_lea.vmem %s4, %s185
      %p187 = scmp.lt.s32.totalorder %s15, 1
      %s188 = scalar_select %p187, %s15, 1
      %s189 = smul.addr %s188, 320
      %s190 = smul.addr %s189, 4
      %s191 = scalar_lea.vmem %s0, %s190
      %p192 = scmp.lt.s32.totalorder %s15, 1
      %s193 = scalar_select %p192, %s15, 1
      %s194 = smul.addr %s193, 8
      %s195 = scalar_lea.vmem %s4, %s194
      %v197 = vld [vmem:[%s1] sm:$0xff]
      %v198 = vld [vmem:[%s1 + $0x8] sm:$0xff]
      %v199 = vld [vmem:[%s191] sm:$0xff]
      %v200 = vld [vmem:[%s191 + $0x8] sm:$0xff]
      %v201 = vld [vmem:[%s191 + $0x10] sm:$0xf]
      %v202 = vld [vmem:[%s191 + $0x14] sm:$0xff]
      %v203 = vld [vmem:[%s191 + $0x1c] sm:$0xff]
      %v204 = vld [vmem:[%s191 + $0x24] sm:$0xf]
      %v205 = vld [vmem:[%s191 + $0x28] sm:$0xff]
      %v206 = vld [vmem:[%s191 + $0x30] sm:$0xff]
      %v207 = vld [vmem:[%s191 + $0x38] sm:$0xf]
      %v208 = vld [vmem:[%s191 + $0x3c] sm:$0xff]
      %v209 = vld [vmem:[%s191 + $0x44] sm:$0xff]
      %v210 = vld [vmem:[%s191 + $0x4c] sm:$0xf]
      %v211 = vld [vmem:[%s191 + $0x50] sm:$0xff]
      %v212 = vld [vmem:[%s191 + $0x58] sm:$0xff]
      %v213 = vld [vmem:[%s191 + $0x60] sm:$0xf]
      %v214 = vld [vmem:[%s191 + $0x64] sm:$0xff]
      %v215 = vld [vmem:[%s191 + $0x6c] sm:$0xff]
      %v216 = vld [vmem:[%s191 + $0x74] sm:$0xf]
      %v217 = vld [vmem:[%s191 + $0x78] sm:$0xff]
      %v218 = vld [vmem:[%s191 + $0x80] sm:$0xff]
      %v219 = vld [vmem:[%s191 + $0x88] sm:$0xf]
      %v220 = vld [vmem:[%s191 + $0x8c] sm:$0xff]
      %v221 = vld [vmem:[%s191 + $0x94] sm:$0xff]
      %v222 = vld [vmem:[%s191 + $0x9c] sm:$0xf]
      %v223 = vld [vmem:[%s191 + $0xa0] sm:$0xff]
      %v224 = vld [vmem:[%s191 + $0xa8] sm:$0xff]
      %v225 = vld [vmem:[%s191 + $0xb0] sm:$0xf]
      %v226 = vld [vmem:[%s191 + $0xb4] sm:$0xff]
      %v227 = vld [vmem:[%s191 + $0xbc] sm:$0xff]
      %v228 = vld [vmem:[%s191 + $0xc4] sm:$0xf]
      %v229 = vld [vmem:[%s191 + $0xc8] sm:$0xff]
      %v230 = vld [vmem:[%s191 + $0xd0] sm:$0xff]
      %v231 = vld [vmem:[%s191 + $0xd8] sm:$0xf]
      %v232 = vld [vmem:[%s191 + $0xdc] sm:$0xff]
      %v233 = vld [vmem:[%s191 + $0xe4] sm:$0xff]
      %v234 = vld [vmem:[%s191 + $0xec] sm:$0xf]
      %v235 = vld [vmem:[%s191 + $0xf0] sm:$0xff]
      %v236 = vld [vmem:[%s191 + $0xf8] sm:$0xff]
      %v237 = vld [vmem:[%s191 + $0x100] sm:$0xf]
      %v238 = vld [vmem:[%s191 + $0x104] sm:$0xff]
      %v239 = vld [vmem:[%s191 + $0x10c] sm:$0xff]
      %v240 = vld [vmem:[%s191 + $0x114] sm:$0xf]
      %v241 = vld [vmem:[%s191 + $0x118] sm:$0xff]
      %v242 = vld [vmem:[%s191 + $0x120] sm:$0xff]
      %v243 = vld [vmem:[%s191 + $0x128] sm:$0xf]
      %v244 = vld [vmem:[%s191 + $0x12c] sm:$0xff]
      %v245 = vld [vmem:[%s191 + $0x134] sm:$0xff]
      %v246 = vld [vmem:[%s191 + $0x13c] sm:$0xf]
      %v247 = vld [vmem:[%s191 + $0x140] sm:$0xff]
      %v248 = vld [vmem:[%s191 + $0x148] sm:$0xff]
      %v249 = vld [vmem:[%s191 + $0x150] sm:$0xf]
      %v250 = vld [vmem:[%s191 + $0x154] sm:$0xff]
      %v251 = vld [vmem:[%s191 + $0x15c] sm:$0xff]
      %v252 = vld [vmem:[%s191 + $0x164] sm:$0xf]
      %v253 = vld [vmem:[%s191 + $0x168] sm:$0xff]
      %v254 = vld [vmem:[%s191 + $0x170] sm:$0xff]
      %v255 = vld [vmem:[%s191 + $0x178] sm:$0xf]
      %v256 = vld [vmem:[%s191 + $0x17c] sm:$0xff]
      %v257 = vld [vmem:[%s191 + $0x184] sm:$0xff]
      %v258 = vld [vmem:[%s191 + $0x18c] sm:$0xf]
      %v259 = vld [vmem:[%s191 + $0x190] sm:$0xff]
      %v260 = vld [vmem:[%s191 + $0x198] sm:$0xff]
      %v261 = vld [vmem:[%s191 + $0x1a0] sm:$0xf]
      %v262 = vld [vmem:[%s191 + $0x1a4] sm:$0xff]
      %v263 = vld [vmem:[%s191 + $0x1ac] sm:$0xff]
      %v264 = vld [vmem:[%s191 + $0x1b4] sm:$0xf]
      %v265 = vld [vmem:[%s191 + $0x1b8] sm:$0xff]
      %v266 = vld [vmem:[%s191 + $0x1c0] sm:$0xff]
      %v267 = vld [vmem:[%s191 + $0x1c8] sm:$0xf]
      %v268 = vld [vmem:[%s191 + $0x1cc] sm:$0xff]
      %v269 = vld [vmem:[%s191 + $0x1d4] sm:$0xff]
      %v270 = vld [vmem:[%s191 + $0x1dc] sm:$0xf]
      %v271 = vld [vmem:[%s191 + $0x1e0] sm:$0xff]
      %v272 = vld [vmem:[%s191 + $0x1e8] sm:$0xff]
      %v273 = vld [vmem:[%s191 + $0x1f0] sm:$0xf]
      %v274 = vld [vmem:[%s191 + $0x1f4] sm:$0xff]
      %v275 = vld [vmem:[%s191 + $0x1fc] sm:$0xff]
      %v276 = vld [vmem:[%s191 + $0x204] sm:$0xf]
      %v277 = vld [vmem:[%s191 + $0x208] sm:$0xff]
      %v278 = vld [vmem:[%s191 + $0x210] sm:$0xff]
      %v279 = vld [vmem:[%s191 + $0x218] sm:$0xf]
      %v280 = vld [vmem:[%s191 + $0x21c] sm:$0xff]
      %v281 = vld [vmem:[%s191 + $0x224] sm:$0xff]
      %v282 = vld [vmem:[%s191 + $0x22c] sm:$0xf]
      %v283 = vld [vmem:[%s191 + $0x230] sm:$0xff]
      %v284 = vld [vmem:[%s191 + $0x238] sm:$0xff]
      %v285 = vld [vmem:[%s191 + $0x240] sm:$0xf]
      %v286 = vld [vmem:[%s191 + $0x244] sm:$0xff]
      %v287 = vld [vmem:[%s191 + $0x24c] sm:$0xff]
      %v288 = vld [vmem:[%s191 + $0x254] sm:$0xf]
      %v289 = vld [vmem:[%s191 + $0x258] sm:$0xff]
      %v290 = vld [vmem:[%s191 + $0x260] sm:$0xff]
      %v291 = vld [vmem:[%s191 + $0x268] sm:$0xf]
      %v292 = vld [vmem:[%s191 + $0x26c] sm:$0xff]
      %v293 = vld [vmem:[%s191 + $0x274] sm:$0xff]
      %v294 = vld [vmem:[%s191 + $0x27c] sm:$0xf]
      %v295 = vld [vmem:[%s191 + $0x280] sm:$0xff]
      %v296 = vld [vmem:[%s191 + $0x288] sm:$0xff]
      %v297 = vld [vmem:[%s191 + $0x290] sm:$0xf]
      %v298 = vld [vmem:[%s191 + $0x294] sm:$0xff]
      %v299 = vld [vmem:[%s191 + $0x29c] sm:$0xff]
      %v300 = vld [vmem:[%s191 + $0x2a4] sm:$0xf]
      %v301 = vld [vmem:[%s191 + $0x2a8] sm:$0xff]
      %v302 = vld [vmem:[%s191 + $0x2b0] sm:$0xff]
      %v303 = vld [vmem:[%s191 + $0x2b8] sm:$0xf]
      %v304 = vld [vmem:[%s191 + $0x2bc] sm:$0xff]
      %v305 = vld [vmem:[%s191 + $0x2c4] sm:$0xff]
      %v306 = vld [vmem:[%s191 + $0x2cc] sm:$0xf]
      %v307 = vld [vmem:[%s191 + $0x2d0] sm:$0xff]
      %v308 = vld [vmem:[%s191 + $0x2d8] sm:$0xff]
      %v309 = vld [vmem:[%s191 + $0x2e0] sm:$0xf]
      %v310 = vld [vmem:[%s191 + $0x2e4] sm:$0xff]
      %v311 = vld [vmem:[%s191 + $0x2ec] sm:$0xff]
      %v312 = vld [vmem:[%s191 + $0x2f4] sm:$0xf]
      %v313 = vld [vmem:[%s191 + $0x2f8] sm:$0xff]
      %v314 = vld [vmem:[%s191 + $0x300] sm:$0xff]
      %v315 = vld [vmem:[%s191 + $0x308] sm:$0xf]
      %v316 = vld [vmem:[%s191 + $0x30c] sm:$0xff]
      %v317 = vld [vmem:[%s191 + $0x314] sm:$0xff]
      %v318 = vld [vmem:[%s191 + $0x31c] sm:$0xf]
      %v319 = vld [vmem:[%s191 + $0x320] sm:$0xff]
      %v320 = vld [vmem:[%s191 + $0x328] sm:$0xff]
      %v321 = vld [vmem:[%s191 + $0x330] sm:$0xf]
      %v322 = vld [vmem:[%s191 + $0x334] sm:$0xff]
      %v323 = vld [vmem:[%s191 + $0x33c] sm:$0xff]
      %v324 = vld [vmem:[%s191 + $0x344] sm:$0xf]
      %v325 = vld [vmem:[%s191 + $0x348] sm:$0xff]
      %v326 = vld [vmem:[%s191 + $0x350] sm:$0xff]
      %v327 = vld [vmem:[%s191 + $0x358] sm:$0xf]
      %v328 = vld [vmem:[%s191 + $0x35c] sm:$0xff]
      %v329 = vld [vmem:[%s191 + $0x364] sm:$0xff]
      %v330 = vld [vmem:[%s191 + $0x36c] sm:$0xf]
      %v331 = vld [vmem:[%s191 + $0x370] sm:$0xff]
      %v332 = vld [vmem:[%s191 + $0x378] sm:$0xff]
      %v333 = vld [vmem:[%s191 + $0x380] sm:$0xf]
      %v334 = vld [vmem:[%s191 + $0x384] sm:$0xff]
      %v335 = vld [vmem:[%s191 + $0x38c] sm:$0xff]
      %v336 = vld [vmem:[%s191 + $0x394] sm:$0xf]
      %v337 = vld [vmem:[%s191 + $0x398] sm:$0xff]
      %v338 = vld [vmem:[%s191 + $0x3a0] sm:$0xff]
      %v339 = vld [vmem:[%s191 + $0x3a8] sm:$0xf]
      %v340 = vld [vmem:[%s191 + $0x3ac] sm:$0xff]
      %v341 = vld [vmem:[%s191 + $0x3b4] sm:$0xff]
      %v342 = vld [vmem:[%s191 + $0x3bc] sm:$0xf]
      %v343 = vld [vmem:[%s191 + $0x3c0] sm:$0xff]
      %v344 = vld [vmem:[%s191 + $0x3c8] sm:$0xff]
      %v345 = vld [vmem:[%s191 + $0x3d0] sm:$0xf]
      %v346 = vld [vmem:[%s191 + $0x3d4] sm:$0xff]
      %v347 = vld [vmem:[%s191 + $0x3dc] sm:$0xff]
      %v348 = vld [vmem:[%s191 + $0x3e4] sm:$0xf]
      %v349 = vld [vmem:[%s191 + $0x3e8] sm:$0xff]
      %v350 = vld [vmem:[%s191 + $0x3f0] sm:$0xff]
      %v351 = vld [vmem:[%s191 + $0x3f8] sm:$0xf]
      %v352 = vld [vmem:[%s191 + $0x3fc] sm:$0xff]
      %v353 = vld [vmem:[%s191 + $0x404] sm:$0xff]
      %v354 = vld [vmem:[%s191 + $0x40c] sm:$0xf]
      %v355 = vld [vmem:[%s191 + $0x410] sm:$0xff]
      %v356 = vld [vmem:[%s191 + $0x418] sm:$0xff]
      %v357 = vld [vmem:[%s191 + $0x420] sm:$0xf]
      %v358 = vld [vmem:[%s191 + $0x424] sm:$0xff]
      %v359 = vld [vmem:[%s191 + $0x42c] sm:$0xff]
      %v360 = vld [vmem:[%s191 + $0x434] sm:$0xf]
      %v361 = vld [vmem:[%s191 + $0x438] sm:$0xff]
      %v362 = vld [vmem:[%s191 + $0x440] sm:$0xff]
      %v363 = vld [vmem:[%s191 + $0x448] sm:$0xf]
      %v364 = vld [vmem:[%s191 + $0x44c] sm:$0xff]
      %v365 = vld [vmem:[%s191 + $0x454] sm:$0xff]
      %v366 = vld [vmem:[%s191 + $0x45c] sm:$0xf]
      %v367 = vld [vmem:[%s191 + $0x460] sm:$0xff]
      %v368 = vld [vmem:[%s191 + $0x468] sm:$0xff]
      %v369 = vld [vmem:[%s191 + $0x470] sm:$0xf]
      %v370 = vld [vmem:[%s191 + $0x474] sm:$0xff]
      %v371 = vld [vmem:[%s191 + $0x47c] sm:$0xff]
      %v372 = vld [vmem:[%s191 + $0x484] sm:$0xf]
      %v373 = vld [vmem:[%s191 + $0x488] sm:$0xff]
      %v374 = vld [vmem:[%s191 + $0x490] sm:$0xff]
      %v375 = vld [vmem:[%s191 + $0x498] sm:$0xf]
      %v376 = vld [vmem:[%s191 + $0x49c] sm:$0xff]
      %v377 = vld [vmem:[%s191 + $0x4a4] sm:$0xff]
      %v378 = vld [vmem:[%s191 + $0x4ac] sm:$0xf]
      %v379 = vld [vmem:[%s191 + $0x4b0] sm:$0xff]
      %v380 = vld [vmem:[%s191 + $0x4b8] sm:$0xff]
      %v381 = vld [vmem:[%s191 + $0x4c0] sm:$0xf]
      %v382 = vld [vmem:[%s191 + $0x4c4] sm:$0xff]
      %v383 = vld [vmem:[%s191 + $0x4cc] sm:$0xff]
      %v384 = vld [vmem:[%s191 + $0x4d4] sm:$0xf]
      %v385 = vld [vmem:[%s191 + $0x4d8] sm:$0xff]
      %v386 = vld [vmem:[%s191 + $0x4e0] sm:$0xff]
      %v387 = vld [vmem:[%s191 + $0x4e8] sm:$0xf]
      %v388 = vld [vmem:[%s191 + $0x4ec] sm:$0xff]
      %v389 = vld [vmem:[%s191 + $0x4f4] sm:$0xff]
      %v390 = vld [vmem:[%s191 + $0x4fc] sm:$0xf]
      %v391 = vld [vmem:[%s2] sm:$0xff]
      %393 = vset.pattern.permute.xlu0 0
      %394 = vperm.xlu0 %393, %v391
      %v395 = vpop.permute.xlu0 %394
      %v399 = vunpack.c.l.b16 %v197
      %v400 = vunpack.c.h.b16 %v197
      %v401 = vunpack.c.l.b16 %v198
      %v402 = vunpack.c.h.b16 %v198
      %v403 = vpack.c.b16 %v399, %v399
      %v404 = vpack.c.b16 %v400, %v400
      %v405 = vpack.c.b16 %v401, %v401
      %v406 = vpack.c.b16 %v402, %v402
      %v603 = vunpack.c.l.b16 %v199
      %v604 = vunpack.c.h.b16 %v199
      %v605 = vunpack.c.l.b16 %v200
      %v606 = vunpack.c.h.b16 %v200
      %v607 = vunpack.c.l.b16 %v201
      %v608 = vunpack.c.l.b16 %v202
      %v609 = vunpack.c.h.b16 %v202
      %v610 = vunpack.c.l.b16 %v203
      %v611 = vunpack.c.h.b16 %v203
      %v612 = vunpack.c.l.b16 %v204
      %v613 = vunpack.c.l.b16 %v205
      %v614 = vunpack.c.h.b16 %v205
      %v615 = vunpack.c.l.b16 %v206
      %v616 = vunpack.c.h.b16 %v206
      %v617 = vunpack.c.l.b16 %v207
      %v618 = vunpack.c.l.b16 %v208
      %v619 = vunpack.c.h.b16 %v208
      %v620 = vunpack.c.l.b16 %v209
      %v621 = vunpack.c.h.b16 %v209
      %v622 = vunpack.c.l.b16 %v210
      %v623 = vunpack.c.l.b16 %v211
      %v624 = vunpack.c.h.b16 %v211
      %v625 = vunpack.c.l.b16 %v212
      %v626 = vunpack.c.h.b16 %v212
      %v627 = vunpack.c.l.b16 %v213
      %v628 = vunpack.c.l.b16 %v214
      %v629 = vunpack.c.h.b16 %v214
      %v630 = vunpack.c.l.b16 %v215
      %v631 = vunpack.c.h.b16 %v215
      %v632 = vunpack.c.l.b16 %v216
      %v633 = vunpack.c.l.b16 %v217
      %v634 = vunpack.c.h.b16 %v217
      %v635 = vunpack.c.l.b16 %v218
      %v636 = vunpack.c.h.b16 %v218
      %v637 = vunpack.c.l.b16 %v219
      %v638 = vunpack.c.l.b16 %v220
      %v639 = vunpack.c.h.b16 %v220
      %v640 = vunpack.c.l.b16 %v221
      %v641 = vunpack.c.h.b16 %v221
      %v642 = vunpack.c.l.b16 %v222
      %v643 = vunpack.c.l.b16 %v223
      %v644 = vunpack.c.h.b16 %v223
      %v645 = vunpack.c.l.b16 %v224
      %v646 = vunpack.c.h.b16 %v224
      %v647 = vunpack.c.l.b16 %v225
      %v648 = vunpack.c.l.b16 %v226
      %v649 = vunpack.c.h.b16 %v226
      %v650 = vunpack.c.l.b16 %v227
      %v651 = vunpack.c.h.b16 %v227
      %v652 = vunpack.c.l.b16 %v228
      %v653 = vunpack.c.l.b16 %v229
      %v654 = vunpack.c.h.b16 %v229
      %v655 = vunpack.c.l.b16 %v230
      %v656 = vunpack.c.h.b16 %v230
      %v657 = vunpack.c.l.b16 %v231
      %v658 = vunpack.c.l.b16 %v232
      %v659 = vunpack.c.h.b16 %v232
      %v660 = vunpack.c.l.b16 %v233
      %v661 = vunpack.c.h.b16 %v233
      %v662 = vunpack.c.l.b16 %v234
      %v663 = vunpack.c.l.b16 %v235
      %v664 = vunpack.c.h.b16 %v235
      %v665 = vunpack.c.l.b16 %v236
      %v666 = vunpack.c.h.b16 %v236
      %v667 = vunpack.c.l.b16 %v237
      %v668 = vunpack.c.l.b16 %v238
      %v669 = vunpack.c.h.b16 %v238
      %v670 = vunpack.c.l.b16 %v239
      %v671 = vunpack.c.h.b16 %v239
      %v672 = vunpack.c.l.b16 %v240
      %v673 = vunpack.c.l.b16 %v241
      %v674 = vunpack.c.h.b16 %v241
      %v675 = vunpack.c.l.b16 %v242
      %v676 = vunpack.c.h.b16 %v242
      %v677 = vunpack.c.l.b16 %v243
      %v678 = vunpack.c.l.b16 %v244
      %v679 = vunpack.c.h.b16 %v244
      %v680 = vunpack.c.l.b16 %v245
      %v681 = vunpack.c.h.b16 %v245
      %v682 = vunpack.c.l.b16 %v246
      %v683 = vunpack.c.l.b16 %v247
      %v684 = vunpack.c.h.b16 %v247
      %v685 = vunpack.c.l.b16 %v248
      %v686 = vunpack.c.h.b16 %v248
      %v687 = vunpack.c.l.b16 %v249
      %v688 = vunpack.c.l.b16 %v250
      %v689 = vunpack.c.h.b16 %v250
      %v690 = vunpack.c.l.b16 %v251
      %v691 = vunpack.c.h.b16 %v251
      %v692 = vunpack.c.l.b16 %v252
      %v693 = vunpack.c.l.b16 %v253
      %v694 = vunpack.c.h.b16 %v253
      %v695 = vunpack.c.l.b16 %v254
      %v696 = vunpack.c.h.b16 %v254
      %v697 = vunpack.c.l.b16 %v255
      %v698 = vunpack.c.l.b16 %v256
      %v699 = vunpack.c.h.b16 %v256
      %v700 = vunpack.c.l.b16 %v257
      %v701 = vunpack.c.h.b16 %v257
      %v702 = vunpack.c.l.b16 %v258
      %v703 = vunpack.c.l.b16 %v259
      %v704 = vunpack.c.h.b16 %v259
      %v705 = vunpack.c.l.b16 %v260
      %v706 = vunpack.c.h.b16 %v260
      %v707 = vunpack.c.l.b16 %v261
      %v708 = vunpack.c.l.b16 %v262
      %v709 = vunpack.c.h.b16 %v262
      %v710 = vunpack.c.l.b16 %v263
      %v711 = vunpack.c.h.b16 %v263
      %v712 = vunpack.c.l.b16 %v264
      %v713 = vunpack.c.l.b16 %v265
      %v714 = vunpack.c.h.b16 %v265
      %v715 = vunpack.c.l.b16 %v266
      %v716 = vunpack.c.h.b16 %v266
      %v717 = vunpack.c.l.b16 %v267
      %v718 = vunpack.c.l.b16 %v268
      %v719 = vunpack.c.h.b16 %v268
      %v720 = vunpack.c.l.b16 %v269
      %v721 = vunpack.c.h.b16 %v269
      %v722 = vunpack.c.l.b16 %v270
      %v723 = vunpack.c.l.b16 %v271
      %v724 = vunpack.c.h.b16 %v271
      %v725 = vunpack.c.l.b16 %v272
      %v726 = vunpack.c.h.b16 %v272
      %v727 = vunpack.c.l.b16 %v273
      %v728 = vunpack.c.l.b16 %v274
      %v729 = vunpack.c.h.b16 %v274
      %v730 = vunpack.c.l.b16 %v275
      %v731 = vunpack.c.h.b16 %v275
      %v732 = vunpack.c.l.b16 %v276
      %v733 = vunpack.c.l.b16 %v277
      %v734 = vunpack.c.h.b16 %v277
      %v735 = vunpack.c.l.b16 %v278
      %v736 = vunpack.c.h.b16 %v278
      %v737 = vunpack.c.l.b16 %v279
      %v738 = vunpack.c.l.b16 %v280
      %v739 = vunpack.c.h.b16 %v280
      %v740 = vunpack.c.l.b16 %v281
      %v741 = vunpack.c.h.b16 %v281
      %v742 = vunpack.c.l.b16 %v282
      %v743 = vunpack.c.l.b16 %v283
      %v744 = vunpack.c.h.b16 %v283
      %v745 = vunpack.c.l.b16 %v284
      %v746 = vunpack.c.h.b16 %v284
      %v747 = vunpack.c.l.b16 %v285
      %v748 = vunpack.c.l.b16 %v286
      %v749 = vunpack.c.h.b16 %v286
      %v750 = vunpack.c.l.b16 %v287
      %v751 = vunpack.c.h.b16 %v287
      %v752 = vunpack.c.l.b16 %v288
      %v753 = vunpack.c.l.b16 %v289
      %v754 = vunpack.c.h.b16 %v289
      %v755 = vunpack.c.l.b16 %v290
      %v756 = vunpack.c.h.b16 %v290
      %v757 = vunpack.c.l.b16 %v291
      %v758 = vunpack.c.l.b16 %v292
      %v759 = vunpack.c.h.b16 %v292
      %v760 = vunpack.c.l.b16 %v293
      %v761 = vunpack.c.h.b16 %v293
      %v762 = vunpack.c.l.b16 %v294
      %v763 = vunpack.c.l.b16 %v295
      %v764 = vunpack.c.h.b16 %v295
      %v765 = vunpack.c.l.b16 %v296
      %v766 = vunpack.c.h.b16 %v296
      %v767 = vunpack.c.l.b16 %v297
      %v768 = vunpack.c.l.b16 %v298
      %v769 = vunpack.c.h.b16 %v298
      %v770 = vunpack.c.l.b16 %v299
      %v771 = vunpack.c.h.b16 %v299
      %v772 = vunpack.c.l.b16 %v300
      %v773 = vunpack.c.l.b16 %v301
      %v774 = vunpack.c.h.b16 %v301
      %v775 = vunpack.c.l.b16 %v302
      %v776 = vunpack.c.h.b16 %v302
      %v777 = vunpack.c.l.b16 %v303
      %v778 = vunpack.c.l.b16 %v304
      %v779 = vunpack.c.h.b16 %v304
      %v780 = vunpack.c.l.b16 %v305
      %v781 = vunpack.c.h.b16 %v305
      %v782 = vunpack.c.l.b16 %v306
      %v783 = vunpack.c.l.b16 %v307
      %v784 = vunpack.c.h.b16 %v307
      %v785 = vunpack.c.l.b16 %v308
      %v786 = vunpack.c.h.b16 %v308
      %v787 = vunpack.c.l.b16 %v309
      %v788 = vunpack.c.l.b16 %v310
      %v789 = vunpack.c.h.b16 %v310
      %v790 = vunpack.c.l.b16 %v311
      %v791 = vunpack.c.h.b16 %v311
      %v792 = vunpack.c.l.b16 %v312
      %v793 = vunpack.c.l.b16 %v313
      %v794 = vunpack.c.h.b16 %v313
      %v795 = vunpack.c.l.b16 %v314
      %v796 = vunpack.c.h.b16 %v314
      %v797 = vunpack.c.l.b16 %v315
      %v798 = vunpack.c.l.b16 %v316
      %v799 = vunpack.c.h.b16 %v316
      %v800 = vunpack.c.l.b16 %v317
      %v801 = vunpack.c.h.b16 %v317
      %v802 = vunpack.c.l.b16 %v318
      %v803 = vunpack.c.l.b16 %v319
      %v804 = vunpack.c.h.b16 %v319
      %v805 = vunpack.c.l.b16 %v320
      %v806 = vunpack.c.h.b16 %v320
      %v807 = vunpack.c.l.b16 %v321
      %v808 = vunpack.c.l.b16 %v322
      %v809 = vunpack.c.h.b16 %v322
      %v810 = vunpack.c.l.b16 %v323
      %v811 = vunpack.c.h.b16 %v323
      %v812 = vunpack.c.l.b16 %v324
      %v813 = vunpack.c.l.b16 %v325
      %v814 = vunpack.c.h.b16 %v325
      %v815 = vunpack.c.l.b16 %v326
      %v816 = vunpack.c.h.b16 %v326
      %v817 = vunpack.c.l.b16 %v327
      %v818 = vunpack.c.l.b16 %v328
      %v819 = vunpack.c.h.b16 %v328
      %v820 = vunpack.c.l.b16 %v329
      %v821 = vunpack.c.h.b16 %v329
      %v822 = vunpack.c.l.b16 %v330
      %v823 = vunpack.c.l.b16 %v331
      %v824 = vunpack.c.h.b16 %v331
      %v825 = vunpack.c.l.b16 %v332
      %v826 = vunpack.c.h.b16 %v332
      %v827 = vunpack.c.l.b16 %v333
      %v828 = vunpack.c.l.b16 %v334
      %v829 = vunpack.c.h.b16 %v334
      %v830 = vunpack.c.l.b16 %v335
      %v831 = vunpack.c.h.b16 %v335
      %v832 = vunpack.c.l.b16 %v336
      %v833 = vunpack.c.l.b16 %v337
      %v834 = vunpack.c.h.b16 %v337
      %v835 = vunpack.c.l.b16 %v338
      %v836 = vunpack.c.h.b16 %v338
      %v837 = vunpack.c.l.b16 %v339
      %v838 = vunpack.c.l.b16 %v340
      %v839 = vunpack.c.h.b16 %v340
      %v840 = vunpack.c.l.b16 %v341
      %v841 = vunpack.c.h.b16 %v341
      %v842 = vunpack.c.l.b16 %v342
      %v843 = vunpack.c.l.b16 %v343
      %v844 = vunpack.c.h.b16 %v343
      %v845 = vunpack.c.l.b16 %v344
      %v846 = vunpack.c.h.b16 %v344
      %v847 = vunpack.c.l.b16 %v345
      %v848 = vunpack.c.l.b16 %v346
      %v849 = vunpack.c.h.b16 %v346
      %v850 = vunpack.c.l.b16 %v347
      %v851 = vunpack.c.h.b16 %v347
      %v852 = vunpack.c.l.b16 %v348
      %v853 = vunpack.c.l.b16 %v349
      %v854 = vunpack.c.h.b16 %v349
      %v855 = vunpack.c.l.b16 %v350
      %v856 = vunpack.c.h.b16 %v350
      %v857 = vunpack.c.l.b16 %v351
      %v858 = vunpack.c.l.b16 %v352
      %v859 = vunpack.c.h.b16 %v352
      %v860 = vunpack.c.l.b16 %v353
      %v861 = vunpack.c.h.b16 %v353
      %v862 = vunpack.c.l.b16 %v354
      %v863 = vunpack.c.l.b16 %v355
      %v864 = vunpack.c.h.b16 %v355
      %v865 = vunpack.c.l.b16 %v356
      %v866 = vunpack.c.h.b16 %v356
      %v867 = vunpack.c.l.b16 %v357
      %v868 = vunpack.c.l.b16 %v358
      %v869 = vunpack.c.h.b16 %v358
      %v870 = vunpack.c.l.b16 %v359
      %v871 = vunpack.c.h.b16 %v359
      %v872 = vunpack.c.l.b16 %v360
      %v873 = vunpack.c.l.b16 %v361
      %v874 = vunpack.c.h.b16 %v361
      %v875 = vunpack.c.l.b16 %v362
      %v876 = vunpack.c.h.b16 %v362
      %v877 = vunpack.c.l.b16 %v363
      %v878 = vunpack.c.l.b16 %v364
      %v879 = vunpack.c.h.b16 %v364
      %v880 = vunpack.c.l.b16 %v365
      %v881 = vunpack.c.h.b16 %v365
      %v882 = vunpack.c.l.b16 %v366
      %v883 = vunpack.c.l.b16 %v367
      %v884 = vunpack.c.h.b16 %v367
      %v885 = vunpack.c.l.b16 %v368
      %v886 = vunpack.c.h.b16 %v368
      %v887 = vunpack.c.l.b16 %v369
      %v888 = vunpack.c.l.b16 %v370
      %v889 = vunpack.c.h.b16 %v370
      %v890 = vunpack.c.l.b16 %v371
      %v891 = vunpack.c.h.b16 %v371
      %v892 = vunpack.c.l.b16 %v372
      %v893 = vunpack.c.l.b16 %v373
      %v894 = vunpack.c.h.b16 %v373
      %v895 = vunpack.c.l.b16 %v374
      %v896 = vunpack.c.h.b16 %v374
      %v897 = vunpack.c.l.b16 %v375
      %v898 = vunpack.c.l.b16 %v376
      %v899 = vunpack.c.h.b16 %v376
      %v900 = vunpack.c.l.b16 %v377
      %v901 = vunpack.c.h.b16 %v377
      %v902 = vunpack.c.l.b16 %v378
      %v903 = vunpack.c.l.b16 %v379
      %v904 = vunpack.c.h.b16 %v379
      %v905 = vunpack.c.l.b16 %v380
      %v906 = vunpack.c.h.b16 %v380
      %v907 = vunpack.c.l.b16 %v381
      %v908 = vunpack.c.l.b16 %v382
      %v909 = vunpack.c.h.b16 %v382
      %v910 = vunpack.c.l.b16 %v383
      %v911 = vunpack.c.h.b16 %v383
      %v912 = vunpack.c.l.b16 %v384
      %v913 = vunpack.c.l.b16 %v385
      %v914 = vunpack.c.h.b16 %v385
      %v915 = vunpack.c.l.b16 %v386
      %v916 = vunpack.c.h.b16 %v386
      %v917 = vunpack.c.l.b16 %v387
      %v918 = vunpack.c.l.b16 %v388
      %v919 = vunpack.c.h.b16 %v388
      %v920 = vunpack.c.l.b16 %v389
      %v921 = vunpack.c.h.b16 %v389
      %v922 = vunpack.c.l.b16 %v390
      %v923 = vpack.c.b16 %v608, %v603
      %v924 = vpack.c.b16 %v609, %v604
      %v925 = vpack.c.b16 %v610, %v605
      %v926 = vpack.c.b16 %v611, %v606
      %v927 = vpack.c.b16 %v612, %v607
      %v928 = vpack.c.b16 %v618, %v613
      %v929 = vpack.c.b16 %v619, %v614
      %v930 = vpack.c.b16 %v620, %v615
      %v931 = vpack.c.b16 %v621, %v616
      %v932 = vpack.c.b16 %v622, %v617
      %v933 = vpack.c.b16 %v628, %v623
      %v934 = vpack.c.b16 %v629, %v624
      %v935 = vpack.c.b16 %v630, %v625
      %v936 = vpack.c.b16 %v631, %v626
      %v937 = vpack.c.b16 %v632, %v627
      %v938 = vpack.c.b16 %v638, %v633
      %v939 = vpack.c.b16 %v639, %v634
      %v940 = vpack.c.b16 %v640, %v635
      %v941 = vpack.c.b16 %v641, %v636
      %v942 = vpack.c.b16 %v642, %v637
      %v943 = vpack.c.b16 %v648, %v643
      %v944 = vpack.c.b16 %v649, %v644
      %v945 = vpack.c.b16 %v650, %v645
      %v946 = vpack.c.b16 %v651, %v646
      %v947 = vpack.c.b16 %v652, %v647
      %v948 = vpack.c.b16 %v658, %v653
      %v949 = vpack.c.b16 %v659, %v654
      %v950 = vpack.c.b16 %v660, %v655
      %v951 = vpack.c.b16 %v661, %v656
      %v952 = vpack.c.b16 %v662, %v657
      %v953 = vpack.c.b16 %v668, %v663
      %v954 = vpack.c.b16 %v669, %v664
      %v955 = vpack.c.b16 %v670, %v665
      %v956 = vpack.c.b16 %v671, %v666
      %v957 = vpack.c.b16 %v672, %v667
      %v958 = vpack.c.b16 %v678, %v673
      %v959 = vpack.c.b16 %v679, %v674
      %v960 = vpack.c.b16 %v680, %v675
      %v961 = vpack.c.b16 %v681, %v676
      %v962 = vpack.c.b16 %v682, %v677
      %v963 = vpack.c.b16 %v688, %v683
      %v964 = vpack.c.b16 %v689, %v684
      %v965 = vpack.c.b16 %v690, %v685
      %v966 = vpack.c.b16 %v691, %v686
      %v967 = vpack.c.b16 %v692, %v687
      %v968 = vpack.c.b16 %v698, %v693
      %v969 = vpack.c.b16 %v699, %v694
      %v970 = vpack.c.b16 %v700, %v695
      %v971 = vpack.c.b16 %v701, %v696
      %v972 = vpack.c.b16 %v702, %v697
      %v973 = vpack.c.b16 %v708, %v703
      %v974 = vpack.c.b16 %v709, %v704
      %v975 = vpack.c.b16 %v710, %v705
      %v976 = vpack.c.b16 %v711, %v706
      %v977 = vpack.c.b16 %v712, %v707
      %v978 = vpack.c.b16 %v718, %v713
      %v979 = vpack.c.b16 %v719, %v714
      %v980 = vpack.c.b16 %v720, %v715
      %v981 = vpack.c.b16 %v721, %v716
      %v982 = vpack.c.b16 %v722, %v717
      %v983 = vpack.c.b16 %v728, %v723
      %v984 = vpack.c.b16 %v729, %v724
      %v985 = vpack.c.b16 %v730, %v725
      %v986 = vpack.c.b16 %v731, %v726
      %v987 = vpack.c.b16 %v732, %v727
      %v988 = vpack.c.b16 %v738, %v733
      %v989 = vpack.c.b16 %v739, %v734
      %v990 = vpack.c.b16 %v740, %v735
      %v991 = vpack.c.b16 %v741, %v736
      %v992 = vpack.c.b16 %v742, %v737
      %v993 = vpack.c.b16 %v748, %v743
      %v994 = vpack.c.b16 %v749, %v744
      %v995 = vpack.c.b16 %v750, %v745
      %v996 = vpack.c.b16 %v751, %v746
      %v997 = vpack.c.b16 %v752, %v747
      %v998 = vpack.c.b16 %v758, %v753
      %v999 = vpack.c.b16 %v759, %v754
      %v1000 = vpack.c.b16 %v760, %v755
      %v1001 = vpack.c.b16 %v761, %v756
      %v1002 = vpack.c.b16 %v762, %v757
      %v1003 = vpack.c.b16 %v768, %v763
      %v1004 = vpack.c.b16 %v769, %v764
      %v1005 = vpack.c.b16 %v770, %v765
      %v1006 = vpack.c.b16 %v771, %v766
      %v1007 = vpack.c.b16 %v772, %v767
      %v1008 = vpack.c.b16 %v778, %v773
      %v1009 = vpack.c.b16 %v779, %v774
      %v1010 = vpack.c.b16 %v780, %v775
      %v1011 = vpack.c.b16 %v781, %v776
      %v1012 = vpack.c.b16 %v782, %v777
      %v1013 = vpack.c.b16 %v788, %v783
      %v1014 = vpack.c.b16 %v789, %v784
      %v1015 = vpack.c.b16 %v790, %v785
      %v1016 = vpack.c.b16 %v791, %v786
      %v1017 = vpack.c.b16 %v792, %v787
      %v1018 = vpack.c.b16 %v798, %v793
      %v1019 = vpack.c.b16 %v799, %v794
      %v1020 = vpack.c.b16 %v800, %v795
      %v1021 = vpack.c.b16 %v801, %v796
      %v1022 = vpack.c.b16 %v802, %v797
      %v1023 = vpack.c.b16 %v808, %v803
      %v1024 = vpack.c.b16 %v809, %v804
      %v1025 = vpack.c.b16 %v810, %v805
      %v1026 = vpack.c.b16 %v811, %v806
      %v1027 = vpack.c.b16 %v812, %v807
      %v1028 = vpack.c.b16 %v818, %v813
      %v1029 = vpack.c.b16 %v819, %v814
      %v1030 = vpack.c.b16 %v820, %v815
      %v1031 = vpack.c.b16 %v821, %v816
      %v1032 = vpack.c.b16 %v822, %v817
      %v1033 = vpack.c.b16 %v828, %v823
      %v1034 = vpack.c.b16 %v829, %v824
      %v1035 = vpack.c.b16 %v830, %v825
      %v1036 = vpack.c.b16 %v831, %v826
      %v1037 = vpack.c.b16 %v832, %v827
      %v1038 = vpack.c.b16 %v838, %v833
      %v1039 = vpack.c.b16 %v839, %v834
      %v1040 = vpack.c.b16 %v840, %v835
      %v1041 = vpack.c.b16 %v841, %v836
      %v1042 = vpack.c.b16 %v842, %v837
      %v1043 = vpack.c.b16 %v848, %v843
      %v1044 = vpack.c.b16 %v849, %v844
      %v1045 = vpack.c.b16 %v850, %v845
      %v1046 = vpack.c.b16 %v851, %v846
      %v1047 = vpack.c.b16 %v852, %v847
      %v1048 = vpack.c.b16 %v858, %v853
      %v1049 = vpack.c.b16 %v859, %v854
      %v1050 = vpack.c.b16 %v860, %v855
      %v1051 = vpack.c.b16 %v861, %v856
      %v1052 = vpack.c.b16 %v862, %v857
      %v1053 = vpack.c.b16 %v868, %v863
      %v1054 = vpack.c.b16 %v869, %v864
      %v1055 = vpack.c.b16 %v870, %v865
      %v1056 = vpack.c.b16 %v871, %v866
      %v1057 = vpack.c.b16 %v872, %v867
      %v1058 = vpack.c.b16 %v878, %v873
      %v1059 = vpack.c.b16 %v879, %v874
      %v1060 = vpack.c.b16 %v880, %v875
      %v1061 = vpack.c.b16 %v881, %v876
      %v1062 = vpack.c.b16 %v882, %v877
      %v1063 = vpack.c.b16 %v888, %v883
      %v1064 = vpack.c.b16 %v889, %v884
      %v1065 = vpack.c.b16 %v890, %v885
      %v1066 = vpack.c.b16 %v891, %v886
      %v1067 = vpack.c.b16 %v892, %v887
      %v1068 = vpack.c.b16 %v898, %v893
      %v1069 = vpack.c.b16 %v899, %v894
      %v1070 = vpack.c.b16 %v900, %v895
      %v1071 = vpack.c.b16 %v901, %v896
      %v1072 = vpack.c.b16 %v902, %v897
      %v1073 = vpack.c.b16 %v908, %v903
      %v1074 = vpack.c.b16 %v909, %v904
      %v1075 = vpack.c.b16 %v910, %v905
      %v1076 = vpack.c.b16 %v911, %v906
      %v1077 = vpack.c.b16 %v912, %v907
      %v1078 = vpack.c.b16 %v918, %v913
      %v1079 = vpack.c.b16 %v919, %v914
      %v1080 = vpack.c.b16 %v920, %v915
      %v1081 = vpack.c.b16 %v921, %v916
      %v1082 = vpack.c.b16 %v922, %v917
      %1243 = vmatprep.subr.bf16.mxu0 %v924
      %1244 = vmatpush1.bf16.msra.mxu0 %v923
      %1245 = vmatprep.subr.bf16.mxu0 %v929
      %1246 = vmatpush1.bf16.msra.mxu0 %v928
      %1247 = vmatprep.subr.bf16.mxu0 %v934
      %1248 = vmatpush1.bf16.msra.mxu0 %v933
      %1249 = vmatprep.subr.bf16.mxu0 %v939
      %1250 = vmatpush1.bf16.msra.mxu0 %v938
      %1251 = vmatprep.subr.bf16.mxu0 %v944
      %1252 = vmatpush1.bf16.msra.mxu0 %v943
      %1253 = vmatprep.subr.bf16.mxu0 %v949
      %1254 = vmatpush1.bf16.msra.mxu0 %v948
      %1255 = vmatprep.subr.bf16.mxu0 %v954
      %1256 = vmatpush1.bf16.msra.mxu0 %v953
      %1257 = vmatprep.subr.bf16.mxu0 %v959
      %1258 = vmatpush1.bf16.msra.mxu0 %v958
      %1259 = vmatprep.subr.bf16.mxu0 %v964
      %1260 = vmatpush1.bf16.msra.mxu0 %v963
      %1261 = vmatprep.subr.bf16.mxu0 %v969
      %1262 = vmatpush1.bf16.msra.mxu0 %v968
      %1263 = vmatprep.subr.bf16.mxu0 %v974
      %1264 = vmatpush1.bf16.msra.mxu0 %v973
      %1265 = vmatprep.subr.bf16.mxu0 %v979
      %1266 = vmatpush1.bf16.msra.mxu0 %v978
      %1267 = vmatprep.subr.bf16.mxu0 %v984
      %1268 = vmatpush1.bf16.msra.mxu0 %v983
      %1269 = vmatprep.subr.bf16.mxu0 %v989
      %1270 = vmatpush1.bf16.msra.mxu0 %v988
      %1271 = vmatprep.subr.bf16.mxu0 %v994
      %1272 = vmatpush1.bf16.msra.mxu0 %v993
      %1273 = vmatprep.subr.bf16.mxu0 %v999
      %1274 = vmatpush1.bf16.msra.mxu0 %v998
      %1275 = vmatprep.mubr.bf16.mxu0 %v404
      %1276 = vmatmul.mubr.bf16.gmra.mrb[0].mxu0 %v403
      %v1277 = vpop.f32.mrb[0].mxu0
      %v1278 = vadd.f32 %v395, %v1277
      %v1279 = vpop.f32.mrb[0].mxu0
      %v1280 = vadd.f32 %v395, %v1279
      %v1281 = vpop.f32.mrb[0].mxu0
      %v1282 = vpop.f32.mrb[0].mxu0
      %1283 = vdwg.mxu0
      %1284 = vmatprep.subr.bf16.mxu0 %v1004
      %1285 = vmatpush1.bf16.msra.mxu0 %v1003
      %1286 = vmatprep.subr.bf16.mxu0 %v1009
      %1287 = vmatpush1.bf16.msra.mxu0 %v1008
      %1288 = vmatprep.subr.bf16.mxu0 %v1014
      %1289 = vmatpush1.bf16.msra.mxu0 %v1013
      %1290 = vmatprep.subr.bf16.mxu0 %v1019
      %1291 = vmatpush1.bf16.msra.mxu0 %v1018
      %1292 = vmatprep.subr.bf16.mxu0 %v1024
      %1293 = vmatpush1.bf16.msra.mxu0 %v1023
      %1294 = vmatprep.subr.bf16.mxu0 %v1029
      %1295 = vmatpush1.bf16.msra.mxu0 %v1028
      %1296 = vmatprep.subr.bf16.mxu0 %v1034
      %1297 = vmatpush1.bf16.msra.mxu0 %v1033
      %1298 = vmatprep.subr.bf16.mxu0 %v1039
      %1299 = vmatpush1.bf16.msra.mxu0 %v1038
      %1300 = vmatprep.subr.bf16.mxu0 %v1044
      %1301 = vmatpush1.bf16.msra.mxu0 %v1043
      %1302 = vmatprep.subr.bf16.mxu0 %v1049
      %1303 = vmatpush1.bf16.msra.mxu0 %v1048
      %1304 = vmatprep.subr.bf16.mxu0 %v1054
      %1305 = vmatpush1.bf16.msra.mxu0 %v1053
      %1306 = vmatprep.subr.bf16.mxu0 %v1059
      %1307 = vmatpush1.bf16.msra.mxu0 %v1058
      %1308 = vmatprep.subr.bf16.mxu0 %v1064
      %1309 = vmatpush1.bf16.msra.mxu0 %v1063
      %1310 = vmatprep.subr.bf16.mxu0 %v1069
      %1311 = vmatpush1.bf16.msra.mxu0 %v1068
      %1312 = vmatprep.subr.bf16.mxu0 %v1074
      %1313 = vmatpush1.bf16.msra.mxu0 %v1073
      %1314 = vmatprep.subr.bf16.mxu0 %v1079
      %1315 = vmatpush1.bf16.msra.mxu0 %v1078
      %1316 = vmatprep.mubr.bf16.mxu0 %v406
      %1317 = vmatmul.mubr.bf16.gmra.mrb[0].mxu0 %v405
      %v1318 = vpop.f32.mrb[0].mxu0
      %v1319 = vadd.f32 %v1278, %v1318
      %v1320 = vpop.f32.mrb[0].mxu0
      %v1321 = vadd.f32 %v1280, %v1320
      %v1322 = vpop.f32.mrb[0].mxu0
      %v1323 = vpop.f32.mrb[0].mxu0
      %1324 = vdwg.mxu0
      %1325 = vmatprep.subr.bf16.mxu0 %v926
      %1326 = vmatpush1.bf16.msra.mxu0 %v925
      %1327 = vmatprep.subr.bf16.mxu0 %v931
      %1328 = vmatpush1.bf16.msra.mxu0 %v930
      %1329 = vmatprep.subr.bf16.mxu0 %v936
      %1330 = vmatpush1.bf16.msra.mxu0 %v935
      %1331 = vmatprep.subr.bf16.mxu0 %v941
      %1332 = vmatpush1.bf16.msra.mxu0 %v940
      %1333 = vmatprep.subr.bf16.mxu0 %v946
      %1334 = vmatpush1.bf16.msra.mxu0 %v945
      %1335 = vmatprep.subr.bf16.mxu0 %v951
      %1336 = vmatpush1.bf16.msra.mxu0 %v950
      %1337 = vmatprep.subr.bf16.mxu0 %v956
      %1338 = vmatpush1.bf16.msra.mxu0 %v955
      %1339 = vmatprep.subr.bf16.mxu0 %v961
      %1340 = vmatpush1.bf16.msra.mxu0 %v960
      %1341 = vmatprep.subr.bf16.mxu0 %v966
      %1342 = vmatpush1.bf16.msra.mxu0 %v965
      %1343 = vmatprep.subr.bf16.mxu0 %v971
      %1344 = vmatpush1.bf16.msra.mxu0 %v970
      %1345 = vmatprep.subr.bf16.mxu0 %v976
      %1346 = vmatpush1.bf16.msra.mxu0 %v975
      %1347 = vmatprep.subr.bf16.mxu0 %v981
      %1348 = vmatpush1.bf16.msra.mxu0 %v980
      %1349 = vmatprep.subr.bf16.mxu0 %v986
      %1350 = vmatpush1.bf16.msra.mxu0 %v985
      %1351 = vmatprep.subr.bf16.mxu0 %v991
      %1352 = vmatpush1.bf16.msra.mxu0 %v990
      %1353 = vmatprep.subr.bf16.mxu0 %v996
      %1354 = vmatpush1.bf16.msra.mxu0 %v995
      %1355 = vmatprep.subr.bf16.mxu0 %v1001
      %1356 = vmatpush1.bf16.msra.mxu0 %v1000
      %1357 = vmatprep.mubr.bf16.mxu0 %v404
      %1358 = vmatmul.mubr.bf16.gmra.mrb[0].mxu0 %v403
      %v1359 = vpop.f32.mrb[0].mxu0
      %v1360 = vadd.f32 %v395, %v1359
      %v1361 = vpop.f32.mrb[0].mxu0
      %v1362 = vadd.f32 %v395, %v1361
      %v1363 = vpop.f32.mrb[0].mxu0
      %v1364 = vpop.f32.mrb[0].mxu0
      %1365 = vdwg.mxu0
      %1366 = vmatprep.subr.bf16.mxu0 %v1006
      %1367 = vmatpush1.bf16.msra.mxu0 %v1005
      %1368 = vmatprep.subr.bf16.mxu0 %v1011
      %1369 = vmatpush1.bf16.msra.mxu0 %v1010
      %1370 = vmatprep.subr.bf16.mxu0 %v1016
      %1371 = vmatpush1.bf16.msra.mxu0 %v1015
      %1372 = vmatprep.subr.bf16.mxu0 %v1021
      %1373 = vmatpush1.bf16.msra.mxu0 %v1020
      %1374 = vmatprep.subr.bf16.mxu0 %v1026
      %1375 = vmatpush1.bf16.msra.mxu0 %v1025
      %1376 = vmatprep.subr.bf16.mxu0 %v1031
      %1377 = vmatpush1.bf16.msra.mxu0 %v1030
      %1378 = vmatprep.subr.bf16.mxu0 %v1036
      %1379 = vmatpush1.bf16.msra.mxu0 %v1035
      %1380 = vmatprep.subr.bf16.mxu0 %v1041
      %1381 = vmatpush1.bf16.msra.mxu0 %v1040
      %1382 = vmatprep.subr.bf16.mxu0 %v1046
      %1383 = vmatpush1.bf16.msra.mxu0 %v1045
      %1384 = vmatprep.subr.bf16.mxu0 %v1051
      %1385 = vmatpush1.bf16.msra.mxu0 %v1050
      %1386 = vmatprep.subr.bf16.mxu0 %v1056
      %1387 = vmatpush1.bf16.msra.mxu0 %v1055
      %1388 = vmatprep.subr.bf16.mxu0 %v1061
      %1389 = vmatpush1.bf16.msra.mxu0 %v1060
      %1390 = vmatprep.subr.bf16.mxu0 %v1066
      %1391 = vmatpush1.bf16.msra.mxu0 %v1065
      %1392 = vmatprep.subr.bf16.mxu0 %v1071
      %1393 = vmatpush1.bf16.msra.mxu0 %v1070
      %1394 = vmatprep.subr.bf16.mxu0 %v1076
      %1395 = vmatpush1.bf16.msra.mxu0 %v1075
      %1396 = vmatprep.subr.bf16.mxu0 %v1081
      %1397 = vmatpush1.bf16.msra.mxu0 %v1080
      %1398 = vmatprep.mubr.bf16.mxu0 %v406
      %1399 = vmatmul.mubr.bf16.gmra.mrb[0].mxu0 %v405
      %v1400 = vpop.f32.mrb[0].mxu0
      %v1401 = vadd.f32 %v1360, %v1400
      %v1402 = vpop.f32.mrb[0].mxu0
      %v1403 = vadd.f32 %v1362, %v1402
      %v1404 = vpop.f32.mrb[0].mxu0
      %v1405 = vpop.f32.mrb[0].mxu0
      %1406 = vdwg.mxu0
      %1407 = vmatprep.subr.bf16.mxu0 0
      %1408 = vmatpush1.bf16.msra.mxu0 %v927
      %1409 = vmatprep.subr.bf16.mxu0 0
      %1410 = vmatpush1.bf16.msra.mxu0 %v932
      %1411 = vmatprep.subr.bf16.mxu0 0
      %1412 = vmatpush1.bf16.msra.mxu0 %v937
      %1413 = vmatprep.subr.bf16.mxu0 0
      %1414 = vmatpush1.bf16.msra.mxu0 %v942
      %1415 = vmatprep.subr.bf16.mxu0 0
      %1416 = vmatpush1.bf16.msra.mxu0 %v947
      %1417 = vmatprep.subr.bf16.mxu0 0
      %1418 = vmatpush1.bf16.msra.mxu0 %v952
      %1419 = vmatprep.subr.bf16.mxu0 0
      %1420 = vmatpush1.bf16.msra.mxu0 %v957
      %1421 = vmatprep.subr.bf16.mxu0 0
      %1422 = vmatpush1.bf16.msra.mxu0 %v962
      %1423 = vmatprep.subr.bf16.mxu0 0
      %1424 = vmatpush1.bf16.msra.mxu0 %v967
      %1425 = vmatprep.subr.bf16.mxu0 0
      %1426 = vmatpush1.bf16.msra.mxu0 %v972
      %1427 = vmatprep.subr.bf16.mxu0 0
      %1428 = vmatpush1.bf16.msra.mxu0 %v977
      %1429 = vmatprep.subr.bf16.mxu0 0
      %1430 = vmatpush1.bf16.msra.mxu0 %v982
      %1431 = vmatprep.subr.bf16.mxu0 0
      %1432 = vmatpush1.bf16.msra.mxu0 %v987
      %1433 = vmatprep.subr.bf16.mxu0 0
      %1434 = vmatpush1.bf16.msra.mxu0 %v992
      %1435 = vmatprep.subr.bf16.mxu0 0
      %1436 = vmatpush1.bf16.msra.mxu0 %v997
      %1437 = vmatprep.subr.bf16.mxu0 0
      %1438 = vmatpush1.bf16.msra.mxu0 %v1002
      %1439 = vmatprep.mubr.bf16.mxu0 %v404
      %1440 = vmatmul.mubr.bf16.gmra.mrb[0].mxu0 %v403
      %v1441 = vpop.f32.mrb[0].mxu0
      %v1442 = vadd.f32 %v395, %v1441
      %v1443 = vpop.f32.mrb[0].mxu0
      %v1444 = vpop.f32.mrb[0].mxu0
      %v1445 = vpop.f32.mrb[0].mxu0
      %1446 = vdwg.mxu0
      %1447 = vmatprep.subr.bf16.mxu0 0
      %1448 = vmatpush1.bf16.msra.mxu0 %v1007
      %1449 = vmatprep.subr.bf16.mxu0 0
      %1450 = vmatpush1.bf16.msra.mxu0 %v1012
      %1451 = vmatprep.subr.bf16.mxu0 0
      %1452 = vmatpush1.bf16.msra.mxu0 %v1017
      %1453 = vmatprep.subr.bf16.mxu0 0
      %1454 = vmatpush1.bf16.msra.mxu0 %v1022
      %1455 = vmatprep.subr.bf16.mxu0 0
      %1456 = vmatpush1.bf16.msra.mxu0 %v1027
      %1457 = vmatprep.subr.bf16.mxu0 0
      %1458 = vmatpush1.bf16.msra.mxu0 %v1032
      %1459 = vmatprep.subr.bf16.mxu0 0
      %1460 = vmatpush1.bf16.msra.mxu0 %v1037
      %1461 = vmatprep.subr.bf16.mxu0 0
      %1462 = vmatpush1.bf16.msra.mxu0 %v1042
      %1463 = vmatprep.subr.bf16.mxu0 0
      %1464 = vmatpush1.bf16.msra.mxu0 %v1047
      %1465 = vmatprep.subr.bf16.mxu0 0
      %1466 = vmatpush1.bf16.msra.mxu0 %v1052
      %1467 = vmatprep.subr.bf16.mxu0 0
      %1468 = vmatpush1.bf16.msra.mxu0 %v1057
      %1469 = vmatprep.subr.bf16.mxu0 0
      %1470 = vmatpush1.bf16.msra.mxu0 %v1062
      %1471 = vmatprep.subr.bf16.mxu0 0
      %1472 = vmatpush1.bf16.msra.mxu0 %v1067
      %1473 = vmatprep.subr.bf16.mxu0 0
      %1474 = vmatpush1.bf16.msra.mxu0 %v1072
      %1475 = vmatprep.subr.bf16.mxu0 0
      %1476 = vmatpush1.bf16.msra.mxu0 %v1077
      %1477 = vmatprep.subr.bf16.mxu0 0
      %1478 = vmatpush1.bf16.msra.mxu0 %v1082
      %1479 = vmatprep.mubr.bf16.mxu0 %v406
      %1480 = vmatmul.mubr.bf16.gmra.mrb[0].mxu0 %v405
      %v1481 = vpop.f32.mrb[0].mxu0
      %v1482 = vadd.f32 %v1442, %v1481
      %v1483 = vpop.f32.mrb[0].mxu0
      %v1484 = vpop.f32.mrb[0].mxu0
      %v1485 = vpop.f32.mrb[0].mxu0
      %1486 = vdwg.mxu0
      %v1487 = vld [vmem:[%s3] sm:$0xff]
      %v1488 = vld [vmem:[%s3 + $0x8] sm:$0xff]
      %v1489 = vld [vmem:[%s3 + $0x10] sm:$0xff]
      %v1490 = vld [vmem:[%s3 + $0x18] sm:$0xff]
      %v1491 = vld [vmem:[%s3 + $0x20] sm:$0xff]
      %v1492 = vld [vmem:[%s3 + $0x28] sm:$0xff]
      %v1493 = vld [vmem:[%s3 + $0x30] sm:$0xff]
      %v1494 = vld [vmem:[%s3 + $0x38] sm:$0xff]
      %v1495 = vld [vmem:[%s3 + $0x40] sm:$0xff]
      %v1496 = vld [vmem:[%s3 + $0x48] sm:$0xff]
      %v1497 = vld [vmem:[%s3 + $0x50] sm:$0xff]
      %v1498 = vld [vmem:[%s3 + $0x58] sm:$0xff]
      %v1499 = vld [vmem:[%s3 + $0x60] sm:$0xff]
      %v1500 = vld [vmem:[%s3 + $0x68] sm:$0xff]
      %v1501 = vld [vmem:[%s3 + $0x70] sm:$0xff]
      %v1502 = vld [vmem:[%s3 + $0x78] sm:$0xff]
      %v1503 = vld [vmem:[%s3 + $0x80] sm:$0xff]
      %v1504 = vld [vmem:[%s3 + $0x88] sm:$0xff]
      %v1505 = vld [vmem:[%s3 + $0x90] sm:$0xff]
      %v1506 = vld [vmem:[%s3 + $0x98] sm:$0xff]
      %v1507 = vld [vmem:[%s3 + $0xa0] sm:$0xff]
      %v1508 = vld [vmem:[%s3 + $0xa8] sm:$0xff]
      %v1509 = vld [vmem:[%s3 + $0xb0] sm:$0xff]
      %v1510 = vld [vmem:[%s3 + $0xb8] sm:$0xff]
      %v1511 = vld [vmem:[%s3 + $0xc0] sm:$0xff]
      %v1512 = vld [vmem:[%s3 + $0xc8] sm:$0xff]
      %v1513 = vld [vmem:[%s3 + $0xd0] sm:$0xff]
      %v1514 = vld [vmem:[%s3 + $0xd8] sm:$0xff]
      %v1515 = vld [vmem:[%s3 + $0xe0] sm:$0xff]
      %v1516 = vld [vmem:[%s3 + $0xe8] sm:$0xff]
      %v1517 = vld [vmem:[%s3 + $0xf0] sm:$0xff]
      %v1518 = vld [vmem:[%s3 + $0xf8] sm:$0xff]
      %v1519 = vld [vmem:[%s3 + $0x100] sm:$0xff]
      %v1520 = vld [vmem:[%s3 + $0x108] sm:$0xff]
      %v1521 = vld [vmem:[%s3 + $0x110] sm:$0xff]
      %v1522 = vld [vmem:[%s3 + $0x118] sm:$0xff]
      %v1523 = vld [vmem:[%s3 + $0x120] sm:$0xff]
      %v1524 = vld [vmem:[%s3 + $0x128] sm:$0xff]
      %v1525 = vld [vmem:[%s3 + $0x130] sm:$0xff]
      %v1526 = vld [vmem:[%s3 + $0x138] sm:$0xff]
      %v1527 = vld [vmem:[%s3 + $0x140] sm:$0xff]
      %v1528 = vld [vmem:[%s3 + $0x148] sm:$0xff]
      %v1529 = vld [vmem:[%s3 + $0x150] sm:$0xff]
      %v1530 = vld [vmem:[%s3 + $0x158] sm:$0xff]
      %v1531 = vld [vmem:[%s3 + $0x160] sm:$0xff]
      %v1532 = vld [vmem:[%s3 + $0x168] sm:$0xff]
      %v1533 = vld [vmem:[%s3 + $0x170] sm:$0xff]
      %v1534 = vld [vmem:[%s3 + $0x178] sm:$0xff]
      %v1535 = vld [vmem:[%s3 + $0x180] sm:$0xff]
      %v1536 = vld [vmem:[%s3 + $0x188] sm:$0xff]
      %v1537 = vld [vmem:[%s3 + $0x190] sm:$0xff]
      %v1538 = vld [vmem:[%s3 + $0x198] sm:$0xff]
      %v1539 = vld [vmem:[%s3 + $0x1a0] sm:$0xff]
      %v1540 = vld [vmem:[%s3 + $0x1a8] sm:$0xff]
      %v1541 = vld [vmem:[%s3 + $0x1b0] sm:$0xff]
      %v1542 = vld [vmem:[%s3 + $0x1b8] sm:$0xff]
      %v1543 = vld [vmem:[%s3 + $0x1c0] sm:$0xff]
      %v1544 = vld [vmem:[%s3 + $0x1c8] sm:$0xff]
      %v1545 = vld [vmem:[%s3 + $0x1d0] sm:$0xff]
      %v1546 = vld [vmem:[%s3 + $0x1d8] sm:$0xff]
      %v1547 = vld [vmem:[%s3 + $0x1e0] sm:$0xff]
      %v1548 = vld [vmem:[%s3 + $0x1e8] sm:$0xff]
      %v1549 = vld [vmem:[%s3 + $0x1f0] sm:$0xff]
      %v1550 = vld [vmem:[%s3 + $0x1f8] sm:$0xff]
      %v1551 = vld [vmem:[%s3 + $0x200] sm:$0xff]
      %v1552 = vld [vmem:[%s3 + $0x208] sm:$0xff]
      %v1553 = vld [vmem:[%s3 + $0x210] sm:$0xff]
      %v1554 = vld [vmem:[%s3 + $0x218] sm:$0xff]
      %v1555 = vld [vmem:[%s3 + $0x220] sm:$0xff]
      %v1556 = vld [vmem:[%s3 + $0x228] sm:$0xff]
      %v1557 = vld [vmem:[%s3 + $0x230] sm:$0xff]
      %v1558 = vld [vmem:[%s3 + $0x238] sm:$0xff]
      %v1559 = vld [vmem:[%s3 + $0x240] sm:$0xff]
      %v1560 = vld [vmem:[%s3 + $0x248] sm:$0xff]
      %v1561 = vld [vmem:[%s3 + $0x250] sm:$0xff]
      %v1562 = vld [vmem:[%s3 + $0x258] sm:$0xff]
      %v1563 = vld [vmem:[%s3 + $0x260] sm:$0xff]
      %v1564 = vld [vmem:[%s3 + $0x268] sm:$0xff]
      %v1565 = vld [vmem:[%s3 + $0x270] sm:$0xff]
      %v1566 = vld [vmem:[%s3 + $0x278] sm:$0xff]
      %1567 = vmatprep.subr.mxu0 0.0
      %1568 = vmatpush1.msra.mxu0 %v1487
      %1569 = vmatprep.subr.mxu0 0.0
      %1570 = vmatpush1.msra.mxu0 %v1488
      %1571 = vmatprep.subr.mxu0 0.0
      %1572 = vmatpush1.msra.mxu0 %v1489
      %1573 = vmatprep.subr.mxu0 0.0
      %1574 = vmatpush1.msra.mxu0 %v1490
      %1575 = vmatprep.subr.mxu0 0.0
      %1576 = vmatpush1.msra.mxu0 %v1491
      %1577 = vmatprep.subr.mxu0 0.0
      %1578 = vmatpush1.msra.mxu0 %v1492
      %1579 = vmatprep.subr.mxu0 0.0
      %1580 = vmatpush1.msra.mxu0 %v1493
      %1581 = vmatprep.subr.mxu0 0.0
      %1582 = vmatpush1.msra.mxu0 %v1494
      %1583 = vmatprep.subr.mxu0 0.0
      %1584 = vmatpush1.msra.mxu0 %v1495
      %1585 = vmatprep.subr.mxu0 0.0
      %1586 = vmatpush1.msra.mxu0 %v1496
      %1587 = vmatprep.subr.mxu0 0.0
      %1588 = vmatpush1.msra.mxu0 %v1497
      %1589 = vmatprep.subr.mxu0 0.0
      %1590 = vmatpush1.msra.mxu0 %v1498
      %1591 = vmatprep.subr.mxu0 0.0
      %1592 = vmatpush1.msra.mxu0 %v1499
      %1593 = vmatprep.subr.mxu0 0.0
      %1594 = vmatpush1.msra.mxu0 %v1500
      %1595 = vmatprep.subr.mxu0 0.0
      %1596 = vmatpush1.msra.mxu0 %v1501
      %1597 = vmatprep.subr.mxu0 0.0
      %1598 = vmatpush1.msra.mxu0 %v1502
      %1599 = vmatprep.subr.mxu0 0.0
      %1600 = vmatpush1.msra.mxu0 %v1503
      %1601 = vmatprep.subr.mxu0 0.0
      %1602 = vmatpush1.msra.mxu0 %v1504
      %1603 = vmatprep.subr.mxu0 0.0
      %1604 = vmatpush1.msra.mxu0 %v1505
      %1605 = vmatprep.subr.mxu0 0.0
      %1606 = vmatpush1.msra.mxu0 %v1506
      %1607 = vmatprep.subr.mxu0 0.0
      %1608 = vmatpush1.msra.mxu0 %v1507
      %1609 = vmatprep.subr.mxu0 0.0
      %1610 = vmatpush1.msra.mxu0 %v1508
      %1611 = vmatprep.subr.mxu0 0.0
      %1612 = vmatpush1.msra.mxu0 %v1509
      %1613 = vmatprep.subr.mxu0 0.0
      %1614 = vmatpush1.msra.mxu0 %v1510
      %1615 = vmatprep.subr.mxu0 0.0
      %1616 = vmatpush1.msra.mxu0 %v1511
      %1617 = vmatprep.subr.mxu0 0.0
      %1618 = vmatpush1.msra.mxu0 %v1512
      %1619 = vmatprep.subr.mxu0 0.0
      %1620 = vmatpush1.msra.mxu0 %v1513
      %1621 = vmatprep.subr.mxu0 0.0
      %1622 = vmatpush1.msra.mxu0 %v1514
      %1623 = vmatprep.subr.mxu0 0.0
      %1624 = vmatpush1.msra.mxu0 %v1515
      %1625 = vmatprep.subr.mxu0 0.0
      %1626 = vmatpush1.msra.mxu0 %v1516
      %1627 = vmatprep.subr.mxu0 0.0
      %1628 = vmatpush1.msra.mxu0 %v1517
      %1629 = vmatprep.subr.mxu0 0.0
      %1630 = vmatpush1.msra.mxu0 %v1518
      %1631 = vmatprep.mubr.f32.mxu0 %v1321
      %1632 = vmatmul.mubr.f32.gmra.mrb[0].mxu0 %v1319
      %v1633 = vpop.f32.mrb[0].mxu0
      %v1634 = vadd.f32 0.0, %v1633
      %v1635 = vpop.f32.mrb[0].mxu0
      %1636 = vdwg.mxu0
      %1637 = vmatprep.subr.mxu0 0.0
      %1638 = vmatpush1.msra.mxu0 %v1519
      %1639 = vmatprep.subr.mxu0 0.0
      %1640 = vmatpush1.msra.mxu0 %v1520
      %1641 = vmatprep.subr.mxu0 0.0
      %1642 = vmatpush1.msra.mxu0 %v1521
      %1643 = vmatprep.subr.mxu0 0.0
      %1644 = vmatpush1.msra.mxu0 %v1522
      %1645 = vmatprep.subr.mxu0 0.0
      %1646 = vmatpush1.msra.mxu0 %v1523
      %1647 = vmatprep.subr.mxu0 0.0
      %1648 = vmatpush1.msra.mxu0 %v1524
      %1649 = vmatprep.subr.mxu0 0.0
      %1650 = vmatpush1.msra.mxu0 %v1525
      %1651 = vmatprep.subr.mxu0 0.0
      %1652 = vmatpush1.msra.mxu0 %v1526
      %1653 = vmatprep.subr.mxu0 0.0
      %1654 = vmatpush1.msra.mxu0 %v1527
      %1655 = vmatprep.subr.mxu0 0.0
      %1656 = vmatpush1.msra.mxu0 %v1528
      %1657 = vmatprep.subr.mxu0 0.0
      %1658 = vmatpush1.msra.mxu0 %v1529
      %1659 = vmatprep.subr.mxu0 0.0
      %1660 = vmatpush1.msra.mxu0 %v1530
      %1661 = vmatprep.subr.mxu0 0.0
      %1662 = vmatpush1.msra.mxu0 %v1531
      %1663 = vmatprep.subr.mxu0 0.0
      %1664 = vmatpush1.msra.mxu0 %v1532
      %1665 = vmatprep.subr.mxu0 0.0
      %1666 = vmatpush1.msra.mxu0 %v1533
      %1667 = vmatprep.subr.mxu0 0.0
      %1668 = vmatpush1.msra.mxu0 %v1534
      %1669 = vmatprep.subr.mxu0 0.0
      %1670 = vmatpush1.msra.mxu0 %v1535
      %1671 = vmatprep.subr.mxu0 0.0
      %1672 = vmatpush1.msra.mxu0 %v1536
      %1673 = vmatprep.subr.mxu0 0.0
      %1674 = vmatpush1.msra.mxu0 %v1537
      %1675 = vmatprep.subr.mxu0 0.0
      %1676 = vmatpush1.msra.mxu0 %v1538
      %1677 = vmatprep.subr.mxu0 0.0
      %1678 = vmatpush1.msra.mxu0 %v1539
      %1679 = vmatprep.subr.mxu0 0.0
      %1680 = vmatpush1.msra.mxu0 %v1540
      %1681 = vmatprep.subr.mxu0 0.0
      %1682 = vmatpush1.msra.mxu0 %v1541
      %1683 = vmatprep.subr.mxu0 0.0
      %1684 = vmatpush1.msra.mxu0 %v1542
      %1685 = vmatprep.subr.mxu0 0.0
      %1686 = vmatpush1.msra.mxu0 %v1543
      %1687 = vmatprep.subr.mxu0 0.0
      %1688 = vmatpush1.msra.mxu0 %v1544
      %1689 = vmatprep.subr.mxu0 0.0
      %1690 = vmatpush1.msra.mxu0 %v1545
      %1691 = vmatprep.subr.mxu0 0.0
      %1692 = vmatpush1.msra.mxu0 %v1546
      %1693 = vmatprep.subr.mxu0 0.0
      %1694 = vmatpush1.msra.mxu0 %v1547
      %1695 = vmatprep.subr.mxu0 0.0
      %1696 = vmatpush1.msra.mxu0 %v1548
      %1697 = vmatprep.subr.mxu0 0.0
      %1698 = vmatpush1.msra.mxu0 %v1549
      %1699 = vmatprep.subr.mxu0 0.0
      %1700 = vmatpush1.msra.mxu0 %v1550
      %1701 = vmatprep.mubr.f32.mxu0 %v1403
      %1702 = vmatmul.mubr.f32.gmra.mrb[0].mxu0 %v1401
      %v1703 = vpop.f32.mrb[0].mxu0
      %v1704 = vadd.f32 %v1634, %v1703
      %v1705 = vpop.f32.mrb[0].mxu0
      %1706 = vdwg.mxu0
      %1707 = vmatprep.subr.mxu0 0.0
      %1708 = vmatpush1.msra.mxu0 %v1551
      %1709 = vmatprep.subr.mxu0 0.0
      %1710 = vmatpush1.msra.mxu0 %v1552
      %1711 = vmatprep.subr.mxu0 0.0
      %1712 = vmatpush1.msra.mxu0 %v1553
      %1713 = vmatprep.subr.mxu0 0.0
      %1714 = vmatpush1.msra.mxu0 %v1554
      %1715 = vmatprep.subr.mxu0 0.0
      %1716 = vmatpush1.msra.mxu0 %v1555
      %1717 = vmatprep.subr.mxu0 0.0
      %1718 = vmatpush1.msra.mxu0 %v1556
      %1719 = vmatprep.subr.mxu0 0.0
      %1720 = vmatpush1.msra.mxu0 %v1557
      %1721 = vmatprep.subr.mxu0 0.0
      %1722 = vmatpush1.msra.mxu0 %v1558
      %1723 = vmatprep.subr.mxu0 0.0
      %1724 = vmatpush1.msra.mxu0 %v1559
      %1725 = vmatprep.subr.mxu0 0.0
      %1726 = vmatpush1.msra.mxu0 %v1560
      %1727 = vmatprep.subr.mxu0 0.0
      %1728 = vmatpush1.msra.mxu0 %v1561
      %1729 = vmatprep.subr.mxu0 0.0
      %1730 = vmatpush1.msra.mxu0 %v1562
      %1731 = vmatprep.subr.mxu0 0.0
      %1732 = vmatpush1.msra.mxu0 %v1563
      %1733 = vmatprep.subr.mxu0 0.0
      %1734 = vmatpush1.msra.mxu0 %v1564
      %1735 = vmatprep.subr.mxu0 0.0
      %1736 = vmatpush1.msra.mxu0 %v1565
      %1737 = vmatprep.subr.mxu0 0.0
      %1738 = vmatpush1.msra.mxu0 %v1566
      %1739 = vmatprep.subr.mxu0 0.0
      %1740 = vmatpush1.msra.mxu0 0.0
      %1741 = vmatprep.subr.mxu0 0.0
      %1742 = vmatpush1.msra.mxu0 0.0
      %1743 = vmatprep.subr.mxu0 0.0
      %1744 = vmatpush1.msra.mxu0 0.0
      %1745 = vmatprep.subr.mxu0 0.0
      %1746 = vmatpush1.msra.mxu0 0.0
      %1747 = vmatprep.subr.mxu0 0.0
      %1748 = vmatpush1.msra.mxu0 0.0
      %1749 = vmatprep.subr.mxu0 0.0
      %1750 = vmatpush1.msra.mxu0 0.0
      %1751 = vmatprep.subr.mxu0 0.0
      %1752 = vmatpush1.msra.mxu0 0.0
      %1753 = vmatprep.subr.mxu0 0.0
      %1754 = vmatpush1.msra.mxu0 0.0
      %1755 = vmatprep.subr.mxu0 0.0
      %1756 = vmatpush1.msra.mxu0 0.0
      %1757 = vmatprep.subr.mxu0 0.0
      %1758 = vmatpush1.msra.mxu0 0.0
      %1759 = vmatprep.subr.mxu0 0.0
      %1760 = vmatpush1.msra.mxu0 0.0
      %1761 = vmatprep.subr.mxu0 0.0
      %1762 = vmatpush1.msra.mxu0 0.0
      %1763 = vmatprep.subr.mxu0 0.0
      %1764 = vmatpush1.msra.mxu0 0.0
      %1765 = vmatprep.subr.mxu0 0.0
      %1766 = vmatpush1.msra.mxu0 0.0
      %1767 = vmatprep.subr.mxu0 0.0
      %1768 = vmatpush1.msra.mxu0 0.0
      %1769 = vmatprep.subr.mxu0 0.0
      %1770 = vmatpush1.msra.mxu0 0.0
      %1771 = vmatprep.mubr.f32.mxu0 0.0
      %1772 = vmatmul.mubr.f32.gmra.mrb[0].mxu0 %v1482
      %v1773 = vpop.f32.mrb[0].mxu0
      %v1774 = vadd.f32 %v1704, %v1773
      %v1775 = vpop.f32.mrb[0].mxu0
      %1776 = vdwg.mxu0
      %1777 = vst [vmem:[%s195] sm:$0xff] %v1774
      %p1778 = scmp.lt.s32.totalorder %s15, 1
      %s1779 = scalar_select %p1778, %s15, 1
      %s1780 = smul.addr %s1779, 8
      %s1781 = scalar_lea.vmem %s4, %s1780
      // Predicated region
      $region37: #{discriminator_forward.9} parent=35 // pred_check
        %p1782 = pneg %p122
      $region38: #{discriminator_forward.9} parent=35 // pred_check_branch
        %1784 = sbr.rel (%p1782) target = $region40
      $region39: #{discriminator_forward.9} parent=35 // pred_region
        _
      $region40: #{discriminator_forward.9} parent=35 // pred_fallthru
        _
    $region36: #{discriminator_forward.9} parent=5 // pred_fallthru
      _
    %p1785 = scmp.le.s32.totalorder 2, %s10
    // Predicated region
    $region41: #{discriminator_forward.9} parent=5 // pred_check
      %p1786 = pneg %p1785
    $region42: #{discriminator_forward.9} parent=5 // pred_check_branch
      %1788 = sbr.rel (%p1786) target = $region44
    $region43: #{discriminator_forward.9} parent=5 // pred_region
      %s1789 = ssub.s32 %s10, 2
      // Predicated region
      $region45: #{discriminator_forward.9} parent=43 // pred_check
        %p1790 = pneg %p128
      $region46: #{discriminator_forward.9} parent=43 // pred_check_branch
        %1792 = sbr.rel (%p1790) target = $region48
      $region47: #{discriminator_forward.9} parent=43 // pred_region
        %p1793 = scmp.lt.s32.totalorder %s16, 1
        %s1794 = scalar_select %p1793, %s16, 1
        %s1795 = smul.addr %s1794, 8
        %s1796 = scalar_lea.vmem %s4, %s1795
      $region48: #{discriminator_forward.9} parent=43 // pred_fallthru
        _
    $region44: #{discriminator_forward.9} parent=5 // pred_fallthru
      _
  $region6: #{discriminator_forward.9} parent=0 // loop_footer
    %s14 = sadd.s32 1, %s10
  $region7: #{discriminator_forward.9} parent=0 // loop_footer_branch
    %9 = sbr.rel target = $region3
  $region8: #{discriminator_forward.9} parent=0 // loop_exit
    _

</llo_original>
